<compile_context>
chip_gen: v7x
topology: tpu7x:2x2x1
jax: 0.10.0
libtpu: 0.0.40
codegen_flags: <defaults>
</compile_context>

<pallas_src>
import jax
import jax.numpy as jnp
from jax import lax
from jax.experimental import pallas as pl
from jax.experimental.pallas import tpu as pltpu

_HIGHEST = lax.Precision.HIGHEST


def cbam_kernel(x_ref, w1_ref, w2_ref, ksp_ref, o_ref, y_sc, sp_sc):
    """Fused CBAM forward for one (Bblk, C, HW) block.

    x_ref, o_ref: (Bblk, C, HW)
    w1_ref: (Ch, C)       channel-MLP fc1 (1x1 conv weight, squeezed, no bias)
    w2_ref: (C, Ch)       channel-MLP fc2
    ksp_ref: (2*HW, HW)   dense Toeplitz form of the 7x7 spatial conv; rows [0, HW)
                          are the channel-mean map taps with 1/C folded in, rows
                          [HW, 2*HW) are the channel-max map taps.
    y_sc:  (C, 2*Bblk)    VMEM scratch: pooled channel stats, cols [avg_0..avg_{B-1},
                          max_0..max_{B-1}]
    sp_sc: (Bblk, 2*HW)   VMEM scratch: per-row [channel-sum | channel-max] maps.
    """
    bblk, c, hw = x_ref.shape
    inv_hw = 1.0 / hw

    # ---- pass 1: per-row pooled channel stats (one (C,HW) row live at a time) ----
    for b in range(bblk):
        x = x_ref[b]                                                    # (C, HW)
        y_sc[:, b:b + 1] = (jnp.sum(x, axis=-1, keepdims=True)
                            * inv_hw).astype(jnp.float32)               # avg column
        y_sc[:, bblk + b:bblk + b + 1] = jnp.max(
            x, axis=-1, keepdims=True).astype(jnp.float32)              # max column

    # ---- batched channel MLP: exactly 2 MXU matmuls for the whole block ----
    h = jnp.maximum(
        jnp.dot(w1_ref[...], y_sc[...], precision=_HIGHEST,
                preferred_element_type=jnp.float32), 0.0)               # (Ch, 2*Bblk)
    h = h[:, :bblk] + h[:, bblk:]                                       # relu(avg)+relu(max)
    ca = jax.nn.sigmoid(
        jnp.dot(w2_ref[...], h, precision=_HIGHEST,
                preferred_element_type=jnp.float32))                    # (C, Bblk)

    # ---- pass 2: spatial stats of x*ca per row (stacked along contraction axis) ----
    for b in range(bblk):
        x_ca = x_ref[b] * ca[:, b:b + 1]                                # (C, HW), lane bcast
        sp_sc[b:b + 1, 0:hw] = jnp.sum(
            x_ca, axis=0, keepdims=True).astype(jnp.float32)            # 1/C folded in ksp
        sp_sc[b:b + 1, hw:2 * hw] = jnp.max(
            x_ca, axis=0, keepdims=True).astype(jnp.float32)

    # ---- batched spatial conv: ONE (Bblk, 2*HW) @ (2*HW, HW) MXU matmul ----
    sa = jax.nn.sigmoid(
        jnp.dot(sp_sc[...], ksp_ref[...], precision=_HIGHEST,
                preferred_element_type=jnp.float32))                    # (Bblk, HW)

    # ---- pass 3: apply both gates, lane-dense unmasked stores ----
    for b in range(bblk):
        o_ref[b] = (x_ref[b] * ca[:, b:b + 1] * sa[b:b + 1, :]).astype(o_ref.dtype)


def build_spatial_conv_matrix(w_sp, H, W, C):
    """(2*HW, HW) stacked Toeplitz form of Conv2d(2, 1, k, padding=k//2, bias=False).

    out_flat = [chan_sum | chan_max] @ K reproduces the PyTorch conv on
    [mean_c, max_c]; the 1/C of the channel mean is folded into the first HW rows.
    """
    k = w_sp.shape[-1]
    p = k // 2
    w = w_sp.reshape(2, k, k).astype(jnp.float32)
    hi = jnp.arange(H)[:, None, None, None]
    wi = jnp.arange(W)[None, :, None, None]
    hj = jnp.arange(H)[None, None, :, None]
    wj = jnp.arange(W)[None, None, None, :]
    dh = hi - hj + p                                   # conv-kernel row index
    dw = wi - wj + p                                   # conv-kernel col index
    valid = (dh >= 0) & (dh < k) & (dw >= 0) & (dw < k)
    tap = w[:, jnp.clip(dh, 0, k - 1), jnp.clip(dw, 0, k - 1)]   # (2, H, W, H, W)
    kmats = jnp.where(valid[None], tap, 0.0).reshape(2, H * W, H * W)
    return jnp.concatenate([kmats[0] * (1.0 / C), kmats[1]], axis=0)   # (2*HW, HW)


def _chip_info():
    """Returns (multi_core_chip, vmem_capacity_bytes) with conservative fallbacks."""
    kind = ""
    try:
        kind = jax.devices()[0].device_kind.lower()
    except Exception:
        pass
    multi_core = any(tag in kind for tag in ("v7", "v4", "v5p"))
    vmem_cap = 64 * 1024 * 1024 if "v7" in kind else 128 * 1024 * 1024
    try:
        info = pltpu.get_tpu_info()
        cap = getattr(info, "vmem_capacity_bytes", None)
        if cap:
            vmem_cap = int(cap)
    except Exception:
        pass
    return multi_core, vmem_cap


def cbam_block_pallas(x, w1, w2, w_sp):
    """x: (B, C, H, W) f32.  w1: (C//r, C), w2: (C, C//r) (1x1-conv layout, no bias).
    w_sp: (1, 2, k, k) spatial-attention conv weight (OIHW, no bias)."""
    B, C, H, W = x.shape
    HW = H * W
    Ch = w1.shape[0]
    itemsize = jnp.dtype(x.dtype).itemsize

    x_flat = x.reshape(B, C, HW)
    ksp = build_spatial_conv_matrix(w_sp, H, W, C)          # (2*HW, HW)

    multi_core, vmem_cap = _chip_info()

    # TODO(synk): for large feature maps (HW >~ 1k) the dense Toeplitz matrix is
    # O(HW^2) VMEM/FLOPs (8 MiB at HW=1024, ~79 MiB at HW=3136) and stops fitting
    # VMEM earliest on v7x (64 MiB); switch the spatial conv to 49 shifted
    # multiply-accumulates (pltpu.roll + boundary masks) and chunk HW with an
    # inner "arbitrary" grid axis (two-pass stats-then-scale) for those shapes.

    # --- block-size selection, per TPU generation ---
    per_row = C * HW * itemsize
    target = (2 if multi_core else 4) * 1024 * 1024         # bytes per grid step
    bblk = max(1, min(B, target // max(per_row, 1), 16))
    if multi_core and B >= 2:
        bblk = min(bblk, -(-B // 2))                         # keep >= 2 steps for 2 TCs

    ksp_bytes = int(ksp.size) * 4
    w_bytes = 2 * C * Ch * 4
    if multi_core:
        vmem_ceiling = min(56 * 1024 * 1024, vmem_cap - 8 * 1024 * 1024)
    else:
        vmem_ceiling = min(100 * 1024 * 1024, vmem_cap - 16 * 1024 * 1024)
    vmem_ceiling = max(vmem_ceiling, 24 * 1024 * 1024)

    def vmem_need(nb, const_copies):
        blk = nb * C * HW * itemsize
        scratch = (C * 2 * nb + nb * 2 * HW) * 4
        return 4 * blk + const_copies * (ksp_bytes + w_bytes) + scratch + (2 << 20)

    while bblk > 1 and vmem_need(bblk, 1) > vmem_ceiling:
        bblk -= 1
    bblk = int(bblk)
    # cdiv grid: uneven B gets a masked partial last block (padded rows only affect
    # their own discarded outputs).
    grid = (pl.cdiv(B, bblk),)

    def run(single_buffer_consts):
        const_kwargs = {}
        if single_buffer_consts and hasattr(pl, "Buffered"):
            const_kwargs["pipeline_mode"] = pl.Buffered(1)   # constants DMA'd once
        in_specs = [
            pl.BlockSpec((bblk, C, HW), lambda b: (b, 0, 0)),
            pl.BlockSpec((Ch, C), lambda b: (0, 0), **const_kwargs),
            pl.BlockSpec((C, Ch), lambda b: (0, 0), **const_kwargs),
            pl.BlockSpec((2 * HW, HW), lambda b: (0, 0), **const_kwargs),
        ]
        vmem_bytes = int(min(max(vmem_need(bblk, 1 if single_buffer_consts else 2),
                                 16 * 1024 * 1024), vmem_ceiling))
        return pl.pallas_call(
            cbam_kernel,
            out_shape=jax.ShapeDtypeStruct((B, C, HW), x.dtype),
            grid_spec=pltpu.PrefetchScalarGridSpec(
                num_scalar_prefetch=0,
                grid=grid,
                in_specs=in_specs,
                out_specs=pl.BlockSpec((bblk, C, HW), lambda b: (b, 0, 0)),
                scratch_shapes=[
                    pltpu.VMEM((C, 2 * bblk), jnp.float32),   # pooled channel stats
                    pltpu.VMEM((bblk, 2 * HW), jnp.float32),  # stacked spatial maps
                ],
            ),
            compiler_params=pltpu.CompilerParams(
                dimension_semantics=("parallel",),
                vmem_limit_bytes=vmem_bytes,
            ),
        )(x_flat, w1, w2, ksp)

    try:
        out_flat = run(True)
    except Exception:
        # Fallback for JAX builds that reject single-buffered constant operands.
        out_flat = run(False)
    return out_flat.reshape(B, C, H, W)


def cbam_block_ref(x, w1, w2, w_sp):
    """Pure-JAX reference matching the PyTorch cbam_block forward."""
    avg = jnp.mean(x, axis=(2, 3))                       # (B, C)
    mx = jnp.max(x, axis=(2, 3))                         # (B, C)

    def mlp(v):
        h = jnp.maximum(jnp.dot(v, w1.T, precision=_HIGHEST), 0.0)
        return jnp.dot(h, w2.T, precision=_HIGHEST)

    ca = jax.nn.sigmoid(mlp(avg) + mlp(mx))              # (B, C)
    x = x * ca[:, :, None, None]

    sp = jnp.concatenate([jnp.mean(x, axis=1, keepdims=True),
                          jnp.max(x, axis=1, keepdims=True)], axis=1)   # (B, 2, H, W)
    p = w_sp.shape[-1] // 2
    sa = lax.conv_general_dilated(
        sp, w_sp, window_strides=(1, 1), padding=((p, p), (p, p)),
        dimension_numbers=("NCHW", "OIHW", "NCHW"), precision=_HIGHEST)
    return x * jax.nn.sigmoid(sa)


if __name__ == "__main__":
    key = jax.random.PRNGKey(0)
    B, C, H, W = 2, 64, 16, 16          # HW = 256 -> lane-dense last dim
    ratio, ksize = 8, 7                 # cbam_block defaults
    Ch = C // ratio

    kx, k1, k2, k3 = jax.random.split(key, 4)
    x = jax.random.normal(kx, (B, C, H, W), dtype=jnp.float32)
    # Weights in the PyTorch layouts: fc1/fc2 are bias-free 1x1 convs (out, in);
    # the spatial conv is Conv2d(2, 1, 7, padding=3, bias=False) -> (1, 2, 7, 7).
    w1 = jax.random.normal(k1, (Ch, C), dtype=jnp.float32) * (1.0 / jnp.sqrt(C))
    w2 = jax.random.normal(k2, (C, Ch), dtype=jnp.float32) * (1.0 / jnp.sqrt(Ch))
    w_sp = jax.random.normal(k3, (1, 2, ksize, ksize), dtype=jnp.float32) * (
        1.0 / jnp.sqrt(2.0 * ksize * ksize))

    out = jax.block_until_ready(cbam_block_pallas(x, w1, w2, w_sp))
    ref = jax.block_until_ready(cbam_block_ref(x, w1, w2, w_sp))

    assert out.shape == (B, C, H, W)
    max_err = float(jnp.max(jnp.abs(out - ref)))
    assert jnp.allclose(out, ref, atol=1e-4, rtol=1e-4), (
        f"mismatch vs reference (max abs err {max_err})")
    print("KERNEL_OK")
</pallas_src>

<mosaic_0001>
module attributes {stable_mosaic.version = 11 : i64} {
  func.func @cbam_kernel(%arg0: i32, %arg1: memref<2x64x256xf32, #tpu.memory_space<vmem>>, %arg2: memref<8x64xf32, #tpu.memory_space<vmem>>, %arg3: memref<64x8xf32, #tpu.memory_space<vmem>>, %arg4: memref<512x256xf32, #tpu.memory_space<vmem>>, %arg5: memref<2x64x256xf32, #tpu.memory_space<vmem>>, %arg6: memref<64x4xf32, #tpu.memory_space<vmem>>, %arg7: memref<2x512xf32, #tpu.memory_space<vmem>>) attributes {dimension_semantics = [#tpu.dimension_semantics<parallel>], iteration_bounds = array<i64: 1>, scalar_prefetch = 0 : i64, scratch_operands = 2 : i64, tpu.core_type = #tpu.core_type<tc>, window_params = [{transform_indices = @transform_0, window_bounds = array<i64: 2, 64, 256>}, {pipeline_mode = #tpu.pipeline_mode<synchronous>, transform_indices = @transform_1, window_bounds = array<i64: 8, 64>}, {pipeline_mode = #tpu.pipeline_mode<synchronous>, transform_indices = @transform_2, window_bounds = array<i64: 64, 8>}, {pipeline_mode = #tpu.pipeline_mode<synchronous>, transform_indices = @transform_3, window_bounds = array<i64: 512, 256>}, {transform_indices = @transform_4, window_bounds = array<i64: 2, 64, 256>}]} {
    %c0 = arith.constant 0 : index
    %c0_0 = arith.constant 0 : index
    %c0_1 = arith.constant 0 : index
    %0 = vector.load %arg1[%c0, %c0_0, %c0_1] : memref<2x64x256xf32, #tpu.memory_space<vmem>>, vector<1x64x256xf32>
    %1 = vector.shape_cast %0 : vector<1x64x256xf32> to vector<64x256xf32>
    %cst = arith.constant dense<0.000000e+00> : vector<64xf32>
    %2 = vector.multi_reduction <add>, %1, %cst [1] : vector<64x256xf32> to vector<64xf32>
    %3 = vector.shape_cast %2 : vector<64xf32> to vector<64x1xf32>
    %cst_2 = arith.constant 3.906250e-03 : f32
    %4 = vector.broadcast %cst_2 : f32 to vector<64x1xf32>
    %5 = arith.mulf %3, %4 : vector<64x1xf32>
    %c0_3 = arith.constant 0 : index
    %c0_4 = arith.constant 0 : index
    %6 = vector.load %arg6[%c0_3, %c0_4] : memref<64x4xf32, #tpu.memory_space<vmem>>, vector<64x1xf32>
    tpu.vector_store %arg6[%c0_3, %c0_4], %5 {strides = array<i32>} : memref<64x4xf32, #tpu.memory_space<vmem>>, vector<64x1xf32>,
    %cst_5 = arith.constant dense<0xFF800000> : vector<64xf32>
    %7 = vector.multi_reduction <maximumf>, %1, %cst_5 [1] : vector<64x256xf32> to vector<64xf32>
    %8 = vector.shape_cast %7 : vector<64xf32> to vector<64x1xf32>
    %c0_6 = arith.constant 0 : index
    %c2 = arith.constant 2 : index
    %9 = vector.load %arg6[%c0_6, %c2] : memref<64x4xf32, #tpu.memory_space<vmem>>, vector<64x1xf32>
    tpu.vector_store %arg6[%c0_6, %c2], %8 {strides = array<i32>} : memref<64x4xf32, #tpu.memory_space<vmem>>, vector<64x1xf32>,
    %c1 = arith.constant 1 : index
    %c0_7 = arith.constant 0 : index
    %c0_8 = arith.constant 0 : index
    %10 = vector.load %arg1[%c1, %c0_7, %c0_8] : memref<2x64x256xf32, #tpu.memory_space<vmem>>, vector<1x64x256xf32>
    %11 = vector.shape_cast %10 : vector<1x64x256xf32> to vector<64x256xf32>
    %cst_9 = arith.constant dense<0.000000e+00> : vector<64xf32>
    %12 = vector.multi_reduction <add>, %11, %cst_9 [1] : vector<64x256xf32> to vector<64xf32>
    %13 = vector.shape_cast %12 : vector<64xf32> to vector<64x1xf32>
    %cst_10 = arith.constant 3.906250e-03 : f32
    %14 = vector.broadcast %cst_10 : f32 to vector<64x1xf32>
    %15 = arith.mulf %13, %14 : vector<64x1xf32>
    %c0_11 = arith.constant 0 : index
    %c1_12 = arith.constant 1 : index
    %16 = vector.load %arg6[%c0_11, %c1_12] : memref<64x4xf32, #tpu.memory_space<vmem>>, vector<64x1xf32>
    tpu.vector_store %arg6[%c0_11, %c1_12], %15 {strides = array<i32>} : memref<64x4xf32, #tpu.memory_space<vmem>>, vector<64x1xf32>,
    %cst_13 = arith.constant dense<0xFF800000> : vector<64xf32>
    %17 = vector.multi_reduction <maximumf>, %11, %cst_13 [1] : vector<64x256xf32> to vector<64xf32>
    %18 = vector.shape_cast %17 : vector<64xf32> to vector<64x1xf32>
    %c0_14 = arith.constant 0 : index
    %c3 = arith.constant 3 : index
    %19 = vector.load %arg6[%c0_14, %c3] : memref<64x4xf32, #tpu.memory_space<vmem>>, vector<64x1xf32>
    tpu.vector_store %arg6[%c0_14, %c3], %18 {strides = array<i32>} : memref<64x4xf32, #tpu.memory_space<vmem>>, vector<64x1xf32>,
    %c0_15 = arith.constant 0 : index
    %c0_16 = arith.constant 0 : index
    %20 = vector.load %arg2[%c0_15, %c0_16] : memref<8x64xf32, #tpu.memory_space<vmem>>, vector<8x64xf32>
    %c0_17 = arith.constant 0 : index
    %c0_18 = arith.constant 0 : index
    %21 = vector.load %arg6[%c0_17, %c0_18] : memref<64x4xf32, #tpu.memory_space<vmem>>, vector<64x4xf32>
    %cst_19 = arith.constant dense<0.000000e+00> : vector<8x4xf32>
    %22 = tpu.matmul %20, %21, %cst_19 {dimension_numbers = #tpu.dot_dimension_numbers<[1], [0], [0], [1], [0, 0, 1, 1], [], []>, precision = #tpu.contract_precision<fp32>} : vector<8x64xf32>, vector<64x4xf32>, vector<8x4xf32> -> vector<8x4xf32>
    %cst_20 = arith.constant 0.000000e+00 : f32
    %23 = vector.broadcast %cst_20 : f32 to vector<8x4xf32>
    %24 = arith.maximumf %22, %23 : vector<8x4xf32>
    %25 = vector.extract_strided_slice %24 {offsets = [0, 0], sizes = [8, 2], strides = [1, 1]} : vector<8x4xf32> to vector<8x2xf32>
    %26 = vector.extract_strided_slice %24 {offsets = [0, 2], sizes = [8, 2], strides = [1, 1]} : vector<8x4xf32> to vector<8x2xf32>
    %27 = arith.addf %25, %26 : vector<8x2xf32>
    %c0_21 = arith.constant 0 : index
    %c0_22 = arith.constant 0 : index
    %28 = vector.load %arg3[%c0_21, %c0_22] : memref<64x8xf32, #tpu.memory_space<vmem>>, vector<64x8xf32>
    %cst_23 = arith.constant dense<0.000000e+00> : vector<64x2xf32>
    %29 = tpu.matmul %28, %27, %cst_23 {dimension_numbers = #tpu.dot_dimension_numbers<[1], [0], [0], [1], [0, 0, 1, 1], [], []>, precision = #tpu.contract_precision<fp32>} : vector<64x8xf32>, vector<8x2xf32>, vector<64x2xf32> -> vector<64x2xf32>
    %30 = arith.negf %29 : vector<64x2xf32>
    %31 = math.exp %30 : vector<64x2xf32>
    %cst_24 = arith.constant 1.000000e+00 : f32
    %32 = vector.broadcast %cst_24 : f32 to vector<64x2xf32>
    %33 = arith.addf %32, %31 : vector<64x2xf32>
    %34 = arith.divf %32, %33 : vector<64x2xf32>
    %c0_25 = arith.constant 0 : index
    %c0_26 = arith.constant 0 : index
    %c0_27 = arith.constant 0 : index
    %35 = vector.load %arg1[%c0_25, %c0_26, %c0_27] : memref<2x64x256xf32, #tpu.memory_space<vmem>>, vector<1x64x256xf32>
    %36 = vector.shape_cast %35 : vector<1x64x256xf32> to vector<64x256xf32>
    %37 = vector.extract_strided_slice %34 {offsets = [0, 0], sizes = [64, 1], strides = [1, 1]} : vector<64x2xf32> to vector<64x1xf32>
    %38 = vector.broadcast %37 : vector<64x1xf32> to vector<64x256xf32>
    %39 = arith.mulf %36, %38 : vector<64x256xf32>
    %cst_28 = arith.constant dense<0.000000e+00> : vector<256xf32>
    %40 = vector.multi_reduction <add>, %39, %cst_28 [0] : vector<64x256xf32> to vector<256xf32>
    %41 = vector.shape_cast %40 : vector<256xf32> to vector<1x256xf32>
    %c0_29 = arith.constant 0 : index
    %c0_30 = arith.constant 0 : index
    %42 = vector.load %arg7[%c0_29, %c0_30] : memref<2x512xf32, #tpu.memory_space<vmem>>, vector<1x256xf32>
    tpu.vector_store %arg7[%c0_29, %c0_30], %41 {strides = array<i32>} : memref<2x512xf32, #tpu.memory_space<vmem>>, vector<1x256xf32>,
    %cst_31 = arith.constant dense<0xFF800000> : vector<256xf32>
    %43 = vector.multi_reduction <maximumf>, %39, %cst_31 [0] : vector<64x256xf32> to vector<256xf32>
    %44 = vector.shape_cast %43 : vector<256xf32> to vector<1x256xf32>
    %c0_32 = arith.constant 0 : index
    %c256 = arith.constant 256 : index
    %45 = vector.load %arg7[%c0_32, %c256] : memref<2x512xf32, #tpu.memory_space<vmem>>, vector<1x256xf32>
    tpu.vector_store %arg7[%c0_32, %c256], %44 {strides = array<i32>} : memref<2x512xf32, #tpu.memory_space<vmem>>, vector<1x256xf32>,
    %c1_33 = arith.constant 1 : index
    %c0_34 = arith.constant 0 : index
    %c0_35 = arith.constant 0 : index
    %46 = vector.load %arg1[%c1_33, %c0_34, %c0_35] : memref<2x64x256xf32, #tpu.memory_space<vmem>>, vector<1x64x256xf32>
    %47 = vector.shape_cast %46 : vector<1x64x256xf32> to vector<64x256xf32>
    %48 = vector.extract_strided_slice %34 {offsets = [0, 1], sizes = [64, 1], strides = [1, 1]} : vector<64x2xf32> to vector<64x1xf32>
    %49 = vector.broadcast %48 : vector<64x1xf32> to vector<64x256xf32>
    %50 = arith.mulf %47, %49 : vector<64x256xf32>
    %cst_36 = arith.constant dense<0.000000e+00> : vector<256xf32>
    %51 = vector.multi_reduction <add>, %50, %cst_36 [0] : vector<64x256xf32> to vector<256xf32>
    %52 = vector.shape_cast %51 : vector<256xf32> to vector<1x256xf32>
    %c1_37 = arith.constant 1 : index
    %c0_38 = arith.constant 0 : index
    %53 = vector.load %arg7[%c1_37, %c0_38] : memref<2x512xf32, #tpu.memory_space<vmem>>, vector<1x256xf32>
    tpu.vector_store %arg7[%c1_37, %c0_38], %52 {strides = array<i32>} : memref<2x512xf32, #tpu.memory_space<vmem>>, vector<1x256xf32>,
    %cst_39 = arith.constant dense<0xFF800000> : vector<256xf32>
    %54 = vector.multi_reduction <maximumf>, %50, %cst_39 [0] : vector<64x256xf32> to vector<256xf32>
    %55 = vector.shape_cast %54 : vector<256xf32> to vector<1x256xf32>
    %c1_40 = arith.constant 1 : index
    %c256_41 = arith.constant 256 : index
    %56 = vector.load %arg7[%c1_40, %c256_41] : memref<2x512xf32, #tpu.memory_space<vmem>>, vector<1x256xf32>
    tpu.vector_store %arg7[%c1_40, %c256_41], %55 {strides = array<i32>} : memref<2x512xf32, #tpu.memory_space<vmem>>, vector<1x256xf32>,
    %c0_42 = arith.constant 0 : index
    %c0_43 = arith.constant 0 : index
    %57 = vector.load %arg7[%c0_42, %c0_43] : memref<2x512xf32, #tpu.memory_space<vmem>>, vector<2x512xf32>
    %c0_44 = arith.constant 0 : index
    %c0_45 = arith.constant 0 : index
    %58 = vector.load %arg4[%c0_44, %c0_45] : memref<512x256xf32, #tpu.memory_space<vmem>>, vector<512x256xf32>
    %cst_46 = arith.constant dense<0.000000e+00> : vector<2x256xf32>
    %59 = tpu.matmul %57, %58, %cst_46 {dimension_numbers = #tpu.dot_dimension_numbers<[1], [0], [0], [1], [0, 0, 1, 1], [], []>, precision = #tpu.contract_precision<fp32>} : vector<2x512xf32>, vector<512x256xf32>, vector<2x256xf32> -> vector<2x256xf32>
    %60 = arith.negf %59 : vector<2x256xf32>
    %61 = math.exp %60 : vector<2x256xf32>
    %cst_47 = arith.constant 1.000000e+00 : f32
    %62 = vector.broadcast %cst_47 : f32 to vector<2x256xf32>
    %63 = arith.addf %62, %61 : vector<2x256xf32>
    %64 = arith.divf %62, %63 : vector<2x256xf32>
    %c0_48 = arith.constant 0 : index
    %c0_49 = arith.constant 0 : index
    %c0_50 = arith.constant 0 : index
    %65 = vector.load %arg1[%c0_48, %c0_49, %c0_50] : memref<2x64x256xf32, #tpu.memory_space<vmem>>, vector<1x64x256xf32>
    %66 = vector.shape_cast %65 : vector<1x64x256xf32> to vector<64x256xf32>
    %67 = vector.extract_strided_slice %34 {offsets = [0, 0], sizes = [64, 1], strides = [1, 1]} : vector<64x2xf32> to vector<64x1xf32>
    %68 = vector.broadcast %67 : vector<64x1xf32> to vector<64x256xf32>
    %69 = arith.mulf %66, %68 : vector<64x256xf32>
    %70 = vector.extract_strided_slice %64 {offsets = [0, 0], sizes = [1, 256], strides = [1, 1]} : vector<2x256xf32> to vector<1x256xf32>
    %71 = vector.broadcast %70 : vector<1x256xf32> to vector<64x256xf32>
    %72 = arith.mulf %69, %71 : vector<64x256xf32>
    %c0_51 = arith.constant 0 : index
    %c0_52 = arith.constant 0 : index
    %c0_53 = arith.constant 0 : index
    %73 = vector.load %arg5[%c0_51, %c0_52, %c0_53] : memref<2x64x256xf32, #tpu.memory_space<vmem>>, vector<1x64x256xf32>
    %74 = vector.shape_cast %73 : vector<1x64x256xf32> to vector<64x256xf32>
    %75 = vector.shape_cast %72 : vector<64x256xf32> to vector<1x64x256xf32>
    tpu.vector_store %arg5[%c0_51, %c0_52, %c0_53], %75 {strides = array<i32>} : memref<2x64x256xf32, #tpu.memory_space<vmem>>, vector<1x64x256xf32>,
    %c1_54 = arith.constant 1 : index
    %c0_55 = arith.constant 0 : index
    %c0_56 = arith.constant 0 : index
    %76 = vector.load %arg1[%c1_54, %c0_55, %c0_56] : memref<2x64x256xf32, #tpu.memory_space<vmem>>, vector<1x64x256xf32>
    %77 = vector.shape_cast %76 : vector<1x64x256xf32> to vector<64x256xf32>
    %78 = vector.extract_strided_slice %34 {offsets = [0, 1], sizes = [64, 1], strides = [1, 1]} : vector<64x2xf32> to vector<64x1xf32>
    %79 = vector.broadcast %78 : vector<64x1xf32> to vector<64x256xf32>
    %80 = arith.mulf %77, %79 : vector<64x256xf32>
    %81 = vector.extract_strided_slice %64 {offsets = [1, 0], sizes = [1, 256], strides = [1, 1]} : vector<2x256xf32> to vector<1x256xf32>
    %82 = vector.broadcast %81 : vector<1x256xf32> to vector<64x256xf32>
    %83 = arith.mulf %80, %82 : vector<64x256xf32>
    %c1_57 = arith.constant 1 : index
    %c0_58 = arith.constant 0 : index
    %c0_59 = arith.constant 0 : index
    %84 = vector.load %arg5[%c1_57, %c0_58, %c0_59] : memref<2x64x256xf32, #tpu.memory_space<vmem>>, vector<1x64x256xf32>
    %85 = vector.shape_cast %84 : vector<1x64x256xf32> to vector<64x256xf32>
    %86 = vector.shape_cast %83 : vector<64x256xf32> to vector<1x64x256xf32>
    tpu.vector_store %arg5[%c1_57, %c0_58, %c0_59], %86 {strides = array<i32>} : memref<2x64x256xf32, #tpu.memory_space<vmem>>, vector<1x64x256xf32>,
    return
  }
  func.func @transform_0(%arg0: i32) -> (i32, i32, i32) {
    %c0_i32 = arith.constant 0 : i32
    %c0_i32_0 = arith.constant 0 : i32
    %c0_i32_1 = arith.constant 0 : i32
    return %arg0, %c0_i32, %c0_i32_0 : i32, i32, i32
  }
  func.func @transform_1(%arg0: i32) -> (i32, i32) {
    %c0_i32 = arith.constant 0 : i32
    %c0_i32_0 = arith.constant 0 : i32
    %c0_i32_1 = arith.constant 0 : i32
    return %c0_i32, %c0_i32_0 : i32, i32
  }
  func.func @transform_2(%arg0: i32) -> (i32, i32) {
    %c0_i32 = arith.constant 0 : i32
    %c0_i32_0 = arith.constant 0 : i32
    %c0_i32_1 = arith.constant 0 : i32
    return %c0_i32, %c0_i32_0 : i32, i32
  }
  func.func @transform_3(%arg0: i32) -> (i32, i32) {
    %c0_i32 = arith.constant 0 : i32
    %c0_i32_0 = arith.constant 0 : i32
    %c0_i32_1 = arith.constant 0 : i32
    return %c0_i32, %c0_i32_0 : i32, i32
  }
  func.func @transform_4(%arg0: i32) -> (i32, i32, i32) {
    %c0_i32 = arith.constant 0 : i32
    %c0_i32_0 = arith.constant 0 : i32
    %c0_i32_1 = arith.constant 0 : i32
    return %arg0, %c0_i32, %c0_i32_0 : i32, i32, i32
  }
}

module attributes {stable_mosaic.version = 11 : i64} {
  func.func @cbam_kernel(%arg0: i32, %arg1: memref<2x64x256xf32, #tpu.memory_space<vmem>>, %arg2: memref<8x64xf32, #tpu.memory_space<vmem>>, %arg3: memref<64x8xf32, #tpu.memory_space<vmem>>, %arg4: memref<512x256xf32, #tpu.memory_space<vmem>>, %arg5: memref<2x64x256xf32, #tpu.memory_space<vmem>>, %arg6: memref<64x4xf32, #tpu.memory_space<vmem>>, %arg7: memref<2x512xf32, #tpu.memory_space<vmem>>) attributes {dimension_semantics = [#tpu.dimension_semantics<parallel>], iteration_bounds = array<i64: 1>, scalar_prefetch = 0 : i64, scratch_operands = 2 : i64, tpu.core_type = #tpu.core_type<tc>, window_params = [{transform_indices = @transform_0, window_bounds = array<i64: 2, 64, 256>}, {pipeline_mode = #tpu.pipeline_mode<synchronous>, transform_indices = @transform_1, window_bounds = array<i64: 8, 64>}, {pipeline_mode = #tpu.pipeline_mode<synchronous>, transform_indices = @transform_2, window_bounds = array<i64: 64, 8>}, {pipeline_mode = #tpu.pipeline_mode<synchronous>, transform_indices = @transform_3, window_bounds = array<i64: 512, 256>}, {transform_indices = @transform_4, window_bounds = array<i64: 2, 64, 256>}]} {
    %c0 = arith.constant 0 : index
    %c0_0 = arith.constant 0 : index
    %c0_1 = arith.constant 0 : index
    %0 = vector.load %arg1[%c0, %c0_0, %c0_1] : memref<2x64x256xf32, #tpu.memory_space<vmem>>, vector<1x64x256xf32>
    %1 = vector.shape_cast %0 : vector<1x64x256xf32> to vector<64x256xf32>
    %cst = arith.constant dense<0.000000e+00> : vector<64xf32>
    %2 = vector.multi_reduction <add>, %1, %cst [1] : vector<64x256xf32> to vector<64xf32>
    %3 = vector.shape_cast %2 : vector<64xf32> to vector<64x1xf32>
    %cst_2 = arith.constant 3.906250e-03 : f32
    %4 = vector.broadcast %cst_2 : f32 to vector<64x1xf32>
    %5 = arith.mulf %3, %4 : vector<64x1xf32>
    %c0_3 = arith.constant 0 : index
    %c0_4 = arith.constant 0 : index
    %6 = vector.load %arg6[%c0_3, %c0_4] : memref<64x4xf32, #tpu.memory_space<vmem>>, vector<64x1xf32>
    tpu.vector_store %arg6[%c0_3, %c0_4], %5 {strides = array<i32>} : memref<64x4xf32, #tpu.memory_space<vmem>>, vector<64x1xf32>,
    %cst_5 = arith.constant dense<0xFF800000> : vector<64xf32>
    %7 = vector.multi_reduction <maximumf>, %1, %cst_5 [1] : vector<64x256xf32> to vector<64xf32>
    %8 = vector.shape_cast %7 : vector<64xf32> to vector<64x1xf32>
    %c0_6 = arith.constant 0 : index
    %c2 = arith.constant 2 : index
    %9 = vector.load %arg6[%c0_6, %c2] : memref<64x4xf32, #tpu.memory_space<vmem>>, vector<64x1xf32>
    tpu.vector_store %arg6[%c0_6, %c2], %8 {strides = array<i32>} : memref<64x4xf32, #tpu.memory_space<vmem>>, vector<64x1xf32>,
    %c1 = arith.constant 1 : index
    %c0_7 = arith.constant 0 : index
    %c0_8 = arith.constant 0 : index
    %10 = vector.load %arg1[%c1, %c0_7, %c0_8] : memref<2x64x256xf32, #tpu.memory_space<vmem>>, vector<1x64x256xf32>
    %11 = vector.shape_cast %10 : vector<1x64x256xf32> to vector<64x256xf32>
    %cst_9 = arith.constant dense<0.000000e+00> : vector<64xf32>
    %12 = vector.multi_reduction <add>, %11, %cst_9 [1] : vector<64x256xf32> to vector<64xf32>
    %13 = vector.shape_cast %12 : vector<64xf32> to vector<64x1xf32>
    %cst_10 = arith.constant 3.906250e-03 : f32
    %14 = vector.broadcast %cst_10 : f32 to vector<64x1xf32>
    %15 = arith.mulf %13, %14 : vector<64x1xf32>
    %c0_11 = arith.constant 0 : index
    %c1_12 = arith.constant 1 : index
    %16 = vector.load %arg6[%c0_11, %c1_12] : memref<64x4xf32, #tpu.memory_space<vmem>>, vector<64x1xf32>
    tpu.vector_store %arg6[%c0_11, %c1_12], %15 {strides = array<i32>} : memref<64x4xf32, #tpu.memory_space<vmem>>, vector<64x1xf32>,
    %cst_13 = arith.constant dense<0xFF800000> : vector<64xf32>
    %17 = vector.multi_reduction <maximumf>, %11, %cst_13 [1] : vector<64x256xf32> to vector<64xf32>
    %18 = vector.shape_cast %17 : vector<64xf32> to vector<64x1xf32>
    %c0_14 = arith.constant 0 : index
    %c3 = arith.constant 3 : index
    %19 = vector.load %arg6[%c0_14, %c3] : memref<64x4xf32, #tpu.memory_space<vmem>>, vector<64x1xf32>
    tpu.vector_store %arg6[%c0_14, %c3], %18 {strides = array<i32>} : memref<64x4xf32, #tpu.memory_space<vmem>>, vector<64x1xf32>,
    %c0_15 = arith.constant 0 : index
    %c0_16 = arith.constant 0 : index
    %20 = vector.load %arg2[%c0_15, %c0_16] : memref<8x64xf32, #tpu.memory_space<vmem>>, vector<8x64xf32>
    %c0_17 = arith.constant 0 : index
    %c0_18 = arith.constant 0 : index
    %21 = vector.load %arg6[%c0_17, %c0_18] : memref<64x4xf32, #tpu.memory_space<vmem>>, vector<64x4xf32>
    %cst_19 = arith.constant dense<0.000000e+00> : vector<8x4xf32>
    %22 = tpu.matmul %20, %21, %cst_19 {dimension_numbers = #tpu.dot_dimension_numbers<[1], [0], [0], [1], [0, 0, 1, 1], [], []>, precision = #tpu.contract_precision<fp32>} : vector<8x64xf32>, vector<64x4xf32>, vector<8x4xf32> -> vector<8x4xf32>
    %cst_20 = arith.constant 0.000000e+00 : f32
    %23 = vector.broadcast %cst_20 : f32 to vector<8x4xf32>
    %24 = arith.maximumf %22, %23 : vector<8x4xf32>
    %25 = vector.extract_strided_slice %24 {offsets = [0, 0], sizes = [8, 2], strides = [1, 1]} : vector<8x4xf32> to vector<8x2xf32>
    %26 = vector.extract_strided_slice %24 {offsets = [0, 2], sizes = [8, 2], strides = [1, 1]} : vector<8x4xf32> to vector<8x2xf32>
    %27 = arith.addf %25, %26 : vector<8x2xf32>
    %c0_21 = arith.constant 0 : index
    %c0_22 = arith.constant 0 : index
    %28 = vector.load %arg3[%c0_21, %c0_22] : memref<64x8xf32, #tpu.memory_space<vmem>>, vector<64x8xf32>
    %cst_23 = arith.constant dense<0.000000e+00> : vector<64x2xf32>
    %29 = tpu.matmul %28, %27, %cst_23 {dimension_numbers = #tpu.dot_dimension_numbers<[1], [0], [0], [1], [0, 0, 1, 1], [], []>, precision = #tpu.contract_precision<fp32>} : vector<64x8xf32>, vector<8x2xf32>, vector<64x2xf32> -> vector<64x2xf32>
    %30 = arith.negf %29 : vector<64x2xf32>
    %31 = math.exp %30 : vector<64x2xf32>
    %cst_24 = arith.constant 1.000000e+00 : f32
    %32 = vector.broadcast %cst_24 : f32 to vector<64x2xf32>
    %33 = arith.addf %32, %31 : vector<64x2xf32>
    %34 = arith.divf %32, %33 : vector<64x2xf32>
    %c0_25 = arith.constant 0 : index
    %c0_26 = arith.constant 0 : index
    %c0_27 = arith.constant 0 : index
    %35 = vector.load %arg1[%c0_25, %c0_26, %c0_27] : memref<2x64x256xf32, #tpu.memory_space<vmem>>, vector<1x64x256xf32>
    %36 = vector.shape_cast %35 : vector<1x64x256xf32> to vector<64x256xf32>
    %37 = vector.extract_strided_slice %34 {offsets = [0, 0], sizes = [64, 1], strides = [1, 1]} : vector<64x2xf32> to vector<64x1xf32>
    %38 = vector.broadcast %37 : vector<64x1xf32> to vector<64x256xf32>
    %39 = arith.mulf %36, %38 : vector<64x256xf32>
    %cst_28 = arith.constant dense<0.000000e+00> : vector<256xf32>
    %40 = vector.multi_reduction <add>, %39, %cst_28 [0] : vector<64x256xf32> to vector<256xf32>
    %41 = vector.shape_cast %40 : vector<256xf32> to vector<1x256xf32>
    %c0_29 = arith.constant 0 : index
    %c0_30 = arith.constant 0 : index
    %42 = vector.load %arg7[%c0_29, %c0_30] : memref<2x512xf32, #tpu.memory_space<vmem>>, vector<1x256xf32>
    tpu.vector_store %arg7[%c0_29, %c0_30], %41 {strides = array<i32>} : memref<2x512xf32, #tpu.memory_space<vmem>>, vector<1x256xf32>,
    %cst_31 = arith.constant dense<0xFF800000> : vector<256xf32>
    %43 = vector.multi_reduction <maximumf>, %39, %cst_31 [0] : vector<64x256xf32> to vector<256xf32>
    %44 = vector.shape_cast %43 : vector<256xf32> to vector<1x256xf32>
    %c0_32 = arith.constant 0 : index
    %c256 = arith.constant 256 : index
    %45 = vector.load %arg7[%c0_32, %c256] : memref<2x512xf32, #tpu.memory_space<vmem>>, vector<1x256xf32>
    tpu.vector_store %arg7[%c0_32, %c256], %44 {strides = array<i32>} : memref<2x512xf32, #tpu.memory_space<vmem>>, vector<1x256xf32>,
    %c1_33 = arith.constant 1 : index
    %c0_34 = arith.constant 0 : index
    %c0_35 = arith.constant 0 : index
    %46 = vector.load %arg1[%c1_33, %c0_34, %c0_35] : memref<2x64x256xf32, #tpu.memory_space<vmem>>, vector<1x64x256xf32>
    %47 = vector.shape_cast %46 : vector<1x64x256xf32> to vector<64x256xf32>
    %48 = vector.extract_strided_slice %34 {offsets = [0, 1], sizes = [64, 1], strides = [1, 1]} : vector<64x2xf32> to vector<64x1xf32>
    %49 = vector.broadcast %48 : vector<64x1xf32> to vector<64x256xf32>
    %50 = arith.mulf %47, %49 : vector<64x256xf32>
    %cst_36 = arith.constant dense<0.000000e+00> : vector<256xf32>
    %51 = vector.multi_reduction <add>, %50, %cst_36 [0] : vector<64x256xf32> to vector<256xf32>
    %52 = vector.shape_cast %51 : vector<256xf32> to vector<1x256xf32>
    %c1_37 = arith.constant 1 : index
    %c0_38 = arith.constant 0 : index
    %53 = vector.load %arg7[%c1_37, %c0_38] : memref<2x512xf32, #tpu.memory_space<vmem>>, vector<1x256xf32>
    tpu.vector_store %arg7[%c1_37, %c0_38], %52 {strides = array<i32>} : memref<2x512xf32, #tpu.memory_space<vmem>>, vector<1x256xf32>,
    %cst_39 = arith.constant dense<0xFF800000> : vector<256xf32>
    %54 = vector.multi_reduction <maximumf>, %50, %cst_39 [0] : vector<64x256xf32> to vector<256xf32>
    %55 = vector.shape_cast %54 : vector<256xf32> to vector<1x256xf32>
    %c1_40 = arith.constant 1 : index
    %c256_41 = arith.constant 256 : index
    %56 = vector.load %arg7[%c1_40, %c256_41] : memref<2x512xf32, #tpu.memory_space<vmem>>, vector<1x256xf32>
    tpu.vector_store %arg7[%c1_40, %c256_41], %55 {strides = array<i32>} : memref<2x512xf32, #tpu.memory_space<vmem>>, vector<1x256xf32>,
    %c0_42 = arith.constant 0 : index
    %c0_43 = arith.constant 0 : index
    %57 = vector.load %arg7[%c0_42, %c0_43] : memref<2x512xf32, #tpu.memory_space<vmem>>, vector<2x512xf32>
    %c0_44 = arith.constant 0 : index
    %c0_45 = arith.constant 0 : index
    %58 = vector.load %arg4[%c0_44, %c0_45] : memref<512x256xf32, #tpu.memory_space<vmem>>, vector<512x256xf32>
    %cst_46 = arith.constant dense<0.000000e+00> : vector<2x256xf32>
    %59 = tpu.matmul %57, %58, %cst_46 {dimension_numbers = #tpu.dot_dimension_numbers<[1], [0], [0], [1], [0, 0, 1, 1], [], []>, precision = #tpu.contract_precision<fp32>} : vector<2x512xf32>, vector<512x256xf32>, vector<2x256xf32> -> vector<2x256xf32>
    %60 = arith.negf %59 : vector<2x256xf32>
    %61 = math.exp %60 : vector<2x256xf32>
    %cst_47 = arith.constant 1.000000e+00 : f32
    %62 = vector.broadcast %cst_47 : f32 to vector<2x256xf32>
    %63 = arith.addf %62, %61 : vector<2x256xf32>
    %64 = arith.divf %62, %63 : vector<2x256xf32>
    %c0_48 = arith.constant 0 : index
    %c0_49 = arith.constant 0 : index
    %c0_50 = arith.constant 0 : index
    %65 = vector.load %arg1[%c0_48, %c0_49, %c0_50] : memref<2x64x256xf32, #tpu.memory_space<vmem>>, vector<1x64x256xf32>
    %66 = vector.shape_cast %65 : vector<1x64x256xf32> to vector<64x256xf32>
    %67 = vector.extract_strided_slice %34 {offsets = [0, 0], sizes = [64, 1], strides = [1, 1]} : vector<64x2xf32> to vector<64x1xf32>
    %68 = vector.broadcast %67 : vector<64x1xf32> to vector<64x256xf32>
    %69 = arith.mulf %66, %68 : vector<64x256xf32>
    %70 = vector.extract_strided_slice %64 {offsets = [0, 0], sizes = [1, 256], strides = [1, 1]} : vector<2x256xf32> to vector<1x256xf32>
    %71 = vector.broadcast %70 : vector<1x256xf32> to vector<64x256xf32>
    %72 = arith.mulf %69, %71 : vector<64x256xf32>
    %c0_51 = arith.constant 0 : index
    %c0_52 = arith.constant 0 : index
    %c0_53 = arith.constant 0 : index
    %73 = vector.load %arg5[%c0_51, %c0_52, %c0_53] : memref<2x64x256xf32, #tpu.memory_space<vmem>>, vector<1x64x256xf32>
    %74 = vector.shape_cast %73 : vector<1x64x256xf32> to vector<64x256xf32>
    %75 = vector.shape_cast %72 : vector<64x256xf32> to vector<1x64x256xf32>
    tpu.vector_store %arg5[%c0_51, %c0_52, %c0_53], %75 {strides = array<i32>} : memref<2x64x256xf32, #tpu.memory_space<vmem>>, vector<1x64x256xf32>,
    %c1_54 = arith.constant 1 : index
    %c0_55 = arith.constant 0 : index
    %c0_56 = arith.constant 0 : index
    %76 = vector.load %arg1[%c1_54, %c0_55, %c0_56] : memref<2x64x256xf32, #tpu.memory_space<vmem>>, vector<1x64x256xf32>
    %77 = vector.shape_cast %76 : vector<1x64x256xf32> to vector<64x256xf32>
    %78 = vector.extract_strided_slice %34 {offsets = [0, 1], sizes = [64, 1], strides = [1, 1]} : vector<64x2xf32> to vector<64x1xf32>
    %79 = vector.broadcast %78 : vector<64x1xf32> to vector<64x256xf32>
    %80 = arith.mulf %77, %79 : vector<64x256xf32>
    %81 = vector.extract_strided_slice %64 {offsets = [1, 0], sizes = [1, 256], strides = [1, 1]} : vector<2x256xf32> to vector<1x256xf32>
    %82 = vector.broadcast %81 : vector<1x256xf32> to vector<64x256xf32>
    %83 = arith.mulf %80, %82 : vector<64x256xf32>
    %c1_57 = arith.constant 1 : index
    %c0_58 = arith.constant 0 : index
    %c0_59 = arith.constant 0 : index
    %84 = vector.load %arg5[%c1_57, %c0_58, %c0_59] : memref<2x64x256xf32, #tpu.memory_space<vmem>>, vector<1x64x256xf32>
    %85 = vector.shape_cast %84 : vector<1x64x256xf32> to vector<64x256xf32>
    %86 = vector.shape_cast %83 : vector<64x256xf32> to vector<1x64x256xf32>
    tpu.vector_store %arg5[%c1_57, %c0_58, %c0_59], %86 {strides = array<i32>} : memref<2x64x256xf32, #tpu.memory_space<vmem>>, vector<1x64x256xf32>,
    return
  }
  func.func @transform_0(%arg0: i32) -> (i32, i32, i32) {
    %c0_i32 = arith.constant 0 : i32
    %c0_i32_0 = arith.constant 0 : i32
    %c0_i32_1 = arith.constant 0 : i32
    return %arg0, %c0_i32, %c0_i32_0 : i32, i32, i32
  }
  func.func @transform_1(%arg0: i32) -> (i32, i32) {
    %c0_i32 = arith.constant 0 : i32
    %c0_i32_0 = arith.constant 0 : i32
    %c0_i32_1 = arith.constant 0 : i32
    return %c0_i32, %c0_i32_0 : i32, i32
  }
  func.func @transform_2(%arg0: i32) -> (i32, i32) {
    %c0_i32 = arith.constant 0 : i32
    %c0_i32_0 = arith.constant 0 : i32
    %c0_i32_1 = arith.constant 0 : i32
    return %c0_i32, %c0_i32_0 : i32, i32
  }
  func.func @transform_3(%arg0: i32) -> (i32, i32) {
    %c0_i32 = arith.constant 0 : i32
    %c0_i32_0 = arith.constant 0 : i32
    %c0_i32_1 = arith.constant 0 : i32
    return %c0_i32, %c0_i32_0 : i32, i32
  }
  func.func @transform_4(%arg0: i32) -> (i32, i32, i32) {
    %c0_i32 = arith.constant 0 : i32
    %c0_i32_0 = arith.constant 0 : i32
    %c0_i32_1 = arith.constant 0 : i32
    return %arg0, %c0_i32, %c0_i32_0 : i32, i32, i32
  }
}

</mosaic_0001>

<llo_original>
// kernel: tpu_custom_call.1
$region0: #{tpu_custom_call.1}
  #allocation0 [shape = 'u32[]', space=smem, size = 0x4, offset = 0x4, fixed_abs, tag = 'smem constant byte address 0x4 - core index']
  #allocation1 [shape = 'u32[144,128]{1,0:T(1,128)}', space=vmem, size = 0x12000, scoped, tag = 'internal scratch']
  #allocation2 [shape = 'f32[64,4]{1,0:T(8,128)}', space=vmem, size = 0x8000, scoped, tag = 'scratch operand']
  #allocation3 [shape = 'f32[2,512]{1,0:T(2,128)}', space=vmem, size = 0x1000, scoped, tag = 'scratch operand']
  %s0 = inlined_call_operand.hbm [shape: f32[2,64,256], index: 0, kind: input, shape index: {}]
  %s1 = inlined_call_operand.vmem [shape: f32[8,64], index: 1, kind: input, shape index: {}]
  %s2 = inlined_call_operand.vmem [shape: f32[64,8], index: 2, kind: input, shape index: {}]
  %s3 = inlined_call_operand.hbm [shape: f32[512,256], index: 3, kind: input, shape index: {}]
  %s4 = inlined_call_operand.hbm [shape: f32[2,64,256], index: 4, kind: output, shape index: {}]
  %s5 = sld [smem:[#allocation0]]
  $region34: #{tpu_custom_call.1} parent=0
    _
  %s7 = ssub.s32 1, %s5
  %s8 = scalar_select 0, %s7, %s5
  $region1: #{tpu_custom_call.1} parent=0
    #allocation4 [shape = 'u8[131072]{0}', space=vmem, size = 0x20000, scoped, tag = 'input window, operand 0, single buffered']
    #allocation5 [shape = 's32[1]{0}', space=sflag, size = 0x4, scoped, tag = 'scoped memory for tpu_custom_call.1']
    #allocation6 [shape = 's32[1]{0}', space=sflag, size = 0x4, scoped, tag = 'scoped memory for tpu_custom_call.1']
    #allocation7 [shape = 'u8[524288]{0}', space=vmem, size = 0x80000, scoped, tag = 'input window, operand 3, single buffered']
    #allocation8 [shape = 's32[1]{0}', space=sflag, size = 0x4, scoped, tag = 'scoped memory for tpu_custom_call.1']
    #allocation9 [shape = 'u8[131072]{0}', space=vmem, size = 0x20000, scoped, tag = 'output window, operand 0, single buffered']
    %9 = vsyncpa [#allocation5], 0
    %10 = vsyncpa [#allocation8], 0
    %11 = vsyncpa [#allocation6], 0
    // Predicated region
    $region2: #{tpu_custom_call.1} parent=1 // pred_check
      _
    $region3: #{tpu_custom_call.1} parent=1 // pred_check_branch
      %13 = sbr.rel (0) target = $region5
    $region4: #{tpu_custom_call.1} parent=1 // pred_region
      %s15 = ssub.s32 4096, 4096
      %16 = vsyncadd [#allocation5], %s15
      %s17 = sshll.u32 [#allocation4], 4
      %s18 = int_to_ptr.vmem [resolvable:$true] %s17
      %23 = dma.hbm_to_vmem [thread:$0]  %s0, 4096, %s18, [#allocation5], 256, 256, 16
    $region5: #{tpu_custom_call.1} parent=1 // pred_fallthru
      _
    // Predicated region
    $region6: #{tpu_custom_call.1} parent=1 // pred_check
      _
    $region7: #{tpu_custom_call.1} parent=1 // pred_check_branch
      %25 = sbr.rel (0) target = $region9
    $region8: #{tpu_custom_call.1} parent=1 // pred_region
      _
    $region9: #{tpu_custom_call.1} parent=1 // pred_fallthru
      _
    // Predicated region
    $region10: #{tpu_custom_call.1} parent=1 // pred_check
      _
    $region11: #{tpu_custom_call.1} parent=1 // pred_check_branch
      %27 = sbr.rel (0) target = $region13
    $region12: #{tpu_custom_call.1} parent=1 // pred_region
      _
    $region13: #{tpu_custom_call.1} parent=1 // pred_fallthru
      _
    // Predicated region
    $region14: #{tpu_custom_call.1} parent=1 // pred_check
      _
    $region15: #{tpu_custom_call.1} parent=1 // pred_check_branch
      %29 = sbr.rel (0) target = $region17
    $region16: #{tpu_custom_call.1} parent=1 // pred_region
      %s31 = ssub.s32 16384, 16384
      %32 = vsyncadd [#allocation8], %s31
      %s33 = sshll.u32 [#allocation7], 4
      %s34 = int_to_ptr.vmem [resolvable:$true] %s33
      %39 = dma.hbm_to_vmem [thread:$0]  %s3, 16384, %s34, [#allocation8], 256, 256, 16
    $region17: #{tpu_custom_call.1} parent=1 // pred_fallthru
      _
    // Predicated region
    $region18: #{tpu_custom_call.1} parent=1 // pred_check
      _
    $region19: #{tpu_custom_call.1} parent=1 // pred_check_branch
      %41 = sbr.rel (0) target = $region21
    $region20: #{tpu_custom_call.1} parent=1 // pred_region
      %42 = dma.done [#allocation5], 4096
    $region21: #{tpu_custom_call.1} parent=1 // pred_fallthru
      _
    // Predicated region
    $region22: #{tpu_custom_call.1} parent=1 // pred_check
      _
    $region23: #{tpu_custom_call.1} parent=1 // pred_check_branch
      %44 = sbr.rel (0) target = $region25
    $region24: #{tpu_custom_call.1} parent=1 // pred_region
      %45 = dma.done [#allocation8], 16384
    $region25: #{tpu_custom_call.1} parent=1 // pred_fallthru
      _
    %v46 = vld [vmem:[#allocation4] sm:$0xff]
    %v47 = vld [vmem:[#allocation4 + $0x8] sm:$0xff]
    %v48 = vld [vmem:[#allocation4 + $0x10] sm:$0xff]
    %v49 = vld [vmem:[#allocation4 + $0x18] sm:$0xff]
    %v50 = vld [vmem:[#allocation4 + $0x20] sm:$0xff]
    %v51 = vld [vmem:[#allocation4 + $0x28] sm:$0xff]
    %v52 = vld [vmem:[#allocation4 + $0x30] sm:$0xff]
    %v53 = vld [vmem:[#allocation4 + $0x38] sm:$0xff]
    %v54 = vld [vmem:[#allocation4 + $0x40] sm:$0xff]
    %v55 = vld [vmem:[#allocation4 + $0x48] sm:$0xff]
    %v56 = vld [vmem:[#allocation4 + $0x50] sm:$0xff]
    %v57 = vld [vmem:[#allocation4 + $0x58] sm:$0xff]
    %v58 = vld [vmem:[#allocation4 + $0x60] sm:$0xff]
    %v59 = vld [vmem:[#allocation4 + $0x68] sm:$0xff]
    %v60 = vld [vmem:[#allocation4 + $0x70] sm:$0xff]
    %v61 = vld [vmem:[#allocation4 + $0x78] sm:$0xff]
    %v62 = vadd.f32 %v46, %v47
    %63 = vadd.xlane.f32.xlu0 %v62
    %v64 = vpop.xlane.xlu0 %63
    %v65 = vadd.f32 %v48, %v49
    %66 = vadd.xlane.f32.xlu0 %v65
    %v67 = vpop.xlane.xlu0 %66
    %v68 = vadd.f32 %v50, %v51
    %69 = vadd.xlane.f32.xlu0 %v68
    %v70 = vpop.xlane.xlu0 %69
    %v71 = vadd.f32 %v52, %v53
    %72 = vadd.xlane.f32.xlu0 %v71
    %v73 = vpop.xlane.xlu0 %72
    %v74 = vadd.f32 %v54, %v55
    %75 = vadd.xlane.f32.xlu0 %v74
    %v76 = vpop.xlane.xlu0 %75
    %v77 = vadd.f32 %v56, %v57
    %78 = vadd.xlane.f32.xlu0 %v77
    %v79 = vpop.xlane.xlu0 %78
    %v80 = vadd.f32 %v58, %v59
    %81 = vadd.xlane.f32.xlu0 %v80
    %v82 = vpop.xlane.xlu0 %81
    %v83 = vadd.f32 %v60, %v61
    %84 = vadd.xlane.f32.xlu0 %v83
    %v85 = vpop.xlane.xlu0 %84
    %v86 = vmul.f32 %v64, 0.00390625
    %v87 = vmul.f32 %v67, 0.00390625
    %v88 = vmul.f32 %v70, 0.00390625
    %v89 = vmul.f32 %v73, 0.00390625
    %v90 = vmul.f32 %v76, 0.00390625
    %v91 = vmul.f32 %v79, 0.00390625
    %v92 = vmul.f32 %v82, 0.00390625
    %v93 = vmul.f32 %v85, 0.00390625
    %vm94 = vcmask 7168
    %95 = vst.msk [vmem:[#allocation2] sm:$0xff] %vm94, %v86
    %96 = vst.msk [vmem:[#allocation2 + $0x8] sm:$0xff] %vm94, %v87
    %97 = vst.msk [vmem:[#allocation2 + $0x10] sm:$0xff] %vm94, %v88
    %98 = vst.msk [vmem:[#allocation2 + $0x18] sm:$0xff] %vm94, %v89
    %99 = vst.msk [vmem:[#allocation2 + $0x20] sm:$0xff] %vm94, %v90
    %100 = vst.msk [vmem:[#allocation2 + $0x28] sm:$0xff] %vm94, %v91
    %101 = vst.msk [vmem:[#allocation2 + $0x30] sm:$0xff] %vm94, %v92
    %102 = vst.msk [vmem:[#allocation2 + $0x38] sm:$0xff] %vm94, %v93
    %v103 = vmax.f32 %v46, %v47
    %104 = vmax.xlane.f32.xlu0 %v103
    %v105 = vpop.xlane.xlu0 %104
    %v106 = vmax.f32 %v48, %v49
    %107 = vmax.xlane.f32.xlu0 %v106
    %v108 = vpop.xlane.xlu0 %107
    %v109 = vmax.f32 %v50, %v51
    %110 = vmax.xlane.f32.xlu0 %v109
    %v111 = vpop.xlane.xlu0 %110
    %v112 = vmax.f32 %v52, %v53
    %113 = vmax.xlane.f32.xlu0 %v112
    %v114 = vpop.xlane.xlu0 %113
    %v115 = vmax.f32 %v54, %v55
    %116 = vmax.xlane.f32.xlu0 %v115
    %v117 = vpop.xlane.xlu0 %116
    %v118 = vmax.f32 %v56, %v57
    %119 = vmax.xlane.f32.xlu0 %v118
    %v120 = vpop.xlane.xlu0 %119
    %v121 = vmax.f32 %v58, %v59
    %122 = vmax.xlane.f32.xlu0 %v121
    %v123 = vpop.xlane.xlu0 %122
    %v124 = vmax.f32 %v60, %v61
    %125 = vmax.xlane.f32.xlu0 %v124
    %v126 = vpop.xlane.xlu0 %125
    %vm127 = vcmask 23568
    %128 = vst.msk [vmem:[#allocation2] sm:$0xff] %vm127, %v105
    %129 = vst.msk [vmem:[#allocation2 + $0x8] sm:$0xff] %vm127, %v108
    %130 = vst.msk [vmem:[#allocation2 + $0x10] sm:$0xff] %vm127, %v111
    %131 = vst.msk [vmem:[#allocation2 + $0x18] sm:$0xff] %vm127, %v114
    %132 = vst.msk [vmem:[#allocation2 + $0x20] sm:$0xff] %vm127, %v117
    %133 = vst.msk [vmem:[#allocation2 + $0x28] sm:$0xff] %vm127, %v120
    %134 = vst.msk [vmem:[#allocation2 + $0x30] sm:$0xff] %vm127, %v123
    %135 = vst.msk [vmem:[#allocation2 + $0x38] sm:$0xff] %vm127, %v126
    %s136 = scalar_lea.vmem [#allocation4], 128
    %v137 = vld [vmem:[%s136] sm:$0xff]
    %v138 = vld [vmem:[%s136 + $0x8] sm:$0xff]
    %v139 = vld [vmem:[%s136 + $0x10] sm:$0xff]
    %v140 = vld [vmem:[%s136 + $0x18] sm:$0xff]
    %v141 = vld [vmem:[%s136 + $0x20] sm:$0xff]
    %v142 = vld [vmem:[%s136 + $0x28] sm:$0xff]
    %v143 = vld [vmem:[%s136 + $0x30] sm:$0xff]
    %v144 = vld [vmem:[%s136 + $0x38] sm:$0xff]
    %v145 = vld [vmem:[%s136 + $0x40] sm:$0xff]
    %v146 = vld [vmem:[%s136 + $0x48] sm:$0xff]
    %v147 = vld [vmem:[%s136 + $0x50] sm:$0xff]
    %v148 = vld [vmem:[%s136 + $0x58] sm:$0xff]
    %v149 = vld [vmem:[%s136 + $0x60] sm:$0xff]
    %v150 = vld [vmem:[%s136 + $0x68] sm:$0xff]
    %v151 = vld [vmem:[%s136 + $0x70] sm:$0xff]
    %v152 = vld [vmem:[%s136 + $0x78] sm:$0xff]
    %v153 = vadd.f32 %v137, %v138
    %154 = vadd.xlane.f32.xlu0 %v153
    %v155 = vpop.xlane.xlu0 %154
    %v156 = vadd.f32 %v139, %v140
    %157 = vadd.xlane.f32.xlu0 %v156
    %v158 = vpop.xlane.xlu0 %157
    %v159 = vadd.f32 %v141, %v142
    %160 = vadd.xlane.f32.xlu0 %v159
    %v161 = vpop.xlane.xlu0 %160
    %v162 = vadd.f32 %v143, %v144
    %163 = vadd.xlane.f32.xlu0 %v162
    %v164 = vpop.xlane.xlu0 %163
    %v165 = vadd.f32 %v145, %v146
    %166 = vadd.xlane.f32.xlu0 %v165
    %v167 = vpop.xlane.xlu0 %166
    %v168 = vadd.f32 %v147, %v148
    %169 = vadd.xlane.f32.xlu0 %v168
    %v170 = vpop.xlane.xlu0 %169
    %v171 = vadd.f32 %v149, %v150
    %172 = vadd.xlane.f32.xlu0 %v171
    %v173 = vpop.xlane.xlu0 %172
    %v174 = vadd.f32 %v151, %v152
    %175 = vadd.xlane.f32.xlu0 %v174
    %v176 = vpop.xlane.xlu0 %175
    %v177 = vmul.f32 %v155, 0.00390625
    %v178 = vmul.f32 %v158, 0.00390625
    %v179 = vmul.f32 %v161, 0.00390625
    %v180 = vmul.f32 %v164, 0.00390625
    %v181 = vmul.f32 %v167, 0.00390625
    %v182 = vmul.f32 %v170, 0.00390625
    %v183 = vmul.f32 %v173, 0.00390625
    %v184 = vmul.f32 %v176, 0.00390625
    %vm185 = vcmask 15368
    %186 = vst.msk [vmem:[#allocation2] sm:$0xff] %vm185, %v177
    %187 = vst.msk [vmem:[#allocation2 + $0x8] sm:$0xff] %vm185, %v178
    %188 = vst.msk [vmem:[#allocation2 + $0x10] sm:$0xff] %vm185, %v179
    %189 = vst.msk [vmem:[#allocation2 + $0x18] sm:$0xff] %vm185, %v180
    %190 = vst.msk [vmem:[#allocation2 + $0x20] sm:$0xff] %vm185, %v181
    %191 = vst.msk [vmem:[#allocation2 + $0x28] sm:$0xff] %vm185, %v182
    %192 = vst.msk [vmem:[#allocation2 + $0x30] sm:$0xff] %vm185, %v183
    %193 = vst.msk [vmem:[#allocation2 + $0x38] sm:$0xff] %vm185, %v184
    %v194 = vmax.f32 %v137, %v138
    %195 = vmax.xlane.f32.xlu0 %v194
    %v196 = vpop.xlane.xlu0 %195
    %v197 = vmax.f32 %v139, %v140
    %198 = vmax.xlane.f32.xlu0 %v197
    %v199 = vpop.xlane.xlu0 %198
    %v200 = vmax.f32 %v141, %v142
    %201 = vmax.xlane.f32.xlu0 %v200
    %v202 = vpop.xlane.xlu0 %201
    %v203 = vmax.f32 %v143, %v144
    %204 = vmax.xlane.f32.xlu0 %v203
    %v205 = vpop.xlane.xlu0 %204
    %v206 = vmax.f32 %v145, %v146
    %207 = vmax.xlane.f32.xlu0 %v206
    %v208 = vpop.xlane.xlu0 %207
    %v209 = vmax.f32 %v147, %v148
    %210 = vmax.xlane.f32.xlu0 %v209
    %v211 = vpop.xlane.xlu0 %210
    %v212 = vmax.f32 %v149, %v150
    %213 = vmax.xlane.f32.xlu0 %v212
    %v214 = vpop.xlane.xlu0 %213
    %v215 = vmax.f32 %v151, %v152
    %216 = vmax.xlane.f32.xlu0 %v215
    %v217 = vpop.xlane.xlu0 %216
    %vm218 = vcmask 31768
    %219 = vst.msk [vmem:[#allocation2] sm:$0xff] %vm218, %v196
    %220 = vst.msk [vmem:[#allocation2 + $0x8] sm:$0xff] %vm218, %v199
    %221 = vst.msk [vmem:[#allocation2 + $0x10] sm:$0xff] %vm218, %v202
    %222 = vst.msk [vmem:[#allocation2 + $0x18] sm:$0xff] %vm218, %v205
    %223 = vst.msk [vmem:[#allocation2 + $0x20] sm:$0xff] %vm218, %v208
    %224 = vst.msk [vmem:[#allocation2 + $0x28] sm:$0xff] %vm218, %v211
    %225 = vst.msk [vmem:[#allocation2 + $0x30] sm:$0xff] %vm218, %v214
    %226 = vst.msk [vmem:[#allocation2 + $0x38] sm:$0xff] %vm218, %v217
    %v227 = vld [vmem:[%s1] sm:$0xff]
    %v228 = vld [vmem:[#allocation2] sm:$0xff]
    %v229 = vld [vmem:[#allocation2 + $0x8] sm:$0xff]
    %v230 = vld [vmem:[#allocation2 + $0x10] sm:$0xff]
    %v231 = vld [vmem:[#allocation2 + $0x18] sm:$0xff]
    %v232 = vld [vmem:[#allocation2 + $0x20] sm:$0xff]
    %v233 = vld [vmem:[#allocation2 + $0x28] sm:$0xff]
    %v234 = vld [vmem:[#allocation2 + $0x30] sm:$0xff]
    %v235 = vld [vmem:[#allocation2 + $0x38] sm:$0xff]
    %vm236 = vcmask 523264
    %v238 = vsel %vm236, %v227, 0
    %240 = vmatprep.subr.mxu0 0.0
    %v241 = vand.u32 %v228, 4294901760
    %242 = vmatpush1.msra.mxu0 %v241
    %243 = vmatprep.subr.mxu0 0.0
    %v244 = vand.u32 %v229, 4294901760
    %245 = vmatpush1.msra.mxu0 %v244
    %246 = vmatprep.subr.mxu0 0.0
    %v247 = vand.u32 %v230, 4294901760
    %248 = vmatpush1.msra.mxu0 %v247
    %249 = vmatprep.subr.mxu0 0.0
    %v250 = vand.u32 %v231, 4294901760
    %251 = vmatpush1.msra.mxu0 %v250
    %252 = vmatprep.subr.mxu0 0.0
    %v253 = vand.u32 %v232, 4294901760
    %254 = vmatpush1.msra.mxu0 %v253
    %255 = vmatprep.subr.mxu0 0.0
    %v256 = vand.u32 %v233, 4294901760
    %257 = vmatpush1.msra.mxu0 %v256
    %258 = vmatprep.subr.mxu0 0.0
    %v259 = vand.u32 %v234, 4294901760
    %260 = vmatpush1.msra.mxu0 %v259
    %261 = vmatprep.subr.mxu0 0.0
    %v262 = vand.u32 %v235, 4294901760
    %263 = vmatpush1.msra.mxu0 %v262
    %264 = vmatprep.subr.mxu0 0.0
    %265 = vmatpush1.msra.mxu0 0.0
    %266 = vmatprep.subr.mxu0 0.0
    %267 = vmatpush1.msra.mxu0 0.0
    %268 = vmatprep.subr.mxu0 0.0
    %269 = vmatpush1.msra.mxu0 0.0
    %270 = vmatprep.subr.mxu0 0.0
    %271 = vmatpush1.msra.mxu0 0.0
    %272 = vmatprep.subr.mxu0 0.0
    %273 = vmatpush1.msra.mxu0 0.0
    %274 = vmatprep.subr.mxu0 0.0
    %275 = vmatpush1.msra.mxu0 0.0
    %276 = vmatprep.subr.mxu0 0.0
    %277 = vmatpush1.msra.mxu0 0.0
    %278 = vmatprep.subr.mxu0 0.0
    %279 = vmatpush1.msra.mxu0 0.0
    %280 = vmatprep.subr.mxu0 0.0
    %281 = vmatpush1.msra.mxu0 0.0
    %282 = vmatprep.subr.mxu0 0.0
    %283 = vmatpush1.msra.mxu0 0.0
    %284 = vmatprep.subr.mxu0 0.0
    %285 = vmatpush1.msra.mxu0 0.0
    %286 = vmatprep.subr.mxu0 0.0
    %287 = vmatpush1.msra.mxu0 0.0
    %288 = vmatprep.subr.mxu0 0.0
    %289 = vmatpush1.msra.mxu0 0.0
    %290 = vmatprep.subr.mxu0 0.0
    %291 = vmatpush1.msra.mxu0 0.0
    %292 = vmatprep.subr.mxu0 0.0
    %293 = vmatpush1.msra.mxu0 0.0
    %294 = vmatprep.subr.mxu0 0.0
    %295 = vmatpush1.msra.mxu0 0.0
    %296 = vmatprep.subr.mxu0 0.0
    %297 = vmatpush1.msra.mxu0 0.0
    %298 = vmatprep.subr.mxu0 0.0
    %299 = vmatpush1.msra.mxu0 0.0
    %300 = vmatprep.subr.mxu0 0.0
    %301 = vmatpush1.msra.mxu0 0.0
    %302 = vmatprep.subr.mxu0 0.0
    %303 = vmatpush1.msra.mxu0 0.0
    %304 = vmatprep.subr.mxu0 0.0
    %305 = vmatpush1.msra.mxu0 0.0
    %306 = vmatprep.subr.mxu0 0.0
    %307 = vmatpush1.msra.mxu0 0.0
    %308 = vmatprep.subr.mxu0 0.0
    %309 = vmatpush1.msra.mxu0 0.0
    %310 = vmatprep.subr.mxu0 0.0
    %311 = vmatpush1.msra.mxu0 0.0
    %312 = vmatprep.mubr.f32.mxu0 0.0
    %v313 = vand.u32 %v238, 4294901760
    %v314 = vsub.f32 %v238, %v313
    %v315 = vand.u32 %v314, 4294901760
    %v316 = vsub.f32 %v314, %v315
    %v317 = vand.u32 %v316, 4294901760
    %318 = vmatmul.mubr.f32.gmra.mrb[0].mxu0 %v317
    %v319 = vpop.f32.mrb[0].mxu0
    %v320 = vadd.f32 0.0, %v319
    %v321 = vpop.f32.mrb[0].mxu0
    %322 = vdwg.mxu0
    %323 = vmatprep.subr.mxu0 0.0
    %v324 = vand.u32 %v228, 4294901760
    %v325 = vsub.f32 %v228, %v324
    %v326 = vand.u32 %v325, 4294901760
    %v327 = vsub.f32 %v325, %v326
    %v328 = vand.u32 %v327, 4294901760
    %329 = vmatpush1.msra.mxu0 %v328
    %330 = vmatprep.subr.mxu0 0.0
    %v331 = vand.u32 %v229, 4294901760
    %v332 = vsub.f32 %v229, %v331
    %v333 = vand.u32 %v332, 4294901760
    %v334 = vsub.f32 %v332, %v333
    %v335 = vand.u32 %v334, 4294901760
    %336 = vmatpush1.msra.mxu0 %v335
    %337 = vmatprep.subr.mxu0 0.0
    %v338 = vand.u32 %v230, 4294901760
    %v339 = vsub.f32 %v230, %v338
    %v340 = vand.u32 %v339, 4294901760
    %v341 = vsub.f32 %v339, %v340
    %v342 = vand.u32 %v341, 4294901760
    %343 = vmatpush1.msra.mxu0 %v342
    %344 = vmatprep.subr.mxu0 0.0
    %v345 = vand.u32 %v231, 4294901760
    %v346 = vsub.f32 %v231, %v345
    %v347 = vand.u32 %v346, 4294901760
    %v348 = vsub.f32 %v346, %v347
    %v349 = vand.u32 %v348, 4294901760
    %350 = vmatpush1.msra.mxu0 %v349
    %351 = vmatprep.subr.mxu0 0.0
    %v352 = vand.u32 %v232, 4294901760
    %v353 = vsub.f32 %v232, %v352
    %v354 = vand.u32 %v353, 4294901760
    %v355 = vsub.f32 %v353, %v354
    %v356 = vand.u32 %v355, 4294901760
    %357 = vmatpush1.msra.mxu0 %v356
    %358 = vmatprep.subr.mxu0 0.0
    %v359 = vand.u32 %v233, 4294901760
    %v360 = vsub.f32 %v233, %v359
    %v361 = vand.u32 %v360, 4294901760
    %v362 = vsub.f32 %v360, %v361
    %v363 = vand.u32 %v362, 4294901760
    %364 = vmatpush1.msra.mxu0 %v363
    %365 = vmatprep.subr.mxu0 0.0
    %v366 = vand.u32 %v234, 4294901760
    %v367 = vsub.f32 %v234, %v366
    %v368 = vand.u32 %v367, 4294901760
    %v369 = vsub.f32 %v367, %v368
    %v370 = vand.u32 %v369, 4294901760
    %371 = vmatpush1.msra.mxu0 %v370
    %372 = vmatprep.subr.mxu0 0.0
    %v373 = vand.u32 %v235, 4294901760
    %v374 = vsub.f32 %v235, %v373
    %v375 = vand.u32 %v374, 4294901760
    %v376 = vsub.f32 %v374, %v375
    %v377 = vand.u32 %v376, 4294901760
    %378 = vmatpush1.msra.mxu0 %v377
    %379 = vmatprep.subr.mxu0 0.0
    %380 = vmatpush1.msra.mxu0 0.0
    %381 = vmatprep.subr.mxu0 0.0
    %382 = vmatpush1.msra.mxu0 0.0
    %383 = vmatprep.subr.mxu0 0.0
    %384 = vmatpush1.msra.mxu0 0.0
    %385 = vmatprep.subr.mxu0 0.0
    %386 = vmatpush1.msra.mxu0 0.0
    %387 = vmatprep.subr.mxu0 0.0
    %388 = vmatpush1.msra.mxu0 0.0
    %389 = vmatprep.subr.mxu0 0.0
    %390 = vmatpush1.msra.mxu0 0.0
    %391 = vmatprep.subr.mxu0 0.0
    %392 = vmatpush1.msra.mxu0 0.0
    %393 = vmatprep.subr.mxu0 0.0
    %394 = vmatpush1.msra.mxu0 0.0
    %395 = vmatprep.subr.mxu0 0.0
    %396 = vmatpush1.msra.mxu0 0.0
    %397 = vmatprep.subr.mxu0 0.0
    %398 = vmatpush1.msra.mxu0 0.0
    %399 = vmatprep.subr.mxu0 0.0
    %400 = vmatpush1.msra.mxu0 0.0
    %401 = vmatprep.subr.mxu0 0.0
    %402 = vmatpush1.msra.mxu0 0.0
    %403 = vmatprep.subr.mxu0 0.0
    %404 = vmatpush1.msra.mxu0 0.0
    %405 = vmatprep.subr.mxu0 0.0
    %406 = vmatpush1.msra.mxu0 0.0
    %407 = vmatprep.subr.mxu0 0.0
    %408 = vmatpush1.msra.mxu0 0.0
    %409 = vmatprep.subr.mxu0 0.0
    %410 = vmatpush1.msra.mxu0 0.0
    %411 = vmatprep.subr.mxu0 0.0
    %412 = vmatpush1.msra.mxu0 0.0
    %413 = vmatprep.subr.mxu0 0.0
    %414 = vmatpush1.msra.mxu0 0.0
    %415 = vmatprep.subr.mxu0 0.0
    %416 = vmatpush1.msra.mxu0 0.0
    %417 = vmatprep.subr.mxu0 0.0
    %418 = vmatpush1.msra.mxu0 0.0
    %419 = vmatprep.subr.mxu0 0.0
    %420 = vmatpush1.msra.mxu0 0.0
    %421 = vmatprep.subr.mxu0 0.0
    %422 = vmatpush1.msra.mxu0 0.0
    %423 = vmatprep.subr.mxu0 0.0
    %424 = vmatpush1.msra.mxu0 0.0
    %425 = vmatprep.subr.mxu0 0.0
    %426 = vmatpush1.msra.mxu0 0.0
    %427 = vmatprep.mubr.f32.mxu0 0.0
    %v428 = vand.u32 %v238, 4294901760
    %429 = vmatmul.mubr.f32.gmra.mrb[0].mxu0 %v428
    %v430 = vpop.f32.mrb[0].mxu0
    %v431 = vadd.f32 %v320, %v430
    %v432 = vpop.f32.mrb[0].mxu0
    %433 = vdwg.mxu0
    %434 = vmatprep.subr.mxu0 0.0
    %v435 = vand.u32 %v228, 4294901760
    %v436 = vsub.f32 %v228, %v435
    %437 = vmatpush1.msra.mxu0 %v436
    %438 = vmatprep.subr.mxu0 0.0
    %v439 = vand.u32 %v229, 4294901760
    %v440 = vsub.f32 %v229, %v439
    %441 = vmatpush1.msra.mxu0 %v440
    %442 = vmatprep.subr.mxu0 0.0
    %v443 = vand.u32 %v230, 4294901760
    %v444 = vsub.f32 %v230, %v443
    %445 = vmatpush1.msra.mxu0 %v444
    %446 = vmatprep.subr.mxu0 0.0
    %v447 = vand.u32 %v231, 4294901760
    %v448 = vsub.f32 %v231, %v447
    %449 = vmatpush1.msra.mxu0 %v448
    %450 = vmatprep.subr.mxu0 0.0
    %v451 = vand.u32 %v232, 4294901760
    %v452 = vsub.f32 %v232, %v451
    %453 = vmatpush1.msra.mxu0 %v452
    %454 = vmatprep.subr.mxu0 0.0
    %v455 = vand.u32 %v233, 4294901760
    %v456 = vsub.f32 %v233, %v455
    %457 = vmatpush1.msra.mxu0 %v456
    %458 = vmatprep.subr.mxu0 0.0
    %v459 = vand.u32 %v234, 4294901760
    %v460 = vsub.f32 %v234, %v459
    %461 = vmatpush1.msra.mxu0 %v460
    %462 = vmatprep.subr.mxu0 0.0
    %v463 = vand.u32 %v235, 4294901760
    %v464 = vsub.f32 %v235, %v463
    %465 = vmatpush1.msra.mxu0 %v464
    %466 = vmatprep.subr.mxu0 0.0
    %467 = vmatpush1.msra.mxu0 0.0
    %468 = vmatprep.subr.mxu0 0.0
    %469 = vmatpush1.msra.mxu0 0.0
    %470 = vmatprep.subr.mxu0 0.0
    %471 = vmatpush1.msra.mxu0 0.0
    %472 = vmatprep.subr.mxu0 0.0
    %473 = vmatpush1.msra.mxu0 0.0
    %474 = vmatprep.subr.mxu0 0.0
    %475 = vmatpush1.msra.mxu0 0.0
    %476 = vmatprep.subr.mxu0 0.0
    %477 = vmatpush1.msra.mxu0 0.0
    %478 = vmatprep.subr.mxu0 0.0
    %479 = vmatpush1.msra.mxu0 0.0
    %480 = vmatprep.subr.mxu0 0.0
    %481 = vmatpush1.msra.mxu0 0.0
    %482 = vmatprep.subr.mxu0 0.0
    %483 = vmatpush1.msra.mxu0 0.0
    %484 = vmatprep.subr.mxu0 0.0
    %485 = vmatpush1.msra.mxu0 0.0
    %486 = vmatprep.subr.mxu0 0.0
    %487 = vmatpush1.msra.mxu0 0.0
    %488 = vmatprep.subr.mxu0 0.0
    %489 = vmatpush1.msra.mxu0 0.0
    %490 = vmatprep.subr.mxu0 0.0
    %491 = vmatpush1.msra.mxu0 0.0
    %492 = vmatprep.subr.mxu0 0.0
    %493 = vmatpush1.msra.mxu0 0.0
    %494 = vmatprep.subr.mxu0 0.0
    %495 = vmatpush1.msra.mxu0 0.0
    %496 = vmatprep.subr.mxu0 0.0
    %497 = vmatpush1.msra.mxu0 0.0
    %498 = vmatprep.subr.mxu0 0.0
    %499 = vmatpush1.msra.mxu0 0.0
    %500 = vmatprep.subr.mxu0 0.0
    %501 = vmatpush1.msra.mxu0 0.0
    %502 = vmatprep.subr.mxu0 0.0
    %503 = vmatpush1.msra.mxu0 0.0
    %504 = vmatprep.subr.mxu0 0.0
    %505 = vmatpush1.msra.mxu0 0.0
    %506 = vmatprep.subr.mxu0 0.0
    %507 = vmatpush1.msra.mxu0 0.0
    %508 = vmatprep.subr.mxu0 0.0
    %509 = vmatpush1.msra.mxu0 0.0
    %510 = vmatprep.subr.mxu0 0.0
    %511 = vmatpush1.msra.mxu0 0.0
    %512 = vmatprep.subr.mxu0 0.0
    %513 = vmatpush1.msra.mxu0 0.0
    %514 = vmatprep.mubr.f32.mxu0 0.0
    %v515 = vand.u32 %v238, 4294901760
    %v516 = vsub.f32 %v238, %v515
    %517 = vmatmul.mubr.f32.gmra.mrb[0].mxu0 %v516
    %v518 = vpop.f32.mrb[0].mxu0
    %v519 = vadd.f32 %v431, %v518
    %v520 = vpop.f32.mrb[0].mxu0
    %521 = vdwg.mxu0
    %522 = vmatprep.subr.mxu0 0.0
    %v523 = vand.u32 %v228, 4294901760
    %524 = vmatpush1.msra.mxu0 %v523
    %525 = vmatprep.subr.mxu0 0.0
    %v526 = vand.u32 %v229, 4294901760
    %527 = vmatpush1.msra.mxu0 %v526
    %528 = vmatprep.subr.mxu0 0.0
    %v529 = vand.u32 %v230, 4294901760
    %530 = vmatpush1.msra.mxu0 %v529
    %531 = vmatprep.subr.mxu0 0.0
    %v532 = vand.u32 %v231, 4294901760
    %533 = vmatpush1.msra.mxu0 %v532
    %534 = vmatprep.subr.mxu0 0.0
    %v535 = vand.u32 %v232, 4294901760
    %536 = vmatpush1.msra.mxu0 %v535
    %537 = vmatprep.subr.mxu0 0.0
    %v538 = vand.u32 %v233, 4294901760
    %539 = vmatpush1.msra.mxu0 %v538
    %540 = vmatprep.subr.mxu0 0.0
    %v541 = vand.u32 %v234, 4294901760
    %542 = vmatpush1.msra.mxu0 %v541
    %543 = vmatprep.subr.mxu0 0.0
    %v544 = vand.u32 %v235, 4294901760
    %545 = vmatpush1.msra.mxu0 %v544
    %546 = vmatprep.subr.mxu0 0.0
    %547 = vmatpush1.msra.mxu0 0.0
    %548 = vmatprep.subr.mxu0 0.0
    %549 = vmatpush1.msra.mxu0 0.0
    %550 = vmatprep.subr.mxu0 0.0
    %551 = vmatpush1.msra.mxu0 0.0
    %552 = vmatprep.subr.mxu0 0.0
    %553 = vmatpush1.msra.mxu0 0.0
    %554 = vmatprep.subr.mxu0 0.0
    %555 = vmatpush1.msra.mxu0 0.0
    %556 = vmatprep.subr.mxu0 0.0
    %557 = vmatpush1.msra.mxu0 0.0
    %558 = vmatprep.subr.mxu0 0.0
    %559 = vmatpush1.msra.mxu0 0.0
    %560 = vmatprep.subr.mxu0 0.0
    %561 = vmatpush1.msra.mxu0 0.0
    %562 = vmatprep.subr.mxu0 0.0
    %563 = vmatpush1.msra.mxu0 0.0
    %564 = vmatprep.subr.mxu0 0.0
    %565 = vmatpush1.msra.mxu0 0.0
    %566 = vmatprep.subr.mxu0 0.0
    %567 = vmatpush1.msra.mxu0 0.0
    %568 = vmatprep.subr.mxu0 0.0
    %569 = vmatpush1.msra.mxu0 0.0
    %570 = vmatprep.subr.mxu0 0.0
    %571 = vmatpush1.msra.mxu0 0.0
    %572 = vmatprep.subr.mxu0 0.0
    %573 = vmatpush1.msra.mxu0 0.0
    %574 = vmatprep.subr.mxu0 0.0
    %575 = vmatpush1.msra.mxu0 0.0
    %576 = vmatprep.subr.mxu0 0.0
    %577 = vmatpush1.msra.mxu0 0.0
    %578 = vmatprep.subr.mxu0 0.0
    %579 = vmatpush1.msra.mxu0 0.0
    %580 = vmatprep.subr.mxu0 0.0
    %581 = vmatpush1.msra.mxu0 0.0
    %582 = vmatprep.subr.mxu0 0.0
    %583 = vmatpush1.msra.mxu0 0.0
    %584 = vmatprep.subr.mxu0 0.0
    %585 = vmatpush1.msra.mxu0 0.0
    %586 = vmatprep.subr.mxu0 0.0
    %587 = vmatpush1.msra.mxu0 0.0
    %588 = vmatprep.subr.mxu0 0.0
    %589 = vmatpush1.msra.mxu0 0.0
    %590 = vmatprep.subr.mxu0 0.0
    %591 = vmatpush1.msra.mxu0 0.0
    %592 = vmatprep.subr.mxu0 0.0
    %593 = vmatpush1.msra.mxu0 0.0
    %594 = vmatprep.mubr.f32.mxu0 0.0
    %v595 = vand.u32 %v238, 4294901760
    %v596 = vsub.f32 %v238, %v595
    %v597 = vand.u32 %v596, 4294901760
    %598 = vmatmul.mubr.f32.gmra.mrb[0].mxu0 %v597
    %v599 = vpop.f32.mrb[0].mxu0
    %v600 = vadd.f32 %v519, %v599
    %v601 = vpop.f32.mrb[0].mxu0
    %602 = vdwg.mxu0
    %603 = vmatprep.subr.mxu0 0.0
    %v604 = vand.u32 %v228, 4294901760
    %v605 = vsub.f32 %v228, %v604
    %v606 = vand.u32 %v605, 4294901760
    %607 = vmatpush1.msra.mxu0 %v606
    %608 = vmatprep.subr.mxu0 0.0
    %v609 = vand.u32 %v229, 4294901760
    %v610 = vsub.f32 %v229, %v609
    %v611 = vand.u32 %v610, 4294901760
    %612 = vmatpush1.msra.mxu0 %v611
    %613 = vmatprep.subr.mxu0 0.0
    %v614 = vand.u32 %v230, 4294901760
    %v615 = vsub.f32 %v230, %v614
    %v616 = vand.u32 %v615, 4294901760
    %617 = vmatpush1.msra.mxu0 %v616
    %618 = vmatprep.subr.mxu0 0.0
    %v619 = vand.u32 %v231, 4294901760
    %v620 = vsub.f32 %v231, %v619
    %v621 = vand.u32 %v620, 4294901760
    %622 = vmatpush1.msra.mxu0 %v621
    %623 = vmatprep.subr.mxu0 0.0
    %v624 = vand.u32 %v232, 4294901760
    %v625 = vsub.f32 %v232, %v624
    %v626 = vand.u32 %v625, 4294901760
    %627 = vmatpush1.msra.mxu0 %v626
    %628 = vmatprep.subr.mxu0 0.0
    %v629 = vand.u32 %v233, 4294901760
    %v630 = vsub.f32 %v233, %v629
    %v631 = vand.u32 %v630, 4294901760
    %632 = vmatpush1.msra.mxu0 %v631
    %633 = vmatprep.subr.mxu0 0.0
    %v634 = vand.u32 %v234, 4294901760
    %v635 = vsub.f32 %v234, %v634
    %v636 = vand.u32 %v635, 4294901760
    %637 = vmatpush1.msra.mxu0 %v636
    %638 = vmatprep.subr.mxu0 0.0
    %v639 = vand.u32 %v235, 4294901760
    %v640 = vsub.f32 %v235, %v639
    %v641 = vand.u32 %v640, 4294901760
    %642 = vmatpush1.msra.mxu0 %v641
    %643 = vmatprep.subr.mxu0 0.0
    %644 = vmatpush1.msra.mxu0 0.0
    %645 = vmatprep.subr.mxu0 0.0
    %646 = vmatpush1.msra.mxu0 0.0
    %647 = vmatprep.subr.mxu0 0.0
    %648 = vmatpush1.msra.mxu0 0.0
    %649 = vmatprep.subr.mxu0 0.0
    %650 = vmatpush1.msra.mxu0 0.0
    %651 = vmatprep.subr.mxu0 0.0
    %652 = vmatpush1.msra.mxu0 0.0
    %653 = vmatprep.subr.mxu0 0.0
    %654 = vmatpush1.msra.mxu0 0.0
    %655 = vmatprep.subr.mxu0 0.0
    %656 = vmatpush1.msra.mxu0 0.0
    %657 = vmatprep.subr.mxu0 0.0
    %658 = vmatpush1.msra.mxu0 0.0
    %659 = vmatprep.subr.mxu0 0.0
    %660 = vmatpush1.msra.mxu0 0.0
    %661 = vmatprep.subr.mxu0 0.0
    %662 = vmatpush1.msra.mxu0 0.0
    %663 = vmatprep.subr.mxu0 0.0
    %664 = vmatpush1.msra.mxu0 0.0
    %665 = vmatprep.subr.mxu0 0.0
    %666 = vmatpush1.msra.mxu0 0.0
    %667 = vmatprep.subr.mxu0 0.0
    %668 = vmatpush1.msra.mxu0 0.0
    %669 = vmatprep.subr.mxu0 0.0
    %670 = vmatpush1.msra.mxu0 0.0
    %671 = vmatprep.subr.mxu0 0.0
    %672 = vmatpush1.msra.mxu0 0.0
    %673 = vmatprep.subr.mxu0 0.0
    %674 = vmatpush1.msra.mxu0 0.0
    %675 = vmatprep.subr.mxu0 0.0
    %676 = vmatpush1.msra.mxu0 0.0
    %677 = vmatprep.subr.mxu0 0.0
    %678 = vmatpush1.msra.mxu0 0.0
    %679 = vmatprep.subr.mxu0 0.0
    %680 = vmatpush1.msra.mxu0 0.0
    %681 = vmatprep.subr.mxu0 0.0
    %682 = vmatpush1.msra.mxu0 0.0
    %683 = vmatprep.subr.mxu0 0.0
    %684 = vmatpush1.msra.mxu0 0.0
    %685 = vmatprep.subr.mxu0 0.0
    %686 = vmatpush1.msra.mxu0 0.0
    %687 = vmatprep.subr.mxu0 0.0
    %688 = vmatpush1.msra.mxu0 0.0
    %689 = vmatprep.subr.mxu0 0.0
    %690 = vmatpush1.msra.mxu0 0.0
    %691 = vmatprep.mubr.f32.mxu0 0.0
    %v692 = vand.u32 %v238, 4294901760
    %693 = vmatmul.mubr.f32.gmra.mrb[0].mxu0 %v692
    %v694 = vpop.f32.mrb[0].mxu0
    %v695 = vadd.f32 %v600, %v694
    %v696 = vpop.f32.mrb[0].mxu0
    %697 = vdwg.mxu0
    %698 = vmatprep.subr.mxu0 0.0
    %v699 = vand.u32 %v228, 4294901760
    %700 = vmatpush1.msra.mxu0 %v699
    %701 = vmatprep.subr.mxu0 0.0
    %v702 = vand.u32 %v229, 4294901760
    %703 = vmatpush1.msra.mxu0 %v702
    %704 = vmatprep.subr.mxu0 0.0
    %v705 = vand.u32 %v230, 4294901760
    %706 = vmatpush1.msra.mxu0 %v705
    %707 = vmatprep.subr.mxu0 0.0
    %v708 = vand.u32 %v231, 4294901760
    %709 = vmatpush1.msra.mxu0 %v708
    %710 = vmatprep.subr.mxu0 0.0
    %v711 = vand.u32 %v232, 4294901760
    %712 = vmatpush1.msra.mxu0 %v711
    %713 = vmatprep.subr.mxu0 0.0
    %v714 = vand.u32 %v233, 4294901760
    %715 = vmatpush1.msra.mxu0 %v714
    %716 = vmatprep.subr.mxu0 0.0
    %v717 = vand.u32 %v234, 4294901760
    %718 = vmatpush1.msra.mxu0 %v717
    %719 = vmatprep.subr.mxu0 0.0
    %v720 = vand.u32 %v235, 4294901760
    %721 = vmatpush1.msra.mxu0 %v720
    %722 = vmatprep.subr.mxu0 0.0
    %723 = vmatpush1.msra.mxu0 0.0
    %724 = vmatprep.subr.mxu0 0.0
    %725 = vmatpush1.msra.mxu0 0.0
    %726 = vmatprep.subr.mxu0 0.0
    %727 = vmatpush1.msra.mxu0 0.0
    %728 = vmatprep.subr.mxu0 0.0
    %729 = vmatpush1.msra.mxu0 0.0
    %730 = vmatprep.subr.mxu0 0.0
    %731 = vmatpush1.msra.mxu0 0.0
    %732 = vmatprep.subr.mxu0 0.0
    %733 = vmatpush1.msra.mxu0 0.0
    %734 = vmatprep.subr.mxu0 0.0
    %735 = vmatpush1.msra.mxu0 0.0
    %736 = vmatprep.subr.mxu0 0.0
    %737 = vmatpush1.msra.mxu0 0.0
    %738 = vmatprep.subr.mxu0 0.0
    %739 = vmatpush1.msra.mxu0 0.0
    %740 = vmatprep.subr.mxu0 0.0
    %741 = vmatpush1.msra.mxu0 0.0
    %742 = vmatprep.subr.mxu0 0.0
    %743 = vmatpush1.msra.mxu0 0.0
    %744 = vmatprep.subr.mxu0 0.0
    %745 = vmatpush1.msra.mxu0 0.0
    %746 = vmatprep.subr.mxu0 0.0
    %747 = vmatpush1.msra.mxu0 0.0
    %748 = vmatprep.subr.mxu0 0.0
    %749 = vmatpush1.msra.mxu0 0.0
    %750 = vmatprep.subr.mxu0 0.0
    %751 = vmatpush1.msra.mxu0 0.0
    %752 = vmatprep.subr.mxu0 0.0
    %753 = vmatpush1.msra.mxu0 0.0
    %754 = vmatprep.subr.mxu0 0.0
    %755 = vmatpush1.msra.mxu0 0.0
    %756 = vmatprep.subr.mxu0 0.0
    %757 = vmatpush1.msra.mxu0 0.0
    %758 = vmatprep.subr.mxu0 0.0
    %759 = vmatpush1.msra.mxu0 0.0
    %760 = vmatprep.subr.mxu0 0.0
    %761 = vmatpush1.msra.mxu0 0.0
    %762 = vmatprep.subr.mxu0 0.0
    %763 = vmatpush1.msra.mxu0 0.0
    %764 = vmatprep.subr.mxu0 0.0
    %765 = vmatpush1.msra.mxu0 0.0
    %766 = vmatprep.subr.mxu0 0.0
    %767 = vmatpush1.msra.mxu0 0.0
    %768 = vmatprep.subr.mxu0 0.0
    %769 = vmatpush1.msra.mxu0 0.0
    %770 = vmatprep.mubr.f32.mxu0 0.0
    %v771 = vand.u32 %v238, 4294901760
    %772 = vmatmul.mubr.f32.gmra.mrb[0].mxu0 %v771
    %v773 = vpop.f32.mrb[0].mxu0
    %v774 = vadd.f32 %v695, %v773
    %v775 = vpop.f32.mrb[0].mxu0
    %776 = vdwg.mxu0
    %v777 = vmax.f32 %v774, 0.0
    %779 = vrot.lane.b32.xlu0 %v777, 126
    %v780 = vpop.permute.xlu0 %779
    %v782 = vadd.f32 %v777, %v780
    %v783 = vld [vmem:[%s2] sm:$0xff]
    %v784 = vld [vmem:[%s2 + $0x8] sm:$0xff]
    %v785 = vld [vmem:[%s2 + $0x10] sm:$0xff]
    %v786 = vld [vmem:[%s2 + $0x18] sm:$0xff]
    %v787 = vld [vmem:[%s2 + $0x20] sm:$0xff]
    %v788 = vld [vmem:[%s2 + $0x28] sm:$0xff]
    %v789 = vld [vmem:[%s2 + $0x30] sm:$0xff]
    %v790 = vld [vmem:[%s2 + $0x38] sm:$0xff]
    %vm791 = vcmask 64512
    %v793 = vsel %vm791, %v783, 0
    %v796 = vsel %vm791, %v784, 0
    %v799 = vsel %vm791, %v785, 0
    %v802 = vsel %vm791, %v786, 0
    %v805 = vsel %vm791, %v787, 0
    %v808 = vsel %vm791, %v788, 0
    %v811 = vsel %vm791, %v789, 0
    %v814 = vsel %vm791, %v790, 0
    %816 = vmatprep.subr.mxu0 0.0
    %v817 = vand.u32 %v782, 4294901760
    %818 = vmatpush1.msra.mxu0 %v817
    %819 = vmatprep.subr.mxu0 0.0
    %820 = vmatpush1.msra.mxu0 0.0
    %821 = vmatprep.subr.mxu0 0.0
    %822 = vmatpush1.msra.mxu0 0.0
    %823 = vmatprep.subr.mxu0 0.0
    %824 = vmatpush1.msra.mxu0 0.0
    %825 = vmatprep.subr.mxu0 0.0
    %826 = vmatpush1.msra.mxu0 0.0
    %827 = vmatprep.subr.mxu0 0.0
    %828 = vmatpush1.msra.mxu0 0.0
    %829 = vmatprep.subr.mxu0 0.0
    %830 = vmatpush1.msra.mxu0 0.0
    %831 = vmatprep.subr.mxu0 0.0
    %832 = vmatpush1.msra.mxu0 0.0
    %833 = vmatprep.subr.mxu0 0.0
    %834 = vmatpush1.msra.mxu0 0.0
    %835 = vmatprep.subr.mxu0 0.0
    %836 = vmatpush1.msra.mxu0 0.0
    %837 = vmatprep.subr.mxu0 0.0
    %838 = vmatpush1.msra.mxu0 0.0
    %839 = vmatprep.subr.mxu0 0.0
    %840 = vmatpush1.msra.mxu0 0.0
    %841 = vmatprep.subr.mxu0 0.0
    %842 = vmatpush1.msra.mxu0 0.0
    %843 = vmatprep.subr.mxu0 0.0
    %844 = vmatpush1.msra.mxu0 0.0
    %845 = vmatprep.subr.mxu0 0.0
    %846 = vmatpush1.msra.mxu0 0.0
    %847 = vmatprep.subr.mxu0 0.0
    %848 = vmatpush1.msra.mxu0 0.0
    %849 = vmatprep.subr.mxu0 0.0
    %850 = vmatpush1.msra.mxu0 0.0
    %851 = vmatprep.subr.mxu0 0.0
    %852 = vmatpush1.msra.mxu0 0.0
    %853 = vmatprep.subr.mxu0 0.0
    %854 = vmatpush1.msra.mxu0 0.0
    %855 = vmatprep.subr.mxu0 0.0
    %856 = vmatpush1.msra.mxu0 0.0
    %857 = vmatprep.subr.mxu0 0.0
    %858 = vmatpush1.msra.mxu0 0.0
    %859 = vmatprep.subr.mxu0 0.0
    %860 = vmatpush1.msra.mxu0 0.0
    %861 = vmatprep.subr.mxu0 0.0
    %862 = vmatpush1.msra.mxu0 0.0
    %863 = vmatprep.subr.mxu0 0.0
    %864 = vmatpush1.msra.mxu0 0.0
    %865 = vmatprep.subr.mxu0 0.0
    %866 = vmatpush1.msra.mxu0 0.0
    %867 = vmatprep.subr.mxu0 0.0
    %868 = vmatpush1.msra.mxu0 0.0
    %869 = vmatprep.subr.mxu0 0.0
    %870 = vmatpush1.msra.mxu0 0.0
    %871 = vmatprep.subr.mxu0 0.0
    %872 = vmatpush1.msra.mxu0 0.0
    %873 = vmatprep.subr.mxu0 0.0
    %874 = vmatpush1.msra.mxu0 0.0
    %875 = vmatprep.subr.mxu0 0.0
    %876 = vmatpush1.msra.mxu0 0.0
    %877 = vmatprep.subr.mxu0 0.0
    %878 = vmatpush1.msra.mxu0 0.0
    %879 = vmatprep.subr.mxu0 0.0
    %880 = vmatpush1.msra.mxu0 0.0
    %881 = vmatprep.mubr.f32.mxu0 0.0
    %v882 = vand.u32 %v793, 4294901760
    %v883 = vsub.f32 %v793, %v882
    %v884 = vand.u32 %v883, 4294901760
    %v885 = vsub.f32 %v883, %v884
    %v886 = vand.u32 %v885, 4294901760
    %887 = vmatmul.mubr.f32.gmra.mrb[0].mxu0 %v886
    %v888 = vpop.f32.mrb[0].mxu0
    %v889 = vadd.f32 0.0, %v888
    %v890 = vpop.f32.mrb[0].mxu0
    %891 = vmatprep.mubr.f32.mxu0 0.0
    %v892 = vand.u32 %v796, 4294901760
    %v893 = vsub.f32 %v796, %v892
    %v894 = vand.u32 %v893, 4294901760
    %v895 = vsub.f32 %v893, %v894
    %v896 = vand.u32 %v895, 4294901760
    %897 = vmatmul.mubr.f32.gmra.mrb[0].mxu0 %v896
    %v898 = vpop.f32.mrb[0].mxu0
    %v899 = vadd.f32 0.0, %v898
    %v900 = vpop.f32.mrb[0].mxu0
    %901 = vmatprep.mubr.f32.mxu0 0.0
    %v902 = vand.u32 %v799, 4294901760
    %v903 = vsub.f32 %v799, %v902
    %v904 = vand.u32 %v903, 4294901760
    %v905 = vsub.f32 %v903, %v904
    %v906 = vand.u32 %v905, 4294901760
    %907 = vmatmul.mubr.f32.gmra.mrb[0].mxu0 %v906
    %v908 = vpop.f32.mrb[0].mxu0
    %v909 = vadd.f32 0.0, %v908
    %v910 = vpop.f32.mrb[0].mxu0
    %911 = vmatprep.mubr.f32.mxu0 0.0
    %v912 = vand.u32 %v802, 4294901760
    %v913 = vsub.f32 %v802, %v912
    %v914 = vand.u32 %v913, 4294901760
    %v915 = vsub.f32 %v913, %v914
    %v916 = vand.u32 %v915, 4294901760
    %917 = vmatmul.mubr.f32.gmra.mrb[0].mxu0 %v916
    %v918 = vpop.f32.mrb[0].mxu0
    %v919 = vadd.f32 0.0, %v918
    %v920 = vpop.f32.mrb[0].mxu0
    %921 = vmatprep.mubr.f32.mxu0 0.0
    %v922 = vand.u32 %v805, 4294901760
    %v923 = vsub.f32 %v805, %v922
    %v924 = vand.u32 %v923, 4294901760
    %v925 = vsub.f32 %v923, %v924
    %v926 = vand.u32 %v925, 4294901760
    %927 = vmatmul.mubr.f32.gmra.mrb[0].mxu0 %v926
    %v928 = vpop.f32.mrb[0].mxu0
    %v929 = vadd.f32 0.0, %v928
    %v930 = vpop.f32.mrb[0].mxu0
    %931 = vmatprep.mubr.f32.mxu0 0.0
    %v932 = vand.u32 %v808, 4294901760
    %v933 = vsub.f32 %v808, %v932
    %v934 = vand.u32 %v933, 4294901760
    %v935 = vsub.f32 %v933, %v934
    %v936 = vand.u32 %v935, 4294901760
    %937 = vmatmul.mubr.f32.gmra.mrb[0].mxu0 %v936
    %v938 = vpop.f32.mrb[0].mxu0
    %v939 = vadd.f32 0.0, %v938
    %v940 = vpop.f32.mrb[0].mxu0
    %941 = vmatprep.mubr.f32.mxu0 0.0
    %v942 = vand.u32 %v811, 4294901760
    %v943 = vsub.f32 %v811, %v942
    %v944 = vand.u32 %v943, 4294901760
    %v945 = vsub.f32 %v943, %v944
    %v946 = vand.u32 %v945, 4294901760
    %947 = vmatmul.mubr.f32.gmra.mrb[0].mxu0 %v946
    %v948 = vpop.f32.mrb[0].mxu0
    %v949 = vadd.f32 0.0, %v948
    %v950 = vpop.f32.mrb[0].mxu0
    %951 = vmatprep.mubr.f32.mxu0 0.0
    %v952 = vand.u32 %v814, 4294901760
    %v953 = vsub.f32 %v814, %v952
    %v954 = vand.u32 %v953, 4294901760
    %v955 = vsub.f32 %v953, %v954
    %v956 = vand.u32 %v955, 4294901760
    %957 = vmatmul.mubr.f32.gmra.mrb[0].mxu0 %v956
    %v958 = vpop.f32.mrb[0].mxu0
    %v959 = vadd.f32 0.0, %v958
    %v960 = vpop.f32.mrb[0].mxu0
    %961 = vdwg.mxu0
    %962 = vmatprep.subr.mxu0 0.0
    %v963 = vand.u32 %v782, 4294901760
    %v964 = vsub.f32 %v782, %v963
    %v965 = vand.u32 %v964, 4294901760
    %v966 = vsub.f32 %v964, %v965
    %v967 = vand.u32 %v966, 4294901760
    %968 = vmatpush1.msra.mxu0 %v967
    %969 = vmatprep.subr.mxu0 0.0
    %970 = vmatpush1.msra.mxu0 0.0
    %971 = vmatprep.subr.mxu0 0.0
    %972 = vmatpush1.msra.mxu0 0.0
    %973 = vmatprep.subr.mxu0 0.0
    %974 = vmatpush1.msra.mxu0 0.0
    %975 = vmatprep.subr.mxu0 0.0
    %976 = vmatpush1.msra.mxu0 0.0
    %977 = vmatprep.subr.mxu0 0.0
    %978 = vmatpush1.msra.mxu0 0.0
    %979 = vmatprep.subr.mxu0 0.0
    %980 = vmatpush1.msra.mxu0 0.0
    %981 = vmatprep.subr.mxu0 0.0
    %982 = vmatpush1.msra.mxu0 0.0
    %983 = vmatprep.subr.mxu0 0.0
    %984 = vmatpush1.msra.mxu0 0.0
    %985 = vmatprep.subr.mxu0 0.0
    %986 = vmatpush1.msra.mxu0 0.0
    %987 = vmatprep.subr.mxu0 0.0
    %988 = vmatpush1.msra.mxu0 0.0
    %989 = vmatprep.subr.mxu0 0.0
    %990 = vmatpush1.msra.mxu0 0.0
    %991 = vmatprep.subr.mxu0 0.0
    %992 = vmatpush1.msra.mxu0 0.0
    %993 = vmatprep.subr.mxu0 0.0
    %994 = vmatpush1.msra.mxu0 0.0
    %995 = vmatprep.subr.mxu0 0.0
    %996 = vmatpush1.msra.mxu0 0.0
    %997 = vmatprep.subr.mxu0 0.0
    %998 = vmatpush1.msra.mxu0 0.0
    %999 = vmatprep.subr.mxu0 0.0
    %1000 = vmatpush1.msra.mxu0 0.0
    %1001 = vmatprep.subr.mxu0 0.0
    %1002 = vmatpush1.msra.mxu0 0.0
    %1003 = vmatprep.subr.mxu0 0.0
    %1004 = vmatpush1.msra.mxu0 0.0
    %1005 = vmatprep.subr.mxu0 0.0
    %1006 = vmatpush1.msra.mxu0 0.0
    %1007 = vmatprep.subr.mxu0 0.0
    %1008 = vmatpush1.msra.mxu0 0.0
    %1009 = vmatprep.subr.mxu0 0.0
    %1010 = vmatpush1.msra.mxu0 0.0
    %1011 = vmatprep.subr.mxu0 0.0
    %1012 = vmatpush1.msra.mxu0 0.0
    %1013 = vmatprep.subr.mxu0 0.0
    %1014 = vmatpush1.msra.mxu0 0.0
    %1015 = vmatprep.subr.mxu0 0.0
    %1016 = vmatpush1.msra.mxu0 0.0
    %1017 = vmatprep.subr.mxu0 0.0
    %1018 = vmatpush1.msra.mxu0 0.0
    %1019 = vmatprep.subr.mxu0 0.0
    %1020 = vmatpush1.msra.mxu0 0.0
    %1021 = vmatprep.subr.mxu0 0.0
    %1022 = vmatpush1.msra.mxu0 0.0
    %1023 = vmatprep.subr.mxu0 0.0
    %1024 = vmatpush1.msra.mxu0 0.0
    %1025 = vmatprep.subr.mxu0 0.0
    %1026 = vmatpush1.msra.mxu0 0.0
    %1027 = vmatprep.subr.mxu0 0.0
    %1028 = vmatpush1.msra.mxu0 0.0
    %1029 = vmatprep.subr.mxu0 0.0
    %1030 = vmatpush1.msra.mxu0 0.0
    %1031 = vmatprep.mubr.f32.mxu0 0.0
    %v1032 = vand.u32 %v793, 4294901760
    %1033 = vmatmul.mubr.f32.gmra.mrb[0].mxu0 %v1032
    %v1034 = vpop.f32.mrb[0].mxu0
    %v1035 = vadd.f32 %v889, %v1034
    %v1036 = vpop.f32.mrb[0].mxu0
    %1037 = vmatprep.mubr.f32.mxu0 0.0
    %v1038 = vand.u32 %v796, 4294901760
    %1039 = vmatmul.mubr.f32.gmra.mrb[0].mxu0 %v1038
    %v1040 = vpop.f32.mrb[0].mxu0
    %v1041 = vadd.f32 %v899, %v1040
    %v1042 = vpop.f32.mrb[0].mxu0
    %1043 = vmatprep.mubr.f32.mxu0 0.0
    %v1044 = vand.u32 %v799, 4294901760
    %1045 = vmatmul.mubr.f32.gmra.mrb[0].mxu0 %v1044
    %v1046 = vpop.f32.mrb[0].mxu0
    %v1047 = vadd.f32 %v909, %v1046
    %v1048 = vpop.f32.mrb[0].mxu0
    %1049 = vmatprep.mubr.f32.mxu0 0.0
    %v1050 = vand.u32 %v802, 4294901760
    %1051 = vmatmul.mubr.f32.gmra.mrb[0].mxu0 %v1050
    %v1052 = vpop.f32.mrb[0].mxu0
    %v1053 = vadd.f32 %v919, %v1052
    %v1054 = vpop.f32.mrb[0].mxu0
    %1055 = vmatprep.mubr.f32.mxu0 0.0
    %v1056 = vand.u32 %v805, 4294901760
    %1057 = vmatmul.mubr.f32.gmra.mrb[0].mxu0 %v1056
    %v1058 = vpop.f32.mrb[0].mxu0
    %v1059 = vadd.f32 %v929, %v1058
    %v1060 = vpop.f32.mrb[0].mxu0
    %1061 = vmatprep.mubr.f32.mxu0 0.0
    %v1062 = vand.u32 %v808, 4294901760
    %1063 = vmatmul.mubr.f32.gmra.mrb[0].mxu0 %v1062
    %v1064 = vpop.f32.mrb[0].mxu0
    %v1065 = vadd.f32 %v939, %v1064
    %v1066 = vpop.f32.mrb[0].mxu0
    %1067 = vmatprep.mubr.f32.mxu0 0.0
    %v1068 = vand.u32 %v811, 4294901760
    %1069 = vmatmul.mubr.f32.gmra.mrb[0].mxu0 %v1068
    %v1070 = vpop.f32.mrb[0].mxu0
    %v1071 = vadd.f32 %v949, %v1070
    %v1072 = vpop.f32.mrb[0].mxu0
    %1073 = vmatprep.mubr.f32.mxu0 0.0
    %v1074 = vand.u32 %v814, 4294901760
    %1075 = vmatmul.mubr.f32.gmra.mrb[0].mxu0 %v1074
    %v1076 = vpop.f32.mrb[0].mxu0
    %v1077 = vadd.f32 %v959, %v1076
    %v1078 = vpop.f32.mrb[0].mxu0
    %1079 = vdwg.mxu0
    %1080 = vmatprep.subr.mxu0 0.0
    %v1081 = vand.u32 %v782, 4294901760
    %v1082 = vsub.f32 %v782, %v1081
    %1083 = vmatpush1.msra.mxu0 %v1082
    %1084 = vmatprep.subr.mxu0 0.0
    %1085 = vmatpush1.msra.mxu0 0.0
    %1086 = vmatprep.subr.mxu0 0.0
    %1087 = vmatpush1.msra.mxu0 0.0
    %1088 = vmatprep.subr.mxu0 0.0
    %1089 = vmatpush1.msra.mxu0 0.0
    %1090 = vmatprep.subr.mxu0 0.0
    %1091 = vmatpush1.msra.mxu0 0.0
    %1092 = vmatprep.subr.mxu0 0.0
    %1093 = vmatpush1.msra.mxu0 0.0
    %1094 = vmatprep.subr.mxu0 0.0
    %1095 = vmatpush1.msra.mxu0 0.0
    %1096 = vmatprep.subr.mxu0 0.0
    %1097 = vmatpush1.msra.mxu0 0.0
    %1098 = vmatprep.subr.mxu0 0.0
    %1099 = vmatpush1.msra.mxu0 0.0
    %1100 = vmatprep.subr.mxu0 0.0
    %1101 = vmatpush1.msra.mxu0 0.0
    %1102 = vmatprep.subr.mxu0 0.0
    %1103 = vmatpush1.msra.mxu0 0.0
    %1104 = vmatprep.subr.mxu0 0.0
    %1105 = vmatpush1.msra.mxu0 0.0
    %1106 = vmatprep.subr.mxu0 0.0
    %1107 = vmatpush1.msra.mxu0 0.0
    %1108 = vmatprep.subr.mxu0 0.0
    %1109 = vmatpush1.msra.mxu0 0.0
    %1110 = vmatprep.subr.mxu0 0.0
    %1111 = vmatpush1.msra.mxu0 0.0
    %1112 = vmatprep.subr.mxu0 0.0
    %1113 = vmatpush1.msra.mxu0 0.0
    %1114 = vmatprep.subr.mxu0 0.0
    %1115 = vmatpush1.msra.mxu0 0.0
    %1116 = vmatprep.subr.mxu0 0.0
    %1117 = vmatpush1.msra.mxu0 0.0
    %1118 = vmatprep.subr.mxu0 0.0
    %1119 = vmatpush1.msra.mxu0 0.0
    %1120 = vmatprep.subr.mxu0 0.0
    %1121 = vmatpush1.msra.mxu0 0.0
    %1122 = vmatprep.subr.mxu0 0.0
    %1123 = vmatpush1.msra.mxu0 0.0
    %1124 = vmatprep.subr.mxu0 0.0
    %1125 = vmatpush1.msra.mxu0 0.0
    %1126 = vmatprep.subr.mxu0 0.0
    %1127 = vmatpush1.msra.mxu0 0.0
    %1128 = vmatprep.subr.mxu0 0.0
    %1129 = vmatpush1.msra.mxu0 0.0
    %1130 = vmatprep.subr.mxu0 0.0
    %1131 = vmatpush1.msra.mxu0 0.0
    %1132 = vmatprep.subr.mxu0 0.0
    %1133 = vmatpush1.msra.mxu0 0.0
    %1134 = vmatprep.subr.mxu0 0.0
    %1135 = vmatpush1.msra.mxu0 0.0
    %1136 = vmatprep.subr.mxu0 0.0
    %1137 = vmatpush1.msra.mxu0 0.0
    %1138 = vmatprep.subr.mxu0 0.0
    %1139 = vmatpush1.msra.mxu0 0.0
    %1140 = vmatprep.subr.mxu0 0.0
    %1141 = vmatpush1.msra.mxu0 0.0
    %1142 = vmatprep.subr.mxu0 0.0
    %1143 = vmatpush1.msra.mxu0 0.0
    %1144 = vmatprep.subr.mxu0 0.0
    %1145 = vmatpush1.msra.mxu0 0.0
    %1146 = vmatprep.mubr.f32.mxu0 0.0
    %v1147 = vand.u32 %v793, 4294901760
    %v1148 = vsub.f32 %v793, %v1147
    %1149 = vmatmul.mubr.f32.gmra.mrb[0].mxu0 %v1148
    %v1150 = vpop.f32.mrb[0].mxu0
    %v1151 = vadd.f32 %v1035, %v1150
    %v1152 = vpop.f32.mrb[0].mxu0
    %1153 = vmatprep.mubr.f32.mxu0 0.0
    %v1154 = vand.u32 %v796, 4294901760
    %v1155 = vsub.f32 %v796, %v1154
    %1156 = vmatmul.mubr.f32.gmra.mrb[0].mxu0 %v1155
    %v1157 = vpop.f32.mrb[0].mxu0
    %v1158 = vadd.f32 %v1041, %v1157
    %v1159 = vpop.f32.mrb[0].mxu0
    %1160 = vmatprep.mubr.f32.mxu0 0.0
    %v1161 = vand.u32 %v799, 4294901760
    %v1162 = vsub.f32 %v799, %v1161
    %1163 = vmatmul.mubr.f32.gmra.mrb[0].mxu0 %v1162
    %v1164 = vpop.f32.mrb[0].mxu0
    %v1165 = vadd.f32 %v1047, %v1164
    %v1166 = vpop.f32.mrb[0].mxu0
    %1167 = vmatprep.mubr.f32.mxu0 0.0
    %v1168 = vand.u32 %v802, 4294901760
    %v1169 = vsub.f32 %v802, %v1168
    %1170 = vmatmul.mubr.f32.gmra.mrb[0].mxu0 %v1169
    %v1171 = vpop.f32.mrb[0].mxu0
    %v1172 = vadd.f32 %v1053, %v1171
    %v1173 = vpop.f32.mrb[0].mxu0
    %1174 = vmatprep.mubr.f32.mxu0 0.0
    %v1175 = vand.u32 %v805, 4294901760
    %v1176 = vsub.f32 %v805, %v1175
    %1177 = vmatmul.mubr.f32.gmra.mrb[0].mxu0 %v1176
    %v1178 = vpop.f32.mrb[0].mxu0
    %v1179 = vadd.f32 %v1059, %v1178
    %v1180 = vpop.f32.mrb[0].mxu0
    %1181 = vmatprep.mubr.f32.mxu0 0.0
    %v1182 = vand.u32 %v808, 4294901760
    %v1183 = vsub.f32 %v808, %v1182
    %1184 = vmatmul.mubr.f32.gmra.mrb[0].mxu0 %v1183
    %v1185 = vpop.f32.mrb[0].mxu0
    %v1186 = vadd.f32 %v1065, %v1185
    %v1187 = vpop.f32.mrb[0].mxu0
    %1188 = vmatprep.mubr.f32.mxu0 0.0
    %v1189 = vand.u32 %v811, 4294901760
    %v1190 = vsub.f32 %v811, %v1189
    %1191 = vmatmul.mubr.f32.gmra.mrb[0].mxu0 %v1190
    %v1192 = vpop.f32.mrb[0].mxu0
    %v1193 = vadd.f32 %v1071, %v1192
    %v1194 = vpop.f32.mrb[0].mxu0
    %1195 = vmatprep.mubr.f32.mxu0 0.0
    %v1196 = vand.u32 %v814, 4294901760
    %v1197 = vsub.f32 %v814, %v1196
    %1198 = vmatmul.mubr.f32.gmra.mrb[0].mxu0 %v1197
    %v1199 = vpop.f32.mrb[0].mxu0
    %v1200 = vadd.f32 %v1077, %v1199
    %v1201 = vpop.f32.mrb[0].mxu0
    %1202 = vdwg.mxu0
    %1203 = vmatprep.subr.mxu0 0.0
    %v1204 = vand.u32 %v782, 4294901760
    %1205 = vmatpush1.msra.mxu0 %v1204
    %1206 = vmatprep.subr.mxu0 0.0
    %1207 = vmatpush1.msra.mxu0 0.0
    %1208 = vmatprep.subr.mxu0 0.0
    %1209 = vmatpush1.msra.mxu0 0.0
    %1210 = vmatprep.subr.mxu0 0.0
    %1211 = vmatpush1.msra.mxu0 0.0
    %1212 = vmatprep.subr.mxu0 0.0
    %1213 = vmatpush1.msra.mxu0 0.0
    %1214 = vmatprep.subr.mxu0 0.0
    %1215 = vmatpush1.msra.mxu0 0.0
    %1216 = vmatprep.subr.mxu0 0.0
    %1217 = vmatpush1.msra.mxu0 0.0
    %1218 = vmatprep.subr.mxu0 0.0
    %1219 = vmatpush1.msra.mxu0 0.0
    %1220 = vmatprep.subr.mxu0 0.0
    %1221 = vmatpush1.msra.mxu0 0.0
    %1222 = vmatprep.subr.mxu0 0.0
    %1223 = vmatpush1.msra.mxu0 0.0
    %1224 = vmatprep.subr.mxu0 0.0
    %1225 = vmatpush1.msra.mxu0 0.0
    %1226 = vmatprep.subr.mxu0 0.0
    %1227 = vmatpush1.msra.mxu0 0.0
    %1228 = vmatprep.subr.mxu0 0.0
    %1229 = vmatpush1.msra.mxu0 0.0
    %1230 = vmatprep.subr.mxu0 0.0
    %1231 = vmatpush1.msra.mxu0 0.0
    %1232 = vmatprep.subr.mxu0 0.0
    %1233 = vmatpush1.msra.mxu0 0.0
    %1234 = vmatprep.subr.mxu0 0.0
    %1235 = vmatpush1.msra.mxu0 0.0
    %1236 = vmatprep.subr.mxu0 0.0
    %1237 = vmatpush1.msra.mxu0 0.0
    %1238 = vmatprep.subr.mxu0 0.0
    %1239 = vmatpush1.msra.mxu0 0.0
    %1240 = vmatprep.subr.mxu0 0.0
    %1241 = vmatpush1.msra.mxu0 0.0
    %1242 = vmatprep.subr.mxu0 0.0
    %1243 = vmatpush1.msra.mxu0 0.0
    %1244 = vmatprep.subr.mxu0 0.0
    %1245 = vmatpush1.msra.mxu0 0.0
    %1246 = vmatprep.subr.mxu0 0.0
    %1247 = vmatpush1.msra.mxu0 0.0
    %1248 = vmatprep.subr.mxu0 0.0
    %1249 = vmatpush1.msra.mxu0 0.0
    %1250 = vmatprep.subr.mxu0 0.0
    %1251 = vmatpush1.msra.mxu0 0.0
    %1252 = vmatprep.subr.mxu0 0.0
    %1253 = vmatpush1.msra.mxu0 0.0
    %1254 = vmatprep.subr.mxu0 0.0
    %1255 = vmatpush1.msra.mxu0 0.0
    %1256 = vmatprep.subr.mxu0 0.0
    %1257 = vmatpush1.msra.mxu0 0.0
    %1258 = vmatprep.subr.mxu0 0.0
    %1259 = vmatpush1.msra.mxu0 0.0
    %1260 = vmatprep.subr.mxu0 0.0
    %1261 = vmatpush1.msra.mxu0 0.0
    %1262 = vmatprep.subr.mxu0 0.0
    %1263 = vmatpush1.msra.mxu0 0.0
    %1264 = vmatprep.subr.mxu0 0.0
    %1265 = vmatpush1.msra.mxu0 0.0
    %1266 = vmatprep.subr.mxu0 0.0
    %1267 = vmatpush1.msra.mxu0 0.0
    %1268 = vmatprep.mubr.f32.mxu0 0.0
    %v1269 = vand.u32 %v793, 4294901760
    %v1270 = vsub.f32 %v793, %v1269
    %v1271 = vand.u32 %v1270, 4294901760
    %1272 = vmatmul.mubr.f32.gmra.mrb[0].mxu0 %v1271
    %v1273 = vpop.f32.mrb[0].mxu0
    %v1274 = vadd.f32 %v1151, %v1273
    %v1275 = vpop.f32.mrb[0].mxu0
    %1276 = vmatprep.mubr.f32.mxu0 0.0
    %v1277 = vand.u32 %v796, 4294901760
    %v1278 = vsub.f32 %v796, %v1277
    %v1279 = vand.u32 %v1278, 4294901760
    %1280 = vmatmul.mubr.f32.gmra.mrb[0].mxu0 %v1279
    %v1281 = vpop.f32.mrb[0].mxu0
    %v1282 = vadd.f32 %v1158, %v1281
    %v1283 = vpop.f32.mrb[0].mxu0
    %1284 = vmatprep.mubr.f32.mxu0 0.0
    %v1285 = vand.u32 %v799, 4294901760
    %v1286 = vsub.f32 %v799, %v1285
    %v1287 = vand.u32 %v1286, 4294901760
    %1288 = vmatmul.mubr.f32.gmra.mrb[0].mxu0 %v1287
    %v1289 = vpop.f32.mrb[0].mxu0
    %v1290 = vadd.f32 %v1165, %v1289
    %v1291 = vpop.f32.mrb[0].mxu0
    %1292 = vmatprep.mubr.f32.mxu0 0.0
    %v1293 = vand.u32 %v802, 4294901760
    %v1294 = vsub.f32 %v802, %v1293
    %v1295 = vand.u32 %v1294, 4294901760
    %1296 = vmatmul.mubr.f32.gmra.mrb[0].mxu0 %v1295
    %v1297 = vpop.f32.mrb[0].mxu0
    %v1298 = vadd.f32 %v1172, %v1297
    %v1299 = vpop.f32.mrb[0].mxu0
    %1300 = vmatprep.mubr.f32.mxu0 0.0
    %v1301 = vand.u32 %v805, 4294901760
    %v1302 = vsub.f32 %v805, %v1301
    %v1303 = vand.u32 %v1302, 4294901760
    %1304 = vmatmul.mubr.f32.gmra.mrb[0].mxu0 %v1303
    %v1305 = vpop.f32.mrb[0].mxu0
    %v1306 = vadd.f32 %v1179, %v1305
    %v1307 = vpop.f32.mrb[0].mxu0
    %1308 = vmatprep.mubr.f32.mxu0 0.0
    %v1309 = vand.u32 %v808, 4294901760
    %v1310 = vsub.f32 %v808, %v1309
    %v1311 = vand.u32 %v1310, 4294901760
    %1312 = vmatmul.mubr.f32.gmra.mrb[0].mxu0 %v1311
    %v1313 = vpop.f32.mrb[0].mxu0
    %v1314 = vadd.f32 %v1186, %v1313
    %v1315 = vpop.f32.mrb[0].mxu0
    %1316 = vmatprep.mubr.f32.mxu0 0.0
    %v1317 = vand.u32 %v811, 4294901760
    %v1318 = vsub.f32 %v811, %v1317
    %v1319 = vand.u32 %v1318, 4294901760
    %1320 = vmatmul.mubr.f32.gmra.mrb[0].mxu0 %v1319
    %v1321 = vpop.f32.mrb[0].mxu0
    %v1322 = vadd.f32 %v1193, %v1321
    %v1323 = vpop.f32.mrb[0].mxu0
    %1324 = vmatprep.mubr.f32.mxu0 0.0
    %v1325 = vand.u32 %v814, 4294901760
    %v1326 = vsub.f32 %v814, %v1325
    %v1327 = vand.u32 %v1326, 4294901760
    %1328 = vmatmul.mubr.f32.gmra.mrb[0].mxu0 %v1327
    %v1329 = vpop.f32.mrb[0].mxu0
    %v1330 = vadd.f32 %v1200, %v1329
    %v1331 = vpop.f32.mrb[0].mxu0
    %1332 = vdwg.mxu0
    %1333 = vmatprep.subr.mxu0 0.0
    %v1334 = vand.u32 %v782, 4294901760
    %v1335 = vsub.f32 %v782, %v1334
    %v1336 = vand.u32 %v1335, 4294901760
    %1337 = vmatpush1.msra.mxu0 %v1336
    %1338 = vmatprep.subr.mxu0 0.0
    %1339 = vmatpush1.msra.mxu0 0.0
    %1340 = vmatprep.subr.mxu0 0.0
    %1341 = vmatpush1.msra.mxu0 0.0
    %1342 = vmatprep.subr.mxu0 0.0
    %1343 = vmatpush1.msra.mxu0 0.0
    %1344 = vmatprep.subr.mxu0 0.0
    %1345 = vmatpush1.msra.mxu0 0.0
    %1346 = vmatprep.subr.mxu0 0.0
    %1347 = vmatpush1.msra.mxu0 0.0
    %1348 = vmatprep.subr.mxu0 0.0
    %1349 = vmatpush1.msra.mxu0 0.0
    %1350 = vmatprep.subr.mxu0 0.0
    %1351 = vmatpush1.msra.mxu0 0.0
    %1352 = vmatprep.subr.mxu0 0.0
    %1353 = vmatpush1.msra.mxu0 0.0
    %1354 = vmatprep.subr.mxu0 0.0
    %1355 = vmatpush1.msra.mxu0 0.0
    %1356 = vmatprep.subr.mxu0 0.0
    %1357 = vmatpush1.msra.mxu0 0.0
    %1358 = vmatprep.subr.mxu0 0.0
    %1359 = vmatpush1.msra.mxu0 0.0
    %1360 = vmatprep.subr.mxu0 0.0
    %1361 = vmatpush1.msra.mxu0 0.0
    %1362 = vmatprep.subr.mxu0 0.0
    %1363 = vmatpush1.msra.mxu0 0.0
    %1364 = vmatprep.subr.mxu0 0.0
    %1365 = vmatpush1.msra.mxu0 0.0
    %1366 = vmatprep.subr.mxu0 0.0
    %1367 = vmatpush1.msra.mxu0 0.0
    %1368 = vmatprep.subr.mxu0 0.0
    %1369 = vmatpush1.msra.mxu0 0.0
    %1370 = vmatprep.subr.mxu0 0.0
    %1371 = vmatpush1.msra.mxu0 0.0
    %1372 = vmatprep.subr.mxu0 0.0
    %1373 = vmatpush1.msra.mxu0 0.0
    %1374 = vmatprep.subr.mxu0 0.0
    %1375 = vmatpush1.msra.mxu0 0.0
    %1376 = vmatprep.subr.mxu0 0.0
    %1377 = vmatpush1.msra.mxu0 0.0
    %1378 = vmatprep.subr.mxu0 0.0
    %1379 = vmatpush1.msra.mxu0 0.0
    %1380 = vmatprep.subr.mxu0 0.0
    %1381 = vmatpush1.msra.mxu0 0.0
    %1382 = vmatprep.subr.mxu0 0.0
    %1383 = vmatpush1.msra.mxu0 0.0
    %1384 = vmatprep.subr.mxu0 0.0
    %1385 = vmatpush1.msra.mxu0 0.0
    %1386 = vmatprep.subr.mxu0 0.0
    %1387 = vmatpush1.msra.mxu0 0.0
    %1388 = vmatprep.subr.mxu0 0.0
    %1389 = vmatpush1.msra.mxu0 0.0
    %1390 = vmatprep.subr.mxu0 0.0
    %1391 = vmatpush1.msra.mxu0 0.0
    %1392 = vmatprep.subr.mxu0 0.0
    %1393 = vmatpush1.msra.mxu0 0.0
    %1394 = vmatprep.subr.mxu0 0.0
    %1395 = vmatpush1.msra.mxu0 0.0
    %1396 = vmatprep.subr.mxu0 0.0
    %1397 = vmatpush1.msra.mxu0 0.0
    %1398 = vmatprep.subr.mxu0 0.0
    %1399 = vmatpush1.msra.mxu0 0.0
    %1400 = vmatprep.mubr.f32.mxu0 0.0
    %v1401 = vand.u32 %v793, 4294901760
    %1402 = vmatmul.mubr.f32.gmra.mrb[0].mxu0 %v1401
    %v1403 = vpop.f32.mrb[0].mxu0
    %v1404 = vadd.f32 %v1274, %v1403
    %v1405 = vpop.f32.mrb[0].mxu0
    %1406 = vmatprep.mubr.f32.mxu0 0.0
    %v1407 = vand.u32 %v796, 4294901760
    %1408 = vmatmul.mubr.f32.gmra.mrb[0].mxu0 %v1407
    %v1409 = vpop.f32.mrb[0].mxu0
    %v1410 = vadd.f32 %v1282, %v1409
    %v1411 = vpop.f32.mrb[0].mxu0
    %1412 = vmatprep.mubr.f32.mxu0 0.0
    %v1413 = vand.u32 %v799, 4294901760
    %1414 = vmatmul.mubr.f32.gmra.mrb[0].mxu0 %v1413
    %v1415 = vpop.f32.mrb[0].mxu0
    %v1416 = vadd.f32 %v1290, %v1415
    %v1417 = vpop.f32.mrb[0].mxu0
    %1418 = vmatprep.mubr.f32.mxu0 0.0
    %v1419 = vand.u32 %v802, 4294901760
    %1420 = vmatmul.mubr.f32.gmra.mrb[0].mxu0 %v1419
    %v1421 = vpop.f32.mrb[0].mxu0
    %v1422 = vadd.f32 %v1298, %v1421
    %v1423 = vpop.f32.mrb[0].mxu0
    %1424 = vmatprep.mubr.f32.mxu0 0.0
    %v1425 = vand.u32 %v805, 4294901760
    %1426 = vmatmul.mubr.f32.gmra.mrb[0].mxu0 %v1425
    %v1427 = vpop.f32.mrb[0].mxu0
    %v1428 = vadd.f32 %v1306, %v1427
    %v1429 = vpop.f32.mrb[0].mxu0
    %1430 = vmatprep.mubr.f32.mxu0 0.0
    %v1431 = vand.u32 %v808, 4294901760
    %1432 = vmatmul.mubr.f32.gmra.mrb[0].mxu0 %v1431
    %v1433 = vpop.f32.mrb[0].mxu0
    %v1434 = vadd.f32 %v1314, %v1433
    %v1435 = vpop.f32.mrb[0].mxu0
    %1436 = vmatprep.mubr.f32.mxu0 0.0
    %v1437 = vand.u32 %v811, 4294901760
    %1438 = vmatmul.mubr.f32.gmra.mrb[0].mxu0 %v1437
    %v1439 = vpop.f32.mrb[0].mxu0
    %v1440 = vadd.f32 %v1322, %v1439
    %v1441 = vpop.f32.mrb[0].mxu0
    %1442 = vmatprep.mubr.f32.mxu0 0.0
    %v1443 = vand.u32 %v814, 4294901760
    %1444 = vmatmul.mubr.f32.gmra.mrb[0].mxu0 %v1443
    %v1445 = vpop.f32.mrb[0].mxu0
    %v1446 = vadd.f32 %v1330, %v1445
    %v1447 = vpop.f32.mrb[0].mxu0
    %1448 = vdwg.mxu0
    %1449 = vmatprep.subr.mxu0 0.0
    %v1450 = vand.u32 %v782, 4294901760
    %1451 = vmatpush1.msra.mxu0 %v1450
    %1452 = vmatprep.subr.mxu0 0.0
    %1453 = vmatpush1.msra.mxu0 0.0
    %1454 = vmatprep.subr.mxu0 0.0
    %1455 = vmatpush1.msra.mxu0 0.0
    %1456 = vmatprep.subr.mxu0 0.0
    %1457 = vmatpush1.msra.mxu0 0.0
    %1458 = vmatprep.subr.mxu0 0.0
    %1459 = vmatpush1.msra.mxu0 0.0
    %1460 = vmatprep.subr.mxu0 0.0
    %1461 = vmatpush1.msra.mxu0 0.0
    %1462 = vmatprep.subr.mxu0 0.0
    %1463 = vmatpush1.msra.mxu0 0.0
    %1464 = vmatprep.subr.mxu0 0.0
    %1465 = vmatpush1.msra.mxu0 0.0
    %1466 = vmatprep.subr.mxu0 0.0
    %1467 = vmatpush1.msra.mxu0 0.0
    %1468 = vmatprep.subr.mxu0 0.0
    %1469 = vmatpush1.msra.mxu0 0.0
    %1470 = vmatprep.subr.mxu0 0.0
    %1471 = vmatpush1.msra.mxu0 0.0
    %1472 = vmatprep.subr.mxu0 0.0
    %1473 = vmatpush1.msra.mxu0 0.0
    %1474 = vmatprep.subr.mxu0 0.0
    %1475 = vmatpush1.msra.mxu0 0.0
    %1476 = vmatprep.subr.mxu0 0.0
    %1477 = vmatpush1.msra.mxu0 0.0
    %1478 = vmatprep.subr.mxu0 0.0
    %1479 = vmatpush1.msra.mxu0 0.0
    %1480 = vmatprep.subr.mxu0 0.0
    %1481 = vmatpush1.msra.mxu0 0.0
    %1482 = vmatprep.subr.mxu0 0.0
    %1483 = vmatpush1.msra.mxu0 0.0
    %1484 = vmatprep.subr.mxu0 0.0
    %1485 = vmatpush1.msra.mxu0 0.0
    %1486 = vmatprep.subr.mxu0 0.0
    %1487 = vmatpush1.msra.mxu0 0.0
    %1488 = vmatprep.subr.mxu0 0.0
    %1489 = vmatpush1.msra.mxu0 0.0
    %1490 = vmatprep.subr.mxu0 0.0
    %1491 = vmatpush1.msra.mxu0 0.0
    %1492 = vmatprep.subr.mxu0 0.0
    %1493 = vmatpush1.msra.mxu0 0.0
    %1494 = vmatprep.subr.mxu0 0.0
    %1495 = vmatpush1.msra.mxu0 0.0
    %1496 = vmatprep.subr.mxu0 0.0
    %1497 = vmatpush1.msra.mxu0 0.0
    %1498 = vmatprep.subr.mxu0 0.0
    %1499 = vmatpush1.msra.mxu0 0.0
    %1500 = vmatprep.subr.mxu0 0.0
    %1501 = vmatpush1.msra.mxu0 0.0
    %1502 = vmatprep.subr.mxu0 0.0
    %1503 = vmatpush1.msra.mxu0 0.0
    %1504 = vmatprep.subr.mxu0 0.0
    %1505 = vmatpush1.msra.mxu0 0.0
    %1506 = vmatprep.subr.mxu0 0.0
    %1507 = vmatpush1.msra.mxu0 0.0
    %1508 = vmatprep.subr.mxu0 0.0
    %1509 = vmatpush1.msra.mxu0 0.0
    %1510 = vmatprep.subr.mxu0 0.0
    %1511 = vmatpush1.msra.mxu0 0.0
    %1512 = vmatprep.subr.mxu0 0.0
    %1513 = vmatpush1.msra.mxu0 0.0
    %1514 = vmatprep.mubr.f32.mxu0 0.0
    %v1515 = vand.u32 %v793, 4294901760
    %1516 = vmatmul.mubr.f32.gmra.mrb[0].mxu0 %v1515
    %v1517 = vpop.f32.mrb[0].mxu0
    %v1518 = vadd.f32 %v1404, %v1517
    %v1519 = vpop.f32.mrb[0].mxu0
    %1520 = vmatprep.mubr.f32.mxu0 0.0
    %v1521 = vand.u32 %v796, 4294901760
    %1522 = vmatmul.mubr.f32.gmra.mrb[0].mxu0 %v1521
    %v1523 = vpop.f32.mrb[0].mxu0
    %v1524 = vadd.f32 %v1410, %v1523
    %v1525 = vpop.f32.mrb[0].mxu0
    %1526 = vmatprep.mubr.f32.mxu0 0.0
    %v1527 = vand.u32 %v799, 4294901760
    %1528 = vmatmul.mubr.f32.gmra.mrb[0].mxu0 %v1527
    %v1529 = vpop.f32.mrb[0].mxu0
    %v1530 = vadd.f32 %v1416, %v1529
    %v1531 = vpop.f32.mrb[0].mxu0
    %1532 = vmatprep.mubr.f32.mxu0 0.0
    %v1533 = vand.u32 %v802, 4294901760
    %1534 = vmatmul.mubr.f32.gmra.mrb[0].mxu0 %v1533
    %v1535 = vpop.f32.mrb[0].mxu0
    %v1536 = vadd.f32 %v1422, %v1535
    %v1537 = vpop.f32.mrb[0].mxu0
    %1538 = vmatprep.mubr.f32.mxu0 0.0
    %v1539 = vand.u32 %v805, 4294901760
    %1540 = vmatmul.mubr.f32.gmra.mrb[0].mxu0 %v1539
    %v1541 = vpop.f32.mrb[0].mxu0
    %v1542 = vadd.f32 %v1428, %v1541
    %v1543 = vpop.f32.mrb[0].mxu0
    %1544 = vmatprep.mubr.f32.mxu0 0.0
    %v1545 = vand.u32 %v808, 4294901760
    %1546 = vmatmul.mubr.f32.gmra.mrb[0].mxu0 %v1545
    %v1547 = vpop.f32.mrb[0].mxu0
    %v1548 = vadd.f32 %v1434, %v1547
    %v1549 = vpop.f32.mrb[0].mxu0
    %1550 = vmatprep.mubr.f32.mxu0 0.0
    %v1551 = vand.u32 %v811, 4294901760
    %1552 = vmatmul.mubr.f32.gmra.mrb[0].mxu0 %v1551
    %v1553 = vpop.f32.mrb[0].mxu0
    %v1554 = vadd.f32 %v1440, %v1553
    %v1555 = vpop.f32.mrb[0].mxu0
    %1556 = vmatprep.mubr.f32.mxu0 0.0
    %v1557 = vand.u32 %v814, 4294901760
    %1558 = vmatmul.mubr.f32.gmra.mrb[0].mxu0 %v1557
    %v1559 = vpop.f32.mrb[0].mxu0
    %v1560 = vadd.f32 %v1446, %v1559
    %v1561 = vpop.f32.mrb[0].mxu0
    %1562 = vdwg.mxu0
    %v1563 = vxor.u32 %v1518, 2147483648
    %v1564 = vxor.u32 %v1524, 2147483648
    %v1565 = vxor.u32 %v1530, 2147483648
    %v1566 = vxor.u32 %v1536, 2147483648
    %v1567 = vxor.u32 %v1542, 2147483648
    %v1568 = vxor.u32 %v1548, 2147483648
    %v1569 = vxor.u32 %v1554, 2147483648
    %v1570 = vxor.u32 %v1560, 2147483648
    %v1571 = vmul.f32 %v1563, 1.442695
    %v1572 = vpow.pop %v1571
    %v1573 = vmul.f32 %v1564, 1.442695
    %v1574 = vpow.pop %v1573
    %v1575 = vmul.f32 %v1565, 1.442695
    %v1576 = vpow.pop %v1575
    %v1577 = vmul.f32 %v1566, 1.442695
    %v1578 = vpow.pop %v1577
    %v1579 = vmul.f32 %v1567, 1.442695
    %v1580 = vpow.pop %v1579
    %v1581 = vmul.f32 %v1568, 1.442695
    %v1582 = vpow.pop %v1581
    %v1583 = vmul.f32 %v1569, 1.442695
    %v1584 = vpow.pop %v1583
    %v1585 = vmul.f32 %v1570, 1.442695
    %v1586 = vpow.pop %v1585
    %v1587 = vadd.f32 %v1572, 1.0
    %v1588 = vadd.f32 %v1574, 1.0
    %v1589 = vadd.f32 %v1576, 1.0
    %v1590 = vadd.f32 %v1578, 1.0
    %v1591 = vadd.f32 %v1580, 1.0
    %v1592 = vadd.f32 %v1582, 1.0
    %v1593 = vadd.f32 %v1584, 1.0
    %v1594 = vadd.f32 %v1586, 1.0
    %v1595 = vrcp.pop %v1587
    %v1596 = vmul.f32 1.0, %v1595
    %v1597 = vrcp.pop %v1588
    %v1598 = vmul.f32 1.0, %v1597
    %v1599 = vrcp.pop %v1589
    %v1600 = vmul.f32 1.0, %v1599
    %v1601 = vrcp.pop %v1590
    %v1602 = vmul.f32 1.0, %v1601
    %v1603 = vrcp.pop %v1591
    %v1604 = vmul.f32 1.0, %v1603
    %v1605 = vrcp.pop %v1592
    %v1606 = vmul.f32 1.0, %v1605
    %v1607 = vrcp.pop %v1593
    %v1608 = vmul.f32 1.0, %v1607
    %v1609 = vrcp.pop %v1594
    %v1610 = vmul.f32 1.0, %v1609
    %v1611 = vld [vmem:[#allocation4] sm:$0xff]
    %v1612 = vld [vmem:[#allocation4 + $0x8] sm:$0xff]
    %v1613 = vld [vmem:[#allocation4 + $0x10] sm:$0xff]
    %v1614 = vld [vmem:[#allocation4 + $0x18] sm:$0xff]
    %v1615 = vld [vmem:[#allocation4 + $0x20] sm:$0xff]
    %v1616 = vld [vmem:[#allocation4 + $0x28] sm:$0xff]
    %v1617 = vld [vmem:[#allocation4 + $0x30] sm:$0xff]
    %v1618 = vld [vmem:[#allocation4 + $0x38] sm:$0xff]
    %v1619 = vld [vmem:[#allocation4 + $0x40] sm:$0xff]
    %v1620 = vld [vmem:[#allocation4 + $0x48] sm:$0xff]
    %v1621 = vld [vmem:[#allocation4 + $0x50] sm:$0xff]
    %v1622 = vld [vmem:[#allocation4 + $0x58] sm:$0xff]
    %v1623 = vld [vmem:[#allocation4 + $0x60] sm:$0xff]
    %v1624 = vld [vmem:[#allocation4 + $0x68] sm:$0xff]
    %v1625 = vld [vmem:[#allocation4 + $0x70] sm:$0xff]
    %v1626 = vld [vmem:[#allocation4 + $0x78] sm:$0xff]
    %1628 = vset.pattern.permute.xlu0 0
    %1629 = vperm.xlu0 %1628, %v1596
    %v1630 = vpop.permute.xlu0 %1629
    %1633 = vset.pattern.permute.xlu0 0
    %1634 = vperm.xlu0 %1633, %v1598
    %v1635 = vpop.permute.xlu0 %1634
    %1638 = vset.pattern.permute.xlu0 0
    %1639 = vperm.xlu0 %1638, %v1600
    %v1640 = vpop.permute.xlu0 %1639
    %1643 = vset.pattern.permute.xlu0 0
    %1644 = vperm.xlu0 %1643, %v1602
    %v1645 = vpop.permute.xlu0 %1644
    %1648 = vset.pattern.permute.xlu0 0
    %1649 = vperm.xlu0 %1648, %v1604
    %v1650 = vpop.permute.xlu0 %1649
    %1653 = vset.pattern.permute.xlu0 0
    %1654 = vperm.xlu0 %1653, %v1606
    %v1655 = vpop.permute.xlu0 %1654
    %1658 = vset.pattern.permute.xlu0 0
    %1659 = vperm.xlu0 %1658, %v1608
    %v1660 = vpop.permute.xlu0 %1659
    %1663 = vset.pattern.permute.xlu0 0
    %1664 = vperm.xlu0 %1663, %v1610
    %v1665 = vpop.permute.xlu0 %1664
    %v1667 = vmul.f32 %v1611, %v1630
    %v1668 = vmul.f32 %v1612, %v1630
    %v1669 = vmul.f32 %v1613, %v1635
    %v1670 = vmul.f32 %v1614, %v1635
    %v1671 = vmul.f32 %v1615, %v1640
    %v1672 = vmul.f32 %v1616, %v1640
    %v1673 = vmul.f32 %v1617, %v1645
    %v1674 = vmul.f32 %v1618, %v1645
    %v1675 = vmul.f32 %v1619, %v1650
    %v1676 = vmul.f32 %v1620, %v1650
    %v1677 = vmul.f32 %v1621, %v1655
    %v1678 = vmul.f32 %v1622, %v1655
    %v1679 = vmul.f32 %v1623, %v1660
    %v1680 = vmul.f32 %v1624, %v1660
    %v1681 = vmul.f32 %v1625, %v1665
    %v1682 = vmul.f32 %v1626, %v1665
    %v1683 = vadd.f32 %v1667, %v1669
    %v1684 = vadd.f32 %v1683, %v1671
    %v1685 = vadd.f32 %v1684, %v1673
    %v1686 = vadd.f32 %v1685, %v1675
    %v1687 = vadd.f32 %v1686, %v1677
    %v1688 = vadd.f32 %v1687, %v1679
    %v1689 = vadd.f32 %v1688, %v1681
    %v1690 = vrot.slane %v1689, 4
    %v1691 = vadd.f32 %v1689, %v1690
    %v1692 = vrot.slane %v1691, 2
    %v1693 = vadd.f32 %v1691, %v1692
    %v1694 = vrot.slane %v1693, 1
    %v1695 = vadd.f32 %v1693, %v1694
    %v1696 = vadd.f32 %v1668, %v1670
    %v1697 = vadd.f32 %v1696, %v1672
    %v1698 = vadd.f32 %v1697, %v1674
    %v1699 = vadd.f32 %v1698, %v1676
    %v1700 = vadd.f32 %v1699, %v1678
    %v1701 = vadd.f32 %v1700, %v1680
    %v1702 = vadd.f32 %v1701, %v1682
    %v1703 = vrot.slane %v1702, 4
    %v1704 = vadd.f32 %v1702, %v1703
    %v1705 = vrot.slane %v1704, 2
    %v1706 = vadd.f32 %v1704, %v1705
    %v1707 = vrot.slane %v1706, 1
    %v1708 = vadd.f32 %v1706, %v1707
    %v1711 = vcombine.low %v1695, %v1708
    %v1713 = vunpack.c.l.s4 1966171168
    %v1714 = vunpack.c.0.s8 %v1713
    %v1715 = vlaneseq
    %v1716 = vshrl.u32 %v1715, 7
    %v1717 = vsub.s32 %v1714, %v1716
    %v1718 = vrot.slane %v1711, %v1717
    %v1720 = vunpack.c.l.s4 1966171168
    %v1721 = vunpack.c.0.s8 %v1720
    %v1722 = vlaneseq
    %v1723 = vshrl.u32 %v1722, 7
    %v1724 = vsub.s32 %v1721, %v1723
    %v1725 = vrot.slane %v1718, %v1724
    %v1727 = vlaneseq
    %vm1728 = vcmp.ge.s32.totalorder %v1727, 0
    %vm1729 = vcmp.lt.s32.totalorder %v1727, 256
    %vm1730 = vmand %vm1728, %vm1729
    %1731 = vst.msk [vmem:[#allocation3] ss:$2 sm:$0x3] %vm1730, %v1725
    %v1732 = vmax.f32 %v1667, %v1671
    %v1733 = vmax.f32 %v1669, %v1673
    %v1734 = vmax.f32 %v1732, %v1675
    %v1735 = vmax.f32 %v1733, %v1677
    %v1736 = vmax.f32 %v1734, %v1679
    %v1737 = vmax.f32 %v1735, %v1681
    %v1738 = vmax.f32 %v1736, %v1737
    %v1739 = vrot.slane %v1738, 4
    %v1740 = vmax.f32 %v1738, %v1739
    %v1741 = vrot.slane %v1740, 2
    %v1742 = vmax.f32 %v1740, %v1741
    %v1743 = vrot.slane %v1742, 1
    %v1744 = vmax.f32 %v1742, %v1743
    %v1745 = vmax.f32 %v1668, %v1672
    %v1746 = vmax.f32 %v1670, %v1674
    %v1747 = vmax.f32 %v1745, %v1676
    %v1748 = vmax.f32 %v1746, %v1678
    %v1749 = vmax.f32 %v1747, %v1680
    %v1750 = vmax.f32 %v1748, %v1682
    %v1751 = vmax.f32 %v1749, %v1750
    %v1752 = vrot.slane %v1751, 4
    %v1753 = vmax.f32 %v1751, %v1752
    %v1754 = vrot.slane %v1753, 2
    %v1755 = vmax.f32 %v1753, %v1754
    %v1756 = vrot.slane %v1755, 1
    %v1757 = vmax.f32 %v1755, %v1756
    %v1760 = vcombine.low %v1744, %v1757
    %v1762 = vunpack.c.l.s4 1966171168
    %v1763 = vunpack.c.0.s8 %v1762
    %v1764 = vlaneseq
    %v1765 = vshrl.u32 %v1764, 7
    %v1766 = vsub.s32 %v1763, %v1765
    %v1767 = vrot.slane %v1760, %v1766
    %v1769 = vunpack.c.l.s4 1966171168
    %v1770 = vunpack.c.0.s8 %v1769
    %v1771 = vlaneseq
    %v1772 = vshrl.u32 %v1771, 7
    %v1773 = vsub.s32 %v1770, %v1772
    %v1774 = vrot.slane %v1767, %v1773
    %s1776 = scalar_lea.vmem [#allocation3], 4
    %1777 = vst.msk [vmem:[%s1776] ss:$2 sm:$0x3] %vm1730, %v1774
    %v1778 = vld [vmem:[%s136] sm:$0xff]
    %v1779 = vld [vmem:[%s136 + $0x8] sm:$0xff]
    %v1780 = vld [vmem:[%s136 + $0x10] sm:$0xff]
    %v1781 = vld [vmem:[%s136 + $0x18] sm:$0xff]
    %v1782 = vld [vmem:[%s136 + $0x20] sm:$0xff]
    %v1783 = vld [vmem:[%s136 + $0x28] sm:$0xff]
    %v1784 = vld [vmem:[%s136 + $0x30] sm:$0xff]
    %v1785 = vld [vmem:[%s136 + $0x38] sm:$0xff]
    %v1786 = vld [vmem:[%s136 + $0x40] sm:$0xff]
    %v1787 = vld [vmem:[%s136 + $0x48] sm:$0xff]
    %v1788 = vld [vmem:[%s136 + $0x50] sm:$0xff]
    %v1789 = vld [vmem:[%s136 + $0x58] sm:$0xff]
    %v1790 = vld [vmem:[%s136 + $0x60] sm:$0xff]
    %v1791 = vld [vmem:[%s136 + $0x68] sm:$0xff]
    %v1792 = vld [vmem:[%s136 + $0x70] sm:$0xff]
    %v1793 = vld [vmem:[%s136 + $0x78] sm:$0xff]
    %1794 = vset.pattern.permute.xlu0 1
    %1795 = vperm.xlu0 %1794, %v1596
    %v1796 = vpop.permute.xlu0 %1795
    %1798 = vset.pattern.permute.xlu0 1
    %1799 = vperm.xlu0 %1798, %v1598
    %v1800 = vpop.permute.xlu0 %1799
    %1802 = vset.pattern.permute.xlu0 1
    %1803 = vperm.xlu0 %1802, %v1600
    %v1804 = vpop.permute.xlu0 %1803
    %1806 = vset.pattern.permute.xlu0 1
    %1807 = vperm.xlu0 %1806, %v1602
    %v1808 = vpop.permute.xlu0 %1807
    %1810 = vset.pattern.permute.xlu0 1
    %1811 = vperm.xlu0 %1810, %v1604
    %v1812 = vpop.permute.xlu0 %1811
    %1814 = vset.pattern.permute.xlu0 1
    %1815 = vperm.xlu0 %1814, %v1606
    %v1816 = vpop.permute.xlu0 %1815
    %1818 = vset.pattern.permute.xlu0 1
    %1819 = vperm.xlu0 %1818, %v1608
    %v1820 = vpop.permute.xlu0 %1819
    %1822 = vset.pattern.permute.xlu0 1
    %1823 = vperm.xlu0 %1822, %v1610
    %v1824 = vpop.permute.xlu0 %1823
    %v1826 = vmul.f32 %v1778, %v1796
    %v1827 = vmul.f32 %v1779, %v1796
    %v1828 = vmul.f32 %v1780, %v1800
    %v1829 = vmul.f32 %v1781, %v1800
    %v1830 = vmul.f32 %v1782, %v1804
    %v1831 = vmul.f32 %v1783, %v1804
    %v1832 = vmul.f32 %v1784, %v1808
    %v1833 = vmul.f32 %v1785, %v1808
    %v1834 = vmul.f32 %v1786, %v1812
    %v1835 = vmul.f32 %v1787, %v1812
    %v1836 = vmul.f32 %v1788, %v1816
    %v1837 = vmul.f32 %v1789, %v1816
    %v1838 = vmul.f32 %v1790, %v1820
    %v1839 = vmul.f32 %v1791, %v1820
    %v1840 = vmul.f32 %v1792, %v1824
    %v1841 = vmul.f32 %v1793, %v1824
    %v1842 = vadd.f32 %v1826, %v1828
    %v1843 = vadd.f32 %v1842, %v1830
    %v1844 = vadd.f32 %v1843, %v1832
    %v1845 = vadd.f32 %v1844, %v1834
    %v1846 = vadd.f32 %v1845, %v1836
    %v1847 = vadd.f32 %v1846, %v1838
    %v1848 = vadd.f32 %v1847, %v1840
    %v1849 = vrot.slane %v1848, 4
    %v1850 = vadd.f32 %v1848, %v1849
    %v1851 = vrot.slane %v1850, 2
    %v1852 = vadd.f32 %v1850, %v1851
    %v1853 = vrot.slane %v1852, 1
    %v1854 = vadd.f32 %v1852, %v1853
    %v1855 = vadd.f32 %v1827, %v1829
    %v1856 = vadd.f32 %v1855, %v1831
    %v1857 = vadd.f32 %v1856, %v1833
    %v1858 = vadd.f32 %v1857, %v1835
    %v1859 = vadd.f32 %v1858, %v1837
    %v1860 = vadd.f32 %v1859, %v1839
    %v1861 = vadd.f32 %v1860, %v1841
    %v1862 = vrot.slane %v1861, 4
    %v1863 = vadd.f32 %v1861, %v1862
    %v1864 = vrot.slane %v1863, 2
    %v1865 = vadd.f32 %v1863, %v1864
    %v1866 = vrot.slane %v1865, 1
    %v1867 = vadd.f32 %v1865, %v1866
    %v1870 = vcombine.low %v1854, %v1867
    %v1872 = vunpack.c.l.s4 1966171168
    %v1873 = vunpack.c.0.s8 %v1872
    %v1874 = vlaneseq
    %v1875 = vshrl.u32 %v1874, 7
    %v1876 = vsub.s32 %v1873, %v1875
    %v1877 = vrot.slane %v1870, %v1876
    %v1879 = vunpack.c.l.s4 1966171168
    %v1880 = vunpack.c.0.s8 %v1879
    %v1881 = vlaneseq
    %v1882 = vshrl.u32 %v1881, 7
    %v1883 = vsub.s32 %v1880, %v1882
    %v1884 = vrot.slane %v1877, %v1883
    %s1886 = scalar_lea.vmem [#allocation3], 1
    %1887 = vst.msk [vmem:[%s1886] ss:$2 sm:$0x3] %vm1730, %v1884
    %v1888 = vmax.f32 %v1826, %v1830
    %v1889 = vmax.f32 %v1828, %v1832
    %v1890 = vmax.f32 %v1888, %v1834
    %v1891 = vmax.f32 %v1889, %v1836
    %v1892 = vmax.f32 %v1890, %v1838
    %v1893 = vmax.f32 %v1891, %v1840
    %v1894 = vmax.f32 %v1892, %v1893
    %v1895 = vrot.slane %v1894, 4
    %v1896 = vmax.f32 %v1894, %v1895
    %v1897 = vrot.slane %v1896, 2
    %v1898 = vmax.f32 %v1896, %v1897
    %v1899 = vrot.slane %v1898, 1
    %v1900 = vmax.f32 %v1898, %v1899
    %v1901 = vmax.f32 %v1827, %v1831
    %v1902 = vmax.f32 %v1829, %v1833
    %v1903 = vmax.f32 %v1901, %v1835
    %v1904 = vmax.f32 %v1902, %v1837
    %v1905 = vmax.f32 %v1903, %v1839
    %v1906 = vmax.f32 %v1904, %v1841
    %v1907 = vmax.f32 %v1905, %v1906
    %v1908 = vrot.slane %v1907, 4
    %v1909 = vmax.f32 %v1907, %v1908
    %v1910 = vrot.slane %v1909, 2
    %v1911 = vmax.f32 %v1909, %v1910
    %v1912 = vrot.slane %v1911, 1
    %v1913 = vmax.f32 %v1911, %v1912
    %v1916 = vcombine.low %v1900, %v1913
    %v1918 = vunpack.c.l.s4 1966171168
    %v1919 = vunpack.c.0.s8 %v1918
    %v1920 = vlaneseq
    %v1921 = vshrl.u32 %v1920, 7
    %v1922 = vsub.s32 %v1919, %v1921
    %v1923 = vrot.slane %v1916, %v1922
    %v1925 = vunpack.c.l.s4 1966171168
    %v1926 = vunpack.c.0.s8 %v1925
    %v1927 = vlaneseq
    %v1928 = vshrl.u32 %v1927, 7
    %v1929 = vsub.s32 %v1926, %v1928
    %v1930 = vrot.slane %v1923, %v1929
    %s1932 = scalar_lea.vmem [#allocation3], 5
    %1933 = vst.msk [vmem:[%s1932] ss:$2 sm:$0x3] %vm1730, %v1930
    %v1934 = vld [vmem:[#allocation3] sm:$0xff]
    %v1935 = vld [vmem:[#allocation7] sm:$0xff]
    %v1936 = vld [vmem:[#allocation7 + $0x8] sm:$0xff]
    %v1937 = vld [vmem:[#allocation7 + $0x10] sm:$0xff]
    %v1938 = vld [vmem:[#allocation7 + $0x18] sm:$0xff]
    %v1939 = vld [vmem:[#allocation7 + $0x20] sm:$0xff]
    %v1940 = vld [vmem:[#allocation7 + $0x28] sm:$0xff]
    %v1941 = vld [vmem:[#allocation7 + $0x30] sm:$0xff]
    %v1942 = vld [vmem:[#allocation7 + $0x38] sm:$0xff]
    %v1943 = vld [vmem:[#allocation7 + $0x40] sm:$0xff]
    %v1944 = vld [vmem:[#allocation7 + $0x48] sm:$0xff]
    %v1945 = vld [vmem:[#allocation7 + $0x50] sm:$0xff]
    %v1946 = vld [vmem:[#allocation7 + $0x58] sm:$0xff]
    %v1947 = vld [vmem:[#allocation7 + $0x60] sm:$0xff]
    %v1948 = vld [vmem:[#allocation7 + $0x68] sm:$0xff]
    %v1949 = vld [vmem:[#allocation7 + $0x70] sm:$0xff]
    %v1950 = vld [vmem:[#allocation7 + $0x78] sm:$0xff]
    %v1951 = vld [vmem:[#allocation7 + $0x80] sm:$0xff]
    %v1952 = vld [vmem:[#allocation7 + $0x88] sm:$0xff]
    %v1953 = vld [vmem:[#allocation7 + $0x90] sm:$0xff]
    %v1954 = vld [vmem:[#allocation7 + $0x98] sm:$0xff]
    %v1955 = vld [vmem:[#allocation7 + $0xa0] sm:$0xff]
    %v1956 = vld [vmem:[#allocation7 + $0xa8] sm:$0xff]
    %v1957 = vld [vmem:[#allocation7 + $0xb0] sm:$0xff]
    %v1958 = vld [vmem:[#allocation7 + $0xb8] sm:$0xff]
    %v1959 = vld [vmem:[#allocation7 + $0xc0] sm:$0xff]
    %v1960 = vld [vmem:[#allocation7 + $0xc8] sm:$0xff]
    %v1961 = vld [vmem:[#allocation7 + $0xd0] sm:$0xff]
    %v1962 = vld [vmem:[#allocation7 + $0xd8] sm:$0xff]
    %v1963 = vld [vmem:[#allocation7 + $0xe0] sm:$0xff]
    %v1964 = vld [vmem:[#allocation7 + $0xe8] sm:$0xff]
    %v1965 = vld [vmem:[#allocation7 + $0xf0] sm:$0xff]
    %v1966 = vld [vmem:[#allocation7 + $0xf8] sm:$0xff]
    %v1967 = vld [vmem:[#allocation7 + $0x100] sm:$0xff]
    %v1968 = vld [vmem:[#allocation7 + $0x108] sm:$0xff]
    %v1969 = vld [vmem:[#allocation7 + $0x110] sm:$0xff]
    %v1970 = vld [vmem:[#allocation7 + $0x118] sm:$0xff]
    %v1971 = vld [vmem:[#allocation7 + $0x120] sm:$0xff]
    %v1972 = vld [vmem:[#allocation7 + $0x128] sm:$0xff]
    %v1973 = vld [vmem:[#allocation7 + $0x130] sm:$0xff]
    %v1974 = vld [vmem:[#allocation7 + $0x138] sm:$0xff]
    %v1975 = vld [vmem:[#allocation7 + $0x140] sm:$0xff]
    %v1976 = vld [vmem:[#allocation7 + $0x148] sm:$0xff]
    %v1977 = vld [vmem:[#allocation7 + $0x150] sm:$0xff]
    %v1978 = vld [vmem:[#allocation7 + $0x158] sm:$0xff]
    %v1979 = vld [vmem:[#allocation7 + $0x160] sm:$0xff]
    %v1980 = vld [vmem:[#allocation7 + $0x168] sm:$0xff]
    %v1981 = vld [vmem:[#allocation7 + $0x170] sm:$0xff]
    %v1982 = vld [vmem:[#allocation7 + $0x178] sm:$0xff]
    %v1983 = vld [vmem:[#allocation7 + $0x180] sm:$0xff]
    %v1984 = vld [vmem:[#allocation7 + $0x188] sm:$0xff]
    %v1985 = vld [vmem:[#allocation7 + $0x190] sm:$0xff]
    %v1986 = vld [vmem:[#allocation7 + $0x198] sm:$0xff]
    %v1987 = vld [vmem:[#allocation7 + $0x1a0] sm:$0xff]
    %v1988 = vld [vmem:[#allocation7 + $0x1a8] sm:$0xff]
    %v1989 = vld [vmem:[#allocation7 + $0x1b0] sm:$0xff]
    %v1990 = vld [vmem:[#allocation7 + $0x1b8] sm:$0xff]
    %v1991 = vld [vmem:[#allocation7 + $0x1c0] sm:$0xff]
    %v1992 = vld [vmem:[#allocation7 + $0x1c8] sm:$0xff]
    %v1993 = vld [vmem:[#allocation7 + $0x1d0] sm:$0xff]
    %v1994 = vld [vmem:[#allocation7 + $0x1d8] sm:$0xff]
    %v1995 = vld [vmem:[#allocation7 + $0x1e0] sm:$0xff]
    %v1996 = vld [vmem:[#allocation7 + $0x1e8] sm:$0xff]
    %v1997 = vld [vmem:[#allocation7 + $0x1f0] sm:$0xff]
    %v1998 = vld [vmem:[#allocation7 + $0x1f8] sm:$0xff]
    %v1999 = vld [vmem:[#allocation7 + $0x200] sm:$0xff]
    %v2000 = vld [vmem:[#allocation7 + $0x208] sm:$0xff]
    %v2001 = vld [vmem:[#allocation7 + $0x210] sm:$0xff]
    %v2002 = vld [vmem:[#allocation7 + $0x218] sm:$0xff]
    %v2003 = vld [vmem:[#allocation7 + $0x220] sm:$0xff]
    %v2004 = vld [vmem:[#allocation7 + $0x228] sm:$0xff]
    %v2005 = vld [vmem:[#allocation7 + $0x230] sm:$0xff]
    %v2006 = vld [vmem:[#allocation7 + $0x238] sm:$0xff]
    %v2007 = vld [vmem:[#allocation7 + $0x240] sm:$0xff]
    %v2008 = vld [vmem:[#allocation7 + $0x248] sm:$0xff]
    %v2009 = vld [vmem:[#allocation7 + $0x250] sm:$0xff]
    %v2010 = vld [vmem:[#allocation7 + $0x258] sm:$0xff]
    %v2011 = vld [vmem:[#allocation7 + $0x260] sm:$0xff]
    %v2012 = vld [vmem:[#allocation7 + $0x268] sm:$0xff]
    %v2013 = vld [vmem:[#allocation7 + $0x270] sm:$0xff]
    %v2014 = vld [vmem:[#allocation7 + $0x278] sm:$0xff]
    %v2015 = vld [vmem:[#allocation7 + $0x280] sm:$0xff]
    %v2016 = vld [vmem:[#allocation7 + $0x288] sm:$0xff]
    %v2017 = vld [vmem:[#allocation7 + $0x290] sm:$0xff]
    %v2018 = vld [vmem:[#allocation7 + $0x298] sm:$0xff]
    %v2019 = vld [vmem:[#allocation7 + $0x2a0] sm:$0xff]
    %v2020 = vld [vmem:[#allocation7 + $0x2a8] sm:$0xff]
    %v2021 = vld [vmem:[#allocation7 + $0x2b0] sm:$0xff]
    %v2022 = vld [vmem:[#allocation7 + $0x2b8] sm:$0xff]
    %v2023 = vld [vmem:[#allocation7 + $0x2c0] sm:$0xff]
    %v2024 = vld [vmem:[#allocation7 + $0x2c8] sm:$0xff]
    %v2025 = vld [vmem:[#allocation7 + $0x2d0] sm:$0xff]
    %v2026 = vld [vmem:[#allocation7 + $0x2d8] sm:$0xff]
    %v2027 = vld [vmem:[#allocation7 + $0x2e0] sm:$0xff]
    %v2028 = vld [vmem:[#allocation7 + $0x2e8] sm:$0xff]
    %v2029 = vld [vmem:[#allocation7 + $0x2f0] sm:$0xff]
    %v2030 = vld [vmem:[#allocation7 + $0x2f8] sm:$0xff]
    %v2031 = vld [vmem:[#allocation7 + $0x300] sm:$0xff]
    %v2032 = vld [vmem:[#allocation7 + $0x308] sm:$0xff]
    %v2033 = vld [vmem:[#allocation7 + $0x310] sm:$0xff]
    %v2034 = vld [vmem:[#allocation7 + $0x318] sm:$0xff]
    %v2035 = vld [vmem:[#allocation7 + $0x320] sm:$0xff]
    %v2036 = vld [vmem:[#allocation7 + $0x328] sm:$0xff]
    %v2037 = vld [vmem:[#allocation7 + $0x330] sm:$0xff]
    %v2038 = vld [vmem:[#allocation7 + $0x338] sm:$0xff]
    %v2039 = vld [vmem:[#allocation7 + $0x340] sm:$0xff]
    %v2040 = vld [vmem:[#allocation7 + $0x348] sm:$0xff]
    %v2041 = vld [vmem:[#allocation7 + $0x350] sm:$0xff]
    %v2042 = vld [vmem:[#allocation7 + $0x358] sm:$0xff]
    %v2043 = vld [vmem:[#allocation7 + $0x360] sm:$0xff]
    %v2044 = vld [vmem:[#allocation7 + $0x368] sm:$0xff]
    %v2045 = vld [vmem:[#allocation7 + $0x370] sm:$0xff]
    %v2046 = vld [vmem:[#allocation7 + $0x378] sm:$0xff]
    %v2047 = vld [vmem:[#allocation7 + $0x380] sm:$0xff]
    %v2048 = vld [vmem:[#allocation7 + $0x388] sm:$0xff]
    %v2049 = vld [vmem:[#allocation7 + $0x390] sm:$0xff]
    %v2050 = vld [vmem:[#allocation7 + $0x398] sm:$0xff]
    %v2051 = vld [vmem:[#allocation7 + $0x3a0] sm:$0xff]
    %v2052 = vld [vmem:[#allocation7 + $0x3a8] sm:$0xff]
    %v2053 = vld [vmem:[#allocation7 + $0x3b0] sm:$0xff]
    %v2054 = vld [vmem:[#allocation7 + $0x3b8] sm:$0xff]
    %v2055 = vld [vmem:[#allocation7 + $0x3c0] sm:$0xff]
    %v2056 = vld [vmem:[#allocation7 + $0x3c8] sm:$0xff]
    %v2057 = vld [vmem:[#allocation7 + $0x3d0] sm:$0xff]
    %v2058 = vld [vmem:[#allocation7 + $0x3d8] sm:$0xff]
    %v2059 = vld [vmem:[#allocation7 + $0x3e0] sm:$0xff]
    %v2060 = vld [vmem:[#allocation7 + $0x3e8] sm:$0xff]
    %v2061 = vld [vmem:[#allocation7 + $0x3f0] sm:$0xff]
    %v2062 = vld [vmem:[#allocation7 + $0x3f8] sm:$0xff]
    %v2064 = vcombine.high %v1934, %v1934
    %v2066 = vunpack.c.l.s4 1983009808
    %v2067 = vunpack.c.0.s8 %v2066
    %v2068 = vlaneseq
    %v2069 = vshrl.u32 %v2068, 7
    %v2070 = vsub.s32 %v2067, %v2069
    %v2071 = vrot.slane %v1934, %v2070
    %v2073 = vunpack.c.l.s4 1983009808
    %v2074 = vunpack.c.0.s8 %v2073
    %v2075 = vlaneseq
    %v2076 = vshrl.u32 %v2075, 7
    %v2077 = vsub.s32 %v2074, %v2076
    %v2078 = vrot.slane %v2064, %v2077
    %v2079 = vcombine.high %v2071, %v2071
    %v2080 = vcombine.high %v2078, %v2078
    %v2085 = vand.u32 %v1936, 4294901760
    %2086 = vmatprep.subr.mxu0 %v2085
    %v2087 = vand.u32 %v1935, 4294901760
    %2088 = vmatpush1.msra.mxu0 %v2087
    %v2089 = vand.u32 %v1938, 4294901760
    %2090 = vmatprep.subr.mxu0 %v2089
    %v2091 = vand.u32 %v1937, 4294901760
    %2092 = vmatpush1.msra.mxu0 %v2091
    %v2093 = vand.u32 %v1940, 4294901760
    %2094 = vmatprep.subr.mxu0 %v2093
    %v2095 = vand.u32 %v1939, 4294901760
    %2096 = vmatpush1.msra.mxu0 %v2095
    %v2097 = vand.u32 %v1942, 4294901760
    %2098 = vmatprep.subr.mxu0 %v2097
    %v2099 = vand.u32 %v1941, 4294901760
    %2100 = vmatpush1.msra.mxu0 %v2099
    %v2101 = vand.u32 %v1944, 4294901760
    %2102 = vmatprep.subr.mxu0 %v2101
    %v2103 = vand.u32 %v1943, 4294901760
    %2104 = vmatpush1.msra.mxu0 %v2103
    %v2105 = vand.u32 %v1946, 4294901760
    %2106 = vmatprep.subr.mxu0 %v2105
    %v2107 = vand.u32 %v1945, 4294901760
    %2108 = vmatpush1.msra.mxu0 %v2107
    %v2109 = vand.u32 %v1948, 4294901760
    %2110 = vmatprep.subr.mxu0 %v2109
    %v2111 = vand.u32 %v1947, 4294901760
    %2112 = vmatpush1.msra.mxu0 %v2111
    %v2113 = vand.u32 %v1950, 4294901760
    %2114 = vmatprep.subr.mxu0 %v2113
    %v2115 = vand.u32 %v1949, 4294901760
    %2116 = vmatpush1.msra.mxu0 %v2115
    %v2117 = vand.u32 %v1952, 4294901760
    %2118 = vmatprep.subr.mxu0 %v2117
    %v2119 = vand.u32 %v1951, 4294901760
    %2120 = vmatpush1.msra.mxu0 %v2119
    %v2121 = vand.u32 %v1954, 4294901760
    %2122 = vmatprep.subr.mxu0 %v2121
    %v2123 = vand.u32 %v1953, 4294901760
    %2124 = vmatpush1.msra.mxu0 %v2123
    %v2125 = vand.u32 %v1956, 4294901760
    %2126 = vmatprep.subr.mxu0 %v2125
    %v2127 = vand.u32 %v1955, 4294901760
    %2128 = vmatpush1.msra.mxu0 %v2127
    %v2129 = vand.u32 %v1958, 4294901760
    %2130 = vmatprep.subr.mxu0 %v2129
    %v2131 = vand.u32 %v1957, 4294901760
    %2132 = vmatpush1.msra.mxu0 %v2131
    %v2133 = vand.u32 %v1960, 4294901760
    %2134 = vmatprep.subr.mxu0 %v2133
    %v2135 = vand.u32 %v1959, 4294901760
    %2136 = vmatpush1.msra.mxu0 %v2135
    %v2137 = vand.u32 %v1962, 4294901760
    %2138 = vmatprep.subr.mxu0 %v2137
    %v2139 = vand.u32 %v1961, 4294901760
    %2140 = vmatpush1.msra.mxu0 %v2139
    %v2141 = vand.u32 %v1964, 4294901760
    %2142 = vmatprep.subr.mxu0 %v2141
    %v2143 = vand.u32 %v1963, 4294901760
    %2144 = vmatpush1.msra.mxu0 %v2143
    %v2145 = vand.u32 %v1966, 4294901760
    %2146 = vmatprep.subr.mxu0 %v2145
    %v2147 = vand.u32 %v1965, 4294901760
    %2148 = vmatpush1.msra.mxu0 %v2147
    %v2149 = vand.u32 %v1968, 4294901760
    %2150 = vmatprep.subr.mxu0 %v2149
    %v2151 = vand.u32 %v1967, 4294901760
    %2152 = vmatpush1.msra.mxu0 %v2151
    %v2153 = vand.u32 %v1970, 4294901760
    %2154 = vmatprep.subr.mxu0 %v2153
    %v2155 = vand.u32 %v1969, 4294901760
    %2156 = vmatpush1.msra.mxu0 %v2155
    %v2157 = vand.u32 %v1972, 4294901760
    %2158 = vmatprep.subr.mxu0 %v2157
    %v2159 = vand.u32 %v1971, 4294901760
    %2160 = vmatpush1.msra.mxu0 %v2159
    %v2161 = vand.u32 %v1974, 4294901760
    %2162 = vmatprep.subr.mxu0 %v2161
    %v2163 = vand.u32 %v1973, 4294901760
    %2164 = vmatpush1.msra.mxu0 %v2163
    %v2165 = vand.u32 %v1976, 4294901760
    %2166 = vmatprep.subr.mxu0 %v2165
    %v2167 = vand.u32 %v1975, 4294901760
    %2168 = vmatpush1.msra.mxu0 %v2167
    %v2169 = vand.u32 %v1978, 4294901760
    %2170 = vmatprep.subr.mxu0 %v2169
    %v2171 = vand.u32 %v1977, 4294901760
    %2172 = vmatpush1.msra.mxu0 %v2171
    %v2173 = vand.u32 %v1980, 4294901760
    %2174 = vmatprep.subr.mxu0 %v2173
    %v2175 = vand.u32 %v1979, 4294901760
    %2176 = vmatpush1.msra.mxu0 %v2175
    %v2177 = vand.u32 %v1982, 4294901760
    %2178 = vmatprep.subr.mxu0 %v2177
    %v2179 = vand.u32 %v1981, 4294901760
    %2180 = vmatpush1.msra.mxu0 %v2179
    %v2181 = vand.u32 %v1984, 4294901760
    %2182 = vmatprep.subr.mxu0 %v2181
    %v2183 = vand.u32 %v1983, 4294901760
    %2184 = vmatpush1.msra.mxu0 %v2183
    %v2185 = vand.u32 %v1986, 4294901760
    %2186 = vmatprep.subr.mxu0 %v2185
    %v2187 = vand.u32 %v1985, 4294901760
    %2188 = vmatpush1.msra.mxu0 %v2187
    %v2189 = vand.u32 %v1988, 4294901760
    %2190 = vmatprep.subr.mxu0 %v2189
    %v2191 = vand.u32 %v1987, 4294901760
    %2192 = vmatpush1.msra.mxu0 %v2191
    %v2193 = vand.u32 %v1990, 4294901760
    %2194 = vmatprep.subr.mxu0 %v2193
    %v2195 = vand.u32 %v1989, 4294901760
    %2196 = vmatpush1.msra.mxu0 %v2195
    %v2197 = vand.u32 %v1992, 4294901760
    %2198 = vmatprep.subr.mxu0 %v2197
    %v2199 = vand.u32 %v1991, 4294901760
    %2200 = vmatpush1.msra.mxu0 %v2199
    %v2201 = vand.u32 %v1994, 4294901760
    %2202 = vmatprep.subr.mxu0 %v2201
    %v2203 = vand.u32 %v1993, 4294901760
    %2204 = vmatpush1.msra.mxu0 %v2203
    %v2205 = vand.u32 %v1996, 4294901760
    %2206 = vmatprep.subr.mxu0 %v2205
    %v2207 = vand.u32 %v1995, 4294901760
    %2208 = vmatpush1.msra.mxu0 %v2207
    %v2209 = vand.u32 %v1998, 4294901760
    %2210 = vmatprep.subr.mxu0 %v2209
    %v2211 = vand.u32 %v1997, 4294901760
    %2212 = vmatpush1.msra.mxu0 %v2211
    %v2213 = vand.u32 %v2079, 4294901760
    %v2214 = vsub.f32 %v2079, %v2213
    %v2215 = vand.u32 %v2214, 4294901760
    %v2216 = vsub.f32 %v2214, %v2215
    %v2217 = vand.u32 %v2216, 4294901760
    %2218 = vmatprep.mubr.f32.mxu0 %v2217
    %v2219 = vand.u32 %v2071, 4294901760
    %v2220 = vsub.f32 %v2071, %v2219
    %v2221 = vand.u32 %v2220, 4294901760
    %v2222 = vsub.f32 %v2220, %v2221
    %v2223 = vand.u32 %v2222, 4294901760
    %2224 = vmatmul.mubr.f32.gmra.mrb[0].mxu0 %v2223
    %v2225 = vpop.f32.mrb[0].mxu0
    %v2226 = vadd.f32 0.0, %v2225
    %v2227 = vpop.f32.mrb[0].mxu0
    %v2228 = vadd.f32 0.0, %v2227
    %2229 = vdwg.mxu0
    %v2230 = vand.u32 %v1936, 4294901760
    %v2231 = vsub.f32 %v1936, %v2230
    %v2232 = vand.u32 %v2231, 4294901760
    %v2233 = vsub.f32 %v2231, %v2232
    %v2234 = vand.u32 %v2233, 4294901760
    %2235 = vmatprep.subr.mxu0 %v2234
    %v2236 = vand.u32 %v1935, 4294901760
    %v2237 = vsub.f32 %v1935, %v2236
    %v2238 = vand.u32 %v2237, 4294901760
    %v2239 = vsub.f32 %v2237, %v2238
    %v2240 = vand.u32 %v2239, 4294901760
    %2241 = vmatpush1.msra.mxu0 %v2240
    %v2242 = vand.u32 %v1938, 4294901760
    %v2243 = vsub.f32 %v1938, %v2242
    %v2244 = vand.u32 %v2243, 4294901760
    %v2245 = vsub.f32 %v2243, %v2244
    %v2246 = vand.u32 %v2245, 4294901760
    %2247 = vmatprep.subr.mxu0 %v2246
    %v2248 = vand.u32 %v1937, 4294901760
    %v2249 = vsub.f32 %v1937, %v2248
    %v2250 = vand.u32 %v2249, 4294901760
    %v2251 = vsub.f32 %v2249, %v2250
    %v2252 = vand.u32 %v2251, 4294901760
    %2253 = vmatpush1.msra.mxu0 %v2252
    %v2254 = vand.u32 %v1940, 4294901760
    %v2255 = vsub.f32 %v1940, %v2254
    %v2256 = vand.u32 %v2255, 4294901760
    %v2257 = vsub.f32 %v2255, %v2256
    %v2258 = vand.u32 %v2257, 4294901760
    %2259 = vmatprep.subr.mxu0 %v2258
    %v2260 = vand.u32 %v1939, 4294901760
    %v2261 = vsub.f32 %v1939, %v2260
    %v2262 = vand.u32 %v2261, 4294901760
    %v2263 = vsub.f32 %v2261, %v2262
    %v2264 = vand.u32 %v2263, 4294901760
    %2265 = vmatpush1.msra.mxu0 %v2264
    %v2266 = vand.u32 %v1942, 4294901760
    %v2267 = vsub.f32 %v1942, %v2266
    %v2268 = vand.u32 %v2267, 4294901760
    %v2269 = vsub.f32 %v2267, %v2268
    %v2270 = vand.u32 %v2269, 4294901760
    %2271 = vmatprep.subr.mxu0 %v2270
    %v2272 = vand.u32 %v1941, 4294901760
    %v2273 = vsub.f32 %v1941, %v2272
    %v2274 = vand.u32 %v2273, 4294901760
    %v2275 = vsub.f32 %v2273, %v2274
    %v2276 = vand.u32 %v2275, 4294901760
    %2277 = vmatpush1.msra.mxu0 %v2276
    %v2278 = vand.u32 %v1944, 4294901760
    %v2279 = vsub.f32 %v1944, %v2278
    %v2280 = vand.u32 %v2279, 4294901760
    %v2281 = vsub.f32 %v2279, %v2280
    %v2282 = vand.u32 %v2281, 4294901760
    %2283 = vmatprep.subr.mxu0 %v2282
    %v2284 = vand.u32 %v1943, 4294901760
    %v2285 = vsub.f32 %v1943, %v2284
    %v2286 = vand.u32 %v2285, 4294901760
    %v2287 = vsub.f32 %v2285, %v2286
    %v2288 = vand.u32 %v2287, 4294901760
    %2289 = vmatpush1.msra.mxu0 %v2288
    %v2290 = vand.u32 %v1946, 4294901760
    %v2291 = vsub.f32 %v1946, %v2290
    %v2292 = vand.u32 %v2291, 4294901760
    %v2293 = vsub.f32 %v2291, %v2292
    %v2294 = vand.u32 %v2293, 4294901760
    %2295 = vmatprep.subr.mxu0 %v2294
    %v2296 = vand.u32 %v1945, 4294901760
    %v2297 = vsub.f32 %v1945, %v2296
    %v2298 = vand.u32 %v2297, 4294901760
    %v2299 = vsub.f32 %v2297, %v2298
    %v2300 = vand.u32 %v2299, 4294901760
    %2301 = vmatpush1.msra.mxu0 %v2300
    %v2302 = vand.u32 %v1948, 4294901760
    %v2303 = vsub.f32 %v1948, %v2302
    %v2304 = vand.u32 %v2303, 4294901760
    %v2305 = vsub.f32 %v2303, %v2304
    %v2306 = vand.u32 %v2305, 4294901760
    %2307 = vmatprep.subr.mxu0 %v2306
    %v2308 = vand.u32 %v1947, 4294901760
    %v2309 = vsub.f32 %v1947, %v2308
    %v2310 = vand.u32 %v2309, 4294901760
    %v2311 = vsub.f32 %v2309, %v2310
    %v2312 = vand.u32 %v2311, 4294901760
    %2313 = vmatpush1.msra.mxu0 %v2312
    %v2314 = vand.u32 %v1950, 4294901760
    %v2315 = vsub.f32 %v1950, %v2314
    %v2316 = vand.u32 %v2315, 4294901760
    %v2317 = vsub.f32 %v2315, %v2316
    %v2318 = vand.u32 %v2317, 4294901760
    %2319 = vmatprep.subr.mxu0 %v2318
    %v2320 = vand.u32 %v1949, 4294901760
    %v2321 = vsub.f32 %v1949, %v2320
    %v2322 = vand.u32 %v2321, 4294901760
    %v2323 = vsub.f32 %v2321, %v2322
    %v2324 = vand.u32 %v2323, 4294901760
    %2325 = vmatpush1.msra.mxu0 %v2324
    %v2326 = vand.u32 %v1952, 4294901760
    %v2327 = vsub.f32 %v1952, %v2326
    %v2328 = vand.u32 %v2327, 4294901760
    %v2329 = vsub.f32 %v2327, %v2328
    %v2330 = vand.u32 %v2329, 4294901760
    %2331 = vmatprep.subr.mxu0 %v2330
    %v2332 = vand.u32 %v1951, 4294901760
    %v2333 = vsub.f32 %v1951, %v2332
    %v2334 = vand.u32 %v2333, 4294901760
    %v2335 = vsub.f32 %v2333, %v2334
    %v2336 = vand.u32 %v2335, 4294901760
    %2337 = vmatpush1.msra.mxu0 %v2336
    %v2338 = vand.u32 %v1954, 4294901760
    %v2339 = vsub.f32 %v1954, %v2338
    %v2340 = vand.u32 %v2339, 4294901760
    %v2341 = vsub.f32 %v2339, %v2340
    %v2342 = vand.u32 %v2341, 4294901760
    %2343 = vmatprep.subr.mxu0 %v2342
    %v2344 = vand.u32 %v1953, 4294901760
    %v2345 = vsub.f32 %v1953, %v2344
    %v2346 = vand.u32 %v2345, 4294901760
    %v2347 = vsub.f32 %v2345, %v2346
    %v2348 = vand.u32 %v2347, 4294901760
    %2349 = vmatpush1.msra.mxu0 %v2348
    %v2350 = vand.u32 %v1956, 4294901760
    %v2351 = vsub.f32 %v1956, %v2350
    %v2352 = vand.u32 %v2351, 4294901760
    %v2353 = vsub.f32 %v2351, %v2352
    %v2354 = vand.u32 %v2353, 4294901760
    %2355 = vmatprep.subr.mxu0 %v2354
    %v2356 = vand.u32 %v1955, 4294901760
    %v2357 = vsub.f32 %v1955, %v2356
    %v2358 = vand.u32 %v2357, 4294901760
    %v2359 = vsub.f32 %v2357, %v2358
    %v2360 = vand.u32 %v2359, 4294901760
    %2361 = vmatpush1.msra.mxu0 %v2360
    %v2362 = vand.u32 %v1958, 4294901760
    %v2363 = vsub.f32 %v1958, %v2362
    %v2364 = vand.u32 %v2363, 4294901760
    %v2365 = vsub.f32 %v2363, %v2364
    %v2366 = vand.u32 %v2365, 4294901760
    %2367 = vmatprep.subr.mxu0 %v2366
    %v2368 = vand.u32 %v1957, 4294901760
    %v2369 = vsub.f32 %v1957, %v2368
    %v2370 = vand.u32 %v2369, 4294901760
    %v2371 = vsub.f32 %v2369, %v2370
    %v2372 = vand.u32 %v2371, 4294901760
    %2373 = vmatpush1.msra.mxu0 %v2372
    %v2374 = vand.u32 %v1960, 4294901760
    %v2375 = vsub.f32 %v1960, %v2374
    %v2376 = vand.u32 %v2375, 4294901760
    %v2377 = vsub.f32 %v2375, %v2376
    %v2378 = vand.u32 %v2377, 4294901760
    %2379 = vmatprep.subr.mxu0 %v2378
    %v2380 = vand.u32 %v1959, 4294901760
    %v2381 = vsub.f32 %v1959, %v2380
    %v2382 = vand.u32 %v2381, 4294901760
    %v2383 = vsub.f32 %v2381, %v2382
    %v2384 = vand.u32 %v2383, 4294901760
    %2385 = vmatpush1.msra.mxu0 %v2384
    %v2386 = vand.u32 %v1962, 4294901760
    %v2387 = vsub.f32 %v1962, %v2386
    %v2388 = vand.u32 %v2387, 4294901760
    %v2389 = vsub.f32 %v2387, %v2388
    %v2390 = vand.u32 %v2389, 4294901760
    %2391 = vmatprep.subr.mxu0 %v2390
    %v2392 = vand.u32 %v1961, 4294901760
    %v2393 = vsub.f32 %v1961, %v2392
    %v2394 = vand.u32 %v2393, 4294901760
    %v2395 = vsub.f32 %v2393, %v2394
    %v2396 = vand.u32 %v2395, 4294901760
    %2397 = vmatpush1.msra.mxu0 %v2396
    %v2398 = vand.u32 %v1964, 4294901760
    %v2399 = vsub.f32 %v1964, %v2398
    %v2400 = vand.u32 %v2399, 4294901760
    %v2401 = vsub.f32 %v2399, %v2400
    %v2402 = vand.u32 %v2401, 4294901760
    %2403 = vmatprep.subr.mxu0 %v2402
    %v2404 = vand.u32 %v1963, 4294901760
    %v2405 = vsub.f32 %v1963, %v2404
    %v2406 = vand.u32 %v2405, 4294901760
    %v2407 = vsub.f32 %v2405, %v2406
    %v2408 = vand.u32 %v2407, 4294901760
    %2409 = vmatpush1.msra.mxu0 %v2408
    %v2410 = vand.u32 %v1966, 4294901760
    %v2411 = vsub.f32 %v1966, %v2410
    %v2412 = vand.u32 %v2411, 4294901760
    %v2413 = vsub.f32 %v2411, %v2412
    %v2414 = vand.u32 %v2413, 4294901760
    %2415 = vmatprep.subr.mxu0 %v2414
    %v2416 = vand.u32 %v1965, 4294901760
    %v2417 = vsub.f32 %v1965, %v2416
    %v2418 = vand.u32 %v2417, 4294901760
    %v2419 = vsub.f32 %v2417, %v2418
    %v2420 = vand.u32 %v2419, 4294901760
    %2421 = vmatpush1.msra.mxu0 %v2420
    %v2422 = vand.u32 %v1968, 4294901760
    %v2423 = vsub.f32 %v1968, %v2422
    %v2424 = vand.u32 %v2423, 4294901760
    %v2425 = vsub.f32 %v2423, %v2424
    %v2426 = vand.u32 %v2425, 4294901760
    %2427 = vmatprep.subr.mxu0 %v2426
    %v2428 = vand.u32 %v1967, 4294901760
    %v2429 = vsub.f32 %v1967, %v2428
    %v2430 = vand.u32 %v2429, 4294901760
    %v2431 = vsub.f32 %v2429, %v2430
    %v2432 = vand.u32 %v2431, 4294901760
    %2433 = vmatpush1.msra.mxu0 %v2432
    %v2434 = vand.u32 %v1970, 4294901760
    %v2435 = vsub.f32 %v1970, %v2434
    %v2436 = vand.u32 %v2435, 4294901760
    %v2437 = vsub.f32 %v2435, %v2436
    %v2438 = vand.u32 %v2437, 4294901760
    %2439 = vmatprep.subr.mxu0 %v2438
    %v2440 = vand.u32 %v1969, 4294901760
    %v2441 = vsub.f32 %v1969, %v2440
    %v2442 = vand.u32 %v2441, 4294901760
    %v2443 = vsub.f32 %v2441, %v2442
    %v2444 = vand.u32 %v2443, 4294901760
    %2445 = vmatpush1.msra.mxu0 %v2444
    %v2446 = vand.u32 %v1972, 4294901760
    %v2447 = vsub.f32 %v1972, %v2446
    %v2448 = vand.u32 %v2447, 4294901760
    %v2449 = vsub.f32 %v2447, %v2448
    %v2450 = vand.u32 %v2449, 4294901760
    %2451 = vmatprep.subr.mxu0 %v2450
    %v2452 = vand.u32 %v1971, 4294901760
    %v2453 = vsub.f32 %v1971, %v2452
    %v2454 = vand.u32 %v2453, 4294901760
    %v2455 = vsub.f32 %v2453, %v2454
    %v2456 = vand.u32 %v2455, 4294901760
    %2457 = vmatpush1.msra.mxu0 %v2456
    %v2458 = vand.u32 %v1974, 4294901760
    %v2459 = vsub.f32 %v1974, %v2458
    %v2460 = vand.u32 %v2459, 4294901760
    %v2461 = vsub.f32 %v2459, %v2460
    %v2462 = vand.u32 %v2461, 4294901760
    %2463 = vmatprep.subr.mxu0 %v2462
    %v2464 = vand.u32 %v1973, 4294901760
    %v2465 = vsub.f32 %v1973, %v2464
    %v2466 = vand.u32 %v2465, 4294901760
    %v2467 = vsub.f32 %v2465, %v2466
    %v2468 = vand.u32 %v2467, 4294901760
    %2469 = vmatpush1.msra.mxu0 %v2468
    %v2470 = vand.u32 %v1976, 4294901760
    %v2471 = vsub.f32 %v1976, %v2470
    %v2472 = vand.u32 %v2471, 4294901760
    %v2473 = vsub.f32 %v2471, %v2472
    %v2474 = vand.u32 %v2473, 4294901760
    %2475 = vmatprep.subr.mxu0 %v2474
    %v2476 = vand.u32 %v1975, 4294901760
    %v2477 = vsub.f32 %v1975, %v2476
    %v2478 = vand.u32 %v2477, 4294901760
    %v2479 = vsub.f32 %v2477, %v2478
    %v2480 = vand.u32 %v2479, 4294901760
    %2481 = vmatpush1.msra.mxu0 %v2480
    %v2482 = vand.u32 %v1978, 4294901760
    %v2483 = vsub.f32 %v1978, %v2482
    %v2484 = vand.u32 %v2483, 4294901760
    %v2485 = vsub.f32 %v2483, %v2484
    %v2486 = vand.u32 %v2485, 4294901760
    %2487 = vmatprep.subr.mxu0 %v2486
    %v2488 = vand.u32 %v1977, 4294901760
    %v2489 = vsub.f32 %v1977, %v2488
    %v2490 = vand.u32 %v2489, 4294901760
    %v2491 = vsub.f32 %v2489, %v2490
    %v2492 = vand.u32 %v2491, 4294901760
    %2493 = vmatpush1.msra.mxu0 %v2492
    %v2494 = vand.u32 %v1980, 4294901760
    %v2495 = vsub.f32 %v1980, %v2494
    %v2496 = vand.u32 %v2495, 4294901760
    %v2497 = vsub.f32 %v2495, %v2496
    %v2498 = vand.u32 %v2497, 4294901760
    %2499 = vmatprep.subr.mxu0 %v2498
    %v2500 = vand.u32 %v1979, 4294901760
    %v2501 = vsub.f32 %v1979, %v2500
    %v2502 = vand.u32 %v2501, 4294901760
    %v2503 = vsub.f32 %v2501, %v2502
    %v2504 = vand.u32 %v2503, 4294901760
    %2505 = vmatpush1.msra.mxu0 %v2504
    %v2506 = vand.u32 %v1982, 4294901760
    %v2507 = vsub.f32 %v1982, %v2506
    %v2508 = vand.u32 %v2507, 4294901760
    %v2509 = vsub.f32 %v2507, %v2508
    %v2510 = vand.u32 %v2509, 4294901760
    %2511 = vmatprep.subr.mxu0 %v2510
    %v2512 = vand.u32 %v1981, 4294901760
    %v2513 = vsub.f32 %v1981, %v2512
    %v2514 = vand.u32 %v2513, 4294901760
    %v2515 = vsub.f32 %v2513, %v2514
    %v2516 = vand.u32 %v2515, 4294901760
    %2517 = vmatpush1.msra.mxu0 %v2516
    %v2518 = vand.u32 %v1984, 4294901760
    %v2519 = vsub.f32 %v1984, %v2518
    %v2520 = vand.u32 %v2519, 4294901760
    %v2521 = vsub.f32 %v2519, %v2520
    %v2522 = vand.u32 %v2521, 4294901760
    %2523 = vmatprep.subr.mxu0 %v2522
    %v2524 = vand.u32 %v1983, 4294901760
    %v2525 = vsub.f32 %v1983, %v2524
    %v2526 = vand.u32 %v2525, 4294901760
    %v2527 = vsub.f32 %v2525, %v2526
    %v2528 = vand.u32 %v2527, 4294901760
    %2529 = vmatpush1.msra.mxu0 %v2528
    %v2530 = vand.u32 %v1986, 4294901760
    %v2531 = vsub.f32 %v1986, %v2530
    %v2532 = vand.u32 %v2531, 4294901760
    %v2533 = vsub.f32 %v2531, %v2532
    %v2534 = vand.u32 %v2533, 4294901760
    %2535 = vmatprep.subr.mxu0 %v2534
    %v2536 = vand.u32 %v1985, 4294901760
    %v2537 = vsub.f32 %v1985, %v2536
    %v2538 = vand.u32 %v2537, 4294901760
    %v2539 = vsub.f32 %v2537, %v2538
    %v2540 = vand.u32 %v2539, 4294901760
    %2541 = vmatpush1.msra.mxu0 %v2540
    %v2542 = vand.u32 %v1988, 4294901760
    %v2543 = vsub.f32 %v1988, %v2542
    %v2544 = vand.u32 %v2543, 4294901760
    %v2545 = vsub.f32 %v2543, %v2544
    %v2546 = vand.u32 %v2545, 4294901760
    %2547 = vmatprep.subr.mxu0 %v2546
    %v2548 = vand.u32 %v1987, 4294901760
    %v2549 = vsub.f32 %v1987, %v2548
    %v2550 = vand.u32 %v2549, 4294901760
    %v2551 = vsub.f32 %v2549, %v2550
    %v2552 = vand.u32 %v2551, 4294901760
    %2553 = vmatpush1.msra.mxu0 %v2552
    %v2554 = vand.u32 %v1990, 4294901760
    %v2555 = vsub.f32 %v1990, %v2554
    %v2556 = vand.u32 %v2555, 4294901760
    %v2557 = vsub.f32 %v2555, %v2556
    %v2558 = vand.u32 %v2557, 4294901760
    %2559 = vmatprep.subr.mxu0 %v2558
    %v2560 = vand.u32 %v1989, 4294901760
    %v2561 = vsub.f32 %v1989, %v2560
    %v2562 = vand.u32 %v2561, 4294901760
    %v2563 = vsub.f32 %v2561, %v2562
    %v2564 = vand.u32 %v2563, 4294901760
    %2565 = vmatpush1.msra.mxu0 %v2564
    %v2566 = vand.u32 %v1992, 4294901760
    %v2567 = vsub.f32 %v1992, %v2566
    %v2568 = vand.u32 %v2567, 4294901760
    %v2569 = vsub.f32 %v2567, %v2568
    %v2570 = vand.u32 %v2569, 4294901760
    %2571 = vmatprep.subr.mxu0 %v2570
    %v2572 = vand.u32 %v1991, 4294901760
    %v2573 = vsub.f32 %v1991, %v2572
    %v2574 = vand.u32 %v2573, 4294901760
    %v2575 = vsub.f32 %v2573, %v2574
    %v2576 = vand.u32 %v2575, 4294901760
    %2577 = vmatpush1.msra.mxu0 %v2576
    %v2578 = vand.u32 %v1994, 4294901760
    %v2579 = vsub.f32 %v1994, %v2578
    %v2580 = vand.u32 %v2579, 4294901760
    %v2581 = vsub.f32 %v2579, %v2580
    %v2582 = vand.u32 %v2581, 4294901760
    %2583 = vmatprep.subr.mxu0 %v2582
    %v2584 = vand.u32 %v1993, 4294901760
    %v2585 = vsub.f32 %v1993, %v2584
    %v2586 = vand.u32 %v2585, 4294901760
    %v2587 = vsub.f32 %v2585, %v2586
    %v2588 = vand.u32 %v2587, 4294901760
    %2589 = vmatpush1.msra.mxu0 %v2588
    %v2590 = vand.u32 %v1996, 4294901760
    %v2591 = vsub.f32 %v1996, %v2590
    %v2592 = vand.u32 %v2591, 4294901760
    %v2593 = vsub.f32 %v2591, %v2592
    %v2594 = vand.u32 %v2593, 4294901760
    %2595 = vmatprep.subr.mxu0 %v2594
    %v2596 = vand.u32 %v1995, 4294901760
    %v2597 = vsub.f32 %v1995, %v2596
    %v2598 = vand.u32 %v2597, 4294901760
    %v2599 = vsub.f32 %v2597, %v2598
    %v2600 = vand.u32 %v2599, 4294901760
    %2601 = vmatpush1.msra.mxu0 %v2600
    %v2602 = vand.u32 %v1998, 4294901760
    %v2603 = vsub.f32 %v1998, %v2602
    %v2604 = vand.u32 %v2603, 4294901760
    %v2605 = vsub.f32 %v2603, %v2604
    %v2606 = vand.u32 %v2605, 4294901760
    %2607 = vmatprep.subr.mxu0 %v2606
    %v2608 = vand.u32 %v1997, 4294901760
    %v2609 = vsub.f32 %v1997, %v2608
    %v2610 = vand.u32 %v2609, 4294901760
    %v2611 = vsub.f32 %v2609, %v2610
    %v2612 = vand.u32 %v2611, 4294901760
    %2613 = vmatpush1.msra.mxu0 %v2612
    %v2614 = vand.u32 %v2079, 4294901760
    %2615 = vmatprep.mubr.f32.mxu0 %v2614
    %v2616 = vand.u32 %v2071, 4294901760
    %2617 = vmatmul.mubr.f32.gmra.mrb[0].mxu0 %v2616
    %v2618 = vpop.f32.mrb[0].mxu0
    %v2619 = vadd.f32 %v2226, %v2618
    %v2620 = vpop.f32.mrb[0].mxu0
    %v2621 = vadd.f32 %v2228, %v2620
    %2622 = vdwg.mxu0
    %v2623 = vand.u32 %v1936, 4294901760
    %v2624 = vsub.f32 %v1936, %v2623
    %2625 = vmatprep.subr.mxu0 %v2624
    %v2626 = vand.u32 %v1935, 4294901760
    %v2627 = vsub.f32 %v1935, %v2626
    %2628 = vmatpush1.msra.mxu0 %v2627
    %v2629 = vand.u32 %v1938, 4294901760
    %v2630 = vsub.f32 %v1938, %v2629
    %2631 = vmatprep.subr.mxu0 %v2630
    %v2632 = vand.u32 %v1937, 4294901760
    %v2633 = vsub.f32 %v1937, %v2632
    %2634 = vmatpush1.msra.mxu0 %v2633
    %v2635 = vand.u32 %v1940, 4294901760
    %v2636 = vsub.f32 %v1940, %v2635
    %2637 = vmatprep.subr.mxu0 %v2636
    %v2638 = vand.u32 %v1939, 4294901760
    %v2639 = vsub.f32 %v1939, %v2638
    %2640 = vmatpush1.msra.mxu0 %v2639
    %v2641 = vand.u32 %v1942, 4294901760
    %v2642 = vsub.f32 %v1942, %v2641
    %2643 = vmatprep.subr.mxu0 %v2642
    %v2644 = vand.u32 %v1941, 4294901760
    %v2645 = vsub.f32 %v1941, %v2644
    %2646 = vmatpush1.msra.mxu0 %v2645
    %v2647 = vand.u32 %v1944, 4294901760
    %v2648 = vsub.f32 %v1944, %v2647
    %2649 = vmatprep.subr.mxu0 %v2648
    %v2650 = vand.u32 %v1943, 4294901760
    %v2651 = vsub.f32 %v1943, %v2650
    %2652 = vmatpush1.msra.mxu0 %v2651
    %v2653 = vand.u32 %v1946, 4294901760
    %v2654 = vsub.f32 %v1946, %v2653
    %2655 = vmatprep.subr.mxu0 %v2654
    %v2656 = vand.u32 %v1945, 4294901760
    %v2657 = vsub.f32 %v1945, %v2656
    %2658 = vmatpush1.msra.mxu0 %v2657
    %v2659 = vand.u32 %v1948, 4294901760
    %v2660 = vsub.f32 %v1948, %v2659
    %2661 = vmatprep.subr.mxu0 %v2660
    %v2662 = vand.u32 %v1947, 4294901760
    %v2663 = vsub.f32 %v1947, %v2662
    %2664 = vmatpush1.msra.mxu0 %v2663
    %v2665 = vand.u32 %v1950, 4294901760
    %v2666 = vsub.f32 %v1950, %v2665
    %2667 = vmatprep.subr.mxu0 %v2666
    %v2668 = vand.u32 %v1949, 4294901760
    %v2669 = vsub.f32 %v1949, %v2668
    %2670 = vmatpush1.msra.mxu0 %v2669
    %v2671 = vand.u32 %v1952, 4294901760
    %v2672 = vsub.f32 %v1952, %v2671
    %2673 = vmatprep.subr.mxu0 %v2672
    %v2674 = vand.u32 %v1951, 4294901760
    %v2675 = vsub.f32 %v1951, %v2674
    %2676 = vmatpush1.msra.mxu0 %v2675
    %v2677 = vand.u32 %v1954, 4294901760
    %v2678 = vsub.f32 %v1954, %v2677
    %2679 = vmatprep.subr.mxu0 %v2678
    %v2680 = vand.u32 %v1953, 4294901760
    %v2681 = vsub.f32 %v1953, %v2680
    %2682 = vmatpush1.msra.mxu0 %v2681
    %v2683 = vand.u32 %v1956, 4294901760
    %v2684 = vsub.f32 %v1956, %v2683
    %2685 = vmatprep.subr.mxu0 %v2684
    %v2686 = vand.u32 %v1955, 4294901760
    %v2687 = vsub.f32 %v1955, %v2686
    %2688 = vmatpush1.msra.mxu0 %v2687
    %v2689 = vand.u32 %v1958, 4294901760
    %v2690 = vsub.f32 %v1958, %v2689
    %2691 = vmatprep.subr.mxu0 %v2690
    %v2692 = vand.u32 %v1957, 4294901760
    %v2693 = vsub.f32 %v1957, %v2692
    %2694 = vmatpush1.msra.mxu0 %v2693
    %v2695 = vand.u32 %v1960, 4294901760
    %v2696 = vsub.f32 %v1960, %v2695
    %2697 = vmatprep.subr.mxu0 %v2696
    %v2698 = vand.u32 %v1959, 4294901760
    %v2699 = vsub.f32 %v1959, %v2698
    %2700 = vmatpush1.msra.mxu0 %v2699
    %v2701 = vand.u32 %v1962, 4294901760
    %v2702 = vsub.f32 %v1962, %v2701
    %2703 = vmatprep.subr.mxu0 %v2702
    %v2704 = vand.u32 %v1961, 4294901760
    %v2705 = vsub.f32 %v1961, %v2704
    %2706 = vmatpush1.msra.mxu0 %v2705
    %v2707 = vand.u32 %v1964, 4294901760
    %v2708 = vsub.f32 %v1964, %v2707
    %2709 = vmatprep.subr.mxu0 %v2708
    %v2710 = vand.u32 %v1963, 4294901760
    %v2711 = vsub.f32 %v1963, %v2710
    %2712 = vmatpush1.msra.mxu0 %v2711
    %v2713 = vand.u32 %v1966, 4294901760
    %v2714 = vsub.f32 %v1966, %v2713
    %2715 = vmatprep.subr.mxu0 %v2714
    %v2716 = vand.u32 %v1965, 4294901760
    %v2717 = vsub.f32 %v1965, %v2716
    %2718 = vmatpush1.msra.mxu0 %v2717
    %v2719 = vand.u32 %v1968, 4294901760
    %v2720 = vsub.f32 %v1968, %v2719
    %2721 = vmatprep.subr.mxu0 %v2720
    %v2722 = vand.u32 %v1967, 4294901760
    %v2723 = vsub.f32 %v1967, %v2722
    %2724 = vmatpush1.msra.mxu0 %v2723
    %v2725 = vand.u32 %v1970, 4294901760
    %v2726 = vsub.f32 %v1970, %v2725
    %2727 = vmatprep.subr.mxu0 %v2726
    %v2728 = vand.u32 %v1969, 4294901760
    %v2729 = vsub.f32 %v1969, %v2728
    %2730 = vmatpush1.msra.mxu0 %v2729
    %v2731 = vand.u32 %v1972, 4294901760
    %v2732 = vsub.f32 %v1972, %v2731
    %2733 = vmatprep.subr.mxu0 %v2732
    %v2734 = vand.u32 %v1971, 4294901760
    %v2735 = vsub.f32 %v1971, %v2734
    %2736 = vmatpush1.msra.mxu0 %v2735
    %v2737 = vand.u32 %v1974, 4294901760
    %v2738 = vsub.f32 %v1974, %v2737
    %2739 = vmatprep.subr.mxu0 %v2738
    %v2740 = vand.u32 %v1973, 4294901760
    %v2741 = vsub.f32 %v1973, %v2740
    %2742 = vmatpush1.msra.mxu0 %v2741
    %v2743 = vand.u32 %v1976, 4294901760
    %v2744 = vsub.f32 %v1976, %v2743
    %2745 = vmatprep.subr.mxu0 %v2744
    %v2746 = vand.u32 %v1975, 4294901760
    %v2747 = vsub.f32 %v1975, %v2746
    %2748 = vmatpush1.msra.mxu0 %v2747
    %v2749 = vand.u32 %v1978, 4294901760
    %v2750 = vsub.f32 %v1978, %v2749
    %2751 = vmatprep.subr.mxu0 %v2750
    %v2752 = vand.u32 %v1977, 4294901760
    %v2753 = vsub.f32 %v1977, %v2752
    %2754 = vmatpush1.msra.mxu0 %v2753
    %v2755 = vand.u32 %v1980, 4294901760
    %v2756 = vsub.f32 %v1980, %v2755
    %2757 = vmatprep.subr.mxu0 %v2756
    %v2758 = vand.u32 %v1979, 4294901760
    %v2759 = vsub.f32 %v1979, %v2758
    %2760 = vmatpush1.msra.mxu0 %v2759
    %v2761 = vand.u32 %v1982, 4294901760
    %v2762 = vsub.f32 %v1982, %v2761
    %2763 = vmatprep.subr.mxu0 %v2762
    %v2764 = vand.u32 %v1981, 4294901760
    %v2765 = vsub.f32 %v1981, %v2764
    %2766 = vmatpush1.msra.mxu0 %v2765
    %v2767 = vand.u32 %v1984, 4294901760
    %v2768 = vsub.f32 %v1984, %v2767
    %2769 = vmatprep.subr.mxu0 %v2768
    %v2770 = vand.u32 %v1983, 4294901760
    %v2771 = vsub.f32 %v1983, %v2770
    %2772 = vmatpush1.msra.mxu0 %v2771
    %v2773 = vand.u32 %v1986, 4294901760
    %v2774 = vsub.f32 %v1986, %v2773
    %2775 = vmatprep.subr.mxu0 %v2774
    %v2776 = vand.u32 %v1985, 4294901760
    %v2777 = vsub.f32 %v1985, %v2776
    %2778 = vmatpush1.msra.mxu0 %v2777
    %v2779 = vand.u32 %v1988, 4294901760
    %v2780 = vsub.f32 %v1988, %v2779
    %2781 = vmatprep.subr.mxu0 %v2780
    %v2782 = vand.u32 %v1987, 4294901760
    %v2783 = vsub.f32 %v1987, %v2782
    %2784 = vmatpush1.msra.mxu0 %v2783
    %v2785 = vand.u32 %v1990, 4294901760
    %v2786 = vsub.f32 %v1990, %v2785
    %2787 = vmatprep.subr.mxu0 %v2786
    %v2788 = vand.u32 %v1989, 4294901760
    %v2789 = vsub.f32 %v1989, %v2788
    %2790 = vmatpush1.msra.mxu0 %v2789
    %v2791 = vand.u32 %v1992, 4294901760
    %v2792 = vsub.f32 %v1992, %v2791
    %2793 = vmatprep.subr.mxu0 %v2792
    %v2794 = vand.u32 %v1991, 4294901760
    %v2795 = vsub.f32 %v1991, %v2794
    %2796 = vmatpush1.msra.mxu0 %v2795
    %v2797 = vand.u32 %v1994, 4294901760
    %v2798 = vsub.f32 %v1994, %v2797
    %2799 = vmatprep.subr.mxu0 %v2798
    %v2800 = vand.u32 %v1993, 4294901760
    %v2801 = vsub.f32 %v1993, %v2800
    %2802 = vmatpush1.msra.mxu0 %v2801
    %v2803 = vand.u32 %v1996, 4294901760
    %v2804 = vsub.f32 %v1996, %v2803
    %2805 = vmatprep.subr.mxu0 %v2804
    %v2806 = vand.u32 %v1995, 4294901760
    %v2807 = vsub.f32 %v1995, %v2806
    %2808 = vmatpush1.msra.mxu0 %v2807
    %v2809 = vand.u32 %v1998, 4294901760
    %v2810 = vsub.f32 %v1998, %v2809
    %2811 = vmatprep.subr.mxu0 %v2810
    %v2812 = vand.u32 %v1997, 4294901760
    %v2813 = vsub.f32 %v1997, %v2812
    %2814 = vmatpush1.msra.mxu0 %v2813
    %v2815 = vand.u32 %v2079, 4294901760
    %v2816 = vsub.f32 %v2079, %v2815
    %2817 = vmatprep.mubr.f32.mxu0 %v2816
    %v2818 = vand.u32 %v2071, 4294901760
    %v2819 = vsub.f32 %v2071, %v2818
    %2820 = vmatmul.mubr.f32.gmra.mrb[0].mxu0 %v2819
    %v2821 = vpop.f32.mrb[0].mxu0
    %v2822 = vadd.f32 %v2619, %v2821
    %v2823 = vpop.f32.mrb[0].mxu0
    %v2824 = vadd.f32 %v2621, %v2823
    %2825 = vdwg.mxu0
    %v2826 = vand.u32 %v1936, 4294901760
    %2827 = vmatprep.subr.mxu0 %v2826
    %v2828 = vand.u32 %v1935, 4294901760
    %2829 = vmatpush1.msra.mxu0 %v2828
    %v2830 = vand.u32 %v1938, 4294901760
    %2831 = vmatprep.subr.mxu0 %v2830
    %v2832 = vand.u32 %v1937, 4294901760
    %2833 = vmatpush1.msra.mxu0 %v2832
    %v2834 = vand.u32 %v1940, 4294901760
    %2835 = vmatprep.subr.mxu0 %v2834
    %v2836 = vand.u32 %v1939, 4294901760
    %2837 = vmatpush1.msra.mxu0 %v2836
    %v2838 = vand.u32 %v1942, 4294901760
    %2839 = vmatprep.subr.mxu0 %v2838
    %v2840 = vand.u32 %v1941, 4294901760
    %2841 = vmatpush1.msra.mxu0 %v2840
    %v2842 = vand.u32 %v1944, 4294901760
    %2843 = vmatprep.subr.mxu0 %v2842
    %v2844 = vand.u32 %v1943, 4294901760
    %2845 = vmatpush1.msra.mxu0 %v2844
    %v2846 = vand.u32 %v1946, 4294901760
    %2847 = vmatprep.subr.mxu0 %v2846
    %v2848 = vand.u32 %v1945, 4294901760
    %2849 = vmatpush1.msra.mxu0 %v2848
    %v2850 = vand.u32 %v1948, 4294901760
    %2851 = vmatprep.subr.mxu0 %v2850
    %v2852 = vand.u32 %v1947, 4294901760
    %2853 = vmatpush1.msra.mxu0 %v2852
    %v2854 = vand.u32 %v1950, 4294901760
    %2855 = vmatprep.subr.mxu0 %v2854
    %v2856 = vand.u32 %v1949, 4294901760
    %2857 = vmatpush1.msra.mxu0 %v2856
    %v2858 = vand.u32 %v1952, 4294901760
    %2859 = vmatprep.subr.mxu0 %v2858
    %v2860 = vand.u32 %v1951, 4294901760
    %2861 = vmatpush1.msra.mxu0 %v2860
    %v2862 = vand.u32 %v1954, 4294901760
    %2863 = vmatprep.subr.mxu0 %v2862
    %v2864 = vand.u32 %v1953, 4294901760
    %2865 = vmatpush1.msra.mxu0 %v2864
    %v2866 = vand.u32 %v1956, 4294901760
    %2867 = vmatprep.subr.mxu0 %v2866
    %v2868 = vand.u32 %v1955, 4294901760
    %2869 = vmatpush1.msra.mxu0 %v2868
    %v2870 = vand.u32 %v1958, 4294901760
    %2871 = vmatprep.subr.mxu0 %v2870
    %v2872 = vand.u32 %v1957, 4294901760
    %2873 = vmatpush1.msra.mxu0 %v2872
    %v2874 = vand.u32 %v1960, 4294901760
    %2875 = vmatprep.subr.mxu0 %v2874
    %v2876 = vand.u32 %v1959, 4294901760
    %2877 = vmatpush1.msra.mxu0 %v2876
    %v2878 = vand.u32 %v1962, 4294901760
    %2879 = vmatprep.subr.mxu0 %v2878
    %v2880 = vand.u32 %v1961, 4294901760
    %2881 = vmatpush1.msra.mxu0 %v2880
    %v2882 = vand.u32 %v1964, 4294901760
    %2883 = vmatprep.subr.mxu0 %v2882
    %v2884 = vand.u32 %v1963, 4294901760
    %2885 = vmatpush1.msra.mxu0 %v2884
    %v2886 = vand.u32 %v1966, 4294901760
    %2887 = vmatprep.subr.mxu0 %v2886
    %v2888 = vand.u32 %v1965, 4294901760
    %2889 = vmatpush1.msra.mxu0 %v2888
    %v2890 = vand.u32 %v1968, 4294901760
    %2891 = vmatprep.subr.mxu0 %v2890
    %v2892 = vand.u32 %v1967, 4294901760
    %2893 = vmatpush1.msra.mxu0 %v2892
    %v2894 = vand.u32 %v1970, 4294901760
    %2895 = vmatprep.subr.mxu0 %v2894
    %v2896 = vand.u32 %v1969, 4294901760
    %2897 = vmatpush1.msra.mxu0 %v2896
    %v2898 = vand.u32 %v1972, 4294901760
    %2899 = vmatprep.subr.mxu0 %v2898
    %v2900 = vand.u32 %v1971, 4294901760
    %2901 = vmatpush1.msra.mxu0 %v2900
    %v2902 = vand.u32 %v1974, 4294901760
    %2903 = vmatprep.subr.mxu0 %v2902
    %v2904 = vand.u32 %v1973, 4294901760
    %2905 = vmatpush1.msra.mxu0 %v2904
    %v2906 = vand.u32 %v1976, 4294901760
    %2907 = vmatprep.subr.mxu0 %v2906
    %v2908 = vand.u32 %v1975, 4294901760
    %2909 = vmatpush1.msra.mxu0 %v2908
    %v2910 = vand.u32 %v1978, 4294901760
    %2911 = vmatprep.subr.mxu0 %v2910
    %v2912 = vand.u32 %v1977, 4294901760
    %2913 = vmatpush1.msra.mxu0 %v2912
    %v2914 = vand.u32 %v1980, 4294901760
    %2915 = vmatprep.subr.mxu0 %v2914
    %v2916 = vand.u32 %v1979, 4294901760
    %2917 = vmatpush1.msra.mxu0 %v2916
    %v2918 = vand.u32 %v1982, 4294901760
    %2919 = vmatprep.subr.mxu0 %v2918
    %v2920 = vand.u32 %v1981, 4294901760
    %2921 = vmatpush1.msra.mxu0 %v2920
    %v2922 = vand.u32 %v1984, 4294901760
    %2923 = vmatprep.subr.mxu0 %v2922
    %v2924 = vand.u32 %v1983, 4294901760
    %2925 = vmatpush1.msra.mxu0 %v2924
    %v2926 = vand.u32 %v1986, 4294901760
    %2927 = vmatprep.subr.mxu0 %v2926
    %v2928 = vand.u32 %v1985, 4294901760
    %2929 = vmatpush1.msra.mxu0 %v2928
    %v2930 = vand.u32 %v1988, 4294901760
    %2931 = vmatprep.subr.mxu0 %v2930
    %v2932 = vand.u32 %v1987, 4294901760
    %2933 = vmatpush1.msra.mxu0 %v2932
    %v2934 = vand.u32 %v1990, 4294901760
    %2935 = vmatprep.subr.mxu0 %v2934
    %v2936 = vand.u32 %v1989, 4294901760
    %2937 = vmatpush1.msra.mxu0 %v2936
    %v2938 = vand.u32 %v1992, 4294901760
    %2939 = vmatprep.subr.mxu0 %v2938
    %v2940 = vand.u32 %v1991, 4294901760
    %2941 = vmatpush1.msra.mxu0 %v2940
    %v2942 = vand.u32 %v1994, 4294901760
    %2943 = vmatprep.subr.mxu0 %v2942
    %v2944 = vand.u32 %v1993, 4294901760
    %2945 = vmatpush1.msra.mxu0 %v2944
    %v2946 = vand.u32 %v1996, 4294901760
    %2947 = vmatprep.subr.mxu0 %v2946
    %v2948 = vand.u32 %v1995, 4294901760
    %2949 = vmatpush1.msra.mxu0 %v2948
    %v2950 = vand.u32 %v1998, 4294901760
    %2951 = vmatprep.subr.mxu0 %v2950
    %v2952 = vand.u32 %v1997, 4294901760
    %2953 = vmatpush1.msra.mxu0 %v2952
    %v2954 = vand.u32 %v2079, 4294901760
    %v2955 = vsub.f32 %v2079, %v2954
    %v2956 = vand.u32 %v2955, 4294901760
    %2957 = vmatprep.mubr.f32.mxu0 %v2956
    %v2958 = vand.u32 %v2071, 4294901760
    %v2959 = vsub.f32 %v2071, %v2958
    %v2960 = vand.u32 %v2959, 4294901760
    %2961 = vmatmul.mubr.f32.gmra.mrb[0].mxu0 %v2960
    %v2962 = vpop.f32.mrb[0].mxu0
    %v2963 = vadd.f32 %v2822, %v2962
    %v2964 = vpop.f32.mrb[0].mxu0
    %v2965 = vadd.f32 %v2824, %v2964
    %2966 = vdwg.mxu0
    %v2967 = vand.u32 %v1936, 4294901760
    %v2968 = vsub.f32 %v1936, %v2967
    %v2969 = vand.u32 %v2968, 4294901760
    %2970 = vmatprep.subr.mxu0 %v2969
    %v2971 = vand.u32 %v1935, 4294901760
    %v2972 = vsub.f32 %v1935, %v2971
    %v2973 = vand.u32 %v2972, 4294901760
    %2974 = vmatpush1.msra.mxu0 %v2973
    %v2975 = vand.u32 %v1938, 4294901760
    %v2976 = vsub.f32 %v1938, %v2975
    %v2977 = vand.u32 %v2976, 4294901760
    %2978 = vmatprep.subr.mxu0 %v2977
    %v2979 = vand.u32 %v1937, 4294901760
    %v2980 = vsub.f32 %v1937, %v2979
    %v2981 = vand.u32 %v2980, 4294901760
    %2982 = vmatpush1.msra.mxu0 %v2981
    %v2983 = vand.u32 %v1940, 4294901760
    %v2984 = vsub.f32 %v1940, %v2983
    %v2985 = vand.u32 %v2984, 4294901760
    %2986 = vmatprep.subr.mxu0 %v2985
    %v2987 = vand.u32 %v1939, 4294901760
    %v2988 = vsub.f32 %v1939, %v2987
    %v2989 = vand.u32 %v2988, 4294901760
    %2990 = vmatpush1.msra.mxu0 %v2989
    %v2991 = vand.u32 %v1942, 4294901760
    %v2992 = vsub.f32 %v1942, %v2991
    %v2993 = vand.u32 %v2992, 4294901760
    %2994 = vmatprep.subr.mxu0 %v2993
    %v2995 = vand.u32 %v1941, 4294901760
    %v2996 = vsub.f32 %v1941, %v2995
    %v2997 = vand.u32 %v2996, 4294901760
    %2998 = vmatpush1.msra.mxu0 %v2997
    %v2999 = vand.u32 %v1944, 4294901760
    %v3000 = vsub.f32 %v1944, %v2999
    %v3001 = vand.u32 %v3000, 4294901760
    %3002 = vmatprep.subr.mxu0 %v3001
    %v3003 = vand.u32 %v1943, 4294901760
    %v3004 = vsub.f32 %v1943, %v3003
    %v3005 = vand.u32 %v3004, 4294901760
    %3006 = vmatpush1.msra.mxu0 %v3005
    %v3007 = vand.u32 %v1946, 4294901760
    %v3008 = vsub.f32 %v1946, %v3007
    %v3009 = vand.u32 %v3008, 4294901760
    %3010 = vmatprep.subr.mxu0 %v3009
    %v3011 = vand.u32 %v1945, 4294901760
    %v3012 = vsub.f32 %v1945, %v3011
    %v3013 = vand.u32 %v3012, 4294901760
    %3014 = vmatpush1.msra.mxu0 %v3013
    %v3015 = vand.u32 %v1948, 4294901760
    %v3016 = vsub.f32 %v1948, %v3015
    %v3017 = vand.u32 %v3016, 4294901760
    %3018 = vmatprep.subr.mxu0 %v3017
    %v3019 = vand.u32 %v1947, 4294901760
    %v3020 = vsub.f32 %v1947, %v3019
    %v3021 = vand.u32 %v3020, 4294901760
    %3022 = vmatpush1.msra.mxu0 %v3021
    %v3023 = vand.u32 %v1950, 4294901760
    %v3024 = vsub.f32 %v1950, %v3023
    %v3025 = vand.u32 %v3024, 4294901760
    %3026 = vmatprep.subr.mxu0 %v3025
    %v3027 = vand.u32 %v1949, 4294901760
    %v3028 = vsub.f32 %v1949, %v3027
    %v3029 = vand.u32 %v3028, 4294901760
    %3030 = vmatpush1.msra.mxu0 %v3029
    %v3031 = vand.u32 %v1952, 4294901760
    %v3032 = vsub.f32 %v1952, %v3031
    %v3033 = vand.u32 %v3032, 4294901760
    %3034 = vmatprep.subr.mxu0 %v3033
    %v3035 = vand.u32 %v1951, 4294901760
    %v3036 = vsub.f32 %v1951, %v3035
    %v3037 = vand.u32 %v3036, 4294901760
    %3038 = vmatpush1.msra.mxu0 %v3037
    %v3039 = vand.u32 %v1954, 4294901760
    %v3040 = vsub.f32 %v1954, %v3039
    %v3041 = vand.u32 %v3040, 4294901760
    %3042 = vmatprep.subr.mxu0 %v3041
    %v3043 = vand.u32 %v1953, 4294901760
    %v3044 = vsub.f32 %v1953, %v3043
    %v3045 = vand.u32 %v3044, 4294901760
    %3046 = vmatpush1.msra.mxu0 %v3045
    %v3047 = vand.u32 %v1956, 4294901760
    %v3048 = vsub.f32 %v1956, %v3047
    %v3049 = vand.u32 %v3048, 4294901760
    %3050 = vmatprep.subr.mxu0 %v3049
    %v3051 = vand.u32 %v1955, 4294901760
    %v3052 = vsub.f32 %v1955, %v3051
    %v3053 = vand.u32 %v3052, 4294901760
    %3054 = vmatpush1.msra.mxu0 %v3053
    %v3055 = vand.u32 %v1958, 4294901760
    %v3056 = vsub.f32 %v1958, %v3055
    %v3057 = vand.u32 %v3056, 4294901760
    %3058 = vmatprep.subr.mxu0 %v3057
    %v3059 = vand.u32 %v1957, 4294901760
    %v3060 = vsub.f32 %v1957, %v3059
    %v3061 = vand.u32 %v3060, 4294901760
    %3062 = vmatpush1.msra.mxu0 %v3061
    %v3063 = vand.u32 %v1960, 4294901760
    %v3064 = vsub.f32 %v1960, %v3063
    %v3065 = vand.u32 %v3064, 4294901760
    %3066 = vmatprep.subr.mxu0 %v3065
    %v3067 = vand.u32 %v1959, 4294901760
    %v3068 = vsub.f32 %v1959, %v3067
    %v3069 = vand.u32 %v3068, 4294901760
    %3070 = vmatpush1.msra.mxu0 %v3069
    %v3071 = vand.u32 %v1962, 4294901760
    %v3072 = vsub.f32 %v1962, %v3071
    %v3073 = vand.u32 %v3072, 4294901760
    %3074 = vmatprep.subr.mxu0 %v3073
    %v3075 = vand.u32 %v1961, 4294901760
    %v3076 = vsub.f32 %v1961, %v3075
    %v3077 = vand.u32 %v3076, 4294901760
    %3078 = vmatpush1.msra.mxu0 %v3077
    %v3079 = vand.u32 %v1964, 4294901760
    %v3080 = vsub.f32 %v1964, %v3079
    %v3081 = vand.u32 %v3080, 4294901760
    %3082 = vmatprep.subr.mxu0 %v3081
    %v3083 = vand.u32 %v1963, 4294901760
    %v3084 = vsub.f32 %v1963, %v3083
    %v3085 = vand.u32 %v3084, 4294901760
    %3086 = vmatpush1.msra.mxu0 %v3085
    %v3087 = vand.u32 %v1966, 4294901760
    %v3088 = vsub.f32 %v1966, %v3087
    %v3089 = vand.u32 %v3088, 4294901760
    %3090 = vmatprep.subr.mxu0 %v3089
    %v3091 = vand.u32 %v1965, 4294901760
    %v3092 = vsub.f32 %v1965, %v3091
    %v3093 = vand.u32 %v3092, 4294901760
    %3094 = vmatpush1.msra.mxu0 %v3093
    %v3095 = vand.u32 %v1968, 4294901760
    %v3096 = vsub.f32 %v1968, %v3095
    %v3097 = vand.u32 %v3096, 4294901760
    %3098 = vmatprep.subr.mxu0 %v3097
    %v3099 = vand.u32 %v1967, 4294901760
    %v3100 = vsub.f32 %v1967, %v3099
    %v3101 = vand.u32 %v3100, 4294901760
    %3102 = vmatpush1.msra.mxu0 %v3101
    %v3103 = vand.u32 %v1970, 4294901760
    %v3104 = vsub.f32 %v1970, %v3103
    %v3105 = vand.u32 %v3104, 4294901760
    %3106 = vmatprep.subr.mxu0 %v3105
    %v3107 = vand.u32 %v1969, 4294901760
    %v3108 = vsub.f32 %v1969, %v3107
    %v3109 = vand.u32 %v3108, 4294901760
    %3110 = vmatpush1.msra.mxu0 %v3109
    %v3111 = vand.u32 %v1972, 4294901760
    %v3112 = vsub.f32 %v1972, %v3111
    %v3113 = vand.u32 %v3112, 4294901760
    %3114 = vmatprep.subr.mxu0 %v3113
    %v3115 = vand.u32 %v1971, 4294901760
    %v3116 = vsub.f32 %v1971, %v3115
    %v3117 = vand.u32 %v3116, 4294901760
    %3118 = vmatpush1.msra.mxu0 %v3117
    %v3119 = vand.u32 %v1974, 4294901760
    %v3120 = vsub.f32 %v1974, %v3119
    %v3121 = vand.u32 %v3120, 4294901760
    %3122 = vmatprep.subr.mxu0 %v3121
    %v3123 = vand.u32 %v1973, 4294901760
    %v3124 = vsub.f32 %v1973, %v3123
    %v3125 = vand.u32 %v3124, 4294901760
    %3126 = vmatpush1.msra.mxu0 %v3125
    %v3127 = vand.u32 %v1976, 4294901760
    %v3128 = vsub.f32 %v1976, %v3127
    %v3129 = vand.u32 %v3128, 4294901760
    %3130 = vmatprep.subr.mxu0 %v3129
    %v3131 = vand.u32 %v1975, 4294901760
    %v3132 = vsub.f32 %v1975, %v3131
    %v3133 = vand.u32 %v3132, 4294901760
    %3134 = vmatpush1.msra.mxu0 %v3133
    %v3135 = vand.u32 %v1978, 4294901760
    %v3136 = vsub.f32 %v1978, %v3135
    %v3137 = vand.u32 %v3136, 4294901760
    %3138 = vmatprep.subr.mxu0 %v3137
    %v3139 = vand.u32 %v1977, 4294901760
    %v3140 = vsub.f32 %v1977, %v3139
    %v3141 = vand.u32 %v3140, 4294901760
    %3142 = vmatpush1.msra.mxu0 %v3141
    %v3143 = vand.u32 %v1980, 4294901760
    %v3144 = vsub.f32 %v1980, %v3143
    %v3145 = vand.u32 %v3144, 4294901760
    %3146 = vmatprep.subr.mxu0 %v3145
    %v3147 = vand.u32 %v1979, 4294901760
    %v3148 = vsub.f32 %v1979, %v3147
    %v3149 = vand.u32 %v3148, 4294901760
    %3150 = vmatpush1.msra.mxu0 %v3149
    %v3151 = vand.u32 %v1982, 4294901760
    %v3152 = vsub.f32 %v1982, %v3151
    %v3153 = vand.u32 %v3152, 4294901760
    %3154 = vmatprep.subr.mxu0 %v3153
    %v3155 = vand.u32 %v1981, 4294901760
    %v3156 = vsub.f32 %v1981, %v3155
    %v3157 = vand.u32 %v3156, 4294901760
    %3158 = vmatpush1.msra.mxu0 %v3157
    %v3159 = vand.u32 %v1984, 4294901760
    %v3160 = vsub.f32 %v1984, %v3159
    %v3161 = vand.u32 %v3160, 4294901760
    %3162 = vmatprep.subr.mxu0 %v3161
    %v3163 = vand.u32 %v1983, 4294901760
    %v3164 = vsub.f32 %v1983, %v3163
    %v3165 = vand.u32 %v3164, 4294901760
    %3166 = vmatpush1.msra.mxu0 %v3165
    %v3167 = vand.u32 %v1986, 4294901760
    %v3168 = vsub.f32 %v1986, %v3167
    %v3169 = vand.u32 %v3168, 4294901760
    %3170 = vmatprep.subr.mxu0 %v3169
    %v3171 = vand.u32 %v1985, 4294901760
    %v3172 = vsub.f32 %v1985, %v3171
    %v3173 = vand.u32 %v3172, 4294901760
    %3174 = vmatpush1.msra.mxu0 %v3173
    %v3175 = vand.u32 %v1988, 4294901760
    %v3176 = vsub.f32 %v1988, %v3175
    %v3177 = vand.u32 %v3176, 4294901760
    %3178 = vmatprep.subr.mxu0 %v3177
    %v3179 = vand.u32 %v1987, 4294901760
    %v3180 = vsub.f32 %v1987, %v3179
    %v3181 = vand.u32 %v3180, 4294901760
    %3182 = vmatpush1.msra.mxu0 %v3181
    %v3183 = vand.u32 %v1990, 4294901760
    %v3184 = vsub.f32 %v1990, %v3183
    %v3185 = vand.u32 %v3184, 4294901760
    %3186 = vmatprep.subr.mxu0 %v3185
    %v3187 = vand.u32 %v1989, 4294901760
    %v3188 = vsub.f32 %v1989, %v3187
    %v3189 = vand.u32 %v3188, 4294901760
    %3190 = vmatpush1.msra.mxu0 %v3189
    %v3191 = vand.u32 %v1992, 4294901760
    %v3192 = vsub.f32 %v1992, %v3191
    %v3193 = vand.u32 %v3192, 4294901760
    %3194 = vmatprep.subr.mxu0 %v3193
    %v3195 = vand.u32 %v1991, 4294901760
    %v3196 = vsub.f32 %v1991, %v3195
    %v3197 = vand.u32 %v3196, 4294901760
    %3198 = vmatpush1.msra.mxu0 %v3197
    %v3199 = vand.u32 %v1994, 4294901760
    %v3200 = vsub.f32 %v1994, %v3199
    %v3201 = vand.u32 %v3200, 4294901760
    %3202 = vmatprep.subr.mxu0 %v3201
    %v3203 = vand.u32 %v1993, 4294901760
    %v3204 = vsub.f32 %v1993, %v3203
    %v3205 = vand.u32 %v3204, 4294901760
    %3206 = vmatpush1.msra.mxu0 %v3205
    %v3207 = vand.u32 %v1996, 4294901760
    %v3208 = vsub.f32 %v1996, %v3207
    %v3209 = vand.u32 %v3208, 4294901760
    %3210 = vmatprep.subr.mxu0 %v3209
    %v3211 = vand.u32 %v1995, 4294901760
    %v3212 = vsub.f32 %v1995, %v3211
    %v3213 = vand.u32 %v3212, 4294901760
    %3214 = vmatpush1.msra.mxu0 %v3213
    %v3215 = vand.u32 %v1998, 4294901760
    %v3216 = vsub.f32 %v1998, %v3215
    %v3217 = vand.u32 %v3216, 4294901760
    %3218 = vmatprep.subr.mxu0 %v3217
    %v3219 = vand.u32 %v1997, 4294901760
    %v3220 = vsub.f32 %v1997, %v3219
    %v3221 = vand.u32 %v3220, 4294901760
    %3222 = vmatpush1.msra.mxu0 %v3221
    %v3223 = vand.u32 %v2079, 4294901760
    %3224 = vmatprep.mubr.f32.mxu0 %v3223
    %v3225 = vand.u32 %v2071, 4294901760
    %3226 = vmatmul.mubr.f32.gmra.mrb[0].mxu0 %v3225
    %v3227 = vpop.f32.mrb[0].mxu0
    %v3228 = vadd.f32 %v2963, %v3227
    %v3229 = vpop.f32.mrb[0].mxu0
    %v3230 = vadd.f32 %v2965, %v3229
    %3231 = vdwg.mxu0
    %v3232 = vand.u32 %v1936, 4294901760
    %3233 = vmatprep.subr.mxu0 %v3232
    %v3234 = vand.u32 %v1935, 4294901760
    %3235 = vmatpush1.msra.mxu0 %v3234
    %v3236 = vand.u32 %v1938, 4294901760
    %3237 = vmatprep.subr.mxu0 %v3236
    %v3238 = vand.u32 %v1937, 4294901760
    %3239 = vmatpush1.msra.mxu0 %v3238
    %v3240 = vand.u32 %v1940, 4294901760
    %3241 = vmatprep.subr.mxu0 %v3240
    %v3242 = vand.u32 %v1939, 4294901760
    %3243 = vmatpush1.msra.mxu0 %v3242
    %v3244 = vand.u32 %v1942, 4294901760
    %3245 = vmatprep.subr.mxu0 %v3244
    %v3246 = vand.u32 %v1941, 4294901760
    %3247 = vmatpush1.msra.mxu0 %v3246
    %v3248 = vand.u32 %v1944, 4294901760
    %3249 = vmatprep.subr.mxu0 %v3248
    %v3250 = vand.u32 %v1943, 4294901760
    %3251 = vmatpush1.msra.mxu0 %v3250
    %v3252 = vand.u32 %v1946, 4294901760
    %3253 = vmatprep.subr.mxu0 %v3252
    %v3254 = vand.u32 %v1945, 4294901760
    %3255 = vmatpush1.msra.mxu0 %v3254
    %v3256 = vand.u32 %v1948, 4294901760
    %3257 = vmatprep.subr.mxu0 %v3256
    %v3258 = vand.u32 %v1947, 4294901760
    %3259 = vmatpush1.msra.mxu0 %v3258
    %v3260 = vand.u32 %v1950, 4294901760
    %3261 = vmatprep.subr.mxu0 %v3260
    %v3262 = vand.u32 %v1949, 4294901760
    %3263 = vmatpush1.msra.mxu0 %v3262
    %v3264 = vand.u32 %v1952, 4294901760
    %3265 = vmatprep.subr.mxu0 %v3264
    %v3266 = vand.u32 %v1951, 4294901760
    %3267 = vmatpush1.msra.mxu0 %v3266
    %v3268 = vand.u32 %v1954, 4294901760
    %3269 = vmatprep.subr.mxu0 %v3268
    %v3270 = vand.u32 %v1953, 4294901760
    %3271 = vmatpush1.msra.mxu0 %v3270
    %v3272 = vand.u32 %v1956, 4294901760
    %3273 = vmatprep.subr.mxu0 %v3272
    %v3274 = vand.u32 %v1955, 4294901760
    %3275 = vmatpush1.msra.mxu0 %v3274
    %v3276 = vand.u32 %v1958, 4294901760
    %3277 = vmatprep.subr.mxu0 %v3276
    %v3278 = vand.u32 %v1957, 4294901760
    %3279 = vmatpush1.msra.mxu0 %v3278
    %v3280 = vand.u32 %v1960, 4294901760
    %3281 = vmatprep.subr.mxu0 %v3280
    %v3282 = vand.u32 %v1959, 4294901760
    %3283 = vmatpush1.msra.mxu0 %v3282
    %v3284 = vand.u32 %v1962, 4294901760
    %3285 = vmatprep.subr.mxu0 %v3284
    %v3286 = vand.u32 %v1961, 4294901760
    %3287 = vmatpush1.msra.mxu0 %v3286
    %v3288 = vand.u32 %v1964, 4294901760
    %3289 = vmatprep.subr.mxu0 %v3288
    %v3290 = vand.u32 %v1963, 4294901760
    %3291 = vmatpush1.msra.mxu0 %v3290
    %v3292 = vand.u32 %v1966, 4294901760
    %3293 = vmatprep.subr.mxu0 %v3292
    %v3294 = vand.u32 %v1965, 4294901760
    %3295 = vmatpush1.msra.mxu0 %v3294
    %v3296 = vand.u32 %v1968, 4294901760
    %3297 = vmatprep.subr.mxu0 %v3296
    %v3298 = vand.u32 %v1967, 4294901760
    %3299 = vmatpush1.msra.mxu0 %v3298
    %v3300 = vand.u32 %v1970, 4294901760
    %3301 = vmatprep.subr.mxu0 %v3300
    %v3302 = vand.u32 %v1969, 4294901760
    %3303 = vmatpush1.msra.mxu0 %v3302
    %v3304 = vand.u32 %v1972, 4294901760
    %3305 = vmatprep.subr.mxu0 %v3304
    %v3306 = vand.u32 %v1971, 4294901760
    %3307 = vmatpush1.msra.mxu0 %v3306
    %v3308 = vand.u32 %v1974, 4294901760
    %3309 = vmatprep.subr.mxu0 %v3308
    %v3310 = vand.u32 %v1973, 4294901760
    %3311 = vmatpush1.msra.mxu0 %v3310
    %v3312 = vand.u32 %v1976, 4294901760
    %3313 = vmatprep.subr.mxu0 %v3312
    %v3314 = vand.u32 %v1975, 4294901760
    %3315 = vmatpush1.msra.mxu0 %v3314
    %v3316 = vand.u32 %v1978, 4294901760
    %3317 = vmatprep.subr.mxu0 %v3316
    %v3318 = vand.u32 %v1977, 4294901760
    %3319 = vmatpush1.msra.mxu0 %v3318
    %v3320 = vand.u32 %v1980, 4294901760
    %3321 = vmatprep.subr.mxu0 %v3320
    %v3322 = vand.u32 %v1979, 4294901760
    %3323 = vmatpush1.msra.mxu0 %v3322
    %v3324 = vand.u32 %v1982, 4294901760
    %3325 = vmatprep.subr.mxu0 %v3324
    %v3326 = vand.u32 %v1981, 4294901760
    %3327 = vmatpush1.msra.mxu0 %v3326
    %v3328 = vand.u32 %v1984, 4294901760
    %3329 = vmatprep.subr.mxu0 %v3328
    %v3330 = vand.u32 %v1983, 4294901760
    %3331 = vmatpush1.msra.mxu0 %v3330
    %v3332 = vand.u32 %v1986, 4294901760
    %3333 = vmatprep.subr.mxu0 %v3332
    %v3334 = vand.u32 %v1985, 4294901760
    %3335 = vmatpush1.msra.mxu0 %v3334
    %v3336 = vand.u32 %v1988, 4294901760
    %3337 = vmatprep.subr.mxu0 %v3336
    %v3338 = vand.u32 %v1987, 4294901760
    %3339 = vmatpush1.msra.mxu0 %v3338
    %v3340 = vand.u32 %v1990, 4294901760
    %3341 = vmatprep.subr.mxu0 %v3340
    %v3342 = vand.u32 %v1989, 4294901760
    %3343 = vmatpush1.msra.mxu0 %v3342
    %v3344 = vand.u32 %v1992, 4294901760
    %3345 = vmatprep.subr.mxu0 %v3344
    %v3346 = vand.u32 %v1991, 4294901760
    %3347 = vmatpush1.msra.mxu0 %v3346
    %v3348 = vand.u32 %v1994, 4294901760
    %3349 = vmatprep.subr.mxu0 %v3348
    %v3350 = vand.u32 %v1993, 4294901760
    %3351 = vmatpush1.msra.mxu0 %v3350
    %v3352 = vand.u32 %v1996, 4294901760
    %3353 = vmatprep.subr.mxu0 %v3352
    %v3354 = vand.u32 %v1995, 4294901760
    %3355 = vmatpush1.msra.mxu0 %v3354
    %v3356 = vand.u32 %v1998, 4294901760
    %3357 = vmatprep.subr.mxu0 %v3356
    %v3358 = vand.u32 %v1997, 4294901760
    %3359 = vmatpush1.msra.mxu0 %v3358
    %v3360 = vand.u32 %v2079, 4294901760
    %3361 = vmatprep.mubr.f32.mxu0 %v3360
    %v3362 = vand.u32 %v2071, 4294901760
    %3363 = vmatmul.mubr.f32.gmra.mrb[0].mxu0 %v3362
    %v3364 = vpop.f32.mrb[0].mxu0
    %v3365 = vadd.f32 %v3228, %v3364
    %v3366 = vpop.f32.mrb[0].mxu0
    %v3367 = vadd.f32 %v3230, %v3366
    %3368 = vdwg.mxu0
    %v3369 = vand.u32 %v2000, 4294901760
    %3370 = vmatprep.subr.mxu0 %v3369
    %v3371 = vand.u32 %v1999, 4294901760
    %3372 = vmatpush1.msra.mxu0 %v3371
    %v3373 = vand.u32 %v2002, 4294901760
    %3374 = vmatprep.subr.mxu0 %v3373
    %v3375 = vand.u32 %v2001, 4294901760
    %3376 = vmatpush1.msra.mxu0 %v3375
    %v3377 = vand.u32 %v2004, 4294901760
    %3378 = vmatprep.subr.mxu0 %v3377
    %v3379 = vand.u32 %v2003, 4294901760
    %3380 = vmatpush1.msra.mxu0 %v3379
    %v3381 = vand.u32 %v2006, 4294901760
    %3382 = vmatprep.subr.mxu0 %v3381
    %v3383 = vand.u32 %v2005, 4294901760
    %3384 = vmatpush1.msra.mxu0 %v3383
    %v3385 = vand.u32 %v2008, 4294901760
    %3386 = vmatprep.subr.mxu0 %v3385
    %v3387 = vand.u32 %v2007, 4294901760
    %3388 = vmatpush1.msra.mxu0 %v3387
    %v3389 = vand.u32 %v2010, 4294901760
    %3390 = vmatprep.subr.mxu0 %v3389
    %v3391 = vand.u32 %v2009, 4294901760
    %3392 = vmatpush1.msra.mxu0 %v3391
    %v3393 = vand.u32 %v2012, 4294901760
    %3394 = vmatprep.subr.mxu0 %v3393
    %v3395 = vand.u32 %v2011, 4294901760
    %3396 = vmatpush1.msra.mxu0 %v3395
    %v3397 = vand.u32 %v2014, 4294901760
    %3398 = vmatprep.subr.mxu0 %v3397
    %v3399 = vand.u32 %v2013, 4294901760
    %3400 = vmatpush1.msra.mxu0 %v3399
    %v3401 = vand.u32 %v2016, 4294901760
    %3402 = vmatprep.subr.mxu0 %v3401
    %v3403 = vand.u32 %v2015, 4294901760
    %3404 = vmatpush1.msra.mxu0 %v3403
    %v3405 = vand.u32 %v2018, 4294901760
    %3406 = vmatprep.subr.mxu0 %v3405
    %v3407 = vand.u32 %v2017, 4294901760
    %3408 = vmatpush1.msra.mxu0 %v3407
    %v3409 = vand.u32 %v2020, 4294901760
    %3410 = vmatprep.subr.mxu0 %v3409
    %v3411 = vand.u32 %v2019, 4294901760
    %3412 = vmatpush1.msra.mxu0 %v3411
    %v3413 = vand.u32 %v2022, 4294901760
    %3414 = vmatprep.subr.mxu0 %v3413
    %v3415 = vand.u32 %v2021, 4294901760
    %3416 = vmatpush1.msra.mxu0 %v3415
    %v3417 = vand.u32 %v2024, 4294901760
    %3418 = vmatprep.subr.mxu0 %v3417
    %v3419 = vand.u32 %v2023, 4294901760
    %3420 = vmatpush1.msra.mxu0 %v3419
    %v3421 = vand.u32 %v2026, 4294901760
    %3422 = vmatprep.subr.mxu0 %v3421
    %v3423 = vand.u32 %v2025, 4294901760
    %3424 = vmatpush1.msra.mxu0 %v3423
    %v3425 = vand.u32 %v2028, 4294901760
    %3426 = vmatprep.subr.mxu0 %v3425
    %v3427 = vand.u32 %v2027, 4294901760
    %3428 = vmatpush1.msra.mxu0 %v3427
    %v3429 = vand.u32 %v2030, 4294901760
    %3430 = vmatprep.subr.mxu0 %v3429
    %v3431 = vand.u32 %v2029, 4294901760
    %3432 = vmatpush1.msra.mxu0 %v3431
    %v3433 = vand.u32 %v2032, 4294901760
    %3434 = vmatprep.subr.mxu0 %v3433
    %v3435 = vand.u32 %v2031, 4294901760
    %3436 = vmatpush1.msra.mxu0 %v3435
    %v3437 = vand.u32 %v2034, 4294901760
    %3438 = vmatprep.subr.mxu0 %v3437
    %v3439 = vand.u32 %v2033, 4294901760
    %3440 = vmatpush1.msra.mxu0 %v3439
    %v3441 = vand.u32 %v2036, 4294901760
    %3442 = vmatprep.subr.mxu0 %v3441
    %v3443 = vand.u32 %v2035, 4294901760
    %3444 = vmatpush1.msra.mxu0 %v3443
    %v3445 = vand.u32 %v2038, 4294901760
    %3446 = vmatprep.subr.mxu0 %v3445
    %v3447 = vand.u32 %v2037, 4294901760
    %3448 = vmatpush1.msra.mxu0 %v3447
    %v3449 = vand.u32 %v2040, 4294901760
    %3450 = vmatprep.subr.mxu0 %v3449
    %v3451 = vand.u32 %v2039, 4294901760
    %3452 = vmatpush1.msra.mxu0 %v3451
    %v3453 = vand.u32 %v2042, 4294901760
    %3454 = vmatprep.subr.mxu0 %v3453
    %v3455 = vand.u32 %v2041, 4294901760
    %3456 = vmatpush1.msra.mxu0 %v3455
    %v3457 = vand.u32 %v2044, 4294901760
    %3458 = vmatprep.subr.mxu0 %v3457
    %v3459 = vand.u32 %v2043, 4294901760
    %3460 = vmatpush1.msra.mxu0 %v3459
    %v3461 = vand.u32 %v2046, 4294901760
    %3462 = vmatprep.subr.mxu0 %v3461
    %v3463 = vand.u32 %v2045, 4294901760
    %3464 = vmatpush1.msra.mxu0 %v3463
    %v3465 = vand.u32 %v2048, 4294901760
    %3466 = vmatprep.subr.mxu0 %v3465
    %v3467 = vand.u32 %v2047, 4294901760
    %3468 = vmatpush1.msra.mxu0 %v3467
    %v3469 = vand.u32 %v2050, 4294901760
    %3470 = vmatprep.subr.mxu0 %v3469
    %v3471 = vand.u32 %v2049, 4294901760
    %3472 = vmatpush1.msra.mxu0 %v3471
    %v3473 = vand.u32 %v2052, 4294901760
    %3474 = vmatprep.subr.mxu0 %v3473
    %v3475 = vand.u32 %v2051, 4294901760
    %3476 = vmatpush1.msra.mxu0 %v3475
    %v3477 = vand.u32 %v2054, 4294901760
    %3478 = vmatprep.subr.mxu0 %v3477
    %v3479 = vand.u32 %v2053, 4294901760
    %3480 = vmatpush1.msra.mxu0 %v3479
    %v3481 = vand.u32 %v2056, 4294901760
    %3482 = vmatprep.subr.mxu0 %v3481
    %v3483 = vand.u32 %v2055, 4294901760
    %3484 = vmatpush1.msra.mxu0 %v3483
    %v3485 = vand.u32 %v2058, 4294901760
    %3486 = vmatprep.subr.mxu0 %v3485
    %v3487 = vand.u32 %v2057, 4294901760
    %3488 = vmatpush1.msra.mxu0 %v3487
    %v3489 = vand.u32 %v2060, 4294901760
    %3490 = vmatprep.subr.mxu0 %v3489
    %v3491 = vand.u32 %v2059, 4294901760
    %3492 = vmatpush1.msra.mxu0 %v3491
    %v3493 = vand.u32 %v2062, 4294901760
    %3494 = vmatprep.subr.mxu0 %v3493
    %v3495 = vand.u32 %v2061, 4294901760
    %3496 = vmatpush1.msra.mxu0 %v3495
    %v3497 = vand.u32 %v2080, 4294901760
    %v3498 = vsub.f32 %v2080, %v3497
    %v3499 = vand.u32 %v3498, 4294901760
    %v3500 = vsub.f32 %v3498, %v3499
    %v3501 = vand.u32 %v3500, 4294901760
    %3502 = vmatprep.mubr.f32.mxu0 %v3501
    %v3503 = vand.u32 %v2078, 4294901760
    %v3504 = vsub.f32 %v2078, %v3503
    %v3505 = vand.u32 %v3504, 4294901760
    %v3506 = vsub.f32 %v3504, %v3505
    %v3507 = vand.u32 %v3506, 4294901760
    %3508 = vmatmul.mubr.f32.gmra.mrb[0].mxu0 %v3507
    %v3509 = vpop.f32.mrb[0].mxu0
    %v3510 = vadd.f32 %v3365, %v3509
    %v3511 = vpop.f32.mrb[0].mxu0
    %v3512 = vadd.f32 %v3367, %v3511
    %3513 = vdwg.mxu0
    %v3514 = vand.u32 %v2000, 4294901760
    %v3515 = vsub.f32 %v2000, %v3514
    %v3516 = vand.u32 %v3515, 4294901760
    %v3517 = vsub.f32 %v3515, %v3516
    %v3518 = vand.u32 %v3517, 4294901760
    %3519 = vmatprep.subr.mxu0 %v3518
    %v3520 = vand.u32 %v1999, 4294901760
    %v3521 = vsub.f32 %v1999, %v3520
    %v3522 = vand.u32 %v3521, 4294901760
    %v3523 = vsub.f32 %v3521, %v3522
    %v3524 = vand.u32 %v3523, 4294901760
    %3525 = vmatpush1.msra.mxu0 %v3524
    %v3526 = vand.u32 %v2002, 4294901760
    %v3527 = vsub.f32 %v2002, %v3526
    %v3528 = vand.u32 %v3527, 4294901760
    %v3529 = vsub.f32 %v3527, %v3528
    %v3530 = vand.u32 %v3529, 4294901760
    %3531 = vmatprep.subr.mxu0 %v3530
    %v3532 = vand.u32 %v2001, 4294901760
    %v3533 = vsub.f32 %v2001, %v3532
    %v3534 = vand.u32 %v3533, 4294901760
    %v3535 = vsub.f32 %v3533, %v3534
    %v3536 = vand.u32 %v3535, 4294901760
    %3537 = vmatpush1.msra.mxu0 %v3536
    %v3538 = vand.u32 %v2004, 4294901760
    %v3539 = vsub.f32 %v2004, %v3538
    %v3540 = vand.u32 %v3539, 4294901760
    %v3541 = vsub.f32 %v3539, %v3540
    %v3542 = vand.u32 %v3541, 4294901760
    %3543 = vmatprep.subr.mxu0 %v3542
    %v3544 = vand.u32 %v2003, 4294901760
    %v3545 = vsub.f32 %v2003, %v3544
    %v3546 = vand.u32 %v3545, 4294901760
    %v3547 = vsub.f32 %v3545, %v3546
    %v3548 = vand.u32 %v3547, 4294901760
    %3549 = vmatpush1.msra.mxu0 %v3548
    %v3550 = vand.u32 %v2006, 4294901760
    %v3551 = vsub.f32 %v2006, %v3550
    %v3552 = vand.u32 %v3551, 4294901760
    %v3553 = vsub.f32 %v3551, %v3552
    %v3554 = vand.u32 %v3553, 4294901760
    %3555 = vmatprep.subr.mxu0 %v3554
    %v3556 = vand.u32 %v2005, 4294901760
    %v3557 = vsub.f32 %v2005, %v3556
    %v3558 = vand.u32 %v3557, 4294901760
    %v3559 = vsub.f32 %v3557, %v3558
    %v3560 = vand.u32 %v3559, 4294901760
    %3561 = vmatpush1.msra.mxu0 %v3560
    %v3562 = vand.u32 %v2008, 4294901760
    %v3563 = vsub.f32 %v2008, %v3562
    %v3564 = vand.u32 %v3563, 4294901760
    %v3565 = vsub.f32 %v3563, %v3564
    %v3566 = vand.u32 %v3565, 4294901760
    %3567 = vmatprep.subr.mxu0 %v3566
    %v3568 = vand.u32 %v2007, 4294901760
    %v3569 = vsub.f32 %v2007, %v3568
    %v3570 = vand.u32 %v3569, 4294901760
    %v3571 = vsub.f32 %v3569, %v3570
    %v3572 = vand.u32 %v3571, 4294901760
    %3573 = vmatpush1.msra.mxu0 %v3572
    %v3574 = vand.u32 %v2010, 4294901760
    %v3575 = vsub.f32 %v2010, %v3574
    %v3576 = vand.u32 %v3575, 4294901760
    %v3577 = vsub.f32 %v3575, %v3576
    %v3578 = vand.u32 %v3577, 4294901760
    %3579 = vmatprep.subr.mxu0 %v3578
    %v3580 = vand.u32 %v2009, 4294901760
    %v3581 = vsub.f32 %v2009, %v3580
    %v3582 = vand.u32 %v3581, 4294901760
    %v3583 = vsub.f32 %v3581, %v3582
    %v3584 = vand.u32 %v3583, 4294901760
    %3585 = vmatpush1.msra.mxu0 %v3584
    %v3586 = vand.u32 %v2012, 4294901760
    %v3587 = vsub.f32 %v2012, %v3586
    %v3588 = vand.u32 %v3587, 4294901760
    %v3589 = vsub.f32 %v3587, %v3588
    %v3590 = vand.u32 %v3589, 4294901760
    %3591 = vmatprep.subr.mxu0 %v3590
    %v3592 = vand.u32 %v2011, 4294901760
    %v3593 = vsub.f32 %v2011, %v3592
    %v3594 = vand.u32 %v3593, 4294901760
    %v3595 = vsub.f32 %v3593, %v3594
    %v3596 = vand.u32 %v3595, 4294901760
    %3597 = vmatpush1.msra.mxu0 %v3596
    %v3598 = vand.u32 %v2014, 4294901760
    %v3599 = vsub.f32 %v2014, %v3598
    %v3600 = vand.u32 %v3599, 4294901760
    %v3601 = vsub.f32 %v3599, %v3600
    %v3602 = vand.u32 %v3601, 4294901760
    %3603 = vmatprep.subr.mxu0 %v3602
    %v3604 = vand.u32 %v2013, 4294901760
    %v3605 = vsub.f32 %v2013, %v3604
    %v3606 = vand.u32 %v3605, 4294901760
    %v3607 = vsub.f32 %v3605, %v3606
    %v3608 = vand.u32 %v3607, 4294901760
    %3609 = vmatpush1.msra.mxu0 %v3608
    %v3610 = vand.u32 %v2016, 4294901760
    %v3611 = vsub.f32 %v2016, %v3610
    %v3612 = vand.u32 %v3611, 4294901760
    %v3613 = vsub.f32 %v3611, %v3612
    %v3614 = vand.u32 %v3613, 4294901760
    %3615 = vmatprep.subr.mxu0 %v3614
    %v3616 = vand.u32 %v2015, 4294901760
    %v3617 = vsub.f32 %v2015, %v3616
    %v3618 = vand.u32 %v3617, 4294901760
    %v3619 = vsub.f32 %v3617, %v3618
    %v3620 = vand.u32 %v3619, 4294901760
    %3621 = vmatpush1.msra.mxu0 %v3620
    %v3622 = vand.u32 %v2018, 4294901760
    %v3623 = vsub.f32 %v2018, %v3622
    %v3624 = vand.u32 %v3623, 4294901760
    %v3625 = vsub.f32 %v3623, %v3624
    %v3626 = vand.u32 %v3625, 4294901760
    %3627 = vmatprep.subr.mxu0 %v3626
    %v3628 = vand.u32 %v2017, 4294901760
    %v3629 = vsub.f32 %v2017, %v3628
    %v3630 = vand.u32 %v3629, 4294901760
    %v3631 = vsub.f32 %v3629, %v3630
    %v3632 = vand.u32 %v3631, 4294901760
    %3633 = vmatpush1.msra.mxu0 %v3632
    %v3634 = vand.u32 %v2020, 4294901760
    %v3635 = vsub.f32 %v2020, %v3634
    %v3636 = vand.u32 %v3635, 4294901760
    %v3637 = vsub.f32 %v3635, %v3636
    %v3638 = vand.u32 %v3637, 4294901760
    %3639 = vmatprep.subr.mxu0 %v3638
    %v3640 = vand.u32 %v2019, 4294901760
    %v3641 = vsub.f32 %v2019, %v3640
    %v3642 = vand.u32 %v3641, 4294901760
    %v3643 = vsub.f32 %v3641, %v3642
    %v3644 = vand.u32 %v3643, 4294901760
    %3645 = vmatpush1.msra.mxu0 %v3644
    %v3646 = vand.u32 %v2022, 4294901760
    %v3647 = vsub.f32 %v2022, %v3646
    %v3648 = vand.u32 %v3647, 4294901760
    %v3649 = vsub.f32 %v3647, %v3648
    %v3650 = vand.u32 %v3649, 4294901760
    %3651 = vmatprep.subr.mxu0 %v3650
    %v3652 = vand.u32 %v2021, 4294901760
    %v3653 = vsub.f32 %v2021, %v3652
    %v3654 = vand.u32 %v3653, 4294901760
    %v3655 = vsub.f32 %v3653, %v3654
    %v3656 = vand.u32 %v3655, 4294901760
    %3657 = vmatpush1.msra.mxu0 %v3656
    %v3658 = vand.u32 %v2024, 4294901760
    %v3659 = vsub.f32 %v2024, %v3658
    %v3660 = vand.u32 %v3659, 4294901760
    %v3661 = vsub.f32 %v3659, %v3660
    %v3662 = vand.u32 %v3661, 4294901760
    %3663 = vmatprep.subr.mxu0 %v3662
    %v3664 = vand.u32 %v2023, 4294901760
    %v3665 = vsub.f32 %v2023, %v3664
    %v3666 = vand.u32 %v3665, 4294901760
    %v3667 = vsub.f32 %v3665, %v3666
    %v3668 = vand.u32 %v3667, 4294901760
    %3669 = vmatpush1.msra.mxu0 %v3668
    %v3670 = vand.u32 %v2026, 4294901760
    %v3671 = vsub.f32 %v2026, %v3670
    %v3672 = vand.u32 %v3671, 4294901760
    %v3673 = vsub.f32 %v3671, %v3672
    %v3674 = vand.u32 %v3673, 4294901760
    %3675 = vmatprep.subr.mxu0 %v3674
    %v3676 = vand.u32 %v2025, 4294901760
    %v3677 = vsub.f32 %v2025, %v3676
    %v3678 = vand.u32 %v3677, 4294901760
    %v3679 = vsub.f32 %v3677, %v3678
    %v3680 = vand.u32 %v3679, 4294901760
    %3681 = vmatpush1.msra.mxu0 %v3680
    %v3682 = vand.u32 %v2028, 4294901760
    %v3683 = vsub.f32 %v2028, %v3682
    %v3684 = vand.u32 %v3683, 4294901760
    %v3685 = vsub.f32 %v3683, %v3684
    %v3686 = vand.u32 %v3685, 4294901760
    %3687 = vmatprep.subr.mxu0 %v3686
    %v3688 = vand.u32 %v2027, 4294901760
    %v3689 = vsub.f32 %v2027, %v3688
    %v3690 = vand.u32 %v3689, 4294901760
    %v3691 = vsub.f32 %v3689, %v3690
    %v3692 = vand.u32 %v3691, 4294901760
    %3693 = vmatpush1.msra.mxu0 %v3692
    %v3694 = vand.u32 %v2030, 4294901760
    %v3695 = vsub.f32 %v2030, %v3694
    %v3696 = vand.u32 %v3695, 4294901760
    %v3697 = vsub.f32 %v3695, %v3696
    %v3698 = vand.u32 %v3697, 4294901760
    %3699 = vmatprep.subr.mxu0 %v3698
    %v3700 = vand.u32 %v2029, 4294901760
    %v3701 = vsub.f32 %v2029, %v3700
    %v3702 = vand.u32 %v3701, 4294901760
    %v3703 = vsub.f32 %v3701, %v3702
    %v3704 = vand.u32 %v3703, 4294901760
    %3705 = vmatpush1.msra.mxu0 %v3704
    %v3706 = vand.u32 %v2032, 4294901760
    %v3707 = vsub.f32 %v2032, %v3706
    %v3708 = vand.u32 %v3707, 4294901760
    %v3709 = vsub.f32 %v3707, %v3708
    %v3710 = vand.u32 %v3709, 4294901760
    %3711 = vmatprep.subr.mxu0 %v3710
    %v3712 = vand.u32 %v2031, 4294901760
    %v3713 = vsub.f32 %v2031, %v3712
    %v3714 = vand.u32 %v3713, 4294901760
    %v3715 = vsub.f32 %v3713, %v3714
    %v3716 = vand.u32 %v3715, 4294901760
    %3717 = vmatpush1.msra.mxu0 %v3716
    %v3718 = vand.u32 %v2034, 4294901760
    %v3719 = vsub.f32 %v2034, %v3718
    %v3720 = vand.u32 %v3719, 4294901760
    %v3721 = vsub.f32 %v3719, %v3720
    %v3722 = vand.u32 %v3721, 4294901760
    %3723 = vmatprep.subr.mxu0 %v3722
    %v3724 = vand.u32 %v2033, 4294901760
    %v3725 = vsub.f32 %v2033, %v3724
    %v3726 = vand.u32 %v3725, 4294901760
    %v3727 = vsub.f32 %v3725, %v3726
    %v3728 = vand.u32 %v3727, 4294901760
    %3729 = vmatpush1.msra.mxu0 %v3728
    %v3730 = vand.u32 %v2036, 4294901760
    %v3731 = vsub.f32 %v2036, %v3730
    %v3732 = vand.u32 %v3731, 4294901760
    %v3733 = vsub.f32 %v3731, %v3732
    %v3734 = vand.u32 %v3733, 4294901760
    %3735 = vmatprep.subr.mxu0 %v3734
    %v3736 = vand.u32 %v2035, 4294901760
    %v3737 = vsub.f32 %v2035, %v3736
    %v3738 = vand.u32 %v3737, 4294901760
    %v3739 = vsub.f32 %v3737, %v3738
    %v3740 = vand.u32 %v3739, 4294901760
    %3741 = vmatpush1.msra.mxu0 %v3740
    %v3742 = vand.u32 %v2038, 4294901760
    %v3743 = vsub.f32 %v2038, %v3742
    %v3744 = vand.u32 %v3743, 4294901760
    %v3745 = vsub.f32 %v3743, %v3744
    %v3746 = vand.u32 %v3745, 4294901760
    %3747 = vmatprep.subr.mxu0 %v3746
    %v3748 = vand.u32 %v2037, 4294901760
    %v3749 = vsub.f32 %v2037, %v3748
    %v3750 = vand.u32 %v3749, 4294901760
    %v3751 = vsub.f32 %v3749, %v3750
    %v3752 = vand.u32 %v3751, 4294901760
    %3753 = vmatpush1.msra.mxu0 %v3752
    %v3754 = vand.u32 %v2040, 4294901760
    %v3755 = vsub.f32 %v2040, %v3754
    %v3756 = vand.u32 %v3755, 4294901760
    %v3757 = vsub.f32 %v3755, %v3756
    %v3758 = vand.u32 %v3757, 4294901760
    %3759 = vmatprep.subr.mxu0 %v3758
    %v3760 = vand.u32 %v2039, 4294901760
    %v3761 = vsub.f32 %v2039, %v3760
    %v3762 = vand.u32 %v3761, 4294901760
    %v3763 = vsub.f32 %v3761, %v3762
    %v3764 = vand.u32 %v3763, 4294901760
    %3765 = vmatpush1.msra.mxu0 %v3764
    %v3766 = vand.u32 %v2042, 4294901760
    %v3767 = vsub.f32 %v2042, %v3766
    %v3768 = vand.u32 %v3767, 4294901760
    %v3769 = vsub.f32 %v3767, %v3768
    %v3770 = vand.u32 %v3769, 4294901760
    %3771 = vmatprep.subr.mxu0 %v3770
    %v3772 = vand.u32 %v2041, 4294901760
    %v3773 = vsub.f32 %v2041, %v3772
    %v3774 = vand.u32 %v3773, 4294901760
    %v3775 = vsub.f32 %v3773, %v3774
    %v3776 = vand.u32 %v3775, 4294901760
    %3777 = vmatpush1.msra.mxu0 %v3776
    %v3778 = vand.u32 %v2044, 4294901760
    %v3779 = vsub.f32 %v2044, %v3778
    %v3780 = vand.u32 %v3779, 4294901760
    %v3781 = vsub.f32 %v3779, %v3780
    %v3782 = vand.u32 %v3781, 4294901760
    %3783 = vmatprep.subr.mxu0 %v3782
    %v3784 = vand.u32 %v2043, 4294901760
    %v3785 = vsub.f32 %v2043, %v3784
    %v3786 = vand.u32 %v3785, 4294901760
    %v3787 = vsub.f32 %v3785, %v3786
    %v3788 = vand.u32 %v3787, 4294901760
    %3789 = vmatpush1.msra.mxu0 %v3788
    %v3790 = vand.u32 %v2046, 4294901760
    %v3791 = vsub.f32 %v2046, %v3790
    %v3792 = vand.u32 %v3791, 4294901760
    %v3793 = vsub.f32 %v3791, %v3792
    %v3794 = vand.u32 %v3793, 4294901760
    %3795 = vmatprep.subr.mxu0 %v3794
    %v3796 = vand.u32 %v2045, 4294901760
    %v3797 = vsub.f32 %v2045, %v3796
    %v3798 = vand.u32 %v3797, 4294901760
    %v3799 = vsub.f32 %v3797, %v3798
    %v3800 = vand.u32 %v3799, 4294901760
    %3801 = vmatpush1.msra.mxu0 %v3800
    %v3802 = vand.u32 %v2048, 4294901760
    %v3803 = vsub.f32 %v2048, %v3802
    %v3804 = vand.u32 %v3803, 4294901760
    %v3805 = vsub.f32 %v3803, %v3804
    %v3806 = vand.u32 %v3805, 4294901760
    %3807 = vmatprep.subr.mxu0 %v3806
    %v3808 = vand.u32 %v2047, 4294901760
    %v3809 = vsub.f32 %v2047, %v3808
    %v3810 = vand.u32 %v3809, 4294901760
    %v3811 = vsub.f32 %v3809, %v3810
    %v3812 = vand.u32 %v3811, 4294901760
    %3813 = vmatpush1.msra.mxu0 %v3812
    %v3814 = vand.u32 %v2050, 4294901760
    %v3815 = vsub.f32 %v2050, %v3814
    %v3816 = vand.u32 %v3815, 4294901760
    %v3817 = vsub.f32 %v3815, %v3816
    %v3818 = vand.u32 %v3817, 4294901760
    %3819 = vmatprep.subr.mxu0 %v3818
    %v3820 = vand.u32 %v2049, 4294901760
    %v3821 = vsub.f32 %v2049, %v3820
    %v3822 = vand.u32 %v3821, 4294901760
    %v3823 = vsub.f32 %v3821, %v3822
    %v3824 = vand.u32 %v3823, 4294901760
    %3825 = vmatpush1.msra.mxu0 %v3824
    %v3826 = vand.u32 %v2052, 4294901760
    %v3827 = vsub.f32 %v2052, %v3826
    %v3828 = vand.u32 %v3827, 4294901760
    %v3829 = vsub.f32 %v3827, %v3828
    %v3830 = vand.u32 %v3829, 4294901760
    %3831 = vmatprep.subr.mxu0 %v3830
    %v3832 = vand.u32 %v2051, 4294901760
    %v3833 = vsub.f32 %v2051, %v3832
    %v3834 = vand.u32 %v3833, 4294901760
    %v3835 = vsub.f32 %v3833, %v3834
    %v3836 = vand.u32 %v3835, 4294901760
    %3837 = vmatpush1.msra.mxu0 %v3836
    %v3838 = vand.u32 %v2054, 4294901760
    %v3839 = vsub.f32 %v2054, %v3838
    %v3840 = vand.u32 %v3839, 4294901760
    %v3841 = vsub.f32 %v3839, %v3840
    %v3842 = vand.u32 %v3841, 4294901760
    %3843 = vmatprep.subr.mxu0 %v3842
    %v3844 = vand.u32 %v2053, 4294901760
    %v3845 = vsub.f32 %v2053, %v3844
    %v3846 = vand.u32 %v3845, 4294901760
    %v3847 = vsub.f32 %v3845, %v3846
    %v3848 = vand.u32 %v3847, 4294901760
    %3849 = vmatpush1.msra.mxu0 %v3848
    %v3850 = vand.u32 %v2056, 4294901760
    %v3851 = vsub.f32 %v2056, %v3850
    %v3852 = vand.u32 %v3851, 4294901760
    %v3853 = vsub.f32 %v3851, %v3852
    %v3854 = vand.u32 %v3853, 4294901760
    %3855 = vmatprep.subr.mxu0 %v3854
    %v3856 = vand.u32 %v2055, 4294901760
    %v3857 = vsub.f32 %v2055, %v3856
    %v3858 = vand.u32 %v3857, 4294901760
    %v3859 = vsub.f32 %v3857, %v3858
    %v3860 = vand.u32 %v3859, 4294901760
    %3861 = vmatpush1.msra.mxu0 %v3860
    %v3862 = vand.u32 %v2058, 4294901760
    %v3863 = vsub.f32 %v2058, %v3862
    %v3864 = vand.u32 %v3863, 4294901760
    %v3865 = vsub.f32 %v3863, %v3864
    %v3866 = vand.u32 %v3865, 4294901760
    %3867 = vmatprep.subr.mxu0 %v3866
    %v3868 = vand.u32 %v2057, 4294901760
    %v3869 = vsub.f32 %v2057, %v3868
    %v3870 = vand.u32 %v3869, 4294901760
    %v3871 = vsub.f32 %v3869, %v3870
    %v3872 = vand.u32 %v3871, 4294901760
    %3873 = vmatpush1.msra.mxu0 %v3872
    %v3874 = vand.u32 %v2060, 4294901760
    %v3875 = vsub.f32 %v2060, %v3874
    %v3876 = vand.u32 %v3875, 4294901760
    %v3877 = vsub.f32 %v3875, %v3876
    %v3878 = vand.u32 %v3877, 4294901760
    %3879 = vmatprep.subr.mxu0 %v3878
    %v3880 = vand.u32 %v2059, 4294901760
    %v3881 = vsub.f32 %v2059, %v3880
    %v3882 = vand.u32 %v3881, 4294901760
    %v3883 = vsub.f32 %v3881, %v3882
    %v3884 = vand.u32 %v3883, 4294901760
    %3885 = vmatpush1.msra.mxu0 %v3884
    %v3886 = vand.u32 %v2062, 4294901760
    %v3887 = vsub.f32 %v2062, %v3886
    %v3888 = vand.u32 %v3887, 4294901760
    %v3889 = vsub.f32 %v3887, %v3888
    %v3890 = vand.u32 %v3889, 4294901760
    %3891 = vmatprep.subr.mxu0 %v3890
    %v3892 = vand.u32 %v2061, 4294901760
    %v3893 = vsub.f32 %v2061, %v3892
    %v3894 = vand.u32 %v3893, 4294901760
    %v3895 = vsub.f32 %v3893, %v3894
    %v3896 = vand.u32 %v3895, 4294901760
    %3897 = vmatpush1.msra.mxu0 %v3896
    %v3898 = vand.u32 %v2080, 4294901760
    %3899 = vmatprep.mubr.f32.mxu0 %v3898
    %v3900 = vand.u32 %v2078, 4294901760
    %3901 = vmatmul.mubr.f32.gmra.mrb[0].mxu0 %v3900
    %v3902 = vpop.f32.mrb[0].mxu0
    %v3903 = vadd.f32 %v3510, %v3902
    %v3904 = vpop.f32.mrb[0].mxu0
    %v3905 = vadd.f32 %v3512, %v3904
    %3906 = vdwg.mxu0
    %v3907 = vand.u32 %v2000, 4294901760
    %v3908 = vsub.f32 %v2000, %v3907
    %3909 = vmatprep.subr.mxu0 %v3908
    %v3910 = vand.u32 %v1999, 4294901760
    %v3911 = vsub.f32 %v1999, %v3910
    %3912 = vmatpush1.msra.mxu0 %v3911
    %v3913 = vand.u32 %v2002, 4294901760
    %v3914 = vsub.f32 %v2002, %v3913
    %3915 = vmatprep.subr.mxu0 %v3914
    %v3916 = vand.u32 %v2001, 4294901760
    %v3917 = vsub.f32 %v2001, %v3916
    %3918 = vmatpush1.msra.mxu0 %v3917
    %v3919 = vand.u32 %v2004, 4294901760
    %v3920 = vsub.f32 %v2004, %v3919
    %3921 = vmatprep.subr.mxu0 %v3920
    %v3922 = vand.u32 %v2003, 4294901760
    %v3923 = vsub.f32 %v2003, %v3922
    %3924 = vmatpush1.msra.mxu0 %v3923
    %v3925 = vand.u32 %v2006, 4294901760
    %v3926 = vsub.f32 %v2006, %v3925
    %3927 = vmatprep.subr.mxu0 %v3926
    %v3928 = vand.u32 %v2005, 4294901760
    %v3929 = vsub.f32 %v2005, %v3928
    %3930 = vmatpush1.msra.mxu0 %v3929
    %v3931 = vand.u32 %v2008, 4294901760
    %v3932 = vsub.f32 %v2008, %v3931
    %3933 = vmatprep.subr.mxu0 %v3932
    %v3934 = vand.u32 %v2007, 4294901760
    %v3935 = vsub.f32 %v2007, %v3934
    %3936 = vmatpush1.msra.mxu0 %v3935
    %v3937 = vand.u32 %v2010, 4294901760
    %v3938 = vsub.f32 %v2010, %v3937
    %3939 = vmatprep.subr.mxu0 %v3938
    %v3940 = vand.u32 %v2009, 4294901760
    %v3941 = vsub.f32 %v2009, %v3940
    %3942 = vmatpush1.msra.mxu0 %v3941
    %v3943 = vand.u32 %v2012, 4294901760
    %v3944 = vsub.f32 %v2012, %v3943
    %3945 = vmatprep.subr.mxu0 %v3944
    %v3946 = vand.u32 %v2011, 4294901760
    %v3947 = vsub.f32 %v2011, %v3946
    %3948 = vmatpush1.msra.mxu0 %v3947
    %v3949 = vand.u32 %v2014, 4294901760
    %v3950 = vsub.f32 %v2014, %v3949
    %3951 = vmatprep.subr.mxu0 %v3950
    %v3952 = vand.u32 %v2013, 4294901760
    %v3953 = vsub.f32 %v2013, %v3952
    %3954 = vmatpush1.msra.mxu0 %v3953
    %v3955 = vand.u32 %v2016, 4294901760
    %v3956 = vsub.f32 %v2016, %v3955
    %3957 = vmatprep.subr.mxu0 %v3956
    %v3958 = vand.u32 %v2015, 4294901760
    %v3959 = vsub.f32 %v2015, %v3958
    %3960 = vmatpush1.msra.mxu0 %v3959
    %v3961 = vand.u32 %v2018, 4294901760
    %v3962 = vsub.f32 %v2018, %v3961
    %3963 = vmatprep.subr.mxu0 %v3962
    %v3964 = vand.u32 %v2017, 4294901760
    %v3965 = vsub.f32 %v2017, %v3964
    %3966 = vmatpush1.msra.mxu0 %v3965
    %v3967 = vand.u32 %v2020, 4294901760
    %v3968 = vsub.f32 %v2020, %v3967
    %3969 = vmatprep.subr.mxu0 %v3968
    %v3970 = vand.u32 %v2019, 4294901760
    %v3971 = vsub.f32 %v2019, %v3970
    %3972 = vmatpush1.msra.mxu0 %v3971
    %v3973 = vand.u32 %v2022, 4294901760
    %v3974 = vsub.f32 %v2022, %v3973
    %3975 = vmatprep.subr.mxu0 %v3974
    %v3976 = vand.u32 %v2021, 4294901760
    %v3977 = vsub.f32 %v2021, %v3976
    %3978 = vmatpush1.msra.mxu0 %v3977
    %v3979 = vand.u32 %v2024, 4294901760
    %v3980 = vsub.f32 %v2024, %v3979
    %3981 = vmatprep.subr.mxu0 %v3980
    %v3982 = vand.u32 %v2023, 4294901760
    %v3983 = vsub.f32 %v2023, %v3982
    %3984 = vmatpush1.msra.mxu0 %v3983
    %v3985 = vand.u32 %v2026, 4294901760
    %v3986 = vsub.f32 %v2026, %v3985
    %3987 = vmatprep.subr.mxu0 %v3986
    %v3988 = vand.u32 %v2025, 4294901760
    %v3989 = vsub.f32 %v2025, %v3988
    %3990 = vmatpush1.msra.mxu0 %v3989
    %v3991 = vand.u32 %v2028, 4294901760
    %v3992 = vsub.f32 %v2028, %v3991
    %3993 = vmatprep.subr.mxu0 %v3992
    %v3994 = vand.u32 %v2027, 4294901760
    %v3995 = vsub.f32 %v2027, %v3994
    %3996 = vmatpush1.msra.mxu0 %v3995
    %v3997 = vand.u32 %v2030, 4294901760
    %v3998 = vsub.f32 %v2030, %v3997
    %3999 = vmatprep.subr.mxu0 %v3998
    %v4000 = vand.u32 %v2029, 4294901760
    %v4001 = vsub.f32 %v2029, %v4000
    %4002 = vmatpush1.msra.mxu0 %v4001
    %v4003 = vand.u32 %v2032, 4294901760
    %v4004 = vsub.f32 %v2032, %v4003
    %4005 = vmatprep.subr.mxu0 %v4004
    %v4006 = vand.u32 %v2031, 4294901760
    %v4007 = vsub.f32 %v2031, %v4006
    %4008 = vmatpush1.msra.mxu0 %v4007
    %v4009 = vand.u32 %v2034, 4294901760
    %v4010 = vsub.f32 %v2034, %v4009
    %4011 = vmatprep.subr.mxu0 %v4010
    %v4012 = vand.u32 %v2033, 4294901760
    %v4013 = vsub.f32 %v2033, %v4012
    %4014 = vmatpush1.msra.mxu0 %v4013
    %v4015 = vand.u32 %v2036, 4294901760
    %v4016 = vsub.f32 %v2036, %v4015
    %4017 = vmatprep.subr.mxu0 %v4016
    %v4018 = vand.u32 %v2035, 4294901760
    %v4019 = vsub.f32 %v2035, %v4018
    %4020 = vmatpush1.msra.mxu0 %v4019
    %v4021 = vand.u32 %v2038, 4294901760
    %v4022 = vsub.f32 %v2038, %v4021
    %4023 = vmatprep.subr.mxu0 %v4022
    %v4024 = vand.u32 %v2037, 4294901760
    %v4025 = vsub.f32 %v2037, %v4024
    %4026 = vmatpush1.msra.mxu0 %v4025
    %v4027 = vand.u32 %v2040, 4294901760
    %v4028 = vsub.f32 %v2040, %v4027
    %4029 = vmatprep.subr.mxu0 %v4028
    %v4030 = vand.u32 %v2039, 4294901760
    %v4031 = vsub.f32 %v2039, %v4030
    %4032 = vmatpush1.msra.mxu0 %v4031
    %v4033 = vand.u32 %v2042, 4294901760
    %v4034 = vsub.f32 %v2042, %v4033
    %4035 = vmatprep.subr.mxu0 %v4034
    %v4036 = vand.u32 %v2041, 4294901760
    %v4037 = vsub.f32 %v2041, %v4036
    %4038 = vmatpush1.msra.mxu0 %v4037
    %v4039 = vand.u32 %v2044, 4294901760
    %v4040 = vsub.f32 %v2044, %v4039
    %4041 = vmatprep.subr.mxu0 %v4040
    %v4042 = vand.u32 %v2043, 4294901760
    %v4043 = vsub.f32 %v2043, %v4042
    %4044 = vmatpush1.msra.mxu0 %v4043
    %v4045 = vand.u32 %v2046, 4294901760
    %v4046 = vsub.f32 %v2046, %v4045
    %4047 = vmatprep.subr.mxu0 %v4046
    %v4048 = vand.u32 %v2045, 4294901760
    %v4049 = vsub.f32 %v2045, %v4048
    %4050 = vmatpush1.msra.mxu0 %v4049
    %v4051 = vand.u32 %v2048, 4294901760
    %v4052 = vsub.f32 %v2048, %v4051
    %4053 = vmatprep.subr.mxu0 %v4052
    %v4054 = vand.u32 %v2047, 4294901760
    %v4055 = vsub.f32 %v2047, %v4054
    %4056 = vmatpush1.msra.mxu0 %v4055
    %v4057 = vand.u32 %v2050, 4294901760
    %v4058 = vsub.f32 %v2050, %v4057
    %4059 = vmatprep.subr.mxu0 %v4058
    %v4060 = vand.u32 %v2049, 4294901760
    %v4061 = vsub.f32 %v2049, %v4060
    %4062 = vmatpush1.msra.mxu0 %v4061
    %v4063 = vand.u32 %v2052, 4294901760
    %v4064 = vsub.f32 %v2052, %v4063
    %4065 = vmatprep.subr.mxu0 %v4064
    %v4066 = vand.u32 %v2051, 4294901760
    %v4067 = vsub.f32 %v2051, %v4066
    %4068 = vmatpush1.msra.mxu0 %v4067
    %v4069 = vand.u32 %v2054, 4294901760
    %v4070 = vsub.f32 %v2054, %v4069
    %4071 = vmatprep.subr.mxu0 %v4070
    %v4072 = vand.u32 %v2053, 4294901760
    %v4073 = vsub.f32 %v2053, %v4072
    %4074 = vmatpush1.msra.mxu0 %v4073
    %v4075 = vand.u32 %v2056, 4294901760
    %v4076 = vsub.f32 %v2056, %v4075
    %4077 = vmatprep.subr.mxu0 %v4076
    %v4078 = vand.u32 %v2055, 4294901760
    %v4079 = vsub.f32 %v2055, %v4078
    %4080 = vmatpush1.msra.mxu0 %v4079
    %v4081 = vand.u32 %v2058, 4294901760
    %v4082 = vsub.f32 %v2058, %v4081
    %4083 = vmatprep.subr.mxu0 %v4082
    %v4084 = vand.u32 %v2057, 4294901760
    %v4085 = vsub.f32 %v2057, %v4084
    %4086 = vmatpush1.msra.mxu0 %v4085
    %v4087 = vand.u32 %v2060, 4294901760
    %v4088 = vsub.f32 %v2060, %v4087
    %4089 = vmatprep.subr.mxu0 %v4088
    %v4090 = vand.u32 %v2059, 4294901760
    %v4091 = vsub.f32 %v2059, %v4090
    %4092 = vmatpush1.msra.mxu0 %v4091
    %v4093 = vand.u32 %v2062, 4294901760
    %v4094 = vsub.f32 %v2062, %v4093
    %4095 = vmatprep.subr.mxu0 %v4094
    %v4096 = vand.u32 %v2061, 4294901760
    %v4097 = vsub.f32 %v2061, %v4096
    %4098 = vmatpush1.msra.mxu0 %v4097
    %v4099 = vand.u32 %v2080, 4294901760
    %v4100 = vsub.f32 %v2080, %v4099
    %4101 = vmatprep.mubr.f32.mxu0 %v4100
    %v4102 = vand.u32 %v2078, 4294901760
    %v4103 = vsub.f32 %v2078, %v4102
    %4104 = vmatmul.mubr.f32.gmra.mrb[0].mxu0 %v4103
    %v4105 = vpop.f32.mrb[0].mxu0
    %v4106 = vadd.f32 %v3903, %v4105
    %v4107 = vpop.f32.mrb[0].mxu0
    %v4108 = vadd.f32 %v3905, %v4107
    %4109 = vdwg.mxu0
    %v4110 = vand.u32 %v2000, 4294901760
    %4111 = vmatprep.subr.mxu0 %v4110
    %v4112 = vand.u32 %v1999, 4294901760
    %4113 = vmatpush1.msra.mxu0 %v4112
    %v4114 = vand.u32 %v2002, 4294901760
    %4115 = vmatprep.subr.mxu0 %v4114
    %v4116 = vand.u32 %v2001, 4294901760
    %4117 = vmatpush1.msra.mxu0 %v4116
    %v4118 = vand.u32 %v2004, 4294901760
    %4119 = vmatprep.subr.mxu0 %v4118
    %v4120 = vand.u32 %v2003, 4294901760
    %4121 = vmatpush1.msra.mxu0 %v4120
    %v4122 = vand.u32 %v2006, 4294901760
    %4123 = vmatprep.subr.mxu0 %v4122
    %v4124 = vand.u32 %v2005, 4294901760
    %4125 = vmatpush1.msra.mxu0 %v4124
    %v4126 = vand.u32 %v2008, 4294901760
    %4127 = vmatprep.subr.mxu0 %v4126
    %v4128 = vand.u32 %v2007, 4294901760
    %4129 = vmatpush1.msra.mxu0 %v4128
    %v4130 = vand.u32 %v2010, 4294901760
    %4131 = vmatprep.subr.mxu0 %v4130
    %v4132 = vand.u32 %v2009, 4294901760
    %4133 = vmatpush1.msra.mxu0 %v4132
    %v4134 = vand.u32 %v2012, 4294901760
    %4135 = vmatprep.subr.mxu0 %v4134
    %v4136 = vand.u32 %v2011, 4294901760
    %4137 = vmatpush1.msra.mxu0 %v4136
    %v4138 = vand.u32 %v2014, 4294901760
    %4139 = vmatprep.subr.mxu0 %v4138
    %v4140 = vand.u32 %v2013, 4294901760
    %4141 = vmatpush1.msra.mxu0 %v4140
    %v4142 = vand.u32 %v2016, 4294901760
    %4143 = vmatprep.subr.mxu0 %v4142
    %v4144 = vand.u32 %v2015, 4294901760
    %4145 = vmatpush1.msra.mxu0 %v4144
    %v4146 = vand.u32 %v2018, 4294901760
    %4147 = vmatprep.subr.mxu0 %v4146
    %v4148 = vand.u32 %v2017, 4294901760
    %4149 = vmatpush1.msra.mxu0 %v4148
    %v4150 = vand.u32 %v2020, 4294901760
    %4151 = vmatprep.subr.mxu0 %v4150
    %v4152 = vand.u32 %v2019, 4294901760
    %4153 = vmatpush1.msra.mxu0 %v4152
    %v4154 = vand.u32 %v2022, 4294901760
    %4155 = vmatprep.subr.mxu0 %v4154
    %v4156 = vand.u32 %v2021, 4294901760
    %4157 = vmatpush1.msra.mxu0 %v4156
    %v4158 = vand.u32 %v2024, 4294901760
    %4159 = vmatprep.subr.mxu0 %v4158
    %v4160 = vand.u32 %v2023, 4294901760
    %4161 = vmatpush1.msra.mxu0 %v4160
    %v4162 = vand.u32 %v2026, 4294901760
    %4163 = vmatprep.subr.mxu0 %v4162
    %v4164 = vand.u32 %v2025, 4294901760
    %4165 = vmatpush1.msra.mxu0 %v4164
    %v4166 = vand.u32 %v2028, 4294901760
    %4167 = vmatprep.subr.mxu0 %v4166
    %v4168 = vand.u32 %v2027, 4294901760
    %4169 = vmatpush1.msra.mxu0 %v4168
    %v4170 = vand.u32 %v2030, 4294901760
    %4171 = vmatprep.subr.mxu0 %v4170
    %v4172 = vand.u32 %v2029, 4294901760
    %4173 = vmatpush1.msra.mxu0 %v4172
    %v4174 = vand.u32 %v2032, 4294901760
    %4175 = vmatprep.subr.mxu0 %v4174
    %v4176 = vand.u32 %v2031, 4294901760
    %4177 = vmatpush1.msra.mxu0 %v4176
    %v4178 = vand.u32 %v2034, 4294901760
    %4179 = vmatprep.subr.mxu0 %v4178
    %v4180 = vand.u32 %v2033, 4294901760
    %4181 = vmatpush1.msra.mxu0 %v4180
    %v4182 = vand.u32 %v2036, 4294901760
    %4183 = vmatprep.subr.mxu0 %v4182
    %v4184 = vand.u32 %v2035, 4294901760
    %4185 = vmatpush1.msra.mxu0 %v4184
    %v4186 = vand.u32 %v2038, 4294901760
    %4187 = vmatprep.subr.mxu0 %v4186
    %v4188 = vand.u32 %v2037, 4294901760
    %4189 = vmatpush1.msra.mxu0 %v4188
    %v4190 = vand.u32 %v2040, 4294901760
    %4191 = vmatprep.subr.mxu0 %v4190
    %v4192 = vand.u32 %v2039, 4294901760
    %4193 = vmatpush1.msra.mxu0 %v4192
    %v4194 = vand.u32 %v2042, 4294901760
    %4195 = vmatprep.subr.mxu0 %v4194
    %v4196 = vand.u32 %v2041, 4294901760
    %4197 = vmatpush1.msra.mxu0 %v4196
    %v4198 = vand.u32 %v2044, 4294901760
    %4199 = vmatprep.subr.mxu0 %v4198
    %v4200 = vand.u32 %v2043, 4294901760
    %4201 = vmatpush1.msra.mxu0 %v4200
    %v4202 = vand.u32 %v2046, 4294901760
    %4203 = vmatprep.subr.mxu0 %v4202
    %v4204 = vand.u32 %v2045, 4294901760
    %4205 = vmatpush1.msra.mxu0 %v4204
    %v4206 = vand.u32 %v2048, 4294901760
    %4207 = vmatprep.subr.mxu0 %v4206
    %v4208 = vand.u32 %v2047, 4294901760
    %4209 = vmatpush1.msra.mxu0 %v4208
    %v4210 = vand.u32 %v2050, 4294901760
    %4211 = vmatprep.subr.mxu0 %v4210
    %v4212 = vand.u32 %v2049, 4294901760
    %4213 = vmatpush1.msra.mxu0 %v4212
    %v4214 = vand.u32 %v2052, 4294901760
    %4215 = vmatprep.subr.mxu0 %v4214
    %v4216 = vand.u32 %v2051, 4294901760
    %4217 = vmatpush1.msra.mxu0 %v4216
    %v4218 = vand.u32 %v2054, 4294901760
    %4219 = vmatprep.subr.mxu0 %v4218
    %v4220 = vand.u32 %v2053, 4294901760
    %4221 = vmatpush1.msra.mxu0 %v4220
    %v4222 = vand.u32 %v2056, 4294901760
    %4223 = vmatprep.subr.mxu0 %v4222
    %v4224 = vand.u32 %v2055, 4294901760
    %4225 = vmatpush1.msra.mxu0 %v4224
    %v4226 = vand.u32 %v2058, 4294901760
    %4227 = vmatprep.subr.mxu0 %v4226
    %v4228 = vand.u32 %v2057, 4294901760
    %4229 = vmatpush1.msra.mxu0 %v4228
    %v4230 = vand.u32 %v2060, 4294901760
    %4231 = vmatprep.subr.mxu0 %v4230
    %v4232 = vand.u32 %v2059, 4294901760
    %4233 = vmatpush1.msra.mxu0 %v4232
    %v4234 = vand.u32 %v2062, 4294901760
    %4235 = vmatprep.subr.mxu0 %v4234
    %v4236 = vand.u32 %v2061, 4294901760
    %4237 = vmatpush1.msra.mxu0 %v4236
    %v4238 = vand.u32 %v2080, 4294901760
    %v4239 = vsub.f32 %v2080, %v4238
    %v4240 = vand.u32 %v4239, 4294901760
    %4241 = vmatprep.mubr.f32.mxu0 %v4240
    %v4242 = vand.u32 %v2078, 4294901760
    %v4243 = vsub.f32 %v2078, %v4242
    %v4244 = vand.u32 %v4243, 4294901760
    %4245 = vmatmul.mubr.f32.gmra.mrb[0].mxu0 %v4244
    %v4246 = vpop.f32.mrb[0].mxu0
    %v4247 = vadd.f32 %v4106, %v4246
    %v4248 = vpop.f32.mrb[0].mxu0
    %v4249 = vadd.f32 %v4108, %v4248
    %4250 = vdwg.mxu0
    %v4251 = vand.u32 %v2000, 4294901760
    %v4252 = vsub.f32 %v2000, %v4251
    %v4253 = vand.u32 %v4252, 4294901760
    %4254 = vmatprep.subr.mxu0 %v4253
    %v4255 = vand.u32 %v1999, 4294901760
    %v4256 = vsub.f32 %v1999, %v4255
    %v4257 = vand.u32 %v4256, 4294901760
    %4258 = vmatpush1.msra.mxu0 %v4257
    %v4259 = vand.u32 %v2002, 4294901760
    %v4260 = vsub.f32 %v2002, %v4259
    %v4261 = vand.u32 %v4260, 4294901760
    %4262 = vmatprep.subr.mxu0 %v4261
    %v4263 = vand.u32 %v2001, 4294901760
    %v4264 = vsub.f32 %v2001, %v4263
    %v4265 = vand.u32 %v4264, 4294901760
    %4266 = vmatpush1.msra.mxu0 %v4265
    %v4267 = vand.u32 %v2004, 4294901760
    %v4268 = vsub.f32 %v2004, %v4267
    %v4269 = vand.u32 %v4268, 4294901760
    %4270 = vmatprep.subr.mxu0 %v4269
    %v4271 = vand.u32 %v2003, 4294901760
    %v4272 = vsub.f32 %v2003, %v4271
    %v4273 = vand.u32 %v4272, 4294901760
    %4274 = vmatpush1.msra.mxu0 %v4273
    %v4275 = vand.u32 %v2006, 4294901760
    %v4276 = vsub.f32 %v2006, %v4275
    %v4277 = vand.u32 %v4276, 4294901760
    %4278 = vmatprep.subr.mxu0 %v4277
    %v4279 = vand.u32 %v2005, 4294901760
    %v4280 = vsub.f32 %v2005, %v4279
    %v4281 = vand.u32 %v4280, 4294901760
    %4282 = vmatpush1.msra.mxu0 %v4281
    %v4283 = vand.u32 %v2008, 4294901760
    %v4284 = vsub.f32 %v2008, %v4283
    %v4285 = vand.u32 %v4284, 4294901760
    %4286 = vmatprep.subr.mxu0 %v4285
    %v4287 = vand.u32 %v2007, 4294901760
    %v4288 = vsub.f32 %v2007, %v4287
    %v4289 = vand.u32 %v4288, 4294901760
    %4290 = vmatpush1.msra.mxu0 %v4289
    %v4291 = vand.u32 %v2010, 4294901760
    %v4292 = vsub.f32 %v2010, %v4291
    %v4293 = vand.u32 %v4292, 4294901760
    %4294 = vmatprep.subr.mxu0 %v4293
    %v4295 = vand.u32 %v2009, 4294901760
    %v4296 = vsub.f32 %v2009, %v4295
    %v4297 = vand.u32 %v4296, 4294901760
    %4298 = vmatpush1.msra.mxu0 %v4297
    %v4299 = vand.u32 %v2012, 4294901760
    %v4300 = vsub.f32 %v2012, %v4299
    %v4301 = vand.u32 %v4300, 4294901760
    %4302 = vmatprep.subr.mxu0 %v4301
    %v4303 = vand.u32 %v2011, 4294901760
    %v4304 = vsub.f32 %v2011, %v4303
    %v4305 = vand.u32 %v4304, 4294901760
    %4306 = vmatpush1.msra.mxu0 %v4305
    %v4307 = vand.u32 %v2014, 4294901760
    %v4308 = vsub.f32 %v2014, %v4307
    %v4309 = vand.u32 %v4308, 4294901760
    %4310 = vmatprep.subr.mxu0 %v4309
    %v4311 = vand.u32 %v2013, 4294901760
    %v4312 = vsub.f32 %v2013, %v4311
    %v4313 = vand.u32 %v4312, 4294901760
    %4314 = vmatpush1.msra.mxu0 %v4313
    %v4315 = vand.u32 %v2016, 4294901760
    %v4316 = vsub.f32 %v2016, %v4315
    %v4317 = vand.u32 %v4316, 4294901760
    %4318 = vmatprep.subr.mxu0 %v4317
    %v4319 = vand.u32 %v2015, 4294901760
    %v4320 = vsub.f32 %v2015, %v4319
    %v4321 = vand.u32 %v4320, 4294901760
    %4322 = vmatpush1.msra.mxu0 %v4321
    %v4323 = vand.u32 %v2018, 4294901760
    %v4324 = vsub.f32 %v2018, %v4323
    %v4325 = vand.u32 %v4324, 4294901760
    %4326 = vmatprep.subr.mxu0 %v4325
    %v4327 = vand.u32 %v2017, 4294901760
    %v4328 = vsub.f32 %v2017, %v4327
    %v4329 = vand.u32 %v4328, 4294901760
    %4330 = vmatpush1.msra.mxu0 %v4329
    %v4331 = vand.u32 %v2020, 4294901760
    %v4332 = vsub.f32 %v2020, %v4331
    %v4333 = vand.u32 %v4332, 4294901760
    %4334 = vmatprep.subr.mxu0 %v4333
    %v4335 = vand.u32 %v2019, 4294901760
    %v4336 = vsub.f32 %v2019, %v4335
    %v4337 = vand.u32 %v4336, 4294901760
    %4338 = vmatpush1.msra.mxu0 %v4337
    %v4339 = vand.u32 %v2022, 4294901760
    %v4340 = vsub.f32 %v2022, %v4339
    %v4341 = vand.u32 %v4340, 4294901760
    %4342 = vmatprep.subr.mxu0 %v4341
    %v4343 = vand.u32 %v2021, 4294901760
    %v4344 = vsub.f32 %v2021, %v4343
    %v4345 = vand.u32 %v4344, 4294901760
    %4346 = vmatpush1.msra.mxu0 %v4345
    %v4347 = vand.u32 %v2024, 4294901760
    %v4348 = vsub.f32 %v2024, %v4347
    %v4349 = vand.u32 %v4348, 4294901760
    %4350 = vmatprep.subr.mxu0 %v4349
    %v4351 = vand.u32 %v2023, 4294901760
    %v4352 = vsub.f32 %v2023, %v4351
    %v4353 = vand.u32 %v4352, 4294901760
    %4354 = vmatpush1.msra.mxu0 %v4353
    %v4355 = vand.u32 %v2026, 4294901760
    %v4356 = vsub.f32 %v2026, %v4355
    %v4357 = vand.u32 %v4356, 4294901760
    %4358 = vmatprep.subr.mxu0 %v4357
    %v4359 = vand.u32 %v2025, 4294901760
    %v4360 = vsub.f32 %v2025, %v4359
    %v4361 = vand.u32 %v4360, 4294901760
    %4362 = vmatpush1.msra.mxu0 %v4361
    %v4363 = vand.u32 %v2028, 4294901760
    %v4364 = vsub.f32 %v2028, %v4363
    %v4365 = vand.u32 %v4364, 4294901760
    %4366 = vmatprep.subr.mxu0 %v4365
    %v4367 = vand.u32 %v2027, 4294901760
    %v4368 = vsub.f32 %v2027, %v4367
    %v4369 = vand.u32 %v4368, 4294901760
    %4370 = vmatpush1.msra.mxu0 %v4369
    %v4371 = vand.u32 %v2030, 4294901760
    %v4372 = vsub.f32 %v2030, %v4371
    %v4373 = vand.u32 %v4372, 4294901760
    %4374 = vmatprep.subr.mxu0 %v4373
    %v4375 = vand.u32 %v2029, 4294901760
    %v4376 = vsub.f32 %v2029, %v4375
    %v4377 = vand.u32 %v4376, 4294901760
    %4378 = vmatpush1.msra.mxu0 %v4377
    %v4379 = vand.u32 %v2032, 4294901760
    %v4380 = vsub.f32 %v2032, %v4379
    %v4381 = vand.u32 %v4380, 4294901760
    %4382 = vmatprep.subr.mxu0 %v4381
    %v4383 = vand.u32 %v2031, 4294901760
    %v4384 = vsub.f32 %v2031, %v4383
    %v4385 = vand.u32 %v4384, 4294901760
    %4386 = vmatpush1.msra.mxu0 %v4385
    %v4387 = vand.u32 %v2034, 4294901760
    %v4388 = vsub.f32 %v2034, %v4387
    %v4389 = vand.u32 %v4388, 4294901760
    %4390 = vmatprep.subr.mxu0 %v4389
    %v4391 = vand.u32 %v2033, 4294901760
    %v4392 = vsub.f32 %v2033, %v4391
    %v4393 = vand.u32 %v4392, 4294901760
    %4394 = vmatpush1.msra.mxu0 %v4393
    %v4395 = vand.u32 %v2036, 4294901760
    %v4396 = vsub.f32 %v2036, %v4395
    %v4397 = vand.u32 %v4396, 4294901760
    %4398 = vmatprep.subr.mxu0 %v4397
    %v4399 = vand.u32 %v2035, 4294901760
    %v4400 = vsub.f32 %v2035, %v4399
    %v4401 = vand.u32 %v4400, 4294901760
    %4402 = vmatpush1.msra.mxu0 %v4401
    %v4403 = vand.u32 %v2038, 4294901760
    %v4404 = vsub.f32 %v2038, %v4403
    %v4405 = vand.u32 %v4404, 4294901760
    %4406 = vmatprep.subr.mxu0 %v4405
    %v4407 = vand.u32 %v2037, 4294901760
    %v4408 = vsub.f32 %v2037, %v4407
    %v4409 = vand.u32 %v4408, 4294901760
    %4410 = vmatpush1.msra.mxu0 %v4409
    %v4411 = vand.u32 %v2040, 4294901760
    %v4412 = vsub.f32 %v2040, %v4411
    %v4413 = vand.u32 %v4412, 4294901760
    %4414 = vmatprep.subr.mxu0 %v4413
    %v4415 = vand.u32 %v2039, 4294901760
    %v4416 = vsub.f32 %v2039, %v4415
    %v4417 = vand.u32 %v4416, 4294901760
    %4418 = vmatpush1.msra.mxu0 %v4417
    %v4419 = vand.u32 %v2042, 4294901760
    %v4420 = vsub.f32 %v2042, %v4419
    %v4421 = vand.u32 %v4420, 4294901760
    %4422 = vmatprep.subr.mxu0 %v4421
    %v4423 = vand.u32 %v2041, 4294901760
    %v4424 = vsub.f32 %v2041, %v4423
    %v4425 = vand.u32 %v4424, 4294901760
    %4426 = vmatpush1.msra.mxu0 %v4425
    %v4427 = vand.u32 %v2044, 4294901760
    %v4428 = vsub.f32 %v2044, %v4427
    %v4429 = vand.u32 %v4428, 4294901760
    %4430 = vmatprep.subr.mxu0 %v4429
    %v4431 = vand.u32 %v2043, 4294901760
    %v4432 = vsub.f32 %v2043, %v4431
    %v4433 = vand.u32 %v4432, 4294901760
    %4434 = vmatpush1.msra.mxu0 %v4433
    %v4435 = vand.u32 %v2046, 4294901760
    %v4436 = vsub.f32 %v2046, %v4435
    %v4437 = vand.u32 %v4436, 4294901760
    %4438 = vmatprep.subr.mxu0 %v4437
    %v4439 = vand.u32 %v2045, 4294901760
    %v4440 = vsub.f32 %v2045, %v4439
    %v4441 = vand.u32 %v4440, 4294901760
    %4442 = vmatpush1.msra.mxu0 %v4441
    %v4443 = vand.u32 %v2048, 4294901760
    %v4444 = vsub.f32 %v2048, %v4443
    %v4445 = vand.u32 %v4444, 4294901760
    %4446 = vmatprep.subr.mxu0 %v4445
    %v4447 = vand.u32 %v2047, 4294901760
    %v4448 = vsub.f32 %v2047, %v4447
    %v4449 = vand.u32 %v4448, 4294901760
    %4450 = vmatpush1.msra.mxu0 %v4449
    %v4451 = vand.u32 %v2050, 4294901760
    %v4452 = vsub.f32 %v2050, %v4451
    %v4453 = vand.u32 %v4452, 4294901760
    %4454 = vmatprep.subr.mxu0 %v4453
    %v4455 = vand.u32 %v2049, 4294901760
    %v4456 = vsub.f32 %v2049, %v4455
    %v4457 = vand.u32 %v4456, 4294901760
    %4458 = vmatpush1.msra.mxu0 %v4457
    %v4459 = vand.u32 %v2052, 4294901760
    %v4460 = vsub.f32 %v2052, %v4459
    %v4461 = vand.u32 %v4460, 4294901760
    %4462 = vmatprep.subr.mxu0 %v4461
    %v4463 = vand.u32 %v2051, 4294901760
    %v4464 = vsub.f32 %v2051, %v4463
    %v4465 = vand.u32 %v4464, 4294901760
    %4466 = vmatpush1.msra.mxu0 %v4465
    %v4467 = vand.u32 %v2054, 4294901760
    %v4468 = vsub.f32 %v2054, %v4467
    %v4469 = vand.u32 %v4468, 4294901760
    %4470 = vmatprep.subr.mxu0 %v4469
    %v4471 = vand.u32 %v2053, 4294901760
    %v4472 = vsub.f32 %v2053, %v4471
    %v4473 = vand.u32 %v4472, 4294901760
    %4474 = vmatpush1.msra.mxu0 %v4473
    %v4475 = vand.u32 %v2056, 4294901760
    %v4476 = vsub.f32 %v2056, %v4475
    %v4477 = vand.u32 %v4476, 4294901760
    %4478 = vmatprep.subr.mxu0 %v4477
    %v4479 = vand.u32 %v2055, 4294901760
    %v4480 = vsub.f32 %v2055, %v4479
    %v4481 = vand.u32 %v4480, 4294901760
    %4482 = vmatpush1.msra.mxu0 %v4481
    %v4483 = vand.u32 %v2058, 4294901760
    %v4484 = vsub.f32 %v2058, %v4483
    %v4485 = vand.u32 %v4484, 4294901760
    %4486 = vmatprep.subr.mxu0 %v4485
    %v4487 = vand.u32 %v2057, 4294901760
    %v4488 = vsub.f32 %v2057, %v4487
    %v4489 = vand.u32 %v4488, 4294901760
    %4490 = vmatpush1.msra.mxu0 %v4489
    %v4491 = vand.u32 %v2060, 4294901760
    %v4492 = vsub.f32 %v2060, %v4491
    %v4493 = vand.u32 %v4492, 4294901760
    %4494 = vmatprep.subr.mxu0 %v4493
    %v4495 = vand.u32 %v2059, 4294901760
    %v4496 = vsub.f32 %v2059, %v4495
    %v4497 = vand.u32 %v4496, 4294901760
    %4498 = vmatpush1.msra.mxu0 %v4497
    %v4499 = vand.u32 %v2062, 4294901760
    %v4500 = vsub.f32 %v2062, %v4499
    %v4501 = vand.u32 %v4500, 4294901760
    %4502 = vmatprep.subr.mxu0 %v4501
    %v4503 = vand.u32 %v2061, 4294901760
    %v4504 = vsub.f32 %v2061, %v4503
    %v4505 = vand.u32 %v4504, 4294901760
    %4506 = vmatpush1.msra.mxu0 %v4505
    %v4507 = vand.u32 %v2080, 4294901760
    %4508 = vmatprep.mubr.f32.mxu0 %v4507
    %v4509 = vand.u32 %v2078, 4294901760
    %4510 = vmatmul.mubr.f32.gmra.mrb[0].mxu0 %v4509
    %v4511 = vpop.f32.mrb[0].mxu0
    %v4512 = vadd.f32 %v4247, %v4511
    %v4513 = vpop.f32.mrb[0].mxu0
    %v4514 = vadd.f32 %v4249, %v4513
    %4515 = vdwg.mxu0
    %v4516 = vand.u32 %v2000, 4294901760
    %4517 = vmatprep.subr.mxu0 %v4516
    %v4518 = vand.u32 %v1999, 4294901760
    %4519 = vmatpush1.msra.mxu0 %v4518
    %v4520 = vand.u32 %v2002, 4294901760
    %4521 = vmatprep.subr.mxu0 %v4520
    %v4522 = vand.u32 %v2001, 4294901760
    %4523 = vmatpush1.msra.mxu0 %v4522
    %v4524 = vand.u32 %v2004, 4294901760
    %4525 = vmatprep.subr.mxu0 %v4524
    %v4526 = vand.u32 %v2003, 4294901760
    %4527 = vmatpush1.msra.mxu0 %v4526
    %v4528 = vand.u32 %v2006, 4294901760
    %4529 = vmatprep.subr.mxu0 %v4528
    %v4530 = vand.u32 %v2005, 4294901760
    %4531 = vmatpush1.msra.mxu0 %v4530
    %v4532 = vand.u32 %v2008, 4294901760
    %4533 = vmatprep.subr.mxu0 %v4532
    %v4534 = vand.u32 %v2007, 4294901760
    %4535 = vmatpush1.msra.mxu0 %v4534
    %v4536 = vand.u32 %v2010, 4294901760
    %4537 = vmatprep.subr.mxu0 %v4536
    %v4538 = vand.u32 %v2009, 4294901760
    %4539 = vmatpush1.msra.mxu0 %v4538
    %v4540 = vand.u32 %v2012, 4294901760
    %4541 = vmatprep.subr.mxu0 %v4540
    %v4542 = vand.u32 %v2011, 4294901760
    %4543 = vmatpush1.msra.mxu0 %v4542
    %v4544 = vand.u32 %v2014, 4294901760
    %4545 = vmatprep.subr.mxu0 %v4544
    %v4546 = vand.u32 %v2013, 4294901760
    %4547 = vmatpush1.msra.mxu0 %v4546
    %v4548 = vand.u32 %v2016, 4294901760
    %4549 = vmatprep.subr.mxu0 %v4548
    %v4550 = vand.u32 %v2015, 4294901760
    %4551 = vmatpush1.msra.mxu0 %v4550
    %v4552 = vand.u32 %v2018, 4294901760
    %4553 = vmatprep.subr.mxu0 %v4552
    %v4554 = vand.u32 %v2017, 4294901760
    %4555 = vmatpush1.msra.mxu0 %v4554
    %v4556 = vand.u32 %v2020, 4294901760
    %4557 = vmatprep.subr.mxu0 %v4556
    %v4558 = vand.u32 %v2019, 4294901760
    %4559 = vmatpush1.msra.mxu0 %v4558
    %v4560 = vand.u32 %v2022, 4294901760
    %4561 = vmatprep.subr.mxu0 %v4560
    %v4562 = vand.u32 %v2021, 4294901760
    %4563 = vmatpush1.msra.mxu0 %v4562
    %v4564 = vand.u32 %v2024, 4294901760
    %4565 = vmatprep.subr.mxu0 %v4564
    %v4566 = vand.u32 %v2023, 4294901760
    %4567 = vmatpush1.msra.mxu0 %v4566
    %v4568 = vand.u32 %v2026, 4294901760
    %4569 = vmatprep.subr.mxu0 %v4568
    %v4570 = vand.u32 %v2025, 4294901760
    %4571 = vmatpush1.msra.mxu0 %v4570
    %v4572 = vand.u32 %v2028, 4294901760
    %4573 = vmatprep.subr.mxu0 %v4572
    %v4574 = vand.u32 %v2027, 4294901760
    %4575 = vmatpush1.msra.mxu0 %v4574
    %v4576 = vand.u32 %v2030, 4294901760
    %4577 = vmatprep.subr.mxu0 %v4576
    %v4578 = vand.u32 %v2029, 4294901760
    %4579 = vmatpush1.msra.mxu0 %v4578
    %v4580 = vand.u32 %v2032, 4294901760
    %4581 = vmatprep.subr.mxu0 %v4580
    %v4582 = vand.u32 %v2031, 4294901760
    %4583 = vmatpush1.msra.mxu0 %v4582
    %v4584 = vand.u32 %v2034, 4294901760
    %4585 = vmatprep.subr.mxu0 %v4584
    %v4586 = vand.u32 %v2033, 4294901760
    %4587 = vmatpush1.msra.mxu0 %v4586
    %v4588 = vand.u32 %v2036, 4294901760
    %4589 = vmatprep.subr.mxu0 %v4588
    %v4590 = vand.u32 %v2035, 4294901760
    %4591 = vmatpush1.msra.mxu0 %v4590
    %v4592 = vand.u32 %v2038, 4294901760
    %4593 = vmatprep.subr.mxu0 %v4592
    %v4594 = vand.u32 %v2037, 4294901760
    %4595 = vmatpush1.msra.mxu0 %v4594
    %v4596 = vand.u32 %v2040, 4294901760
    %4597 = vmatprep.subr.mxu0 %v4596
    %v4598 = vand.u32 %v2039, 4294901760
    %4599 = vmatpush1.msra.mxu0 %v4598
    %v4600 = vand.u32 %v2042, 4294901760
    %4601 = vmatprep.subr.mxu0 %v4600
    %v4602 = vand.u32 %v2041, 4294901760
    %4603 = vmatpush1.msra.mxu0 %v4602
    %v4604 = vand.u32 %v2044, 4294901760
    %4605 = vmatprep.subr.mxu0 %v4604
    %v4606 = vand.u32 %v2043, 4294901760
    %4607 = vmatpush1.msra.mxu0 %v4606
    %v4608 = vand.u32 %v2046, 4294901760
    %4609 = vmatprep.subr.mxu0 %v4608
    %v4610 = vand.u32 %v2045, 4294901760
    %4611 = vmatpush1.msra.mxu0 %v4610
    %v4612 = vand.u32 %v2048, 4294901760
    %4613 = vmatprep.subr.mxu0 %v4612
    %v4614 = vand.u32 %v2047, 4294901760
    %4615 = vmatpush1.msra.mxu0 %v4614
    %v4616 = vand.u32 %v2050, 4294901760
    %4617 = vmatprep.subr.mxu0 %v4616
    %v4618 = vand.u32 %v2049, 4294901760
    %4619 = vmatpush1.msra.mxu0 %v4618
    %v4620 = vand.u32 %v2052, 4294901760
    %4621 = vmatprep.subr.mxu0 %v4620
    %v4622 = vand.u32 %v2051, 4294901760
    %4623 = vmatpush1.msra.mxu0 %v4622
    %v4624 = vand.u32 %v2054, 4294901760
    %4625 = vmatprep.subr.mxu0 %v4624
    %v4626 = vand.u32 %v2053, 4294901760
    %4627 = vmatpush1.msra.mxu0 %v4626
    %v4628 = vand.u32 %v2056, 4294901760
    %4629 = vmatprep.subr.mxu0 %v4628
    %v4630 = vand.u32 %v2055, 4294901760
    %4631 = vmatpush1.msra.mxu0 %v4630
    %v4632 = vand.u32 %v2058, 4294901760
    %4633 = vmatprep.subr.mxu0 %v4632
    %v4634 = vand.u32 %v2057, 4294901760
    %4635 = vmatpush1.msra.mxu0 %v4634
    %v4636 = vand.u32 %v2060, 4294901760
    %4637 = vmatprep.subr.mxu0 %v4636
    %v4638 = vand.u32 %v2059, 4294901760
    %4639 = vmatpush1.msra.mxu0 %v4638
    %v4640 = vand.u32 %v2062, 4294901760
    %4641 = vmatprep.subr.mxu0 %v4640
    %v4642 = vand.u32 %v2061, 4294901760
    %4643 = vmatpush1.msra.mxu0 %v4642
    %v4644 = vand.u32 %v2080, 4294901760
    %4645 = vmatprep.mubr.f32.mxu0 %v4644
    %v4646 = vand.u32 %v2078, 4294901760
    %4647 = vmatmul.mubr.f32.gmra.mrb[0].mxu0 %v4646
    %v4648 = vpop.f32.mrb[0].mxu0
    %v4649 = vadd.f32 %v4512, %v4648
    %v4650 = vpop.f32.mrb[0].mxu0
    %v4651 = vadd.f32 %v4514, %v4650
    %4652 = vdwg.mxu0
    %v4653 = vxor.u32 %v4649, 2147483648
    %v4654 = vxor.u32 %v4651, 2147483648
    %v4655 = vmul.f32 %v4653, 1.442695
    %v4656 = vpow.pop %v4655
    %v4657 = vmul.f32 %v4654, 1.442695
    %v4658 = vpow.pop %v4657
    %v4659 = vadd.f32 %v4656, 1.0
    %v4660 = vadd.f32 %v4658, 1.0
    %v4661 = vrcp.pop %v4659
    %v4662 = vmul.f32 1.0, %v4661
    %v4663 = vrcp.pop %v4660
    %v4664 = vmul.f32 1.0, %v4663
    %v4665 = vld [vmem:[#allocation4] sm:$0xff]
    %v4666 = vld [vmem:[#allocation4 + $0x8] sm:$0xff]
    %v4667 = vld [vmem:[#allocation4 + $0x10] sm:$0xff]
    %v4668 = vld [vmem:[#allocation4 + $0x18] sm:$0xff]
    %v4669 = vld [vmem:[#allocation4 + $0x20] sm:$0xff]
    %v4670 = vld [vmem:[#allocation4 + $0x28] sm:$0xff]
    %v4671 = vld [vmem:[#allocation4 + $0x30] sm:$0xff]
    %v4672 = vld [vmem:[#allocation4 + $0x38] sm:$0xff]
    %v4673 = vld [vmem:[#allocation4 + $0x40] sm:$0xff]
    %v4674 = vld [vmem:[#allocation4 + $0x48] sm:$0xff]
    %v4675 = vld [vmem:[#allocation4 + $0x50] sm:$0xff]
    %v4676 = vld [vmem:[#allocation4 + $0x58] sm:$0xff]
    %v4677 = vld [vmem:[#allocation4 + $0x60] sm:$0xff]
    %v4678 = vld [vmem:[#allocation4 + $0x68] sm:$0xff]
    %v4679 = vld [vmem:[#allocation4 + $0x70] sm:$0xff]
    %v4680 = vld [vmem:[#allocation4 + $0x78] sm:$0xff]
    %v4681 = vmul.f32 %v4665, %v1630
    %v4682 = vmul.f32 %v4666, %v1630
    %v4683 = vmul.f32 %v4667, %v1635
    %v4684 = vmul.f32 %v4668, %v1635
    %v4685 = vmul.f32 %v4669, %v1640
    %v4686 = vmul.f32 %v4670, %v1640
    %v4687 = vmul.f32 %v4671, %v1645
    %v4688 = vmul.f32 %v4672, %v1645
    %v4689 = vmul.f32 %v4673, %v1650
    %v4690 = vmul.f32 %v4674, %v1650
    %v4691 = vmul.f32 %v4675, %v1655
    %v4692 = vmul.f32 %v4676, %v1655
    %v4693 = vmul.f32 %v4677, %v1660
    %v4694 = vmul.f32 %v4678, %v1660
    %v4695 = vmul.f32 %v4679, %v1665
    %v4696 = vmul.f32 %v4680, %v1665
    %v4697 = vlaneseq
    %v4698 = vshrl.u32 %v4697, 7
    %v4699 = vsub.s32 0, %v4698
    %v4700 = vrot.slane %v4662, %v4699
    %v4701 = vlaneseq
    %v4702 = vshrl.u32 %v4701, 7
    %v4703 = vsub.s32 0, %v4702
    %v4704 = vrot.slane %v4664, %v4703
    %v4705 = vmul.f32 %v4681, %v4700
    %v4706 = vmul.f32 %v4682, %v4704
    %v4707 = vmul.f32 %v4683, %v4700
    %v4708 = vmul.f32 %v4684, %v4704
    %v4709 = vmul.f32 %v4685, %v4700
    %v4710 = vmul.f32 %v4686, %v4704
    %v4711 = vmul.f32 %v4687, %v4700
    %v4712 = vmul.f32 %v4688, %v4704
    %v4713 = vmul.f32 %v4689, %v4700
    %v4714 = vmul.f32 %v4690, %v4704
    %v4715 = vmul.f32 %v4691, %v4700
    %v4716 = vmul.f32 %v4692, %v4704
    %v4717 = vmul.f32 %v4693, %v4700
    %v4718 = vmul.f32 %v4694, %v4704
    %v4719 = vmul.f32 %v4695, %v4700
    %v4720 = vmul.f32 %v4696, %v4704
    %4721 = vst [vmem:[#allocation9] sm:$0xff] %v4705
    %4722 = vst [vmem:[#allocation9 + $0x8] sm:$0xff] %v4706
    %4723 = vst [vmem:[#allocation9 + $0x10] sm:$0xff] %v4707
    %4724 = vst [vmem:[#allocation9 + $0x18] sm:$0xff] %v4708
    %4725 = vst [vmem:[#allocation9 + $0x20] sm:$0xff] %v4709
    %4726 = vst [vmem:[#allocation9 + $0x28] sm:$0xff] %v4710
    %4727 = vst [vmem:[#allocation9 + $0x30] sm:$0xff] %v4711
    %4728 = vst [vmem:[#allocation9 + $0x38] sm:$0xff] %v4712
    %4729 = vst [vmem:[#allocation9 + $0x40] sm:$0xff] %v4713
    %4730 = vst [vmem:[#allocation9 + $0x48] sm:$0xff] %v4714
    %4731 = vst [vmem:[#allocation9 + $0x50] sm:$0xff] %v4715
    %4732 = vst [vmem:[#allocation9 + $0x58] sm:$0xff] %v4716
    %4733 = vst [vmem:[#allocation9 + $0x60] sm:$0xff] %v4717
    %4734 = vst [vmem:[#allocation9 + $0x68] sm:$0xff] %v4718
    %4735 = vst [vmem:[#allocation9 + $0x70] sm:$0xff] %v4719
    %4736 = vst [vmem:[#allocation9 + $0x78] sm:$0xff] %v4720
    %v4737 = vld [vmem:[%s136] sm:$0xff]
    %v4738 = vld [vmem:[%s136 + $0x8] sm:$0xff]
    %v4739 = vld [vmem:[%s136 + $0x10] sm:$0xff]
    %v4740 = vld [vmem:[%s136 + $0x18] sm:$0xff]
    %v4741 = vld [vmem:[%s136 + $0x20] sm:$0xff]
    %v4742 = vld [vmem:[%s136 + $0x28] sm:$0xff]
    %v4743 = vld [vmem:[%s136 + $0x30] sm:$0xff]
    %v4744 = vld [vmem:[%s136 + $0x38] sm:$0xff]
    %v4745 = vld [vmem:[%s136 + $0x40] sm:$0xff]
    %v4746 = vld [vmem:[%s136 + $0x48] sm:$0xff]
    %v4747 = vld [vmem:[%s136 + $0x50] sm:$0xff]
    %v4748 = vld [vmem:[%s136 + $0x58] sm:$0xff]
    %v4749 = vld [vmem:[%s136 + $0x60] sm:$0xff]
    %v4750 = vld [vmem:[%s136 + $0x68] sm:$0xff]
    %v4751 = vld [vmem:[%s136 + $0x70] sm:$0xff]
    %v4752 = vld [vmem:[%s136 + $0x78] sm:$0xff]
    %v4753 = vmul.f32 %v4737, %v1796
    %v4754 = vmul.f32 %v4738, %v1796
    %v4755 = vmul.f32 %v4739, %v1800
    %v4756 = vmul.f32 %v4740, %v1800
    %v4757 = vmul.f32 %v4741, %v1804
    %v4758 = vmul.f32 %v4742, %v1804
    %v4759 = vmul.f32 %v4743, %v1808
    %v4760 = vmul.f32 %v4744, %v1808
    %v4761 = vmul.f32 %v4745, %v1812
    %v4762 = vmul.f32 %v4746, %v1812
    %v4763 = vmul.f32 %v4747, %v1816
    %v4764 = vmul.f32 %v4748, %v1816
    %v4765 = vmul.f32 %v4749, %v1820
    %v4766 = vmul.f32 %v4750, %v1820
    %v4767 = vmul.f32 %v4751, %v1824
    %v4768 = vmul.f32 %v4752, %v1824
    %v4769 = vlaneseq
    %v4770 = vshrl.u32 %v4769, 7
    %v4771 = vsub.s32 1, %v4770
    %v4772 = vrot.slane %v4662, %v4771
    %v4773 = vlaneseq
    %v4774 = vshrl.u32 %v4773, 7
    %v4775 = vsub.s32 1, %v4774
    %v4776 = vrot.slane %v4664, %v4775
    %v4777 = vmul.f32 %v4753, %v4772
    %v4778 = vmul.f32 %v4754, %v4776
    %v4779 = vmul.f32 %v4755, %v4772
    %v4780 = vmul.f32 %v4756, %v4776
    %v4781 = vmul.f32 %v4757, %v4772
    %v4782 = vmul.f32 %v4758, %v4776
    %v4783 = vmul.f32 %v4759, %v4772
    %v4784 = vmul.f32 %v4760, %v4776
    %v4785 = vmul.f32 %v4761, %v4772
    %v4786 = vmul.f32 %v4762, %v4776
    %v4787 = vmul.f32 %v4763, %v4772
    %v4788 = vmul.f32 %v4764, %v4776
    %v4789 = vmul.f32 %v4765, %v4772
    %v4790 = vmul.f32 %v4766, %v4776
    %v4791 = vmul.f32 %v4767, %v4772
    %v4792 = vmul.f32 %v4768, %v4776
    %s4793 = scalar_lea.vmem [#allocation9], 128
    %4794 = vst [vmem:[%s4793] sm:$0xff] %v4777
    %4795 = vst [vmem:[%s4793 + $0x8] sm:$0xff] %v4778
    %4796 = vst [vmem:[%s4793 + $0x10] sm:$0xff] %v4779
    %4797 = vst [vmem:[%s4793 + $0x18] sm:$0xff] %v4780
    %4798 = vst [vmem:[%s4793 + $0x20] sm:$0xff] %v4781
    %4799 = vst [vmem:[%s4793 + $0x28] sm:$0xff] %v4782
    %4800 = vst [vmem:[%s4793 + $0x30] sm:$0xff] %v4783
    %4801 = vst [vmem:[%s4793 + $0x38] sm:$0xff] %v4784
    %4802 = vst [vmem:[%s4793 + $0x40] sm:$0xff] %v4785
    %4803 = vst [vmem:[%s4793 + $0x48] sm:$0xff] %v4786
    %4804 = vst [vmem:[%s4793 + $0x50] sm:$0xff] %v4787
    %4805 = vst [vmem:[%s4793 + $0x58] sm:$0xff] %v4788
    %4806 = vst [vmem:[%s4793 + $0x60] sm:$0xff] %v4789
    %4807 = vst [vmem:[%s4793 + $0x68] sm:$0xff] %v4790
    %4808 = vst [vmem:[%s4793 + $0x70] sm:$0xff] %v4791
    %4809 = vst [vmem:[%s4793 + $0x78] sm:$0xff] %v4792
    // Predicated region
    $region26: #{tpu_custom_call.1} parent=1 // pred_check
      _
    $region27: #{tpu_custom_call.1} parent=1 // pred_check_branch
      %4811 = sbr.rel (0) target = $region29
    $region28: #{tpu_custom_call.1} parent=1 // pred_region
      %s4813 = ssub.s32 4096, 4096
      %4814 = vsyncadd [#allocation6], %s4813
      %s4815 = sshll.u32 [#allocation9], 4
      %s4816 = int_to_ptr.vmem [resolvable:$true] %s4815
      %4821 = dma.vmem_to_hbm [thread:$0]  %s4816, 4096, %s4, [#allocation6], 256, 256, 16
    $region29: #{tpu_custom_call.1} parent=1 // pred_fallthru
      _
    // Predicated region
    $region30: #{tpu_custom_call.1} parent=1 // pred_check
      _
    $region31: #{tpu_custom_call.1} parent=1 // pred_check_branch
      %4823 = sbr.rel (0) target = $region33
    $region32: #{tpu_custom_call.1} parent=1 // pred_region
      %4824 = dma.done [#allocation6], 4096
    $region33: #{tpu_custom_call.1} parent=1 // pred_fallthru
      _
    %4825 = vsyncpa [#allocation5], 1
    %4826 = vsyncpa [#allocation8], 1
    %4827 = vsyncpa [#allocation6], 1

// kernel: tpu_custom_call.1
$region0: #{tpu_custom_call.1}
  #allocation0 [shape = 'u32[]', space=smem, size = 0x4, offset = 0x4, fixed_abs, tag = 'smem constant byte address 0x4 - core index']
  #allocation1 [shape = 'u32[144,128]{1,0:T(1,128)}', space=vmem, size = 0x12000, scoped, tag = 'internal scratch']
  #allocation2 [shape = 'f32[64,4]{1,0:T(8,128)}', space=vmem, size = 0x8000, scoped, tag = 'scratch operand']
  #allocation3 [shape = 'f32[2,512]{1,0:T(2,128)}', space=vmem, size = 0x1000, scoped, tag = 'scratch operand']
  %s0 = inlined_call_operand.hbm [shape: f32[2,64,256], index: 0, kind: input, shape index: {}]
  %s1 = inlined_call_operand.vmem [shape: f32[8,64], index: 1, kind: input, shape index: {}]
  %s2 = inlined_call_operand.vmem [shape: f32[64,8], index: 2, kind: input, shape index: {}]
  %s3 = inlined_call_operand.hbm [shape: f32[512,256], index: 3, kind: input, shape index: {}]
  %s4 = inlined_call_operand.hbm [shape: f32[2,64,256], index: 4, kind: output, shape index: {}]
  %s5 = sld [smem:[#allocation0]]
  $region34: #{tpu_custom_call.1} parent=0
    _
  %s7 = ssub.s32 1, %s5
  %s8 = scalar_select 0, %s7, %s5
  $region1: #{tpu_custom_call.1} parent=0
    #allocation4 [shape = 'u8[131072]{0}', space=vmem, size = 0x20000, scoped, tag = 'input window, operand 0, single buffered']
    #allocation5 [shape = 's32[1]{0}', space=sflag, size = 0x4, scoped, tag = 'scoped memory for tpu_custom_call.1']
    #allocation6 [shape = 's32[1]{0}', space=sflag, size = 0x4, scoped, tag = 'scoped memory for tpu_custom_call.1']
    #allocation7 [shape = 'u8[524288]{0}', space=vmem, size = 0x80000, scoped, tag = 'input window, operand 3, single buffered']
    #allocation8 [shape = 's32[1]{0}', space=sflag, size = 0x4, scoped, tag = 'scoped memory for tpu_custom_call.1']
    #allocation9 [shape = 'u8[131072]{0}', space=vmem, size = 0x20000, scoped, tag = 'output window, operand 0, single buffered']
    %9 = vsyncpa [#allocation5], 0
    %10 = vsyncpa [#allocation8], 0
    %11 = vsyncpa [#allocation6], 0
    // Predicated region
    $region2: #{tpu_custom_call.1} parent=1 // pred_check
      _
    $region3: #{tpu_custom_call.1} parent=1 // pred_check_branch
      %13 = sbr.rel (0) target = $region5
    $region4: #{tpu_custom_call.1} parent=1 // pred_region
      %s15 = ssub.s32 4096, 4096
      %16 = vsyncadd [#allocation5], %s15
      %s17 = sshll.u32 [#allocation4], 4
      %s18 = int_to_ptr.vmem [resolvable:$true] %s17
      %23 = dma.hbm_to_vmem [thread:$0]  %s0, 4096, %s18, [#allocation5], 256, 256, 16
    $region5: #{tpu_custom_call.1} parent=1 // pred_fallthru
      _
    // Predicated region
    $region6: #{tpu_custom_call.1} parent=1 // pred_check
      _
    $region7: #{tpu_custom_call.1} parent=1 // pred_check_branch
      %25 = sbr.rel (0) target = $region9
    $region8: #{tpu_custom_call.1} parent=1 // pred_region
      _
    $region9: #{tpu_custom_call.1} parent=1 // pred_fallthru
      _
    // Predicated region
    $region10: #{tpu_custom_call.1} parent=1 // pred_check
      _
    $region11: #{tpu_custom_call.1} parent=1 // pred_check_branch
      %27 = sbr.rel (0) target = $region13
    $region12: #{tpu_custom_call.1} parent=1 // pred_region
      _
    $region13: #{tpu_custom_call.1} parent=1 // pred_fallthru
      _
    // Predicated region
    $region14: #{tpu_custom_call.1} parent=1 // pred_check
      _
    $region15: #{tpu_custom_call.1} parent=1 // pred_check_branch
      %29 = sbr.rel (0) target = $region17
    $region16: #{tpu_custom_call.1} parent=1 // pred_region
      %s31 = ssub.s32 16384, 16384
      %32 = vsyncadd [#allocation8], %s31
      %s33 = sshll.u32 [#allocation7], 4
      %s34 = int_to_ptr.vmem [resolvable:$true] %s33
      %39 = dma.hbm_to_vmem [thread:$0]  %s3, 16384, %s34, [#allocation8], 256, 256, 16
    $region17: #{tpu_custom_call.1} parent=1 // pred_fallthru
      _
    // Predicated region
    $region18: #{tpu_custom_call.1} parent=1 // pred_check
      _
    $region19: #{tpu_custom_call.1} parent=1 // pred_check_branch
      %41 = sbr.rel (0) target = $region21
    $region20: #{tpu_custom_call.1} parent=1 // pred_region
      %42 = dma.done [#allocation5], 4096
    $region21: #{tpu_custom_call.1} parent=1 // pred_fallthru
      _
    // Predicated region
    $region22: #{tpu_custom_call.1} parent=1 // pred_check
      _
    $region23: #{tpu_custom_call.1} parent=1 // pred_check_branch
      %44 = sbr.rel (0) target = $region25
    $region24: #{tpu_custom_call.1} parent=1 // pred_region
      %45 = dma.done [#allocation8], 16384
    $region25: #{tpu_custom_call.1} parent=1 // pred_fallthru
      _
    %v46 = vld [vmem:[#allocation4] sm:$0xff]
    %v47 = vld [vmem:[#allocation4 + $0x8] sm:$0xff]
    %v48 = vld [vmem:[#allocation4 + $0x10] sm:$0xff]
    %v49 = vld [vmem:[#allocation4 + $0x18] sm:$0xff]
    %v50 = vld [vmem:[#allocation4 + $0x20] sm:$0xff]
    %v51 = vld [vmem:[#allocation4 + $0x28] sm:$0xff]
    %v52 = vld [vmem:[#allocation4 + $0x30] sm:$0xff]
    %v53 = vld [vmem:[#allocation4 + $0x38] sm:$0xff]
    %v54 = vld [vmem:[#allocation4 + $0x40] sm:$0xff]
    %v55 = vld [vmem:[#allocation4 + $0x48] sm:$0xff]
    %v56 = vld [vmem:[#allocation4 + $0x50] sm:$0xff]
    %v57 = vld [vmem:[#allocation4 + $0x58] sm:$0xff]
    %v58 = vld [vmem:[#allocation4 + $0x60] sm:$0xff]
    %v59 = vld [vmem:[#allocation4 + $0x68] sm:$0xff]
    %v60 = vld [vmem:[#allocation4 + $0x70] sm:$0xff]
    %v61 = vld [vmem:[#allocation4 + $0x78] sm:$0xff]
    %v62 = vadd.f32 %v46, %v47
    %63 = vadd.xlane.f32.xlu0 %v62
    %v64 = vpop.xlane.xlu0 %63
    %v65 = vadd.f32 %v48, %v49
    %66 = vadd.xlane.f32.xlu0 %v65
    %v67 = vpop.xlane.xlu0 %66
    %v68 = vadd.f32 %v50, %v51
    %69 = vadd.xlane.f32.xlu0 %v68
    %v70 = vpop.xlane.xlu0 %69
    %v71 = vadd.f32 %v52, %v53
    %72 = vadd.xlane.f32.xlu0 %v71
    %v73 = vpop.xlane.xlu0 %72
    %v74 = vadd.f32 %v54, %v55
    %75 = vadd.xlane.f32.xlu0 %v74
    %v76 = vpop.xlane.xlu0 %75
    %v77 = vadd.f32 %v56, %v57
    %78 = vadd.xlane.f32.xlu0 %v77
    %v79 = vpop.xlane.xlu0 %78
    %v80 = vadd.f32 %v58, %v59
    %81 = vadd.xlane.f32.xlu0 %v80
    %v82 = vpop.xlane.xlu0 %81
    %v83 = vadd.f32 %v60, %v61
    %84 = vadd.xlane.f32.xlu0 %v83
    %v85 = vpop.xlane.xlu0 %84
    %v86 = vmul.f32 %v64, 0.00390625
    %v87 = vmul.f32 %v67, 0.00390625
    %v88 = vmul.f32 %v70, 0.00390625
    %v89 = vmul.f32 %v73, 0.00390625
    %v90 = vmul.f32 %v76, 0.00390625
    %v91 = vmul.f32 %v79, 0.00390625
    %v92 = vmul.f32 %v82, 0.00390625
    %v93 = vmul.f32 %v85, 0.00390625
    %vm94 = vcmask 7168
    %95 = vst.msk [vmem:[#allocation2] sm:$0xff] %vm94, %v86
    %96 = vst.msk [vmem:[#allocation2 + $0x8] sm:$0xff] %vm94, %v87
    %97 = vst.msk [vmem:[#allocation2 + $0x10] sm:$0xff] %vm94, %v88
    %98 = vst.msk [vmem:[#allocation2 + $0x18] sm:$0xff] %vm94, %v89
    %99 = vst.msk [vmem:[#allocation2 + $0x20] sm:$0xff] %vm94, %v90
    %100 = vst.msk [vmem:[#allocation2 + $0x28] sm:$0xff] %vm94, %v91
    %101 = vst.msk [vmem:[#allocation2 + $0x30] sm:$0xff] %vm94, %v92
    %102 = vst.msk [vmem:[#allocation2 + $0x38] sm:$0xff] %vm94, %v93
    %v103 = vmax.f32 %v46, %v47
    %104 = vmax.xlane.f32.xlu0 %v103
    %v105 = vpop.xlane.xlu0 %104
    %v106 = vmax.f32 %v48, %v49
    %107 = vmax.xlane.f32.xlu0 %v106
    %v108 = vpop.xlane.xlu0 %107
    %v109 = vmax.f32 %v50, %v51
    %110 = vmax.xlane.f32.xlu0 %v109
    %v111 = vpop.xlane.xlu0 %110
    %v112 = vmax.f32 %v52, %v53
    %113 = vmax.xlane.f32.xlu0 %v112
    %v114 = vpop.xlane.xlu0 %113
    %v115 = vmax.f32 %v54, %v55
    %116 = vmax.xlane.f32.xlu0 %v115
    %v117 = vpop.xlane.xlu0 %116
    %v118 = vmax.f32 %v56, %v57
    %119 = vmax.xlane.f32.xlu0 %v118
    %v120 = vpop.xlane.xlu0 %119
    %v121 = vmax.f32 %v58, %v59
    %122 = vmax.xlane.f32.xlu0 %v121
    %v123 = vpop.xlane.xlu0 %122
    %v124 = vmax.f32 %v60, %v61
    %125 = vmax.xlane.f32.xlu0 %v124
    %v126 = vpop.xlane.xlu0 %125
    %vm127 = vcmask 23568
    %128 = vst.msk [vmem:[#allocation2] sm:$0xff] %vm127, %v105
    %129 = vst.msk [vmem:[#allocation2 + $0x8] sm:$0xff] %vm127, %v108
    %130 = vst.msk [vmem:[#allocation2 + $0x10] sm:$0xff] %vm127, %v111
    %131 = vst.msk [vmem:[#allocation2 + $0x18] sm:$0xff] %vm127, %v114
    %132 = vst.msk [vmem:[#allocation2 + $0x20] sm:$0xff] %vm127, %v117
    %133 = vst.msk [vmem:[#allocation2 + $0x28] sm:$0xff] %vm127, %v120
    %134 = vst.msk [vmem:[#allocation2 + $0x30] sm:$0xff] %vm127, %v123
    %135 = vst.msk [vmem:[#allocation2 + $0x38] sm:$0xff] %vm127, %v126
    %s136 = scalar_lea.vmem [#allocation4], 128
    %v137 = vld [vmem:[%s136] sm:$0xff]
    %v138 = vld [vmem:[%s136 + $0x8] sm:$0xff]
    %v139 = vld [vmem:[%s136 + $0x10] sm:$0xff]
    %v140 = vld [vmem:[%s136 + $0x18] sm:$0xff]
    %v141 = vld [vmem:[%s136 + $0x20] sm:$0xff]
    %v142 = vld [vmem:[%s136 + $0x28] sm:$0xff]
    %v143 = vld [vmem:[%s136 + $0x30] sm:$0xff]
    %v144 = vld [vmem:[%s136 + $0x38] sm:$0xff]
    %v145 = vld [vmem:[%s136 + $0x40] sm:$0xff]
    %v146 = vld [vmem:[%s136 + $0x48] sm:$0xff]
    %v147 = vld [vmem:[%s136 + $0x50] sm:$0xff]
    %v148 = vld [vmem:[%s136 + $0x58] sm:$0xff]
    %v149 = vld [vmem:[%s136 + $0x60] sm:$0xff]
    %v150 = vld [vmem:[%s136 + $0x68] sm:$0xff]
    %v151 = vld [vmem:[%s136 + $0x70] sm:$0xff]
    %v152 = vld [vmem:[%s136 + $0x78] sm:$0xff]
    %v153 = vadd.f32 %v137, %v138
    %154 = vadd.xlane.f32.xlu0 %v153
    %v155 = vpop.xlane.xlu0 %154
    %v156 = vadd.f32 %v139, %v140
    %157 = vadd.xlane.f32.xlu0 %v156
    %v158 = vpop.xlane.xlu0 %157
    %v159 = vadd.f32 %v141, %v142
    %160 = vadd.xlane.f32.xlu0 %v159
    %v161 = vpop.xlane.xlu0 %160
    %v162 = vadd.f32 %v143, %v144
    %163 = vadd.xlane.f32.xlu0 %v162
    %v164 = vpop.xlane.xlu0 %163
    %v165 = vadd.f32 %v145, %v146
    %166 = vadd.xlane.f32.xlu0 %v165
    %v167 = vpop.xlane.xlu0 %166
    %v168 = vadd.f32 %v147, %v148
    %169 = vadd.xlane.f32.xlu0 %v168
    %v170 = vpop.xlane.xlu0 %169
    %v171 = vadd.f32 %v149, %v150
    %172 = vadd.xlane.f32.xlu0 %v171
    %v173 = vpop.xlane.xlu0 %172
    %v174 = vadd.f32 %v151, %v152
    %175 = vadd.xlane.f32.xlu0 %v174
    %v176 = vpop.xlane.xlu0 %175
    %v177 = vmul.f32 %v155, 0.00390625
    %v178 = vmul.f32 %v158, 0.00390625
    %v179 = vmul.f32 %v161, 0.00390625
    %v180 = vmul.f32 %v164, 0.00390625
    %v181 = vmul.f32 %v167, 0.00390625
    %v182 = vmul.f32 %v170, 0.00390625
    %v183 = vmul.f32 %v173, 0.00390625
    %v184 = vmul.f32 %v176, 0.00390625
    %vm185 = vcmask 15368
    %186 = vst.msk [vmem:[#allocation2] sm:$0xff] %vm185, %v177
    %187 = vst.msk [vmem:[#allocation2 + $0x8] sm:$0xff] %vm185, %v178
    %188 = vst.msk [vmem:[#allocation2 + $0x10] sm:$0xff] %vm185, %v179
    %189 = vst.msk [vmem:[#allocation2 + $0x18] sm:$0xff] %vm185, %v180
    %190 = vst.msk [vmem:[#allocation2 + $0x20] sm:$0xff] %vm185, %v181
    %191 = vst.msk [vmem:[#allocation2 + $0x28] sm:$0xff] %vm185, %v182
    %192 = vst.msk [vmem:[#allocation2 + $0x30] sm:$0xff] %vm185, %v183
    %193 = vst.msk [vmem:[#allocation2 + $0x38] sm:$0xff] %vm185, %v184
    %v194 = vmax.f32 %v137, %v138
    %195 = vmax.xlane.f32.xlu0 %v194
    %v196 = vpop.xlane.xlu0 %195
    %v197 = vmax.f32 %v139, %v140
    %198 = vmax.xlane.f32.xlu0 %v197
    %v199 = vpop.xlane.xlu0 %198
    %v200 = vmax.f32 %v141, %v142
    %201 = vmax.xlane.f32.xlu0 %v200
    %v202 = vpop.xlane.xlu0 %201
    %v203 = vmax.f32 %v143, %v144
    %204 = vmax.xlane.f32.xlu0 %v203
    %v205 = vpop.xlane.xlu0 %204
    %v206 = vmax.f32 %v145, %v146
    %207 = vmax.xlane.f32.xlu0 %v206
    %v208 = vpop.xlane.xlu0 %207
    %v209 = vmax.f32 %v147, %v148
    %210 = vmax.xlane.f32.xlu0 %v209
    %v211 = vpop.xlane.xlu0 %210
    %v212 = vmax.f32 %v149, %v150
    %213 = vmax.xlane.f32.xlu0 %v212
    %v214 = vpop.xlane.xlu0 %213
    %v215 = vmax.f32 %v151, %v152
    %216 = vmax.xlane.f32.xlu0 %v215
    %v217 = vpop.xlane.xlu0 %216
    %vm218 = vcmask 31768
    %219 = vst.msk [vmem:[#allocation2] sm:$0xff] %vm218, %v196
    %220 = vst.msk [vmem:[#allocation2 + $0x8] sm:$0xff] %vm218, %v199
    %221 = vst.msk [vmem:[#allocation2 + $0x10] sm:$0xff] %vm218, %v202
    %222 = vst.msk [vmem:[#allocation2 + $0x18] sm:$0xff] %vm218, %v205
    %223 = vst.msk [vmem:[#allocation2 + $0x20] sm:$0xff] %vm218, %v208
    %224 = vst.msk [vmem:[#allocation2 + $0x28] sm:$0xff] %vm218, %v211
    %225 = vst.msk [vmem:[#allocation2 + $0x30] sm:$0xff] %vm218, %v214
    %226 = vst.msk [vmem:[#allocation2 + $0x38] sm:$0xff] %vm218, %v217
    %v227 = vld [vmem:[%s1] sm:$0xff]
    %v228 = vld [vmem:[#allocation2] sm:$0xff]
    %v229 = vld [vmem:[#allocation2 + $0x8] sm:$0xff]
    %v230 = vld [vmem:[#allocation2 + $0x10] sm:$0xff]
    %v231 = vld [vmem:[#allocation2 + $0x18] sm:$0xff]
    %v232 = vld [vmem:[#allocation2 + $0x20] sm:$0xff]
    %v233 = vld [vmem:[#allocation2 + $0x28] sm:$0xff]
    %v234 = vld [vmem:[#allocation2 + $0x30] sm:$0xff]
    %v235 = vld [vmem:[#allocation2 + $0x38] sm:$0xff]
    %vm236 = vcmask 523264
    %v238 = vsel %vm236, %v227, 0
    %240 = vmatprep.subr.mxu0 0.0
    %v241 = vand.u32 %v228, 4294901760
    %242 = vmatpush1.msra.mxu0 %v241
    %243 = vmatprep.subr.mxu0 0.0
    %v244 = vand.u32 %v229, 4294901760
    %245 = vmatpush1.msra.mxu0 %v244
    %246 = vmatprep.subr.mxu0 0.0
    %v247 = vand.u32 %v230, 4294901760
    %248 = vmatpush1.msra.mxu0 %v247
    %249 = vmatprep.subr.mxu0 0.0
    %v250 = vand.u32 %v231, 4294901760
    %251 = vmatpush1.msra.mxu0 %v250
    %252 = vmatprep.subr.mxu0 0.0
    %v253 = vand.u32 %v232, 4294901760
    %254 = vmatpush1.msra.mxu0 %v253
    %255 = vmatprep.subr.mxu0 0.0
    %v256 = vand.u32 %v233, 4294901760
    %257 = vmatpush1.msra.mxu0 %v256
    %258 = vmatprep.subr.mxu0 0.0
    %v259 = vand.u32 %v234, 4294901760
    %260 = vmatpush1.msra.mxu0 %v259
    %261 = vmatprep.subr.mxu0 0.0
    %v262 = vand.u32 %v235, 4294901760
    %263 = vmatpush1.msra.mxu0 %v262
    %264 = vmatprep.subr.mxu0 0.0
    %265 = vmatpush1.msra.mxu0 0.0
    %266 = vmatprep.subr.mxu0 0.0
    %267 = vmatpush1.msra.mxu0 0.0
    %268 = vmatprep.subr.mxu0 0.0
    %269 = vmatpush1.msra.mxu0 0.0
    %270 = vmatprep.subr.mxu0 0.0
    %271 = vmatpush1.msra.mxu0 0.0
    %272 = vmatprep.subr.mxu0 0.0
    %273 = vmatpush1.msra.mxu0 0.0
    %274 = vmatprep.subr.mxu0 0.0
    %275 = vmatpush1.msra.mxu0 0.0
    %276 = vmatprep.subr.mxu0 0.0
    %277 = vmatpush1.msra.mxu0 0.0
    %278 = vmatprep.subr.mxu0 0.0
    %279 = vmatpush1.msra.mxu0 0.0
    %280 = vmatprep.subr.mxu0 0.0
    %281 = vmatpush1.msra.mxu0 0.0
    %282 = vmatprep.subr.mxu0 0.0
    %283 = vmatpush1.msra.mxu0 0.0
    %284 = vmatprep.subr.mxu0 0.0
    %285 = vmatpush1.msra.mxu0 0.0
    %286 = vmatprep.subr.mxu0 0.0
    %287 = vmatpush1.msra.mxu0 0.0
    %288 = vmatprep.subr.mxu0 0.0
    %289 = vmatpush1.msra.mxu0 0.0
    %290 = vmatprep.subr.mxu0 0.0
    %291 = vmatpush1.msra.mxu0 0.0
    %292 = vmatprep.subr.mxu0 0.0
    %293 = vmatpush1.msra.mxu0 0.0
    %294 = vmatprep.subr.mxu0 0.0
    %295 = vmatpush1.msra.mxu0 0.0
    %296 = vmatprep.subr.mxu0 0.0
    %297 = vmatpush1.msra.mxu0 0.0
    %298 = vmatprep.subr.mxu0 0.0
    %299 = vmatpush1.msra.mxu0 0.0
    %300 = vmatprep.subr.mxu0 0.0
    %301 = vmatpush1.msra.mxu0 0.0
    %302 = vmatprep.subr.mxu0 0.0
    %303 = vmatpush1.msra.mxu0 0.0
    %304 = vmatprep.subr.mxu0 0.0
    %305 = vmatpush1.msra.mxu0 0.0
    %306 = vmatprep.subr.mxu0 0.0
    %307 = vmatpush1.msra.mxu0 0.0
    %308 = vmatprep.subr.mxu0 0.0
    %309 = vmatpush1.msra.mxu0 0.0
    %310 = vmatprep.subr.mxu0 0.0
    %311 = vmatpush1.msra.mxu0 0.0
    %312 = vmatprep.mubr.f32.mxu0 0.0
    %v313 = vand.u32 %v238, 4294901760
    %v314 = vsub.f32 %v238, %v313
    %v315 = vand.u32 %v314, 4294901760
    %v316 = vsub.f32 %v314, %v315
    %v317 = vand.u32 %v316, 4294901760
    %318 = vmatmul.mubr.f32.gmra.mrb[0].mxu0 %v317
    %v319 = vpop.f32.mrb[0].mxu0
    %v320 = vadd.f32 0.0, %v319
    %v321 = vpop.f32.mrb[0].mxu0
    %322 = vdwg.mxu0
    %323 = vmatprep.subr.mxu0 0.0
    %v324 = vand.u32 %v228, 4294901760
    %v325 = vsub.f32 %v228, %v324
    %v326 = vand.u32 %v325, 4294901760
    %v327 = vsub.f32 %v325, %v326
    %v328 = vand.u32 %v327, 4294901760
    %329 = vmatpush1.msra.mxu0 %v328
    %330 = vmatprep.subr.mxu0 0.0
    %v331 = vand.u32 %v229, 4294901760
    %v332 = vsub.f32 %v229, %v331
    %v333 = vand.u32 %v332, 4294901760
    %v334 = vsub.f32 %v332, %v333
    %v335 = vand.u32 %v334, 4294901760
    %336 = vmatpush1.msra.mxu0 %v335
    %337 = vmatprep.subr.mxu0 0.0
    %v338 = vand.u32 %v230, 4294901760
    %v339 = vsub.f32 %v230, %v338
    %v340 = vand.u32 %v339, 4294901760
    %v341 = vsub.f32 %v339, %v340
    %v342 = vand.u32 %v341, 4294901760
    %343 = vmatpush1.msra.mxu0 %v342
    %344 = vmatprep.subr.mxu0 0.0
    %v345 = vand.u32 %v231, 4294901760
    %v346 = vsub.f32 %v231, %v345
    %v347 = vand.u32 %v346, 4294901760
    %v348 = vsub.f32 %v346, %v347
    %v349 = vand.u32 %v348, 4294901760
    %350 = vmatpush1.msra.mxu0 %v349
    %351 = vmatprep.subr.mxu0 0.0
    %v352 = vand.u32 %v232, 4294901760
    %v353 = vsub.f32 %v232, %v352
    %v354 = vand.u32 %v353, 4294901760
    %v355 = vsub.f32 %v353, %v354
    %v356 = vand.u32 %v355, 4294901760
    %357 = vmatpush1.msra.mxu0 %v356
    %358 = vmatprep.subr.mxu0 0.0
    %v359 = vand.u32 %v233, 4294901760
    %v360 = vsub.f32 %v233, %v359
    %v361 = vand.u32 %v360, 4294901760
    %v362 = vsub.f32 %v360, %v361
    %v363 = vand.u32 %v362, 4294901760
    %364 = vmatpush1.msra.mxu0 %v363
    %365 = vmatprep.subr.mxu0 0.0
    %v366 = vand.u32 %v234, 4294901760
    %v367 = vsub.f32 %v234, %v366
    %v368 = vand.u32 %v367, 4294901760
    %v369 = vsub.f32 %v367, %v368
    %v370 = vand.u32 %v369, 4294901760
    %371 = vmatpush1.msra.mxu0 %v370
    %372 = vmatprep.subr.mxu0 0.0
    %v373 = vand.u32 %v235, 4294901760
    %v374 = vsub.f32 %v235, %v373
    %v375 = vand.u32 %v374, 4294901760
    %v376 = vsub.f32 %v374, %v375
    %v377 = vand.u32 %v376, 4294901760
    %378 = vmatpush1.msra.mxu0 %v377
    %379 = vmatprep.subr.mxu0 0.0
    %380 = vmatpush1.msra.mxu0 0.0
    %381 = vmatprep.subr.mxu0 0.0
    %382 = vmatpush1.msra.mxu0 0.0
    %383 = vmatprep.subr.mxu0 0.0
    %384 = vmatpush1.msra.mxu0 0.0
    %385 = vmatprep.subr.mxu0 0.0
    %386 = vmatpush1.msra.mxu0 0.0
    %387 = vmatprep.subr.mxu0 0.0
    %388 = vmatpush1.msra.mxu0 0.0
    %389 = vmatprep.subr.mxu0 0.0
    %390 = vmatpush1.msra.mxu0 0.0
    %391 = vmatprep.subr.mxu0 0.0
    %392 = vmatpush1.msra.mxu0 0.0
    %393 = vmatprep.subr.mxu0 0.0
    %394 = vmatpush1.msra.mxu0 0.0
    %395 = vmatprep.subr.mxu0 0.0
    %396 = vmatpush1.msra.mxu0 0.0
    %397 = vmatprep.subr.mxu0 0.0
    %398 = vmatpush1.msra.mxu0 0.0
    %399 = vmatprep.subr.mxu0 0.0
    %400 = vmatpush1.msra.mxu0 0.0
    %401 = vmatprep.subr.mxu0 0.0
    %402 = vmatpush1.msra.mxu0 0.0
    %403 = vmatprep.subr.mxu0 0.0
    %404 = vmatpush1.msra.mxu0 0.0
    %405 = vmatprep.subr.mxu0 0.0
    %406 = vmatpush1.msra.mxu0 0.0
    %407 = vmatprep.subr.mxu0 0.0
    %408 = vmatpush1.msra.mxu0 0.0
    %409 = vmatprep.subr.mxu0 0.0
    %410 = vmatpush1.msra.mxu0 0.0
    %411 = vmatprep.subr.mxu0 0.0
    %412 = vmatpush1.msra.mxu0 0.0
    %413 = vmatprep.subr.mxu0 0.0
    %414 = vmatpush1.msra.mxu0 0.0
    %415 = vmatprep.subr.mxu0 0.0
    %416 = vmatpush1.msra.mxu0 0.0
    %417 = vmatprep.subr.mxu0 0.0
    %418 = vmatpush1.msra.mxu0 0.0
    %419 = vmatprep.subr.mxu0 0.0
    %420 = vmatpush1.msra.mxu0 0.0
    %421 = vmatprep.subr.mxu0 0.0
    %422 = vmatpush1.msra.mxu0 0.0
    %423 = vmatprep.subr.mxu0 0.0
    %424 = vmatpush1.msra.mxu0 0.0
    %425 = vmatprep.subr.mxu0 0.0
    %426 = vmatpush1.msra.mxu0 0.0
    %427 = vmatprep.mubr.f32.mxu0 0.0
    %v428 = vand.u32 %v238, 4294901760
    %429 = vmatmul.mubr.f32.gmra.mrb[0].mxu0 %v428
    %v430 = vpop.f32.mrb[0].mxu0
    %v431 = vadd.f32 %v320, %v430
    %v432 = vpop.f32.mrb[0].mxu0
    %433 = vdwg.mxu0
    %434 = vmatprep.subr.mxu0 0.0
    %v435 = vand.u32 %v228, 4294901760
    %v436 = vsub.f32 %v228, %v435
    %437 = vmatpush1.msra.mxu0 %v436
    %438 = vmatprep.subr.mxu0 0.0
    %v439 = vand.u32 %v229, 4294901760
    %v440 = vsub.f32 %v229, %v439
    %441 = vmatpush1.msra.mxu0 %v440
    %442 = vmatprep.subr.mxu0 0.0
    %v443 = vand.u32 %v230, 4294901760
    %v444 = vsub.f32 %v230, %v443
    %445 = vmatpush1.msra.mxu0 %v444
    %446 = vmatprep.subr.mxu0 0.0
    %v447 = vand.u32 %v231, 4294901760
    %v448 = vsub.f32 %v231, %v447
    %449 = vmatpush1.msra.mxu0 %v448
    %450 = vmatprep.subr.mxu0 0.0
    %v451 = vand.u32 %v232, 4294901760
    %v452 = vsub.f32 %v232, %v451
    %453 = vmatpush1.msra.mxu0 %v452
    %454 = vmatprep.subr.mxu0 0.0
    %v455 = vand.u32 %v233, 4294901760
    %v456 = vsub.f32 %v233, %v455
    %457 = vmatpush1.msra.mxu0 %v456
    %458 = vmatprep.subr.mxu0 0.0
    %v459 = vand.u32 %v234, 4294901760
    %v460 = vsub.f32 %v234, %v459
    %461 = vmatpush1.msra.mxu0 %v460
    %462 = vmatprep.subr.mxu0 0.0
    %v463 = vand.u32 %v235, 4294901760
    %v464 = vsub.f32 %v235, %v463
    %465 = vmatpush1.msra.mxu0 %v464
    %466 = vmatprep.subr.mxu0 0.0
    %467 = vmatpush1.msra.mxu0 0.0
    %468 = vmatprep.subr.mxu0 0.0
    %469 = vmatpush1.msra.mxu0 0.0
    %470 = vmatprep.subr.mxu0 0.0
    %471 = vmatpush1.msra.mxu0 0.0
    %472 = vmatprep.subr.mxu0 0.0
    %473 = vmatpush1.msra.mxu0 0.0
    %474 = vmatprep.subr.mxu0 0.0
    %475 = vmatpush1.msra.mxu0 0.0
    %476 = vmatprep.subr.mxu0 0.0
    %477 = vmatpush1.msra.mxu0 0.0
    %478 = vmatprep.subr.mxu0 0.0
    %479 = vmatpush1.msra.mxu0 0.0
    %480 = vmatprep.subr.mxu0 0.0
    %481 = vmatpush1.msra.mxu0 0.0
    %482 = vmatprep.subr.mxu0 0.0
    %483 = vmatpush1.msra.mxu0 0.0
    %484 = vmatprep.subr.mxu0 0.0
    %485 = vmatpush1.msra.mxu0 0.0
    %486 = vmatprep.subr.mxu0 0.0
    %487 = vmatpush1.msra.mxu0 0.0
    %488 = vmatprep.subr.mxu0 0.0
    %489 = vmatpush1.msra.mxu0 0.0
    %490 = vmatprep.subr.mxu0 0.0
    %491 = vmatpush1.msra.mxu0 0.0
    %492 = vmatprep.subr.mxu0 0.0
    %493 = vmatpush1.msra.mxu0 0.0
    %494 = vmatprep.subr.mxu0 0.0
    %495 = vmatpush1.msra.mxu0 0.0
    %496 = vmatprep.subr.mxu0 0.0
    %497 = vmatpush1.msra.mxu0 0.0
    %498 = vmatprep.subr.mxu0 0.0
    %499 = vmatpush1.msra.mxu0 0.0
    %500 = vmatprep.subr.mxu0 0.0
    %501 = vmatpush1.msra.mxu0 0.0
    %502 = vmatprep.subr.mxu0 0.0
    %503 = vmatpush1.msra.mxu0 0.0
    %504 = vmatprep.subr.mxu0 0.0
    %505 = vmatpush1.msra.mxu0 0.0
    %506 = vmatprep.subr.mxu0 0.0
    %507 = vmatpush1.msra.mxu0 0.0
    %508 = vmatprep.subr.mxu0 0.0
    %509 = vmatpush1.msra.mxu0 0.0
    %510 = vmatprep.subr.mxu0 0.0
    %511 = vmatpush1.msra.mxu0 0.0
    %512 = vmatprep.subr.mxu0 0.0
    %513 = vmatpush1.msra.mxu0 0.0
    %514 = vmatprep.mubr.f32.mxu0 0.0
    %v515 = vand.u32 %v238, 4294901760
    %v516 = vsub.f32 %v238, %v515
    %517 = vmatmul.mubr.f32.gmra.mrb[0].mxu0 %v516
    %v518 = vpop.f32.mrb[0].mxu0
    %v519 = vadd.f32 %v431, %v518
    %v520 = vpop.f32.mrb[0].mxu0
    %521 = vdwg.mxu0
    %522 = vmatprep.subr.mxu0 0.0
    %v523 = vand.u32 %v228, 4294901760
    %524 = vmatpush1.msra.mxu0 %v523
    %525 = vmatprep.subr.mxu0 0.0
    %v526 = vand.u32 %v229, 4294901760
    %527 = vmatpush1.msra.mxu0 %v526
    %528 = vmatprep.subr.mxu0 0.0
    %v529 = vand.u32 %v230, 4294901760
    %530 = vmatpush1.msra.mxu0 %v529
    %531 = vmatprep.subr.mxu0 0.0
    %v532 = vand.u32 %v231, 4294901760
    %533 = vmatpush1.msra.mxu0 %v532
    %534 = vmatprep.subr.mxu0 0.0
    %v535 = vand.u32 %v232, 4294901760
    %536 = vmatpush1.msra.mxu0 %v535
    %537 = vmatprep.subr.mxu0 0.0
    %v538 = vand.u32 %v233, 4294901760
    %539 = vmatpush1.msra.mxu0 %v538
    %540 = vmatprep.subr.mxu0 0.0
    %v541 = vand.u32 %v234, 4294901760
    %542 = vmatpush1.msra.mxu0 %v541
    %543 = vmatprep.subr.mxu0 0.0
    %v544 = vand.u32 %v235, 4294901760
    %545 = vmatpush1.msra.mxu0 %v544
    %546 = vmatprep.subr.mxu0 0.0
    %547 = vmatpush1.msra.mxu0 0.0
    %548 = vmatprep.subr.mxu0 0.0
    %549 = vmatpush1.msra.mxu0 0.0
    %550 = vmatprep.subr.mxu0 0.0
    %551 = vmatpush1.msra.mxu0 0.0
    %552 = vmatprep.subr.mxu0 0.0
    %553 = vmatpush1.msra.mxu0 0.0
    %554 = vmatprep.subr.mxu0 0.0
    %555 = vmatpush1.msra.mxu0 0.0
    %556 = vmatprep.subr.mxu0 0.0
    %557 = vmatpush1.msra.mxu0 0.0
    %558 = vmatprep.subr.mxu0 0.0
    %559 = vmatpush1.msra.mxu0 0.0
    %560 = vmatprep.subr.mxu0 0.0
    %561 = vmatpush1.msra.mxu0 0.0
    %562 = vmatprep.subr.mxu0 0.0
    %563 = vmatpush1.msra.mxu0 0.0
    %564 = vmatprep.subr.mxu0 0.0
    %565 = vmatpush1.msra.mxu0 0.0
    %566 = vmatprep.subr.mxu0 0.0
    %567 = vmatpush1.msra.mxu0 0.0
    %568 = vmatprep.subr.mxu0 0.0
    %569 = vmatpush1.msra.mxu0 0.0
    %570 = vmatprep.subr.mxu0 0.0
    %571 = vmatpush1.msra.mxu0 0.0
    %572 = vmatprep.subr.mxu0 0.0
    %573 = vmatpush1.msra.mxu0 0.0
    %574 = vmatprep.subr.mxu0 0.0
    %575 = vmatpush1.msra.mxu0 0.0
    %576 = vmatprep.subr.mxu0 0.0
    %577 = vmatpush1.msra.mxu0 0.0
    %578 = vmatprep.subr.mxu0 0.0
    %579 = vmatpush1.msra.mxu0 0.0
    %580 = vmatprep.subr.mxu0 0.0
    %581 = vmatpush1.msra.mxu0 0.0
    %582 = vmatprep.subr.mxu0 0.0
    %583 = vmatpush1.msra.mxu0 0.0
    %584 = vmatprep.subr.mxu0 0.0
    %585 = vmatpush1.msra.mxu0 0.0
    %586 = vmatprep.subr.mxu0 0.0
    %587 = vmatpush1.msra.mxu0 0.0
    %588 = vmatprep.subr.mxu0 0.0
    %589 = vmatpush1.msra.mxu0 0.0
    %590 = vmatprep.subr.mxu0 0.0
    %591 = vmatpush1.msra.mxu0 0.0
    %592 = vmatprep.subr.mxu0 0.0
    %593 = vmatpush1.msra.mxu0 0.0
    %594 = vmatprep.mubr.f32.mxu0 0.0
    %v595 = vand.u32 %v238, 4294901760
    %v596 = vsub.f32 %v238, %v595
    %v597 = vand.u32 %v596, 4294901760
    %598 = vmatmul.mubr.f32.gmra.mrb[0].mxu0 %v597
    %v599 = vpop.f32.mrb[0].mxu0
    %v600 = vadd.f32 %v519, %v599
    %v601 = vpop.f32.mrb[0].mxu0
    %602 = vdwg.mxu0
    %603 = vmatprep.subr.mxu0 0.0
    %v604 = vand.u32 %v228, 4294901760
    %v605 = vsub.f32 %v228, %v604
    %v606 = vand.u32 %v605, 4294901760
    %607 = vmatpush1.msra.mxu0 %v606
    %608 = vmatprep.subr.mxu0 0.0
    %v609 = vand.u32 %v229, 4294901760
    %v610 = vsub.f32 %v229, %v609
    %v611 = vand.u32 %v610, 4294901760
    %612 = vmatpush1.msra.mxu0 %v611
    %613 = vmatprep.subr.mxu0 0.0
    %v614 = vand.u32 %v230, 4294901760
    %v615 = vsub.f32 %v230, %v614
    %v616 = vand.u32 %v615, 4294901760
    %617 = vmatpush1.msra.mxu0 %v616
    %618 = vmatprep.subr.mxu0 0.0
    %v619 = vand.u32 %v231, 4294901760
    %v620 = vsub.f32 %v231, %v619
    %v621 = vand.u32 %v620, 4294901760
    %622 = vmatpush1.msra.mxu0 %v621
    %623 = vmatprep.subr.mxu0 0.0
    %v624 = vand.u32 %v232, 4294901760
    %v625 = vsub.f32 %v232, %v624
    %v626 = vand.u32 %v625, 4294901760
    %627 = vmatpush1.msra.mxu0 %v626
    %628 = vmatprep.subr.mxu0 0.0
    %v629 = vand.u32 %v233, 4294901760
    %v630 = vsub.f32 %v233, %v629
    %v631 = vand.u32 %v630, 4294901760
    %632 = vmatpush1.msra.mxu0 %v631
    %633 = vmatprep.subr.mxu0 0.0
    %v634 = vand.u32 %v234, 4294901760
    %v635 = vsub.f32 %v234, %v634
    %v636 = vand.u32 %v635, 4294901760
    %637 = vmatpush1.msra.mxu0 %v636
    %638 = vmatprep.subr.mxu0 0.0
    %v639 = vand.u32 %v235, 4294901760
    %v640 = vsub.f32 %v235, %v639
    %v641 = vand.u32 %v640, 4294901760
    %642 = vmatpush1.msra.mxu0 %v641
    %643 = vmatprep.subr.mxu0 0.0
    %644 = vmatpush1.msra.mxu0 0.0
    %645 = vmatprep.subr.mxu0 0.0
    %646 = vmatpush1.msra.mxu0 0.0
    %647 = vmatprep.subr.mxu0 0.0
    %648 = vmatpush1.msra.mxu0 0.0
    %649 = vmatprep.subr.mxu0 0.0
    %650 = vmatpush1.msra.mxu0 0.0
    %651 = vmatprep.subr.mxu0 0.0
    %652 = vmatpush1.msra.mxu0 0.0
    %653 = vmatprep.subr.mxu0 0.0
    %654 = vmatpush1.msra.mxu0 0.0
    %655 = vmatprep.subr.mxu0 0.0
    %656 = vmatpush1.msra.mxu0 0.0
    %657 = vmatprep.subr.mxu0 0.0
    %658 = vmatpush1.msra.mxu0 0.0
    %659 = vmatprep.subr.mxu0 0.0
    %660 = vmatpush1.msra.mxu0 0.0
    %661 = vmatprep.subr.mxu0 0.0
    %662 = vmatpush1.msra.mxu0 0.0
    %663 = vmatprep.subr.mxu0 0.0
    %664 = vmatpush1.msra.mxu0 0.0
    %665 = vmatprep.subr.mxu0 0.0
    %666 = vmatpush1.msra.mxu0 0.0
    %667 = vmatprep.subr.mxu0 0.0
    %668 = vmatpush1.msra.mxu0 0.0
    %669 = vmatprep.subr.mxu0 0.0
    %670 = vmatpush1.msra.mxu0 0.0
    %671 = vmatprep.subr.mxu0 0.0
    %672 = vmatpush1.msra.mxu0 0.0
    %673 = vmatprep.subr.mxu0 0.0
    %674 = vmatpush1.msra.mxu0 0.0
    %675 = vmatprep.subr.mxu0 0.0
    %676 = vmatpush1.msra.mxu0 0.0
    %677 = vmatprep.subr.mxu0 0.0
    %678 = vmatpush1.msra.mxu0 0.0
    %679 = vmatprep.subr.mxu0 0.0
    %680 = vmatpush1.msra.mxu0 0.0
    %681 = vmatprep.subr.mxu0 0.0
    %682 = vmatpush1.msra.mxu0 0.0
    %683 = vmatprep.subr.mxu0 0.0
    %684 = vmatpush1.msra.mxu0 0.0
    %685 = vmatprep.subr.mxu0 0.0
    %686 = vmatpush1.msra.mxu0 0.0
    %687 = vmatprep.subr.mxu0 0.0
    %688 = vmatpush1.msra.mxu0 0.0
    %689 = vmatprep.subr.mxu0 0.0
    %690 = vmatpush1.msra.mxu0 0.0
    %691 = vmatprep.mubr.f32.mxu0 0.0
    %v692 = vand.u32 %v238, 4294901760
    %693 = vmatmul.mubr.f32.gmra.mrb[0].mxu0 %v692
    %v694 = vpop.f32.mrb[0].mxu0
    %v695 = vadd.f32 %v600, %v694
    %v696 = vpop.f32.mrb[0].mxu0
    %697 = vdwg.mxu0
    %698 = vmatprep.subr.mxu0 0.0
    %v699 = vand.u32 %v228, 4294901760
    %700 = vmatpush1.msra.mxu0 %v699
    %701 = vmatprep.subr.mxu0 0.0
    %v702 = vand.u32 %v229, 4294901760
    %703 = vmatpush1.msra.mxu0 %v702
    %704 = vmatprep.subr.mxu0 0.0
    %v705 = vand.u32 %v230, 4294901760
    %706 = vmatpush1.msra.mxu0 %v705
    %707 = vmatprep.subr.mxu0 0.0
    %v708 = vand.u32 %v231, 4294901760
    %709 = vmatpush1.msra.mxu0 %v708
    %710 = vmatprep.subr.mxu0 0.0
    %v711 = vand.u32 %v232, 4294901760
    %712 = vmatpush1.msra.mxu0 %v711
    %713 = vmatprep.subr.mxu0 0.0
    %v714 = vand.u32 %v233, 4294901760
    %715 = vmatpush1.msra.mxu0 %v714
    %716 = vmatprep.subr.mxu0 0.0
    %v717 = vand.u32 %v234, 4294901760
    %718 = vmatpush1.msra.mxu0 %v717
    %719 = vmatprep.subr.mxu0 0.0
    %v720 = vand.u32 %v235, 4294901760
    %721 = vmatpush1.msra.mxu0 %v720
    %722 = vmatprep.subr.mxu0 0.0
    %723 = vmatpush1.msra.mxu0 0.0
    %724 = vmatprep.subr.mxu0 0.0
    %725 = vmatpush1.msra.mxu0 0.0
    %726 = vmatprep.subr.mxu0 0.0
    %727 = vmatpush1.msra.mxu0 0.0
    %728 = vmatprep.subr.mxu0 0.0
    %729 = vmatpush1.msra.mxu0 0.0
    %730 = vmatprep.subr.mxu0 0.0
    %731 = vmatpush1.msra.mxu0 0.0
    %732 = vmatprep.subr.mxu0 0.0
    %733 = vmatpush1.msra.mxu0 0.0
    %734 = vmatprep.subr.mxu0 0.0
    %735 = vmatpush1.msra.mxu0 0.0
    %736 = vmatprep.subr.mxu0 0.0
    %737 = vmatpush1.msra.mxu0 0.0
    %738 = vmatprep.subr.mxu0 0.0
    %739 = vmatpush1.msra.mxu0 0.0
    %740 = vmatprep.subr.mxu0 0.0
    %741 = vmatpush1.msra.mxu0 0.0
    %742 = vmatprep.subr.mxu0 0.0
    %743 = vmatpush1.msra.mxu0 0.0
    %744 = vmatprep.subr.mxu0 0.0
    %745 = vmatpush1.msra.mxu0 0.0
    %746 = vmatprep.subr.mxu0 0.0
    %747 = vmatpush1.msra.mxu0 0.0
    %748 = vmatprep.subr.mxu0 0.0
    %749 = vmatpush1.msra.mxu0 0.0
    %750 = vmatprep.subr.mxu0 0.0
    %751 = vmatpush1.msra.mxu0 0.0
    %752 = vmatprep.subr.mxu0 0.0
    %753 = vmatpush1.msra.mxu0 0.0
    %754 = vmatprep.subr.mxu0 0.0
    %755 = vmatpush1.msra.mxu0 0.0
    %756 = vmatprep.subr.mxu0 0.0
    %757 = vmatpush1.msra.mxu0 0.0
    %758 = vmatprep.subr.mxu0 0.0
    %759 = vmatpush1.msra.mxu0 0.0
    %760 = vmatprep.subr.mxu0 0.0
    %761 = vmatpush1.msra.mxu0 0.0
    %762 = vmatprep.subr.mxu0 0.0
    %763 = vmatpush1.msra.mxu0 0.0
    %764 = vmatprep.subr.mxu0 0.0
    %765 = vmatpush1.msra.mxu0 0.0
    %766 = vmatprep.subr.mxu0 0.0
    %767 = vmatpush1.msra.mxu0 0.0
    %768 = vmatprep.subr.mxu0 0.0
    %769 = vmatpush1.msra.mxu0 0.0
    %770 = vmatprep.mubr.f32.mxu0 0.0
    %v771 = vand.u32 %v238, 4294901760
    %772 = vmatmul.mubr.f32.gmra.mrb[0].mxu0 %v771
    %v773 = vpop.f32.mrb[0].mxu0
    %v774 = vadd.f32 %v695, %v773
    %v775 = vpop.f32.mrb[0].mxu0
    %776 = vdwg.mxu0
    %v777 = vmax.f32 %v774, 0.0
    %779 = vrot.lane.b32.xlu0 %v777, 126
    %v780 = vpop.permute.xlu0 %779
    %v782 = vadd.f32 %v777, %v780
    %v783 = vld [vmem:[%s2] sm:$0xff]
    %v784 = vld [vmem:[%s2 + $0x8] sm:$0xff]
    %v785 = vld [vmem:[%s2 + $0x10] sm:$0xff]
    %v786 = vld [vmem:[%s2 + $0x18] sm:$0xff]
    %v787 = vld [vmem:[%s2 + $0x20] sm:$0xff]
    %v788 = vld [vmem:[%s2 + $0x28] sm:$0xff]
    %v789 = vld [vmem:[%s2 + $0x30] sm:$0xff]
    %v790 = vld [vmem:[%s2 + $0x38] sm:$0xff]
    %vm791 = vcmask 64512
    %v793 = vsel %vm791, %v783, 0
    %v796 = vsel %vm791, %v784, 0
    %v799 = vsel %vm791, %v785, 0
    %v802 = vsel %vm791, %v786, 0
    %v805 = vsel %vm791, %v787, 0
    %v808 = vsel %vm791, %v788, 0
    %v811 = vsel %vm791, %v789, 0
    %v814 = vsel %vm791, %v790, 0
    %816 = vmatprep.subr.mxu0 0.0
    %v817 = vand.u32 %v782, 4294901760
    %818 = vmatpush1.msra.mxu0 %v817
    %819 = vmatprep.subr.mxu0 0.0
    %820 = vmatpush1.msra.mxu0 0.0
    %821 = vmatprep.subr.mxu0 0.0
    %822 = vmatpush1.msra.mxu0 0.0
    %823 = vmatprep.subr.mxu0 0.0
    %824 = vmatpush1.msra.mxu0 0.0
    %825 = vmatprep.subr.mxu0 0.0
    %826 = vmatpush1.msra.mxu0 0.0
    %827 = vmatprep.subr.mxu0 0.0
    %828 = vmatpush1.msra.mxu0 0.0
    %829 = vmatprep.subr.mxu0 0.0
    %830 = vmatpush1.msra.mxu0 0.0
    %831 = vmatprep.subr.mxu0 0.0
    %832 = vmatpush1.msra.mxu0 0.0
    %833 = vmatprep.subr.mxu0 0.0
    %834 = vmatpush1.msra.mxu0 0.0
    %835 = vmatprep.subr.mxu0 0.0
    %836 = vmatpush1.msra.mxu0 0.0
    %837 = vmatprep.subr.mxu0 0.0
    %838 = vmatpush1.msra.mxu0 0.0
    %839 = vmatprep.subr.mxu0 0.0
    %840 = vmatpush1.msra.mxu0 0.0
    %841 = vmatprep.subr.mxu0 0.0
    %842 = vmatpush1.msra.mxu0 0.0
    %843 = vmatprep.subr.mxu0 0.0
    %844 = vmatpush1.msra.mxu0 0.0
    %845 = vmatprep.subr.mxu0 0.0
    %846 = vmatpush1.msra.mxu0 0.0
    %847 = vmatprep.subr.mxu0 0.0
    %848 = vmatpush1.msra.mxu0 0.0
    %849 = vmatprep.subr.mxu0 0.0
    %850 = vmatpush1.msra.mxu0 0.0
    %851 = vmatprep.subr.mxu0 0.0
    %852 = vmatpush1.msra.mxu0 0.0
    %853 = vmatprep.subr.mxu0 0.0
    %854 = vmatpush1.msra.mxu0 0.0
    %855 = vmatprep.subr.mxu0 0.0
    %856 = vmatpush1.msra.mxu0 0.0
    %857 = vmatprep.subr.mxu0 0.0
    %858 = vmatpush1.msra.mxu0 0.0
    %859 = vmatprep.subr.mxu0 0.0
    %860 = vmatpush1.msra.mxu0 0.0
    %861 = vmatprep.subr.mxu0 0.0
    %862 = vmatpush1.msra.mxu0 0.0
    %863 = vmatprep.subr.mxu0 0.0
    %864 = vmatpush1.msra.mxu0 0.0
    %865 = vmatprep.subr.mxu0 0.0
    %866 = vmatpush1.msra.mxu0 0.0
    %867 = vmatprep.subr.mxu0 0.0
    %868 = vmatpush1.msra.mxu0 0.0
    %869 = vmatprep.subr.mxu0 0.0
    %870 = vmatpush1.msra.mxu0 0.0
    %871 = vmatprep.subr.mxu0 0.0
    %872 = vmatpush1.msra.mxu0 0.0
    %873 = vmatprep.subr.mxu0 0.0
    %874 = vmatpush1.msra.mxu0 0.0
    %875 = vmatprep.subr.mxu0 0.0
    %876 = vmatpush1.msra.mxu0 0.0
    %877 = vmatprep.subr.mxu0 0.0
    %878 = vmatpush1.msra.mxu0 0.0
    %879 = vmatprep.subr.mxu0 0.0
    %880 = vmatpush1.msra.mxu0 0.0
    %881 = vmatprep.mubr.f32.mxu0 0.0
    %v882 = vand.u32 %v793, 4294901760
    %v883 = vsub.f32 %v793, %v882
    %v884 = vand.u32 %v883, 4294901760
    %v885 = vsub.f32 %v883, %v884
    %v886 = vand.u32 %v885, 4294901760
    %887 = vmatmul.mubr.f32.gmra.mrb[0].mxu0 %v886
    %v888 = vpop.f32.mrb[0].mxu0
    %v889 = vadd.f32 0.0, %v888
    %v890 = vpop.f32.mrb[0].mxu0
    %891 = vmatprep.mubr.f32.mxu0 0.0
    %v892 = vand.u32 %v796, 4294901760
    %v893 = vsub.f32 %v796, %v892
    %v894 = vand.u32 %v893, 4294901760
    %v895 = vsub.f32 %v893, %v894
    %v896 = vand.u32 %v895, 4294901760
    %897 = vmatmul.mubr.f32.gmra.mrb[0].mxu0 %v896
    %v898 = vpop.f32.mrb[0].mxu0
    %v899 = vadd.f32 0.0, %v898
    %v900 = vpop.f32.mrb[0].mxu0
    %901 = vmatprep.mubr.f32.mxu0 0.0
    %v902 = vand.u32 %v799, 4294901760
    %v903 = vsub.f32 %v799, %v902
    %v904 = vand.u32 %v903, 4294901760
    %v905 = vsub.f32 %v903, %v904
    %v906 = vand.u32 %v905, 4294901760
    %907 = vmatmul.mubr.f32.gmra.mrb[0].mxu0 %v906
    %v908 = vpop.f32.mrb[0].mxu0
    %v909 = vadd.f32 0.0, %v908
    %v910 = vpop.f32.mrb[0].mxu0
    %911 = vmatprep.mubr.f32.mxu0 0.0
    %v912 = vand.u32 %v802, 4294901760
    %v913 = vsub.f32 %v802, %v912
    %v914 = vand.u32 %v913, 4294901760
    %v915 = vsub.f32 %v913, %v914
    %v916 = vand.u32 %v915, 4294901760
    %917 = vmatmul.mubr.f32.gmra.mrb[0].mxu0 %v916
    %v918 = vpop.f32.mrb[0].mxu0
    %v919 = vadd.f32 0.0, %v918
    %v920 = vpop.f32.mrb[0].mxu0
    %921 = vmatprep.mubr.f32.mxu0 0.0
    %v922 = vand.u32 %v805, 4294901760
    %v923 = vsub.f32 %v805, %v922
    %v924 = vand.u32 %v923, 4294901760
    %v925 = vsub.f32 %v923, %v924
    %v926 = vand.u32 %v925, 4294901760
    %927 = vmatmul.mubr.f32.gmra.mrb[0].mxu0 %v926
    %v928 = vpop.f32.mrb[0].mxu0
    %v929 = vadd.f32 0.0, %v928
    %v930 = vpop.f32.mrb[0].mxu0
    %931 = vmatprep.mubr.f32.mxu0 0.0
    %v932 = vand.u32 %v808, 4294901760
    %v933 = vsub.f32 %v808, %v932
    %v934 = vand.u32 %v933, 4294901760
    %v935 = vsub.f32 %v933, %v934
    %v936 = vand.u32 %v935, 4294901760
    %937 = vmatmul.mubr.f32.gmra.mrb[0].mxu0 %v936
    %v938 = vpop.f32.mrb[0].mxu0
    %v939 = vadd.f32 0.0, %v938
    %v940 = vpop.f32.mrb[0].mxu0
    %941 = vmatprep.mubr.f32.mxu0 0.0
    %v942 = vand.u32 %v811, 4294901760
    %v943 = vsub.f32 %v811, %v942
    %v944 = vand.u32 %v943, 4294901760
    %v945 = vsub.f32 %v943, %v944
    %v946 = vand.u32 %v945, 4294901760
    %947 = vmatmul.mubr.f32.gmra.mrb[0].mxu0 %v946
    %v948 = vpop.f32.mrb[0].mxu0
    %v949 = vadd.f32 0.0, %v948
    %v950 = vpop.f32.mrb[0].mxu0
    %951 = vmatprep.mubr.f32.mxu0 0.0
    %v952 = vand.u32 %v814, 4294901760
    %v953 = vsub.f32 %v814, %v952
    %v954 = vand.u32 %v953, 4294901760
    %v955 = vsub.f32 %v953, %v954
    %v956 = vand.u32 %v955, 4294901760
    %957 = vmatmul.mubr.f32.gmra.mrb[0].mxu0 %v956
    %v958 = vpop.f32.mrb[0].mxu0
    %v959 = vadd.f32 0.0, %v958
    %v960 = vpop.f32.mrb[0].mxu0
    %961 = vdwg.mxu0
    %962 = vmatprep.subr.mxu0 0.0
    %v963 = vand.u32 %v782, 4294901760
    %v964 = vsub.f32 %v782, %v963
    %v965 = vand.u32 %v964, 4294901760
    %v966 = vsub.f32 %v964, %v965
    %v967 = vand.u32 %v966, 4294901760
    %968 = vmatpush1.msra.mxu0 %v967
    %969 = vmatprep.subr.mxu0 0.0
    %970 = vmatpush1.msra.mxu0 0.0
    %971 = vmatprep.subr.mxu0 0.0
    %972 = vmatpush1.msra.mxu0 0.0
    %973 = vmatprep.subr.mxu0 0.0
    %974 = vmatpush1.msra.mxu0 0.0
    %975 = vmatprep.subr.mxu0 0.0
    %976 = vmatpush1.msra.mxu0 0.0
    %977 = vmatprep.subr.mxu0 0.0
    %978 = vmatpush1.msra.mxu0 0.0
    %979 = vmatprep.subr.mxu0 0.0
    %980 = vmatpush1.msra.mxu0 0.0
    %981 = vmatprep.subr.mxu0 0.0
    %982 = vmatpush1.msra.mxu0 0.0
    %983 = vmatprep.subr.mxu0 0.0
    %984 = vmatpush1.msra.mxu0 0.0
    %985 = vmatprep.subr.mxu0 0.0
    %986 = vmatpush1.msra.mxu0 0.0
    %987 = vmatprep.subr.mxu0 0.0
    %988 = vmatpush1.msra.mxu0 0.0
    %989 = vmatprep.subr.mxu0 0.0
    %990 = vmatpush1.msra.mxu0 0.0
    %991 = vmatprep.subr.mxu0 0.0
    %992 = vmatpush1.msra.mxu0 0.0
    %993 = vmatprep.subr.mxu0 0.0
    %994 = vmatpush1.msra.mxu0 0.0
    %995 = vmatprep.subr.mxu0 0.0
    %996 = vmatpush1.msra.mxu0 0.0
    %997 = vmatprep.subr.mxu0 0.0
    %998 = vmatpush1.msra.mxu0 0.0
    %999 = vmatprep.subr.mxu0 0.0
    %1000 = vmatpush1.msra.mxu0 0.0
    %1001 = vmatprep.subr.mxu0 0.0
    %1002 = vmatpush1.msra.mxu0 0.0
    %1003 = vmatprep.subr.mxu0 0.0
    %1004 = vmatpush1.msra.mxu0 0.0
    %1005 = vmatprep.subr.mxu0 0.0
    %1006 = vmatpush1.msra.mxu0 0.0
    %1007 = vmatprep.subr.mxu0 0.0
    %1008 = vmatpush1.msra.mxu0 0.0
    %1009 = vmatprep.subr.mxu0 0.0
    %1010 = vmatpush1.msra.mxu0 0.0
    %1011 = vmatprep.subr.mxu0 0.0
    %1012 = vmatpush1.msra.mxu0 0.0
    %1013 = vmatprep.subr.mxu0 0.0
    %1014 = vmatpush1.msra.mxu0 0.0
    %1015 = vmatprep.subr.mxu0 0.0
    %1016 = vmatpush1.msra.mxu0 0.0
    %1017 = vmatprep.subr.mxu0 0.0
    %1018 = vmatpush1.msra.mxu0 0.0
    %1019 = vmatprep.subr.mxu0 0.0
    %1020 = vmatpush1.msra.mxu0 0.0
    %1021 = vmatprep.subr.mxu0 0.0
    %1022 = vmatpush1.msra.mxu0 0.0
    %1023 = vmatprep.subr.mxu0 0.0
    %1024 = vmatpush1.msra.mxu0 0.0
    %1025 = vmatprep.subr.mxu0 0.0
    %1026 = vmatpush1.msra.mxu0 0.0
    %1027 = vmatprep.subr.mxu0 0.0
    %1028 = vmatpush1.msra.mxu0 0.0
    %1029 = vmatprep.subr.mxu0 0.0
    %1030 = vmatpush1.msra.mxu0 0.0
    %1031 = vmatprep.mubr.f32.mxu0 0.0
    %v1032 = vand.u32 %v793, 4294901760
    %1033 = vmatmul.mubr.f32.gmra.mrb[0].mxu0 %v1032
    %v1034 = vpop.f32.mrb[0].mxu0
    %v1035 = vadd.f32 %v889, %v1034
    %v1036 = vpop.f32.mrb[0].mxu0
    %1037 = vmatprep.mubr.f32.mxu0 0.0
    %v1038 = vand.u32 %v796, 4294901760
    %1039 = vmatmul.mubr.f32.gmra.mrb[0].mxu0 %v1038
    %v1040 = vpop.f32.mrb[0].mxu0
    %v1041 = vadd.f32 %v899, %v1040
    %v1042 = vpop.f32.mrb[0].mxu0
    %1043 = vmatprep.mubr.f32.mxu0 0.0
    %v1044 = vand.u32 %v799, 4294901760
    %1045 = vmatmul.mubr.f32.gmra.mrb[0].mxu0 %v1044
    %v1046 = vpop.f32.mrb[0].mxu0
    %v1047 = vadd.f32 %v909, %v1046
    %v1048 = vpop.f32.mrb[0].mxu0
    %1049 = vmatprep.mubr.f32.mxu0 0.0
    %v1050 = vand.u32 %v802, 4294901760
    %1051 = vmatmul.mubr.f32.gmra.mrb[0].mxu0 %v1050
    %v1052 = vpop.f32.mrb[0].mxu0
    %v1053 = vadd.f32 %v919, %v1052
    %v1054 = vpop.f32.mrb[0].mxu0
    %1055 = vmatprep.mubr.f32.mxu0 0.0
    %v1056 = vand.u32 %v805, 4294901760
    %1057 = vmatmul.mubr.f32.gmra.mrb[0].mxu0 %v1056
    %v1058 = vpop.f32.mrb[0].mxu0
    %v1059 = vadd.f32 %v929, %v1058
    %v1060 = vpop.f32.mrb[0].mxu0
    %1061 = vmatprep.mubr.f32.mxu0 0.0
    %v1062 = vand.u32 %v808, 4294901760
    %1063 = vmatmul.mubr.f32.gmra.mrb[0].mxu0 %v1062
    %v1064 = vpop.f32.mrb[0].mxu0
    %v1065 = vadd.f32 %v939, %v1064
    %v1066 = vpop.f32.mrb[0].mxu0
    %1067 = vmatprep.mubr.f32.mxu0 0.0
    %v1068 = vand.u32 %v811, 4294901760
    %1069 = vmatmul.mubr.f32.gmra.mrb[0].mxu0 %v1068
    %v1070 = vpop.f32.mrb[0].mxu0
    %v1071 = vadd.f32 %v949, %v1070
    %v1072 = vpop.f32.mrb[0].mxu0
    %1073 = vmatprep.mubr.f32.mxu0 0.0
    %v1074 = vand.u32 %v814, 4294901760
    %1075 = vmatmul.mubr.f32.gmra.mrb[0].mxu0 %v1074
    %v1076 = vpop.f32.mrb[0].mxu0
    %v1077 = vadd.f32 %v959, %v1076
    %v1078 = vpop.f32.mrb[0].mxu0
    %1079 = vdwg.mxu0
    %1080 = vmatprep.subr.mxu0 0.0
    %v1081 = vand.u32 %v782, 4294901760
    %v1082 = vsub.f32 %v782, %v1081
    %1083 = vmatpush1.msra.mxu0 %v1082
    %1084 = vmatprep.subr.mxu0 0.0
    %1085 = vmatpush1.msra.mxu0 0.0
    %1086 = vmatprep.subr.mxu0 0.0
    %1087 = vmatpush1.msra.mxu0 0.0
    %1088 = vmatprep.subr.mxu0 0.0
    %1089 = vmatpush1.msra.mxu0 0.0
    %1090 = vmatprep.subr.mxu0 0.0
    %1091 = vmatpush1.msra.mxu0 0.0
    %1092 = vmatprep.subr.mxu0 0.0
    %1093 = vmatpush1.msra.mxu0 0.0
    %1094 = vmatprep.subr.mxu0 0.0
    %1095 = vmatpush1.msra.mxu0 0.0
    %1096 = vmatprep.subr.mxu0 0.0
    %1097 = vmatpush1.msra.mxu0 0.0
    %1098 = vmatprep.subr.mxu0 0.0
    %1099 = vmatpush1.msra.mxu0 0.0
    %1100 = vmatprep.subr.mxu0 0.0
    %1101 = vmatpush1.msra.mxu0 0.0
    %1102 = vmatprep.subr.mxu0 0.0
    %1103 = vmatpush1.msra.mxu0 0.0
    %1104 = vmatprep.subr.mxu0 0.0
    %1105 = vmatpush1.msra.mxu0 0.0
    %1106 = vmatprep.subr.mxu0 0.0
    %1107 = vmatpush1.msra.mxu0 0.0
    %1108 = vmatprep.subr.mxu0 0.0
    %1109 = vmatpush1.msra.mxu0 0.0
    %1110 = vmatprep.subr.mxu0 0.0
    %1111 = vmatpush1.msra.mxu0 0.0
    %1112 = vmatprep.subr.mxu0 0.0
    %1113 = vmatpush1.msra.mxu0 0.0
    %1114 = vmatprep.subr.mxu0 0.0
    %1115 = vmatpush1.msra.mxu0 0.0
    %1116 = vmatprep.subr.mxu0 0.0
    %1117 = vmatpush1.msra.mxu0 0.0
    %1118 = vmatprep.subr.mxu0 0.0
    %1119 = vmatpush1.msra.mxu0 0.0
    %1120 = vmatprep.subr.mxu0 0.0
    %1121 = vmatpush1.msra.mxu0 0.0
    %1122 = vmatprep.subr.mxu0 0.0
    %1123 = vmatpush1.msra.mxu0 0.0
    %1124 = vmatprep.subr.mxu0 0.0
    %1125 = vmatpush1.msra.mxu0 0.0
    %1126 = vmatprep.subr.mxu0 0.0
    %1127 = vmatpush1.msra.mxu0 0.0
    %1128 = vmatprep.subr.mxu0 0.0
    %1129 = vmatpush1.msra.mxu0 0.0
    %1130 = vmatprep.subr.mxu0 0.0
    %1131 = vmatpush1.msra.mxu0 0.0
    %1132 = vmatprep.subr.mxu0 0.0
    %1133 = vmatpush1.msra.mxu0 0.0
    %1134 = vmatprep.subr.mxu0 0.0
    %1135 = vmatpush1.msra.mxu0 0.0
    %1136 = vmatprep.subr.mxu0 0.0
    %1137 = vmatpush1.msra.mxu0 0.0
    %1138 = vmatprep.subr.mxu0 0.0
    %1139 = vmatpush1.msra.mxu0 0.0
    %1140 = vmatprep.subr.mxu0 0.0
    %1141 = vmatpush1.msra.mxu0 0.0
    %1142 = vmatprep.subr.mxu0 0.0
    %1143 = vmatpush1.msra.mxu0 0.0
    %1144 = vmatprep.subr.mxu0 0.0
    %1145 = vmatpush1.msra.mxu0 0.0
    %1146 = vmatprep.mubr.f32.mxu0 0.0
    %v1147 = vand.u32 %v793, 4294901760
    %v1148 = vsub.f32 %v793, %v1147
    %1149 = vmatmul.mubr.f32.gmra.mrb[0].mxu0 %v1148
    %v1150 = vpop.f32.mrb[0].mxu0
    %v1151 = vadd.f32 %v1035, %v1150
    %v1152 = vpop.f32.mrb[0].mxu0
    %1153 = vmatprep.mubr.f32.mxu0 0.0
    %v1154 = vand.u32 %v796, 4294901760
    %v1155 = vsub.f32 %v796, %v1154
    %1156 = vmatmul.mubr.f32.gmra.mrb[0].mxu0 %v1155
    %v1157 = vpop.f32.mrb[0].mxu0
    %v1158 = vadd.f32 %v1041, %v1157
    %v1159 = vpop.f32.mrb[0].mxu0
    %1160 = vmatprep.mubr.f32.mxu0 0.0
    %v1161 = vand.u32 %v799, 4294901760
    %v1162 = vsub.f32 %v799, %v1161
    %1163 = vmatmul.mubr.f32.gmra.mrb[0].mxu0 %v1162
    %v1164 = vpop.f32.mrb[0].mxu0
    %v1165 = vadd.f32 %v1047, %v1164
    %v1166 = vpop.f32.mrb[0].mxu0
    %1167 = vmatprep.mubr.f32.mxu0 0.0
    %v1168 = vand.u32 %v802, 4294901760
    %v1169 = vsub.f32 %v802, %v1168
    %1170 = vmatmul.mubr.f32.gmra.mrb[0].mxu0 %v1169
    %v1171 = vpop.f32.mrb[0].mxu0
    %v1172 = vadd.f32 %v1053, %v1171
    %v1173 = vpop.f32.mrb[0].mxu0
    %1174 = vmatprep.mubr.f32.mxu0 0.0
    %v1175 = vand.u32 %v805, 4294901760
    %v1176 = vsub.f32 %v805, %v1175
    %1177 = vmatmul.mubr.f32.gmra.mrb[0].mxu0 %v1176
    %v1178 = vpop.f32.mrb[0].mxu0
    %v1179 = vadd.f32 %v1059, %v1178
    %v1180 = vpop.f32.mrb[0].mxu0
    %1181 = vmatprep.mubr.f32.mxu0 0.0
    %v1182 = vand.u32 %v808, 4294901760
    %v1183 = vsub.f32 %v808, %v1182
    %1184 = vmatmul.mubr.f32.gmra.mrb[0].mxu0 %v1183
    %v1185 = vpop.f32.mrb[0].mxu0
    %v1186 = vadd.f32 %v1065, %v1185
    %v1187 = vpop.f32.mrb[0].mxu0
    %1188 = vmatprep.mubr.f32.mxu0 0.0
    %v1189 = vand.u32 %v811, 4294901760
    %v1190 = vsub.f32 %v811, %v1189
    %1191 = vmatmul.mubr.f32.gmra.mrb[0].mxu0 %v1190
    %v1192 = vpop.f32.mrb[0].mxu0
    %v1193 = vadd.f32 %v1071, %v1192
    %v1194 = vpop.f32.mrb[0].mxu0
    %1195 = vmatprep.mubr.f32.mxu0 0.0
    %v1196 = vand.u32 %v814, 4294901760
    %v1197 = vsub.f32 %v814, %v1196
    %1198 = vmatmul.mubr.f32.gmra.mrb[0].mxu0 %v1197
    %v1199 = vpop.f32.mrb[0].mxu0
    %v1200 = vadd.f32 %v1077, %v1199
    %v1201 = vpop.f32.mrb[0].mxu0
    %1202 = vdwg.mxu0
    %1203 = vmatprep.subr.mxu0 0.0
    %v1204 = vand.u32 %v782, 4294901760
    %1205 = vmatpush1.msra.mxu0 %v1204
    %1206 = vmatprep.subr.mxu0 0.0
    %1207 = vmatpush1.msra.mxu0 0.0
    %1208 = vmatprep.subr.mxu0 0.0
    %1209 = vmatpush1.msra.mxu0 0.0
    %1210 = vmatprep.subr.mxu0 0.0
    %1211 = vmatpush1.msra.mxu0 0.0
    %1212 = vmatprep.subr.mxu0 0.0
    %1213 = vmatpush1.msra.mxu0 0.0
    %1214 = vmatprep.subr.mxu0 0.0
    %1215 = vmatpush1.msra.mxu0 0.0
    %1216 = vmatprep.subr.mxu0 0.0
    %1217 = vmatpush1.msra.mxu0 0.0
    %1218 = vmatprep.subr.mxu0 0.0
    %1219 = vmatpush1.msra.mxu0 0.0
    %1220 = vmatprep.subr.mxu0 0.0
    %1221 = vmatpush1.msra.mxu0 0.0
    %1222 = vmatprep.subr.mxu0 0.0
    %1223 = vmatpush1.msra.mxu0 0.0
    %1224 = vmatprep.subr.mxu0 0.0
    %1225 = vmatpush1.msra.mxu0 0.0
    %1226 = vmatprep.subr.mxu0 0.0
    %1227 = vmatpush1.msra.mxu0 0.0
    %1228 = vmatprep.subr.mxu0 0.0
    %1229 = vmatpush1.msra.mxu0 0.0
    %1230 = vmatprep.subr.mxu0 0.0
    %1231 = vmatpush1.msra.mxu0 0.0
    %1232 = vmatprep.subr.mxu0 0.0
    %1233 = vmatpush1.msra.mxu0 0.0
    %1234 = vmatprep.subr.mxu0 0.0
    %1235 = vmatpush1.msra.mxu0 0.0
    %1236 = vmatprep.subr.mxu0 0.0
    %1237 = vmatpush1.msra.mxu0 0.0
    %1238 = vmatprep.subr.mxu0 0.0
    %1239 = vmatpush1.msra.mxu0 0.0
    %1240 = vmatprep.subr.mxu0 0.0
    %1241 = vmatpush1.msra.mxu0 0.0
    %1242 = vmatprep.subr.mxu0 0.0
    %1243 = vmatpush1.msra.mxu0 0.0
    %1244 = vmatprep.subr.mxu0 0.0
    %1245 = vmatpush1.msra.mxu0 0.0
    %1246 = vmatprep.subr.mxu0 0.0
    %1247 = vmatpush1.msra.mxu0 0.0
    %1248 = vmatprep.subr.mxu0 0.0
    %1249 = vmatpush1.msra.mxu0 0.0
    %1250 = vmatprep.subr.mxu0 0.0
    %1251 = vmatpush1.msra.mxu0 0.0
    %1252 = vmatprep.subr.mxu0 0.0
    %1253 = vmatpush1.msra.mxu0 0.0
    %1254 = vmatprep.subr.mxu0 0.0
    %1255 = vmatpush1.msra.mxu0 0.0
    %1256 = vmatprep.subr.mxu0 0.0
    %1257 = vmatpush1.msra.mxu0 0.0
    %1258 = vmatprep.subr.mxu0 0.0
    %1259 = vmatpush1.msra.mxu0 0.0
    %1260 = vmatprep.subr.mxu0 0.0
    %1261 = vmatpush1.msra.mxu0 0.0
    %1262 = vmatprep.subr.mxu0 0.0
    %1263 = vmatpush1.msra.mxu0 0.0
    %1264 = vmatprep.subr.mxu0 0.0
    %1265 = vmatpush1.msra.mxu0 0.0
    %1266 = vmatprep.subr.mxu0 0.0
    %1267 = vmatpush1.msra.mxu0 0.0
    %1268 = vmatprep.mubr.f32.mxu0 0.0
    %v1269 = vand.u32 %v793, 4294901760
    %v1270 = vsub.f32 %v793, %v1269
    %v1271 = vand.u32 %v1270, 4294901760
    %1272 = vmatmul.mubr.f32.gmra.mrb[0].mxu0 %v1271
    %v1273 = vpop.f32.mrb[0].mxu0
    %v1274 = vadd.f32 %v1151, %v1273
    %v1275 = vpop.f32.mrb[0].mxu0
    %1276 = vmatprep.mubr.f32.mxu0 0.0
    %v1277 = vand.u32 %v796, 4294901760
    %v1278 = vsub.f32 %v796, %v1277
    %v1279 = vand.u32 %v1278, 4294901760
    %1280 = vmatmul.mubr.f32.gmra.mrb[0].mxu0 %v1279
    %v1281 = vpop.f32.mrb[0].mxu0
    %v1282 = vadd.f32 %v1158, %v1281
    %v1283 = vpop.f32.mrb[0].mxu0
    %1284 = vmatprep.mubr.f32.mxu0 0.0
    %v1285 = vand.u32 %v799, 4294901760
    %v1286 = vsub.f32 %v799, %v1285
    %v1287 = vand.u32 %v1286, 4294901760
    %1288 = vmatmul.mubr.f32.gmra.mrb[0].mxu0 %v1287
    %v1289 = vpop.f32.mrb[0].mxu0
    %v1290 = vadd.f32 %v1165, %v1289
    %v1291 = vpop.f32.mrb[0].mxu0
    %1292 = vmatprep.mubr.f32.mxu0 0.0
    %v1293 = vand.u32 %v802, 4294901760
    %v1294 = vsub.f32 %v802, %v1293
    %v1295 = vand.u32 %v1294, 4294901760
    %1296 = vmatmul.mubr.f32.gmra.mrb[0].mxu0 %v1295
    %v1297 = vpop.f32.mrb[0].mxu0
    %v1298 = vadd.f32 %v1172, %v1297
    %v1299 = vpop.f32.mrb[0].mxu0
    %1300 = vmatprep.mubr.f32.mxu0 0.0
    %v1301 = vand.u32 %v805, 4294901760
    %v1302 = vsub.f32 %v805, %v1301
    %v1303 = vand.u32 %v1302, 4294901760
    %1304 = vmatmul.mubr.f32.gmra.mrb[0].mxu0 %v1303
    %v1305 = vpop.f32.mrb[0].mxu0
    %v1306 = vadd.f32 %v1179, %v1305
    %v1307 = vpop.f32.mrb[0].mxu0
    %1308 = vmatprep.mubr.f32.mxu0 0.0
    %v1309 = vand.u32 %v808, 4294901760
    %v1310 = vsub.f32 %v808, %v1309
    %v1311 = vand.u32 %v1310, 4294901760
    %1312 = vmatmul.mubr.f32.gmra.mrb[0].mxu0 %v1311
    %v1313 = vpop.f32.mrb[0].mxu0
    %v1314 = vadd.f32 %v1186, %v1313
    %v1315 = vpop.f32.mrb[0].mxu0
    %1316 = vmatprep.mubr.f32.mxu0 0.0
    %v1317 = vand.u32 %v811, 4294901760
    %v1318 = vsub.f32 %v811, %v1317
    %v1319 = vand.u32 %v1318, 4294901760
    %1320 = vmatmul.mubr.f32.gmra.mrb[0].mxu0 %v1319
    %v1321 = vpop.f32.mrb[0].mxu0
    %v1322 = vadd.f32 %v1193, %v1321
    %v1323 = vpop.f32.mrb[0].mxu0
    %1324 = vmatprep.mubr.f32.mxu0 0.0
    %v1325 = vand.u32 %v814, 4294901760
    %v1326 = vsub.f32 %v814, %v1325
    %v1327 = vand.u32 %v1326, 4294901760
    %1328 = vmatmul.mubr.f32.gmra.mrb[0].mxu0 %v1327
    %v1329 = vpop.f32.mrb[0].mxu0
    %v1330 = vadd.f32 %v1200, %v1329
    %v1331 = vpop.f32.mrb[0].mxu0
    %1332 = vdwg.mxu0
    %1333 = vmatprep.subr.mxu0 0.0
    %v1334 = vand.u32 %v782, 4294901760
    %v1335 = vsub.f32 %v782, %v1334
    %v1336 = vand.u32 %v1335, 4294901760
    %1337 = vmatpush1.msra.mxu0 %v1336
    %1338 = vmatprep.subr.mxu0 0.0
    %1339 = vmatpush1.msra.mxu0 0.0
    %1340 = vmatprep.subr.mxu0 0.0
    %1341 = vmatpush1.msra.mxu0 0.0
    %1342 = vmatprep.subr.mxu0 0.0
    %1343 = vmatpush1.msra.mxu0 0.0
    %1344 = vmatprep.subr.mxu0 0.0
    %1345 = vmatpush1.msra.mxu0 0.0
    %1346 = vmatprep.subr.mxu0 0.0
    %1347 = vmatpush1.msra.mxu0 0.0
    %1348 = vmatprep.subr.mxu0 0.0
    %1349 = vmatpush1.msra.mxu0 0.0
    %1350 = vmatprep.subr.mxu0 0.0
    %1351 = vmatpush1.msra.mxu0 0.0
    %1352 = vmatprep.subr.mxu0 0.0
    %1353 = vmatpush1.msra.mxu0 0.0
    %1354 = vmatprep.subr.mxu0 0.0
    %1355 = vmatpush1.msra.mxu0 0.0
    %1356 = vmatprep.subr.mxu0 0.0
    %1357 = vmatpush1.msra.mxu0 0.0
    %1358 = vmatprep.subr.mxu0 0.0
    %1359 = vmatpush1.msra.mxu0 0.0
    %1360 = vmatprep.subr.mxu0 0.0
    %1361 = vmatpush1.msra.mxu0 0.0
    %1362 = vmatprep.subr.mxu0 0.0
    %1363 = vmatpush1.msra.mxu0 0.0
    %1364 = vmatprep.subr.mxu0 0.0
    %1365 = vmatpush1.msra.mxu0 0.0
    %1366 = vmatprep.subr.mxu0 0.0
    %1367 = vmatpush1.msra.mxu0 0.0
    %1368 = vmatprep.subr.mxu0 0.0
    %1369 = vmatpush1.msra.mxu0 0.0
    %1370 = vmatprep.subr.mxu0 0.0
    %1371 = vmatpush1.msra.mxu0 0.0
    %1372 = vmatprep.subr.mxu0 0.0
    %1373 = vmatpush1.msra.mxu0 0.0
    %1374 = vmatprep.subr.mxu0 0.0
    %1375 = vmatpush1.msra.mxu0 0.0
    %1376 = vmatprep.subr.mxu0 0.0
    %1377 = vmatpush1.msra.mxu0 0.0
    %1378 = vmatprep.subr.mxu0 0.0
    %1379 = vmatpush1.msra.mxu0 0.0
    %1380 = vmatprep.subr.mxu0 0.0
    %1381 = vmatpush1.msra.mxu0 0.0
    %1382 = vmatprep.subr.mxu0 0.0
    %1383 = vmatpush1.msra.mxu0 0.0
    %1384 = vmatprep.subr.mxu0 0.0
    %1385 = vmatpush1.msra.mxu0 0.0
    %1386 = vmatprep.subr.mxu0 0.0
    %1387 = vmatpush1.msra.mxu0 0.0
    %1388 = vmatprep.subr.mxu0 0.0
    %1389 = vmatpush1.msra.mxu0 0.0
    %1390 = vmatprep.subr.mxu0 0.0
    %1391 = vmatpush1.msra.mxu0 0.0
    %1392 = vmatprep.subr.mxu0 0.0
    %1393 = vmatpush1.msra.mxu0 0.0
    %1394 = vmatprep.subr.mxu0 0.0
    %1395 = vmatpush1.msra.mxu0 0.0
    %1396 = vmatprep.subr.mxu0 0.0
    %1397 = vmatpush1.msra.mxu0 0.0
    %1398 = vmatprep.subr.mxu0 0.0
    %1399 = vmatpush1.msra.mxu0 0.0
    %1400 = vmatprep.mubr.f32.mxu0 0.0
    %v1401 = vand.u32 %v793, 4294901760
    %1402 = vmatmul.mubr.f32.gmra.mrb[0].mxu0 %v1401
    %v1403 = vpop.f32.mrb[0].mxu0
    %v1404 = vadd.f32 %v1274, %v1403
    %v1405 = vpop.f32.mrb[0].mxu0
    %1406 = vmatprep.mubr.f32.mxu0 0.0
    %v1407 = vand.u32 %v796, 4294901760
    %1408 = vmatmul.mubr.f32.gmra.mrb[0].mxu0 %v1407
    %v1409 = vpop.f32.mrb[0].mxu0
    %v1410 = vadd.f32 %v1282, %v1409
    %v1411 = vpop.f32.mrb[0].mxu0
    %1412 = vmatprep.mubr.f32.mxu0 0.0
    %v1413 = vand.u32 %v799, 4294901760
    %1414 = vmatmul.mubr.f32.gmra.mrb[0].mxu0 %v1413
    %v1415 = vpop.f32.mrb[0].mxu0
    %v1416 = vadd.f32 %v1290, %v1415
    %v1417 = vpop.f32.mrb[0].mxu0
    %1418 = vmatprep.mubr.f32.mxu0 0.0
    %v1419 = vand.u32 %v802, 4294901760
    %1420 = vmatmul.mubr.f32.gmra.mrb[0].mxu0 %v1419
    %v1421 = vpop.f32.mrb[0].mxu0
    %v1422 = vadd.f32 %v1298, %v1421
    %v1423 = vpop.f32.mrb[0].mxu0
    %1424 = vmatprep.mubr.f32.mxu0 0.0
    %v1425 = vand.u32 %v805, 4294901760
    %1426 = vmatmul.mubr.f32.gmra.mrb[0].mxu0 %v1425
    %v1427 = vpop.f32.mrb[0].mxu0
    %v1428 = vadd.f32 %v1306, %v1427
    %v1429 = vpop.f32.mrb[0].mxu0
    %1430 = vmatprep.mubr.f32.mxu0 0.0
    %v1431 = vand.u32 %v808, 4294901760
    %1432 = vmatmul.mubr.f32.gmra.mrb[0].mxu0 %v1431
    %v1433 = vpop.f32.mrb[0].mxu0
    %v1434 = vadd.f32 %v1314, %v1433
    %v1435 = vpop.f32.mrb[0].mxu0
    %1436 = vmatprep.mubr.f32.mxu0 0.0
    %v1437 = vand.u32 %v811, 4294901760
    %1438 = vmatmul.mubr.f32.gmra.mrb[0].mxu0 %v1437
    %v1439 = vpop.f32.mrb[0].mxu0
    %v1440 = vadd.f32 %v1322, %v1439
    %v1441 = vpop.f32.mrb[0].mxu0
    %1442 = vmatprep.mubr.f32.mxu0 0.0
    %v1443 = vand.u32 %v814, 4294901760
    %1444 = vmatmul.mubr.f32.gmra.mrb[0].mxu0 %v1443
    %v1445 = vpop.f32.mrb[0].mxu0
    %v1446 = vadd.f32 %v1330, %v1445
    %v1447 = vpop.f32.mrb[0].mxu0
    %1448 = vdwg.mxu0
    %1449 = vmatprep.subr.mxu0 0.0
    %v1450 = vand.u32 %v782, 4294901760
    %1451 = vmatpush1.msra.mxu0 %v1450
    %1452 = vmatprep.subr.mxu0 0.0
    %1453 = vmatpush1.msra.mxu0 0.0
    %1454 = vmatprep.subr.mxu0 0.0
    %1455 = vmatpush1.msra.mxu0 0.0
    %1456 = vmatprep.subr.mxu0 0.0
    %1457 = vmatpush1.msra.mxu0 0.0
    %1458 = vmatprep.subr.mxu0 0.0
    %1459 = vmatpush1.msra.mxu0 0.0
    %1460 = vmatprep.subr.mxu0 0.0
    %1461 = vmatpush1.msra.mxu0 0.0
    %1462 = vmatprep.subr.mxu0 0.0
    %1463 = vmatpush1.msra.mxu0 0.0
    %1464 = vmatprep.subr.mxu0 0.0
    %1465 = vmatpush1.msra.mxu0 0.0
    %1466 = vmatprep.subr.mxu0 0.0
    %1467 = vmatpush1.msra.mxu0 0.0
    %1468 = vmatprep.subr.mxu0 0.0
    %1469 = vmatpush1.msra.mxu0 0.0
    %1470 = vmatprep.subr.mxu0 0.0
    %1471 = vmatpush1.msra.mxu0 0.0
    %1472 = vmatprep.subr.mxu0 0.0
    %1473 = vmatpush1.msra.mxu0 0.0
    %1474 = vmatprep.subr.mxu0 0.0
    %1475 = vmatpush1.msra.mxu0 0.0
    %1476 = vmatprep.subr.mxu0 0.0
    %1477 = vmatpush1.msra.mxu0 0.0
    %1478 = vmatprep.subr.mxu0 0.0
    %1479 = vmatpush1.msra.mxu0 0.0
    %1480 = vmatprep.subr.mxu0 0.0
    %1481 = vmatpush1.msra.mxu0 0.0
    %1482 = vmatprep.subr.mxu0 0.0
    %1483 = vmatpush1.msra.mxu0 0.0
    %1484 = vmatprep.subr.mxu0 0.0
    %1485 = vmatpush1.msra.mxu0 0.0
    %1486 = vmatprep.subr.mxu0 0.0
    %1487 = vmatpush1.msra.mxu0 0.0
    %1488 = vmatprep.subr.mxu0 0.0
    %1489 = vmatpush1.msra.mxu0 0.0
    %1490 = vmatprep.subr.mxu0 0.0
    %1491 = vmatpush1.msra.mxu0 0.0
    %1492 = vmatprep.subr.mxu0 0.0
    %1493 = vmatpush1.msra.mxu0 0.0
    %1494 = vmatprep.subr.mxu0 0.0
    %1495 = vmatpush1.msra.mxu0 0.0
    %1496 = vmatprep.subr.mxu0 0.0
    %1497 = vmatpush1.msra.mxu0 0.0
    %1498 = vmatprep.subr.mxu0 0.0
    %1499 = vmatpush1.msra.mxu0 0.0
    %1500 = vmatprep.subr.mxu0 0.0
    %1501 = vmatpush1.msra.mxu0 0.0
    %1502 = vmatprep.subr.mxu0 0.0
    %1503 = vmatpush1.msra.mxu0 0.0
    %1504 = vmatprep.subr.mxu0 0.0
    %1505 = vmatpush1.msra.mxu0 0.0
    %1506 = vmatprep.subr.mxu0 0.0
    %1507 = vmatpush1.msra.mxu0 0.0
    %1508 = vmatprep.subr.mxu0 0.0
    %1509 = vmatpush1.msra.mxu0 0.0
    %1510 = vmatprep.subr.mxu0 0.0
    %1511 = vmatpush1.msra.mxu0 0.0
    %1512 = vmatprep.subr.mxu0 0.0
    %1513 = vmatpush1.msra.mxu0 0.0
    %1514 = vmatprep.mubr.f32.mxu0 0.0
    %v1515 = vand.u32 %v793, 4294901760
    %1516 = vmatmul.mubr.f32.gmra.mrb[0].mxu0 %v1515
    %v1517 = vpop.f32.mrb[0].mxu0
    %v1518 = vadd.f32 %v1404, %v1517
    %v1519 = vpop.f32.mrb[0].mxu0
    %1520 = vmatprep.mubr.f32.mxu0 0.0
    %v1521 = vand.u32 %v796, 4294901760
    %1522 = vmatmul.mubr.f32.gmra.mrb[0].mxu0 %v1521
    %v1523 = vpop.f32.mrb[0].mxu0
    %v1524 = vadd.f32 %v1410, %v1523
    %v1525 = vpop.f32.mrb[0].mxu0
    %1526 = vmatprep.mubr.f32.mxu0 0.0
    %v1527 = vand.u32 %v799, 4294901760
    %1528 = vmatmul.mubr.f32.gmra.mrb[0].mxu0 %v1527
    %v1529 = vpop.f32.mrb[0].mxu0
    %v1530 = vadd.f32 %v1416, %v1529
    %v1531 = vpop.f32.mrb[0].mxu0
    %1532 = vmatprep.mubr.f32.mxu0 0.0
    %v1533 = vand.u32 %v802, 4294901760
    %1534 = vmatmul.mubr.f32.gmra.mrb[0].mxu0 %v1533
    %v1535 = vpop.f32.mrb[0].mxu0
    %v1536 = vadd.f32 %v1422, %v1535
    %v1537 = vpop.f32.mrb[0].mxu0
    %1538 = vmatprep.mubr.f32.mxu0 0.0
    %v1539 = vand.u32 %v805, 4294901760
    %1540 = vmatmul.mubr.f32.gmra.mrb[0].mxu0 %v1539
    %v1541 = vpop.f32.mrb[0].mxu0
    %v1542 = vadd.f32 %v1428, %v1541
    %v1543 = vpop.f32.mrb[0].mxu0
    %1544 = vmatprep.mubr.f32.mxu0 0.0
    %v1545 = vand.u32 %v808, 4294901760
    %1546 = vmatmul.mubr.f32.gmra.mrb[0].mxu0 %v1545
    %v1547 = vpop.f32.mrb[0].mxu0
    %v1548 = vadd.f32 %v1434, %v1547
    %v1549 = vpop.f32.mrb[0].mxu0
    %1550 = vmatprep.mubr.f32.mxu0 0.0
    %v1551 = vand.u32 %v811, 4294901760
    %1552 = vmatmul.mubr.f32.gmra.mrb[0].mxu0 %v1551
    %v1553 = vpop.f32.mrb[0].mxu0
    %v1554 = vadd.f32 %v1440, %v1553
    %v1555 = vpop.f32.mrb[0].mxu0
    %1556 = vmatprep.mubr.f32.mxu0 0.0
    %v1557 = vand.u32 %v814, 4294901760
    %1558 = vmatmul.mubr.f32.gmra.mrb[0].mxu0 %v1557
    %v1559 = vpop.f32.mrb[0].mxu0
    %v1560 = vadd.f32 %v1446, %v1559
    %v1561 = vpop.f32.mrb[0].mxu0
    %1562 = vdwg.mxu0
    %v1563 = vxor.u32 %v1518, 2147483648
    %v1564 = vxor.u32 %v1524, 2147483648
    %v1565 = vxor.u32 %v1530, 2147483648
    %v1566 = vxor.u32 %v1536, 2147483648
    %v1567 = vxor.u32 %v1542, 2147483648
    %v1568 = vxor.u32 %v1548, 2147483648
    %v1569 = vxor.u32 %v1554, 2147483648
    %v1570 = vxor.u32 %v1560, 2147483648
    %v1571 = vmul.f32 %v1563, 1.442695
    %v1572 = vpow.pop %v1571
    %v1573 = vmul.f32 %v1564, 1.442695
    %v1574 = vpow.pop %v1573
    %v1575 = vmul.f32 %v1565, 1.442695
    %v1576 = vpow.pop %v1575
    %v1577 = vmul.f32 %v1566, 1.442695
    %v1578 = vpow.pop %v1577
    %v1579 = vmul.f32 %v1567, 1.442695
    %v1580 = vpow.pop %v1579
    %v1581 = vmul.f32 %v1568, 1.442695
    %v1582 = vpow.pop %v1581
    %v1583 = vmul.f32 %v1569, 1.442695
    %v1584 = vpow.pop %v1583
    %v1585 = vmul.f32 %v1570, 1.442695
    %v1586 = vpow.pop %v1585
    %v1587 = vadd.f32 %v1572, 1.0
    %v1588 = vadd.f32 %v1574, 1.0
    %v1589 = vadd.f32 %v1576, 1.0
    %v1590 = vadd.f32 %v1578, 1.0
    %v1591 = vadd.f32 %v1580, 1.0
    %v1592 = vadd.f32 %v1582, 1.0
    %v1593 = vadd.f32 %v1584, 1.0
    %v1594 = vadd.f32 %v1586, 1.0
    %v1595 = vrcp.pop %v1587
    %v1596 = vmul.f32 1.0, %v1595
    %v1597 = vrcp.pop %v1588
    %v1598 = vmul.f32 1.0, %v1597
    %v1599 = vrcp.pop %v1589
    %v1600 = vmul.f32 1.0, %v1599
    %v1601 = vrcp.pop %v1590
    %v1602 = vmul.f32 1.0, %v1601
    %v1603 = vrcp.pop %v1591
    %v1604 = vmul.f32 1.0, %v1603
    %v1605 = vrcp.pop %v1592
    %v1606 = vmul.f32 1.0, %v1605
    %v1607 = vrcp.pop %v1593
    %v1608 = vmul.f32 1.0, %v1607
    %v1609 = vrcp.pop %v1594
    %v1610 = vmul.f32 1.0, %v1609
    %v1611 = vld [vmem:[#allocation4] sm:$0xff]
    %v1612 = vld [vmem:[#allocation4 + $0x8] sm:$0xff]
    %v1613 = vld [vmem:[#allocation4 + $0x10] sm:$0xff]
    %v1614 = vld [vmem:[#allocation4 + $0x18] sm:$0xff]
    %v1615 = vld [vmem:[#allocation4 + $0x20] sm:$0xff]
    %v1616 = vld [vmem:[#allocation4 + $0x28] sm:$0xff]
    %v1617 = vld [vmem:[#allocation4 + $0x30] sm:$0xff]
    %v1618 = vld [vmem:[#allocation4 + $0x38] sm:$0xff]
    %v1619 = vld [vmem:[#allocation4 + $0x40] sm:$0xff]
    %v1620 = vld [vmem:[#allocation4 + $0x48] sm:$0xff]
    %v1621 = vld [vmem:[#allocation4 + $0x50] sm:$0xff]
    %v1622 = vld [vmem:[#allocation4 + $0x58] sm:$0xff]
    %v1623 = vld [vmem:[#allocation4 + $0x60] sm:$0xff]
    %v1624 = vld [vmem:[#allocation4 + $0x68] sm:$0xff]
    %v1625 = vld [vmem:[#allocation4 + $0x70] sm:$0xff]
    %v1626 = vld [vmem:[#allocation4 + $0x78] sm:$0xff]
    %1628 = vset.pattern.permute.xlu0 0
    %1629 = vperm.xlu0 %1628, %v1596
    %v1630 = vpop.permute.xlu0 %1629
    %1633 = vset.pattern.permute.xlu0 0
    %1634 = vperm.xlu0 %1633, %v1598
    %v1635 = vpop.permute.xlu0 %1634
    %1638 = vset.pattern.permute.xlu0 0
    %1639 = vperm.xlu0 %1638, %v1600
    %v1640 = vpop.permute.xlu0 %1639
    %1643 = vset.pattern.permute.xlu0 0
    %1644 = vperm.xlu0 %1643, %v1602
    %v1645 = vpop.permute.xlu0 %1644
    %1648 = vset.pattern.permute.xlu0 0
    %1649 = vperm.xlu0 %1648, %v1604
    %v1650 = vpop.permute.xlu0 %1649
    %1653 = vset.pattern.permute.xlu0 0
    %1654 = vperm.xlu0 %1653, %v1606
    %v1655 = vpop.permute.xlu0 %1654
    %1658 = vset.pattern.permute.xlu0 0
    %1659 = vperm.xlu0 %1658, %v1608
    %v1660 = vpop.permute.xlu0 %1659
    %1663 = vset.pattern.permute.xlu0 0
    %1664 = vperm.xlu0 %1663, %v1610
    %v1665 = vpop.permute.xlu0 %1664
    %v1667 = vmul.f32 %v1611, %v1630
    %v1668 = vmul.f32 %v1612, %v1630
    %v1669 = vmul.f32 %v1613, %v1635
    %v1670 = vmul.f32 %v1614, %v1635
    %v1671 = vmul.f32 %v1615, %v1640
    %v1672 = vmul.f32 %v1616, %v1640
    %v1673 = vmul.f32 %v1617, %v1645
    %v1674 = vmul.f32 %v1618, %v1645
    %v1675 = vmul.f32 %v1619, %v1650
    %v1676 = vmul.f32 %v1620, %v1650
    %v1677 = vmul.f32 %v1621, %v1655
    %v1678 = vmul.f32 %v1622, %v1655
    %v1679 = vmul.f32 %v1623, %v1660
    %v1680 = vmul.f32 %v1624, %v1660
    %v1681 = vmul.f32 %v1625, %v1665
    %v1682 = vmul.f32 %v1626, %v1665
    %v1683 = vadd.f32 %v1667, %v1669
    %v1684 = vadd.f32 %v1683, %v1671
    %v1685 = vadd.f32 %v1684, %v1673
    %v1686 = vadd.f32 %v1685, %v1675
    %v1687 = vadd.f32 %v1686, %v1677
    %v1688 = vadd.f32 %v1687, %v1679
    %v1689 = vadd.f32 %v1688, %v1681
    %v1690 = vrot.slane %v1689, 4
    %v1691 = vadd.f32 %v1689, %v1690
    %v1692 = vrot.slane %v1691, 2
    %v1693 = vadd.f32 %v1691, %v1692
    %v1694 = vrot.slane %v1693, 1
    %v1695 = vadd.f32 %v1693, %v1694
    %v1696 = vadd.f32 %v1668, %v1670
    %v1697 = vadd.f32 %v1696, %v1672
    %v1698 = vadd.f32 %v1697, %v1674
    %v1699 = vadd.f32 %v1698, %v1676
    %v1700 = vadd.f32 %v1699, %v1678
    %v1701 = vadd.f32 %v1700, %v1680
    %v1702 = vadd.f32 %v1701, %v1682
    %v1703 = vrot.slane %v1702, 4
    %v1704 = vadd.f32 %v1702, %v1703
    %v1705 = vrot.slane %v1704, 2
    %v1706 = vadd.f32 %v1704, %v1705
    %v1707 = vrot.slane %v1706, 1
    %v1708 = vadd.f32 %v1706, %v1707
    %v1711 = vcombine.low %v1695, %v1708
    %v1713 = vunpack.c.l.s4 1966171168
    %v1714 = vunpack.c.0.s8 %v1713
    %v1715 = vlaneseq
    %v1716 = vshrl.u32 %v1715, 7
    %v1717 = vsub.s32 %v1714, %v1716
    %v1718 = vrot.slane %v1711, %v1717
    %v1720 = vunpack.c.l.s4 1966171168
    %v1721 = vunpack.c.0.s8 %v1720
    %v1722 = vlaneseq
    %v1723 = vshrl.u32 %v1722, 7
    %v1724 = vsub.s32 %v1721, %v1723
    %v1725 = vrot.slane %v1718, %v1724
    %v1727 = vlaneseq
    %vm1728 = vcmp.ge.s32.totalorder %v1727, 0
    %vm1729 = vcmp.lt.s32.totalorder %v1727, 256
    %vm1730 = vmand %vm1728, %vm1729
    %1731 = vst.msk [vmem:[#allocation3] ss:$2 sm:$0x3] %vm1730, %v1725
    %v1732 = vmax.f32 %v1667, %v1671
    %v1733 = vmax.f32 %v1669, %v1673
    %v1734 = vmax.f32 %v1732, %v1675
    %v1735 = vmax.f32 %v1733, %v1677
    %v1736 = vmax.f32 %v1734, %v1679
    %v1737 = vmax.f32 %v1735, %v1681
    %v1738 = vmax.f32 %v1736, %v1737
    %v1739 = vrot.slane %v1738, 4
    %v1740 = vmax.f32 %v1738, %v1739
    %v1741 = vrot.slane %v1740, 2
    %v1742 = vmax.f32 %v1740, %v1741
    %v1743 = vrot.slane %v1742, 1
    %v1744 = vmax.f32 %v1742, %v1743
    %v1745 = vmax.f32 %v1668, %v1672
    %v1746 = vmax.f32 %v1670, %v1674
    %v1747 = vmax.f32 %v1745, %v1676
    %v1748 = vmax.f32 %v1746, %v1678
    %v1749 = vmax.f32 %v1747, %v1680
    %v1750 = vmax.f32 %v1748, %v1682
    %v1751 = vmax.f32 %v1749, %v1750
    %v1752 = vrot.slane %v1751, 4
    %v1753 = vmax.f32 %v1751, %v1752
    %v1754 = vrot.slane %v1753, 2
    %v1755 = vmax.f32 %v1753, %v1754
    %v1756 = vrot.slane %v1755, 1
    %v1757 = vmax.f32 %v1755, %v1756
    %v1760 = vcombine.low %v1744, %v1757
    %v1762 = vunpack.c.l.s4 1966171168
    %v1763 = vunpack.c.0.s8 %v1762
    %v1764 = vlaneseq
    %v1765 = vshrl.u32 %v1764, 7
    %v1766 = vsub.s32 %v1763, %v1765
    %v1767 = vrot.slane %v1760, %v1766
    %v1769 = vunpack.c.l.s4 1966171168
    %v1770 = vunpack.c.0.s8 %v1769
    %v1771 = vlaneseq
    %v1772 = vshrl.u32 %v1771, 7
    %v1773 = vsub.s32 %v1770, %v1772
    %v1774 = vrot.slane %v1767, %v1773
    %s1776 = scalar_lea.vmem [#allocation3], 4
    %1777 = vst.msk [vmem:[%s1776] ss:$2 sm:$0x3] %vm1730, %v1774
    %v1778 = vld [vmem:[%s136] sm:$0xff]
    %v1779 = vld [vmem:[%s136 + $0x8] sm:$0xff]
    %v1780 = vld [vmem:[%s136 + $0x10] sm:$0xff]
    %v1781 = vld [vmem:[%s136 + $0x18] sm:$0xff]
    %v1782 = vld [vmem:[%s136 + $0x20] sm:$0xff]
    %v1783 = vld [vmem:[%s136 + $0x28] sm:$0xff]
    %v1784 = vld [vmem:[%s136 + $0x30] sm:$0xff]
    %v1785 = vld [vmem:[%s136 + $0x38] sm:$0xff]
    %v1786 = vld [vmem:[%s136 + $0x40] sm:$0xff]
    %v1787 = vld [vmem:[%s136 + $0x48] sm:$0xff]
    %v1788 = vld [vmem:[%s136 + $0x50] sm:$0xff]
    %v1789 = vld [vmem:[%s136 + $0x58] sm:$0xff]
    %v1790 = vld [vmem:[%s136 + $0x60] sm:$0xff]
    %v1791 = vld [vmem:[%s136 + $0x68] sm:$0xff]
    %v1792 = vld [vmem:[%s136 + $0x70] sm:$0xff]
    %v1793 = vld [vmem:[%s136 + $0x78] sm:$0xff]
    %1794 = vset.pattern.permute.xlu0 1
    %1795 = vperm.xlu0 %1794, %v1596
    %v1796 = vpop.permute.xlu0 %1795
    %1798 = vset.pattern.permute.xlu0 1
    %1799 = vperm.xlu0 %1798, %v1598
    %v1800 = vpop.permute.xlu0 %1799
    %1802 = vset.pattern.permute.xlu0 1
    %1803 = vperm.xlu0 %1802, %v1600
    %v1804 = vpop.permute.xlu0 %1803
    %1806 = vset.pattern.permute.xlu0 1
    %1807 = vperm.xlu0 %1806, %v1602
    %v1808 = vpop.permute.xlu0 %1807
    %1810 = vset.pattern.permute.xlu0 1
    %1811 = vperm.xlu0 %1810, %v1604
    %v1812 = vpop.permute.xlu0 %1811
    %1814 = vset.pattern.permute.xlu0 1
    %1815 = vperm.xlu0 %1814, %v1606
    %v1816 = vpop.permute.xlu0 %1815
    %1818 = vset.pattern.permute.xlu0 1
    %1819 = vperm.xlu0 %1818, %v1608
    %v1820 = vpop.permute.xlu0 %1819
    %1822 = vset.pattern.permute.xlu0 1
    %1823 = vperm.xlu0 %1822, %v1610
    %v1824 = vpop.permute.xlu0 %1823
    %v1826 = vmul.f32 %v1778, %v1796
    %v1827 = vmul.f32 %v1779, %v1796
    %v1828 = vmul.f32 %v1780, %v1800
    %v1829 = vmul.f32 %v1781, %v1800
    %v1830 = vmul.f32 %v1782, %v1804
    %v1831 = vmul.f32 %v1783, %v1804
    %v1832 = vmul.f32 %v1784, %v1808
    %v1833 = vmul.f32 %v1785, %v1808
    %v1834 = vmul.f32 %v1786, %v1812
    %v1835 = vmul.f32 %v1787, %v1812
    %v1836 = vmul.f32 %v1788, %v1816
    %v1837 = vmul.f32 %v1789, %v1816
    %v1838 = vmul.f32 %v1790, %v1820
    %v1839 = vmul.f32 %v1791, %v1820
    %v1840 = vmul.f32 %v1792, %v1824
    %v1841 = vmul.f32 %v1793, %v1824
    %v1842 = vadd.f32 %v1826, %v1828
    %v1843 = vadd.f32 %v1842, %v1830
    %v1844 = vadd.f32 %v1843, %v1832
    %v1845 = vadd.f32 %v1844, %v1834
    %v1846 = vadd.f32 %v1845, %v1836
    %v1847 = vadd.f32 %v1846, %v1838
    %v1848 = vadd.f32 %v1847, %v1840
    %v1849 = vrot.slane %v1848, 4
    %v1850 = vadd.f32 %v1848, %v1849
    %v1851 = vrot.slane %v1850, 2
    %v1852 = vadd.f32 %v1850, %v1851
    %v1853 = vrot.slane %v1852, 1
    %v1854 = vadd.f32 %v1852, %v1853
    %v1855 = vadd.f32 %v1827, %v1829
    %v1856 = vadd.f32 %v1855, %v1831
    %v1857 = vadd.f32 %v1856, %v1833
    %v1858 = vadd.f32 %v1857, %v1835
    %v1859 = vadd.f32 %v1858, %v1837
    %v1860 = vadd.f32 %v1859, %v1839
    %v1861 = vadd.f32 %v1860, %v1841
    %v1862 = vrot.slane %v1861, 4
    %v1863 = vadd.f32 %v1861, %v1862
    %v1864 = vrot.slane %v1863, 2
    %v1865 = vadd.f32 %v1863, %v1864
    %v1866 = vrot.slane %v1865, 1
    %v1867 = vadd.f32 %v1865, %v1866
    %v1870 = vcombine.low %v1854, %v1867
    %v1872 = vunpack.c.l.s4 1966171168
    %v1873 = vunpack.c.0.s8 %v1872
    %v1874 = vlaneseq
    %v1875 = vshrl.u32 %v1874, 7
    %v1876 = vsub.s32 %v1873, %v1875
    %v1877 = vrot.slane %v1870, %v1876
    %v1879 = vunpack.c.l.s4 1966171168
    %v1880 = vunpack.c.0.s8 %v1879
    %v1881 = vlaneseq
    %v1882 = vshrl.u32 %v1881, 7
    %v1883 = vsub.s32 %v1880, %v1882
    %v1884 = vrot.slane %v1877, %v1883
    %s1886 = scalar_lea.vmem [#allocation3], 1
    %1887 = vst.msk [vmem:[%s1886] ss:$2 sm:$0x3] %vm1730, %v1884
    %v1888 = vmax.f32 %v1826, %v1830
    %v1889 = vmax.f32 %v1828, %v1832
    %v1890 = vmax.f32 %v1888, %v1834
    %v1891 = vmax.f32 %v1889, %v1836
    %v1892 = vmax.f32 %v1890, %v1838
    %v1893 = vmax.f32 %v1891, %v1840
    %v1894 = vmax.f32 %v1892, %v1893
    %v1895 = vrot.slane %v1894, 4
    %v1896 = vmax.f32 %v1894, %v1895
    %v1897 = vrot.slane %v1896, 2
    %v1898 = vmax.f32 %v1896, %v1897
    %v1899 = vrot.slane %v1898, 1
    %v1900 = vmax.f32 %v1898, %v1899
    %v1901 = vmax.f32 %v1827, %v1831
    %v1902 = vmax.f32 %v1829, %v1833
    %v1903 = vmax.f32 %v1901, %v1835
    %v1904 = vmax.f32 %v1902, %v1837
    %v1905 = vmax.f32 %v1903, %v1839
    %v1906 = vmax.f32 %v1904, %v1841
    %v1907 = vmax.f32 %v1905, %v1906
    %v1908 = vrot.slane %v1907, 4
    %v1909 = vmax.f32 %v1907, %v1908
    %v1910 = vrot.slane %v1909, 2
    %v1911 = vmax.f32 %v1909, %v1910
    %v1912 = vrot.slane %v1911, 1
    %v1913 = vmax.f32 %v1911, %v1912
    %v1916 = vcombine.low %v1900, %v1913
    %v1918 = vunpack.c.l.s4 1966171168
    %v1919 = vunpack.c.0.s8 %v1918
    %v1920 = vlaneseq
    %v1921 = vshrl.u32 %v1920, 7
    %v1922 = vsub.s32 %v1919, %v1921
    %v1923 = vrot.slane %v1916, %v1922
    %v1925 = vunpack.c.l.s4 1966171168
    %v1926 = vunpack.c.0.s8 %v1925
    %v1927 = vlaneseq
    %v1928 = vshrl.u32 %v1927, 7
    %v1929 = vsub.s32 %v1926, %v1928
    %v1930 = vrot.slane %v1923, %v1929
    %s1932 = scalar_lea.vmem [#allocation3], 5
    %1933 = vst.msk [vmem:[%s1932] ss:$2 sm:$0x3] %vm1730, %v1930
    %v1934 = vld [vmem:[#allocation3] sm:$0xff]
    %v1935 = vld [vmem:[#allocation7] sm:$0xff]
    %v1936 = vld [vmem:[#allocation7 + $0x8] sm:$0xff]
    %v1937 = vld [vmem:[#allocation7 + $0x10] sm:$0xff]
    %v1938 = vld [vmem:[#allocation7 + $0x18] sm:$0xff]
    %v1939 = vld [vmem:[#allocation7 + $0x20] sm:$0xff]
    %v1940 = vld [vmem:[#allocation7 + $0x28] sm:$0xff]
    %v1941 = vld [vmem:[#allocation7 + $0x30] sm:$0xff]
    %v1942 = vld [vmem:[#allocation7 + $0x38] sm:$0xff]
    %v1943 = vld [vmem:[#allocation7 + $0x40] sm:$0xff]
    %v1944 = vld [vmem:[#allocation7 + $0x48] sm:$0xff]
    %v1945 = vld [vmem:[#allocation7 + $0x50] sm:$0xff]
    %v1946 = vld [vmem:[#allocation7 + $0x58] sm:$0xff]
    %v1947 = vld [vmem:[#allocation7 + $0x60] sm:$0xff]
    %v1948 = vld [vmem:[#allocation7 + $0x68] sm:$0xff]
    %v1949 = vld [vmem:[#allocation7 + $0x70] sm:$0xff]
    %v1950 = vld [vmem:[#allocation7 + $0x78] sm:$0xff]
    %v1951 = vld [vmem:[#allocation7 + $0x80] sm:$0xff]
    %v1952 = vld [vmem:[#allocation7 + $0x88] sm:$0xff]
    %v1953 = vld [vmem:[#allocation7 + $0x90] sm:$0xff]
    %v1954 = vld [vmem:[#allocation7 + $0x98] sm:$0xff]
    %v1955 = vld [vmem:[#allocation7 + $0xa0] sm:$0xff]
    %v1956 = vld [vmem:[#allocation7 + $0xa8] sm:$0xff]
    %v1957 = vld [vmem:[#allocation7 + $0xb0] sm:$0xff]
    %v1958 = vld [vmem:[#allocation7 + $0xb8] sm:$0xff]
    %v1959 = vld [vmem:[#allocation7 + $0xc0] sm:$0xff]
    %v1960 = vld [vmem:[#allocation7 + $0xc8] sm:$0xff]
    %v1961 = vld [vmem:[#allocation7 + $0xd0] sm:$0xff]
    %v1962 = vld [vmem:[#allocation7 + $0xd8] sm:$0xff]
    %v1963 = vld [vmem:[#allocation7 + $0xe0] sm:$0xff]
    %v1964 = vld [vmem:[#allocation7 + $0xe8] sm:$0xff]
    %v1965 = vld [vmem:[#allocation7 + $0xf0] sm:$0xff]
    %v1966 = vld [vmem:[#allocation7 + $0xf8] sm:$0xff]
    %v1967 = vld [vmem:[#allocation7 + $0x100] sm:$0xff]
    %v1968 = vld [vmem:[#allocation7 + $0x108] sm:$0xff]
    %v1969 = vld [vmem:[#allocation7 + $0x110] sm:$0xff]
    %v1970 = vld [vmem:[#allocation7 + $0x118] sm:$0xff]
    %v1971 = vld [vmem:[#allocation7 + $0x120] sm:$0xff]
    %v1972 = vld [vmem:[#allocation7 + $0x128] sm:$0xff]
    %v1973 = vld [vmem:[#allocation7 + $0x130] sm:$0xff]
    %v1974 = vld [vmem:[#allocation7 + $0x138] sm:$0xff]
    %v1975 = vld [vmem:[#allocation7 + $0x140] sm:$0xff]
    %v1976 = vld [vmem:[#allocation7 + $0x148] sm:$0xff]
    %v1977 = vld [vmem:[#allocation7 + $0x150] sm:$0xff]
    %v1978 = vld [vmem:[#allocation7 + $0x158] sm:$0xff]
    %v1979 = vld [vmem:[#allocation7 + $0x160] sm:$0xff]
    %v1980 = vld [vmem:[#allocation7 + $0x168] sm:$0xff]
    %v1981 = vld [vmem:[#allocation7 + $0x170] sm:$0xff]
    %v1982 = vld [vmem:[#allocation7 + $0x178] sm:$0xff]
    %v1983 = vld [vmem:[#allocation7 + $0x180] sm:$0xff]
    %v1984 = vld [vmem:[#allocation7 + $0x188] sm:$0xff]
    %v1985 = vld [vmem:[#allocation7 + $0x190] sm:$0xff]
    %v1986 = vld [vmem:[#allocation7 + $0x198] sm:$0xff]
    %v1987 = vld [vmem:[#allocation7 + $0x1a0] sm:$0xff]
    %v1988 = vld [vmem:[#allocation7 + $0x1a8] sm:$0xff]
    %v1989 = vld [vmem:[#allocation7 + $0x1b0] sm:$0xff]
    %v1990 = vld [vmem:[#allocation7 + $0x1b8] sm:$0xff]
    %v1991 = vld [vmem:[#allocation7 + $0x1c0] sm:$0xff]
    %v1992 = vld [vmem:[#allocation7 + $0x1c8] sm:$0xff]
    %v1993 = vld [vmem:[#allocation7 + $0x1d0] sm:$0xff]
    %v1994 = vld [vmem:[#allocation7 + $0x1d8] sm:$0xff]
    %v1995 = vld [vmem:[#allocation7 + $0x1e0] sm:$0xff]
    %v1996 = vld [vmem:[#allocation7 + $0x1e8] sm:$0xff]
    %v1997 = vld [vmem:[#allocation7 + $0x1f0] sm:$0xff]
    %v1998 = vld [vmem:[#allocation7 + $0x1f8] sm:$0xff]
    %v1999 = vld [vmem:[#allocation7 + $0x200] sm:$0xff]
    %v2000 = vld [vmem:[#allocation7 + $0x208] sm:$0xff]
    %v2001 = vld [vmem:[#allocation7 + $0x210] sm:$0xff]
    %v2002 = vld [vmem:[#allocation7 + $0x218] sm:$0xff]
    %v2003 = vld [vmem:[#allocation7 + $0x220] sm:$0xff]
    %v2004 = vld [vmem:[#allocation7 + $0x228] sm:$0xff]
    %v2005 = vld [vmem:[#allocation7 + $0x230] sm:$0xff]
    %v2006 = vld [vmem:[#allocation7 + $0x238] sm:$0xff]
    %v2007 = vld [vmem:[#allocation7 + $0x240] sm:$0xff]
    %v2008 = vld [vmem:[#allocation7 + $0x248] sm:$0xff]
    %v2009 = vld [vmem:[#allocation7 + $0x250] sm:$0xff]
    %v2010 = vld [vmem:[#allocation7 + $0x258] sm:$0xff]
    %v2011 = vld [vmem:[#allocation7 + $0x260] sm:$0xff]
    %v2012 = vld [vmem:[#allocation7 + $0x268] sm:$0xff]
    %v2013 = vld [vmem:[#allocation7 + $0x270] sm:$0xff]
    %v2014 = vld [vmem:[#allocation7 + $0x278] sm:$0xff]
    %v2015 = vld [vmem:[#allocation7 + $0x280] sm:$0xff]
    %v2016 = vld [vmem:[#allocation7 + $0x288] sm:$0xff]
    %v2017 = vld [vmem:[#allocation7 + $0x290] sm:$0xff]
    %v2018 = vld [vmem:[#allocation7 + $0x298] sm:$0xff]
    %v2019 = vld [vmem:[#allocation7 + $0x2a0] sm:$0xff]
    %v2020 = vld [vmem:[#allocation7 + $0x2a8] sm:$0xff]
    %v2021 = vld [vmem:[#allocation7 + $0x2b0] sm:$0xff]
    %v2022 = vld [vmem:[#allocation7 + $0x2b8] sm:$0xff]
    %v2023 = vld [vmem:[#allocation7 + $0x2c0] sm:$0xff]
    %v2024 = vld [vmem:[#allocation7 + $0x2c8] sm:$0xff]
    %v2025 = vld [vmem:[#allocation7 + $0x2d0] sm:$0xff]
    %v2026 = vld [vmem:[#allocation7 + $0x2d8] sm:$0xff]
    %v2027 = vld [vmem:[#allocation7 + $0x2e0] sm:$0xff]
    %v2028 = vld [vmem:[#allocation7 + $0x2e8] sm:$0xff]
    %v2029 = vld [vmem:[#allocation7 + $0x2f0] sm:$0xff]
    %v2030 = vld [vmem:[#allocation7 + $0x2f8] sm:$0xff]
    %v2031 = vld [vmem:[#allocation7 + $0x300] sm:$0xff]
    %v2032 = vld [vmem:[#allocation7 + $0x308] sm:$0xff]
    %v2033 = vld [vmem:[#allocation7 + $0x310] sm:$0xff]
    %v2034 = vld [vmem:[#allocation7 + $0x318] sm:$0xff]
    %v2035 = vld [vmem:[#allocation7 + $0x320] sm:$0xff]
    %v2036 = vld [vmem:[#allocation7 + $0x328] sm:$0xff]
    %v2037 = vld [vmem:[#allocation7 + $0x330] sm:$0xff]
    %v2038 = vld [vmem:[#allocation7 + $0x338] sm:$0xff]
    %v2039 = vld [vmem:[#allocation7 + $0x340] sm:$0xff]
    %v2040 = vld [vmem:[#allocation7 + $0x348] sm:$0xff]
    %v2041 = vld [vmem:[#allocation7 + $0x350] sm:$0xff]
    %v2042 = vld [vmem:[#allocation7 + $0x358] sm:$0xff]
    %v2043 = vld [vmem:[#allocation7 + $0x360] sm:$0xff]
    %v2044 = vld [vmem:[#allocation7 + $0x368] sm:$0xff]
    %v2045 = vld [vmem:[#allocation7 + $0x370] sm:$0xff]
    %v2046 = vld [vmem:[#allocation7 + $0x378] sm:$0xff]
    %v2047 = vld [vmem:[#allocation7 + $0x380] sm:$0xff]
    %v2048 = vld [vmem:[#allocation7 + $0x388] sm:$0xff]
    %v2049 = vld [vmem:[#allocation7 + $0x390] sm:$0xff]
    %v2050 = vld [vmem:[#allocation7 + $0x398] sm:$0xff]
    %v2051 = vld [vmem:[#allocation7 + $0x3a0] sm:$0xff]
    %v2052 = vld [vmem:[#allocation7 + $0x3a8] sm:$0xff]
    %v2053 = vld [vmem:[#allocation7 + $0x3b0] sm:$0xff]
    %v2054 = vld [vmem:[#allocation7 + $0x3b8] sm:$0xff]
    %v2055 = vld [vmem:[#allocation7 + $0x3c0] sm:$0xff]
    %v2056 = vld [vmem:[#allocation7 + $0x3c8] sm:$0xff]
    %v2057 = vld [vmem:[#allocation7 + $0x3d0] sm:$0xff]
    %v2058 = vld [vmem:[#allocation7 + $0x3d8] sm:$0xff]
    %v2059 = vld [vmem:[#allocation7 + $0x3e0] sm:$0xff]
    %v2060 = vld [vmem:[#allocation7 + $0x3e8] sm:$0xff]
    %v2061 = vld [vmem:[#allocation7 + $0x3f0] sm:$0xff]
    %v2062 = vld [vmem:[#allocation7 + $0x3f8] sm:$0xff]
    %v2064 = vcombine.high %v1934, %v1934
    %v2066 = vunpack.c.l.s4 1983009808
    %v2067 = vunpack.c.0.s8 %v2066
    %v2068 = vlaneseq
    %v2069 = vshrl.u32 %v2068, 7
    %v2070 = vsub.s32 %v2067, %v2069
    %v2071 = vrot.slane %v1934, %v2070
    %v2073 = vunpack.c.l.s4 1983009808
    %v2074 = vunpack.c.0.s8 %v2073
    %v2075 = vlaneseq
    %v2076 = vshrl.u32 %v2075, 7
    %v2077 = vsub.s32 %v2074, %v2076
    %v2078 = vrot.slane %v2064, %v2077
    %v2079 = vcombine.high %v2071, %v2071
    %v2080 = vcombine.high %v2078, %v2078
    %v2085 = vand.u32 %v1936, 4294901760
    %2086 = vmatprep.subr.mxu0 %v2085
    %v2087 = vand.u32 %v1935, 4294901760
    %2088 = vmatpush1.msra.mxu0 %v2087
    %v2089 = vand.u32 %v1938, 4294901760
    %2090 = vmatprep.subr.mxu0 %v2089
    %v2091 = vand.u32 %v1937, 4294901760
    %2092 = vmatpush1.msra.mxu0 %v2091
    %v2093 = vand.u32 %v1940, 4294901760
    %2094 = vmatprep.subr.mxu0 %v2093
    %v2095 = vand.u32 %v1939, 4294901760
    %2096 = vmatpush1.msra.mxu0 %v2095
    %v2097 = vand.u32 %v1942, 4294901760
    %2098 = vmatprep.subr.mxu0 %v2097
    %v2099 = vand.u32 %v1941, 4294901760
    %2100 = vmatpush1.msra.mxu0 %v2099
    %v2101 = vand.u32 %v1944, 4294901760
    %2102 = vmatprep.subr.mxu0 %v2101
    %v2103 = vand.u32 %v1943, 4294901760
    %2104 = vmatpush1.msra.mxu0 %v2103
    %v2105 = vand.u32 %v1946, 4294901760
    %2106 = vmatprep.subr.mxu0 %v2105
    %v2107 = vand.u32 %v1945, 4294901760
    %2108 = vmatpush1.msra.mxu0 %v2107
    %v2109 = vand.u32 %v1948, 4294901760
    %2110 = vmatprep.subr.mxu0 %v2109
    %v2111 = vand.u32 %v1947, 4294901760
    %2112 = vmatpush1.msra.mxu0 %v2111
    %v2113 = vand.u32 %v1950, 4294901760
    %2114 = vmatprep.subr.mxu0 %v2113
    %v2115 = vand.u32 %v1949, 4294901760
    %2116 = vmatpush1.msra.mxu0 %v2115
    %v2117 = vand.u32 %v1952, 4294901760
    %2118 = vmatprep.subr.mxu0 %v2117
    %v2119 = vand.u32 %v1951, 4294901760
    %2120 = vmatpush1.msra.mxu0 %v2119
    %v2121 = vand.u32 %v1954, 4294901760
    %2122 = vmatprep.subr.mxu0 %v2121
    %v2123 = vand.u32 %v1953, 4294901760
    %2124 = vmatpush1.msra.mxu0 %v2123
    %v2125 = vand.u32 %v1956, 4294901760
    %2126 = vmatprep.subr.mxu0 %v2125
    %v2127 = vand.u32 %v1955, 4294901760
    %2128 = vmatpush1.msra.mxu0 %v2127
    %v2129 = vand.u32 %v1958, 4294901760
    %2130 = vmatprep.subr.mxu0 %v2129
    %v2131 = vand.u32 %v1957, 4294901760
    %2132 = vmatpush1.msra.mxu0 %v2131
    %v2133 = vand.u32 %v1960, 4294901760
    %2134 = vmatprep.subr.mxu0 %v2133
    %v2135 = vand.u32 %v1959, 4294901760
    %2136 = vmatpush1.msra.mxu0 %v2135
    %v2137 = vand.u32 %v1962, 4294901760
    %2138 = vmatprep.subr.mxu0 %v2137
    %v2139 = vand.u32 %v1961, 4294901760
    %2140 = vmatpush1.msra.mxu0 %v2139
    %v2141 = vand.u32 %v1964, 4294901760
    %2142 = vmatprep.subr.mxu0 %v2141
    %v2143 = vand.u32 %v1963, 4294901760
    %2144 = vmatpush1.msra.mxu0 %v2143
    %v2145 = vand.u32 %v1966, 4294901760
    %2146 = vmatprep.subr.mxu0 %v2145
    %v2147 = vand.u32 %v1965, 4294901760
    %2148 = vmatpush1.msra.mxu0 %v2147
    %v2149 = vand.u32 %v1968, 4294901760
    %2150 = vmatprep.subr.mxu0 %v2149
    %v2151 = vand.u32 %v1967, 4294901760
    %2152 = vmatpush1.msra.mxu0 %v2151
    %v2153 = vand.u32 %v1970, 4294901760
    %2154 = vmatprep.subr.mxu0 %v2153
    %v2155 = vand.u32 %v1969, 4294901760
    %2156 = vmatpush1.msra.mxu0 %v2155
    %v2157 = vand.u32 %v1972, 4294901760
    %2158 = vmatprep.subr.mxu0 %v2157
    %v2159 = vand.u32 %v1971, 4294901760
    %2160 = vmatpush1.msra.mxu0 %v2159
    %v2161 = vand.u32 %v1974, 4294901760
    %2162 = vmatprep.subr.mxu0 %v2161
    %v2163 = vand.u32 %v1973, 4294901760
    %2164 = vmatpush1.msra.mxu0 %v2163
    %v2165 = vand.u32 %v1976, 4294901760
    %2166 = vmatprep.subr.mxu0 %v2165
    %v2167 = vand.u32 %v1975, 4294901760
    %2168 = vmatpush1.msra.mxu0 %v2167
    %v2169 = vand.u32 %v1978, 4294901760
    %2170 = vmatprep.subr.mxu0 %v2169
    %v2171 = vand.u32 %v1977, 4294901760
    %2172 = vmatpush1.msra.mxu0 %v2171
    %v2173 = vand.u32 %v1980, 4294901760
    %2174 = vmatprep.subr.mxu0 %v2173
    %v2175 = vand.u32 %v1979, 4294901760
    %2176 = vmatpush1.msra.mxu0 %v2175
    %v2177 = vand.u32 %v1982, 4294901760
    %2178 = vmatprep.subr.mxu0 %v2177
    %v2179 = vand.u32 %v1981, 4294901760
    %2180 = vmatpush1.msra.mxu0 %v2179
    %v2181 = vand.u32 %v1984, 4294901760
    %2182 = vmatprep.subr.mxu0 %v2181
    %v2183 = vand.u32 %v1983, 4294901760
    %2184 = vmatpush1.msra.mxu0 %v2183
    %v2185 = vand.u32 %v1986, 4294901760
    %2186 = vmatprep.subr.mxu0 %v2185
    %v2187 = vand.u32 %v1985, 4294901760
    %2188 = vmatpush1.msra.mxu0 %v2187
    %v2189 = vand.u32 %v1988, 4294901760
    %2190 = vmatprep.subr.mxu0 %v2189
    %v2191 = vand.u32 %v1987, 4294901760
    %2192 = vmatpush1.msra.mxu0 %v2191
    %v2193 = vand.u32 %v1990, 4294901760
    %2194 = vmatprep.subr.mxu0 %v2193
    %v2195 = vand.u32 %v1989, 4294901760
    %2196 = vmatpush1.msra.mxu0 %v2195
    %v2197 = vand.u32 %v1992, 4294901760
    %2198 = vmatprep.subr.mxu0 %v2197
    %v2199 = vand.u32 %v1991, 4294901760
    %2200 = vmatpush1.msra.mxu0 %v2199
    %v2201 = vand.u32 %v1994, 4294901760
    %2202 = vmatprep.subr.mxu0 %v2201
    %v2203 = vand.u32 %v1993, 4294901760
    %2204 = vmatpush1.msra.mxu0 %v2203
    %v2205 = vand.u32 %v1996, 4294901760
    %2206 = vmatprep.subr.mxu0 %v2205
    %v2207 = vand.u32 %v1995, 4294901760
    %2208 = vmatpush1.msra.mxu0 %v2207
    %v2209 = vand.u32 %v1998, 4294901760
    %2210 = vmatprep.subr.mxu0 %v2209
    %v2211 = vand.u32 %v1997, 4294901760
    %2212 = vmatpush1.msra.mxu0 %v2211
    %v2213 = vand.u32 %v2079, 4294901760
    %v2214 = vsub.f32 %v2079, %v2213
    %v2215 = vand.u32 %v2214, 4294901760
    %v2216 = vsub.f32 %v2214, %v2215
    %v2217 = vand.u32 %v2216, 4294901760
    %2218 = vmatprep.mubr.f32.mxu0 %v2217
    %v2219 = vand.u32 %v2071, 4294901760
    %v2220 = vsub.f32 %v2071, %v2219
    %v2221 = vand.u32 %v2220, 4294901760
    %v2222 = vsub.f32 %v2220, %v2221
    %v2223 = vand.u32 %v2222, 4294901760
    %2224 = vmatmul.mubr.f32.gmra.mrb[0].mxu0 %v2223
    %v2225 = vpop.f32.mrb[0].mxu0
    %v2226 = vadd.f32 0.0, %v2225
    %v2227 = vpop.f32.mrb[0].mxu0
    %v2228 = vadd.f32 0.0, %v2227
    %2229 = vdwg.mxu0
    %v2230 = vand.u32 %v1936, 4294901760
    %v2231 = vsub.f32 %v1936, %v2230
    %v2232 = vand.u32 %v2231, 4294901760
    %v2233 = vsub.f32 %v2231, %v2232
    %v2234 = vand.u32 %v2233, 4294901760
    %2235 = vmatprep.subr.mxu0 %v2234
    %v2236 = vand.u32 %v1935, 4294901760
    %v2237 = vsub.f32 %v1935, %v2236
    %v2238 = vand.u32 %v2237, 4294901760
    %v2239 = vsub.f32 %v2237, %v2238
    %v2240 = vand.u32 %v2239, 4294901760
    %2241 = vmatpush1.msra.mxu0 %v2240
    %v2242 = vand.u32 %v1938, 4294901760
    %v2243 = vsub.f32 %v1938, %v2242
    %v2244 = vand.u32 %v2243, 4294901760
    %v2245 = vsub.f32 %v2243, %v2244
    %v2246 = vand.u32 %v2245, 4294901760
    %2247 = vmatprep.subr.mxu0 %v2246
    %v2248 = vand.u32 %v1937, 4294901760
    %v2249 = vsub.f32 %v1937, %v2248
    %v2250 = vand.u32 %v2249, 4294901760
    %v2251 = vsub.f32 %v2249, %v2250
    %v2252 = vand.u32 %v2251, 4294901760
    %2253 = vmatpush1.msra.mxu0 %v2252
    %v2254 = vand.u32 %v1940, 4294901760
    %v2255 = vsub.f32 %v1940, %v2254
    %v2256 = vand.u32 %v2255, 4294901760
    %v2257 = vsub.f32 %v2255, %v2256
    %v2258 = vand.u32 %v2257, 4294901760
    %2259 = vmatprep.subr.mxu0 %v2258
    %v2260 = vand.u32 %v1939, 4294901760
    %v2261 = vsub.f32 %v1939, %v2260
    %v2262 = vand.u32 %v2261, 4294901760
    %v2263 = vsub.f32 %v2261, %v2262
    %v2264 = vand.u32 %v2263, 4294901760
    %2265 = vmatpush1.msra.mxu0 %v2264
    %v2266 = vand.u32 %v1942, 4294901760
    %v2267 = vsub.f32 %v1942, %v2266
    %v2268 = vand.u32 %v2267, 4294901760
    %v2269 = vsub.f32 %v2267, %v2268
    %v2270 = vand.u32 %v2269, 4294901760
    %2271 = vmatprep.subr.mxu0 %v2270
    %v2272 = vand.u32 %v1941, 4294901760
    %v2273 = vsub.f32 %v1941, %v2272
    %v2274 = vand.u32 %v2273, 4294901760
    %v2275 = vsub.f32 %v2273, %v2274
    %v2276 = vand.u32 %v2275, 4294901760
    %2277 = vmatpush1.msra.mxu0 %v2276
    %v2278 = vand.u32 %v1944, 4294901760
    %v2279 = vsub.f32 %v1944, %v2278
    %v2280 = vand.u32 %v2279, 4294901760
    %v2281 = vsub.f32 %v2279, %v2280
    %v2282 = vand.u32 %v2281, 4294901760
    %2283 = vmatprep.subr.mxu0 %v2282
    %v2284 = vand.u32 %v1943, 4294901760
    %v2285 = vsub.f32 %v1943, %v2284
    %v2286 = vand.u32 %v2285, 4294901760
    %v2287 = vsub.f32 %v2285, %v2286
    %v2288 = vand.u32 %v2287, 4294901760
    %2289 = vmatpush1.msra.mxu0 %v2288
    %v2290 = vand.u32 %v1946, 4294901760
    %v2291 = vsub.f32 %v1946, %v2290
    %v2292 = vand.u32 %v2291, 4294901760
    %v2293 = vsub.f32 %v2291, %v2292
    %v2294 = vand.u32 %v2293, 4294901760
    %2295 = vmatprep.subr.mxu0 %v2294
    %v2296 = vand.u32 %v1945, 4294901760
    %v2297 = vsub.f32 %v1945, %v2296
    %v2298 = vand.u32 %v2297, 4294901760
    %v2299 = vsub.f32 %v2297, %v2298
    %v2300 = vand.u32 %v2299, 4294901760
    %2301 = vmatpush1.msra.mxu0 %v2300
    %v2302 = vand.u32 %v1948, 4294901760
    %v2303 = vsub.f32 %v1948, %v2302
    %v2304 = vand.u32 %v2303, 4294901760
    %v2305 = vsub.f32 %v2303, %v2304
    %v2306 = vand.u32 %v2305, 4294901760
    %2307 = vmatprep.subr.mxu0 %v2306
    %v2308 = vand.u32 %v1947, 4294901760
    %v2309 = vsub.f32 %v1947, %v2308
    %v2310 = vand.u32 %v2309, 4294901760
    %v2311 = vsub.f32 %v2309, %v2310
    %v2312 = vand.u32 %v2311, 4294901760
    %2313 = vmatpush1.msra.mxu0 %v2312
    %v2314 = vand.u32 %v1950, 4294901760
    %v2315 = vsub.f32 %v1950, %v2314
    %v2316 = vand.u32 %v2315, 4294901760
    %v2317 = vsub.f32 %v2315, %v2316
    %v2318 = vand.u32 %v2317, 4294901760
    %2319 = vmatprep.subr.mxu0 %v2318
    %v2320 = vand.u32 %v1949, 4294901760
    %v2321 = vsub.f32 %v1949, %v2320
    %v2322 = vand.u32 %v2321, 4294901760
    %v2323 = vsub.f32 %v2321, %v2322
    %v2324 = vand.u32 %v2323, 4294901760
    %2325 = vmatpush1.msra.mxu0 %v2324
    %v2326 = vand.u32 %v1952, 4294901760
    %v2327 = vsub.f32 %v1952, %v2326
    %v2328 = vand.u32 %v2327, 4294901760
    %v2329 = vsub.f32 %v2327, %v2328
    %v2330 = vand.u32 %v2329, 4294901760
    %2331 = vmatprep.subr.mxu0 %v2330
    %v2332 = vand.u32 %v1951, 4294901760
    %v2333 = vsub.f32 %v1951, %v2332
    %v2334 = vand.u32 %v2333, 4294901760
    %v2335 = vsub.f32 %v2333, %v2334
    %v2336 = vand.u32 %v2335, 4294901760
    %2337 = vmatpush1.msra.mxu0 %v2336
    %v2338 = vand.u32 %v1954, 4294901760
    %v2339 = vsub.f32 %v1954, %v2338
    %v2340 = vand.u32 %v2339, 4294901760
    %v2341 = vsub.f32 %v2339, %v2340
    %v2342 = vand.u32 %v2341, 4294901760
    %2343 = vmatprep.subr.mxu0 %v2342
    %v2344 = vand.u32 %v1953, 4294901760
    %v2345 = vsub.f32 %v1953, %v2344
    %v2346 = vand.u32 %v2345, 4294901760
    %v2347 = vsub.f32 %v2345, %v2346
    %v2348 = vand.u32 %v2347, 4294901760
    %2349 = vmatpush1.msra.mxu0 %v2348
    %v2350 = vand.u32 %v1956, 4294901760
    %v2351 = vsub.f32 %v1956, %v2350
    %v2352 = vand.u32 %v2351, 4294901760
    %v2353 = vsub.f32 %v2351, %v2352
    %v2354 = vand.u32 %v2353, 4294901760
    %2355 = vmatprep.subr.mxu0 %v2354
    %v2356 = vand.u32 %v1955, 4294901760
    %v2357 = vsub.f32 %v1955, %v2356
    %v2358 = vand.u32 %v2357, 4294901760
    %v2359 = vsub.f32 %v2357, %v2358
    %v2360 = vand.u32 %v2359, 4294901760
    %2361 = vmatpush1.msra.mxu0 %v2360
    %v2362 = vand.u32 %v1958, 4294901760
    %v2363 = vsub.f32 %v1958, %v2362
    %v2364 = vand.u32 %v2363, 4294901760
    %v2365 = vsub.f32 %v2363, %v2364
    %v2366 = vand.u32 %v2365, 4294901760
    %2367 = vmatprep.subr.mxu0 %v2366
    %v2368 = vand.u32 %v1957, 4294901760
    %v2369 = vsub.f32 %v1957, %v2368
    %v2370 = vand.u32 %v2369, 4294901760
    %v2371 = vsub.f32 %v2369, %v2370
    %v2372 = vand.u32 %v2371, 4294901760
    %2373 = vmatpush1.msra.mxu0 %v2372
    %v2374 = vand.u32 %v1960, 4294901760
    %v2375 = vsub.f32 %v1960, %v2374
    %v2376 = vand.u32 %v2375, 4294901760
    %v2377 = vsub.f32 %v2375, %v2376
    %v2378 = vand.u32 %v2377, 4294901760
    %2379 = vmatprep.subr.mxu0 %v2378
    %v2380 = vand.u32 %v1959, 4294901760
    %v2381 = vsub.f32 %v1959, %v2380
    %v2382 = vand.u32 %v2381, 4294901760
    %v2383 = vsub.f32 %v2381, %v2382
    %v2384 = vand.u32 %v2383, 4294901760
    %2385 = vmatpush1.msra.mxu0 %v2384
    %v2386 = vand.u32 %v1962, 4294901760
    %v2387 = vsub.f32 %v1962, %v2386
    %v2388 = vand.u32 %v2387, 4294901760
    %v2389 = vsub.f32 %v2387, %v2388
    %v2390 = vand.u32 %v2389, 4294901760
    %2391 = vmatprep.subr.mxu0 %v2390
    %v2392 = vand.u32 %v1961, 4294901760
    %v2393 = vsub.f32 %v1961, %v2392
    %v2394 = vand.u32 %v2393, 4294901760
    %v2395 = vsub.f32 %v2393, %v2394
    %v2396 = vand.u32 %v2395, 4294901760
    %2397 = vmatpush1.msra.mxu0 %v2396
    %v2398 = vand.u32 %v1964, 4294901760
    %v2399 = vsub.f32 %v1964, %v2398
    %v2400 = vand.u32 %v2399, 4294901760
    %v2401 = vsub.f32 %v2399, %v2400
    %v2402 = vand.u32 %v2401, 4294901760
    %2403 = vmatprep.subr.mxu0 %v2402
    %v2404 = vand.u32 %v1963, 4294901760
    %v2405 = vsub.f32 %v1963, %v2404
    %v2406 = vand.u32 %v2405, 4294901760
    %v2407 = vsub.f32 %v2405, %v2406
    %v2408 = vand.u32 %v2407, 4294901760
    %2409 = vmatpush1.msra.mxu0 %v2408
    %v2410 = vand.u32 %v1966, 4294901760
    %v2411 = vsub.f32 %v1966, %v2410
    %v2412 = vand.u32 %v2411, 4294901760
    %v2413 = vsub.f32 %v2411, %v2412
    %v2414 = vand.u32 %v2413, 4294901760
    %2415 = vmatprep.subr.mxu0 %v2414
    %v2416 = vand.u32 %v1965, 4294901760
    %v2417 = vsub.f32 %v1965, %v2416
    %v2418 = vand.u32 %v2417, 4294901760
    %v2419 = vsub.f32 %v2417, %v2418
    %v2420 = vand.u32 %v2419, 4294901760
    %2421 = vmatpush1.msra.mxu0 %v2420
    %v2422 = vand.u32 %v1968, 4294901760
    %v2423 = vsub.f32 %v1968, %v2422
    %v2424 = vand.u32 %v2423, 4294901760
    %v2425 = vsub.f32 %v2423, %v2424
    %v2426 = vand.u32 %v2425, 4294901760
    %2427 = vmatprep.subr.mxu0 %v2426
    %v2428 = vand.u32 %v1967, 4294901760
    %v2429 = vsub.f32 %v1967, %v2428
    %v2430 = vand.u32 %v2429, 4294901760
    %v2431 = vsub.f32 %v2429, %v2430
    %v2432 = vand.u32 %v2431, 4294901760
    %2433 = vmatpush1.msra.mxu0 %v2432
    %v2434 = vand.u32 %v1970, 4294901760
    %v2435 = vsub.f32 %v1970, %v2434
    %v2436 = vand.u32 %v2435, 4294901760
    %v2437 = vsub.f32 %v2435, %v2436
    %v2438 = vand.u32 %v2437, 4294901760
    %2439 = vmatprep.subr.mxu0 %v2438
    %v2440 = vand.u32 %v1969, 4294901760
    %v2441 = vsub.f32 %v1969, %v2440
    %v2442 = vand.u32 %v2441, 4294901760
    %v2443 = vsub.f32 %v2441, %v2442
    %v2444 = vand.u32 %v2443, 4294901760
    %2445 = vmatpush1.msra.mxu0 %v2444
    %v2446 = vand.u32 %v1972, 4294901760
    %v2447 = vsub.f32 %v1972, %v2446
    %v2448 = vand.u32 %v2447, 4294901760
    %v2449 = vsub.f32 %v2447, %v2448
    %v2450 = vand.u32 %v2449, 4294901760
    %2451 = vmatprep.subr.mxu0 %v2450
    %v2452 = vand.u32 %v1971, 4294901760
    %v2453 = vsub.f32 %v1971, %v2452
    %v2454 = vand.u32 %v2453, 4294901760
    %v2455 = vsub.f32 %v2453, %v2454
    %v2456 = vand.u32 %v2455, 4294901760
    %2457 = vmatpush1.msra.mxu0 %v2456
    %v2458 = vand.u32 %v1974, 4294901760
    %v2459 = vsub.f32 %v1974, %v2458
    %v2460 = vand.u32 %v2459, 4294901760
    %v2461 = vsub.f32 %v2459, %v2460
    %v2462 = vand.u32 %v2461, 4294901760
    %2463 = vmatprep.subr.mxu0 %v2462
    %v2464 = vand.u32 %v1973, 4294901760
    %v2465 = vsub.f32 %v1973, %v2464
    %v2466 = vand.u32 %v2465, 4294901760
    %v2467 = vsub.f32 %v2465, %v2466
    %v2468 = vand.u32 %v2467, 4294901760
    %2469 = vmatpush1.msra.mxu0 %v2468
    %v2470 = vand.u32 %v1976, 4294901760
    %v2471 = vsub.f32 %v1976, %v2470
    %v2472 = vand.u32 %v2471, 4294901760
    %v2473 = vsub.f32 %v2471, %v2472
    %v2474 = vand.u32 %v2473, 4294901760
    %2475 = vmatprep.subr.mxu0 %v2474
    %v2476 = vand.u32 %v1975, 4294901760
    %v2477 = vsub.f32 %v1975, %v2476
    %v2478 = vand.u32 %v2477, 4294901760
    %v2479 = vsub.f32 %v2477, %v2478
    %v2480 = vand.u32 %v2479, 4294901760
    %2481 = vmatpush1.msra.mxu0 %v2480
    %v2482 = vand.u32 %v1978, 4294901760
    %v2483 = vsub.f32 %v1978, %v2482
    %v2484 = vand.u32 %v2483, 4294901760
    %v2485 = vsub.f32 %v2483, %v2484
    %v2486 = vand.u32 %v2485, 4294901760
    %2487 = vmatprep.subr.mxu0 %v2486
    %v2488 = vand.u32 %v1977, 4294901760
    %v2489 = vsub.f32 %v1977, %v2488
    %v2490 = vand.u32 %v2489, 4294901760
    %v2491 = vsub.f32 %v2489, %v2490
    %v2492 = vand.u32 %v2491, 4294901760
    %2493 = vmatpush1.msra.mxu0 %v2492
    %v2494 = vand.u32 %v1980, 4294901760
    %v2495 = vsub.f32 %v1980, %v2494
    %v2496 = vand.u32 %v2495, 4294901760
    %v2497 = vsub.f32 %v2495, %v2496
    %v2498 = vand.u32 %v2497, 4294901760
    %2499 = vmatprep.subr.mxu0 %v2498
    %v2500 = vand.u32 %v1979, 4294901760
    %v2501 = vsub.f32 %v1979, %v2500
    %v2502 = vand.u32 %v2501, 4294901760
    %v2503 = vsub.f32 %v2501, %v2502
    %v2504 = vand.u32 %v2503, 4294901760
    %2505 = vmatpush1.msra.mxu0 %v2504
    %v2506 = vand.u32 %v1982, 4294901760
    %v2507 = vsub.f32 %v1982, %v2506
    %v2508 = vand.u32 %v2507, 4294901760
    %v2509 = vsub.f32 %v2507, %v2508
    %v2510 = vand.u32 %v2509, 4294901760
    %2511 = vmatprep.subr.mxu0 %v2510
    %v2512 = vand.u32 %v1981, 4294901760
    %v2513 = vsub.f32 %v1981, %v2512
    %v2514 = vand.u32 %v2513, 4294901760
    %v2515 = vsub.f32 %v2513, %v2514
    %v2516 = vand.u32 %v2515, 4294901760
    %2517 = vmatpush1.msra.mxu0 %v2516
    %v2518 = vand.u32 %v1984, 4294901760
    %v2519 = vsub.f32 %v1984, %v2518
    %v2520 = vand.u32 %v2519, 4294901760
    %v2521 = vsub.f32 %v2519, %v2520
    %v2522 = vand.u32 %v2521, 4294901760
    %2523 = vmatprep.subr.mxu0 %v2522
    %v2524 = vand.u32 %v1983, 4294901760
    %v2525 = vsub.f32 %v1983, %v2524
    %v2526 = vand.u32 %v2525, 4294901760
    %v2527 = vsub.f32 %v2525, %v2526
    %v2528 = vand.u32 %v2527, 4294901760
    %2529 = vmatpush1.msra.mxu0 %v2528
    %v2530 = vand.u32 %v1986, 4294901760
    %v2531 = vsub.f32 %v1986, %v2530
    %v2532 = vand.u32 %v2531, 4294901760
    %v2533 = vsub.f32 %v2531, %v2532
    %v2534 = vand.u32 %v2533, 4294901760
    %2535 = vmatprep.subr.mxu0 %v2534
    %v2536 = vand.u32 %v1985, 4294901760
    %v2537 = vsub.f32 %v1985, %v2536
    %v2538 = vand.u32 %v2537, 4294901760
    %v2539 = vsub.f32 %v2537, %v2538
    %v2540 = vand.u32 %v2539, 4294901760
    %2541 = vmatpush1.msra.mxu0 %v2540
    %v2542 = vand.u32 %v1988, 4294901760
    %v2543 = vsub.f32 %v1988, %v2542
    %v2544 = vand.u32 %v2543, 4294901760
    %v2545 = vsub.f32 %v2543, %v2544
    %v2546 = vand.u32 %v2545, 4294901760
    %2547 = vmatprep.subr.mxu0 %v2546
    %v2548 = vand.u32 %v1987, 4294901760
    %v2549 = vsub.f32 %v1987, %v2548
    %v2550 = vand.u32 %v2549, 4294901760
    %v2551 = vsub.f32 %v2549, %v2550
    %v2552 = vand.u32 %v2551, 4294901760
    %2553 = vmatpush1.msra.mxu0 %v2552
    %v2554 = vand.u32 %v1990, 4294901760
    %v2555 = vsub.f32 %v1990, %v2554
    %v2556 = vand.u32 %v2555, 4294901760
    %v2557 = vsub.f32 %v2555, %v2556
    %v2558 = vand.u32 %v2557, 4294901760
    %2559 = vmatprep.subr.mxu0 %v2558
    %v2560 = vand.u32 %v1989, 4294901760
    %v2561 = vsub.f32 %v1989, %v2560
    %v2562 = vand.u32 %v2561, 4294901760
    %v2563 = vsub.f32 %v2561, %v2562
    %v2564 = vand.u32 %v2563, 4294901760
    %2565 = vmatpush1.msra.mxu0 %v2564
    %v2566 = vand.u32 %v1992, 4294901760
    %v2567 = vsub.f32 %v1992, %v2566
    %v2568 = vand.u32 %v2567, 4294901760
    %v2569 = vsub.f32 %v2567, %v2568
    %v2570 = vand.u32 %v2569, 4294901760
    %2571 = vmatprep.subr.mxu0 %v2570
    %v2572 = vand.u32 %v1991, 4294901760
    %v2573 = vsub.f32 %v1991, %v2572
    %v2574 = vand.u32 %v2573, 4294901760
    %v2575 = vsub.f32 %v2573, %v2574
    %v2576 = vand.u32 %v2575, 4294901760
    %2577 = vmatpush1.msra.mxu0 %v2576
    %v2578 = vand.u32 %v1994, 4294901760
    %v2579 = vsub.f32 %v1994, %v2578
    %v2580 = vand.u32 %v2579, 4294901760
    %v2581 = vsub.f32 %v2579, %v2580
    %v2582 = vand.u32 %v2581, 4294901760
    %2583 = vmatprep.subr.mxu0 %v2582
    %v2584 = vand.u32 %v1993, 4294901760
    %v2585 = vsub.f32 %v1993, %v2584
    %v2586 = vand.u32 %v2585, 4294901760
    %v2587 = vsub.f32 %v2585, %v2586
    %v2588 = vand.u32 %v2587, 4294901760
    %2589 = vmatpush1.msra.mxu0 %v2588
    %v2590 = vand.u32 %v1996, 4294901760
    %v2591 = vsub.f32 %v1996, %v2590
    %v2592 = vand.u32 %v2591, 4294901760
    %v2593 = vsub.f32 %v2591, %v2592
    %v2594 = vand.u32 %v2593, 4294901760
    %2595 = vmatprep.subr.mxu0 %v2594
    %v2596 = vand.u32 %v1995, 4294901760
    %v2597 = vsub.f32 %v1995, %v2596
    %v2598 = vand.u32 %v2597, 4294901760
    %v2599 = vsub.f32 %v2597, %v2598
    %v2600 = vand.u32 %v2599, 4294901760
    %2601 = vmatpush1.msra.mxu0 %v2600
    %v2602 = vand.u32 %v1998, 4294901760
    %v2603 = vsub.f32 %v1998, %v2602
    %v2604 = vand.u32 %v2603, 4294901760
    %v2605 = vsub.f32 %v2603, %v2604
    %v2606 = vand.u32 %v2605, 4294901760
    %2607 = vmatprep.subr.mxu0 %v2606
    %v2608 = vand.u32 %v1997, 4294901760
    %v2609 = vsub.f32 %v1997, %v2608
    %v2610 = vand.u32 %v2609, 4294901760
    %v2611 = vsub.f32 %v2609, %v2610
    %v2612 = vand.u32 %v2611, 4294901760
    %2613 = vmatpush1.msra.mxu0 %v2612
    %v2614 = vand.u32 %v2079, 4294901760
    %2615 = vmatprep.mubr.f32.mxu0 %v2614
    %v2616 = vand.u32 %v2071, 4294901760
    %2617 = vmatmul.mubr.f32.gmra.mrb[0].mxu0 %v2616
    %v2618 = vpop.f32.mrb[0].mxu0
    %v2619 = vadd.f32 %v2226, %v2618
    %v2620 = vpop.f32.mrb[0].mxu0
    %v2621 = vadd.f32 %v2228, %v2620
    %2622 = vdwg.mxu0
    %v2623 = vand.u32 %v1936, 4294901760
    %v2624 = vsub.f32 %v1936, %v2623
    %2625 = vmatprep.subr.mxu0 %v2624
    %v2626 = vand.u32 %v1935, 4294901760
    %v2627 = vsub.f32 %v1935, %v2626
    %2628 = vmatpush1.msra.mxu0 %v2627
    %v2629 = vand.u32 %v1938, 4294901760
    %v2630 = vsub.f32 %v1938, %v2629
    %2631 = vmatprep.subr.mxu0 %v2630
    %v2632 = vand.u32 %v1937, 4294901760
    %v2633 = vsub.f32 %v1937, %v2632
    %2634 = vmatpush1.msra.mxu0 %v2633
    %v2635 = vand.u32 %v1940, 4294901760
    %v2636 = vsub.f32 %v1940, %v2635
    %2637 = vmatprep.subr.mxu0 %v2636
    %v2638 = vand.u32 %v1939, 4294901760
    %v2639 = vsub.f32 %v1939, %v2638
    %2640 = vmatpush1.msra.mxu0 %v2639
    %v2641 = vand.u32 %v1942, 4294901760
    %v2642 = vsub.f32 %v1942, %v2641
    %2643 = vmatprep.subr.mxu0 %v2642
    %v2644 = vand.u32 %v1941, 4294901760
    %v2645 = vsub.f32 %v1941, %v2644
    %2646 = vmatpush1.msra.mxu0 %v2645
    %v2647 = vand.u32 %v1944, 4294901760
    %v2648 = vsub.f32 %v1944, %v2647
    %2649 = vmatprep.subr.mxu0 %v2648
    %v2650 = vand.u32 %v1943, 4294901760
    %v2651 = vsub.f32 %v1943, %v2650
    %2652 = vmatpush1.msra.mxu0 %v2651
    %v2653 = vand.u32 %v1946, 4294901760
    %v2654 = vsub.f32 %v1946, %v2653
    %2655 = vmatprep.subr.mxu0 %v2654
    %v2656 = vand.u32 %v1945, 4294901760
    %v2657 = vsub.f32 %v1945, %v2656
    %2658 = vmatpush1.msra.mxu0 %v2657
    %v2659 = vand.u32 %v1948, 4294901760
    %v2660 = vsub.f32 %v1948, %v2659
    %2661 = vmatprep.subr.mxu0 %v2660
    %v2662 = vand.u32 %v1947, 4294901760
    %v2663 = vsub.f32 %v1947, %v2662
    %2664 = vmatpush1.msra.mxu0 %v2663
    %v2665 = vand.u32 %v1950, 4294901760
    %v2666 = vsub.f32 %v1950, %v2665
    %2667 = vmatprep.subr.mxu0 %v2666
    %v2668 = vand.u32 %v1949, 4294901760
    %v2669 = vsub.f32 %v1949, %v2668
    %2670 = vmatpush1.msra.mxu0 %v2669
    %v2671 = vand.u32 %v1952, 4294901760
    %v2672 = vsub.f32 %v1952, %v2671
    %2673 = vmatprep.subr.mxu0 %v2672
    %v2674 = vand.u32 %v1951, 4294901760
    %v2675 = vsub.f32 %v1951, %v2674
    %2676 = vmatpush1.msra.mxu0 %v2675
    %v2677 = vand.u32 %v1954, 4294901760
    %v2678 = vsub.f32 %v1954, %v2677
    %2679 = vmatprep.subr.mxu0 %v2678
    %v2680 = vand.u32 %v1953, 4294901760
    %v2681 = vsub.f32 %v1953, %v2680
    %2682 = vmatpush1.msra.mxu0 %v2681
    %v2683 = vand.u32 %v1956, 4294901760
    %v2684 = vsub.f32 %v1956, %v2683
    %2685 = vmatprep.subr.mxu0 %v2684
    %v2686 = vand.u32 %v1955, 4294901760
    %v2687 = vsub.f32 %v1955, %v2686
    %2688 = vmatpush1.msra.mxu0 %v2687
    %v2689 = vand.u32 %v1958, 4294901760
    %v2690 = vsub.f32 %v1958, %v2689
    %2691 = vmatprep.subr.mxu0 %v2690
    %v2692 = vand.u32 %v1957, 4294901760
    %v2693 = vsub.f32 %v1957, %v2692
    %2694 = vmatpush1.msra.mxu0 %v2693
    %v2695 = vand.u32 %v1960, 4294901760
    %v2696 = vsub.f32 %v1960, %v2695
    %2697 = vmatprep.subr.mxu0 %v2696
    %v2698 = vand.u32 %v1959, 4294901760
    %v2699 = vsub.f32 %v1959, %v2698
    %2700 = vmatpush1.msra.mxu0 %v2699
    %v2701 = vand.u32 %v1962, 4294901760
    %v2702 = vsub.f32 %v1962, %v2701
    %2703 = vmatprep.subr.mxu0 %v2702
    %v2704 = vand.u32 %v1961, 4294901760
    %v2705 = vsub.f32 %v1961, %v2704
    %2706 = vmatpush1.msra.mxu0 %v2705
    %v2707 = vand.u32 %v1964, 4294901760
    %v2708 = vsub.f32 %v1964, %v2707
    %2709 = vmatprep.subr.mxu0 %v2708
    %v2710 = vand.u32 %v1963, 4294901760
    %v2711 = vsub.f32 %v1963, %v2710
    %2712 = vmatpush1.msra.mxu0 %v2711
    %v2713 = vand.u32 %v1966, 4294901760
    %v2714 = vsub.f32 %v1966, %v2713
    %2715 = vmatprep.subr.mxu0 %v2714
    %v2716 = vand.u32 %v1965, 4294901760
    %v2717 = vsub.f32 %v1965, %v2716
    %2718 = vmatpush1.msra.mxu0 %v2717
    %v2719 = vand.u32 %v1968, 4294901760
    %v2720 = vsub.f32 %v1968, %v2719
    %2721 = vmatprep.subr.mxu0 %v2720
    %v2722 = vand.u32 %v1967, 4294901760
    %v2723 = vsub.f32 %v1967, %v2722
    %2724 = vmatpush1.msra.mxu0 %v2723
    %v2725 = vand.u32 %v1970, 4294901760
    %v2726 = vsub.f32 %v1970, %v2725
    %2727 = vmatprep.subr.mxu0 %v2726
    %v2728 = vand.u32 %v1969, 4294901760
    %v2729 = vsub.f32 %v1969, %v2728
    %2730 = vmatpush1.msra.mxu0 %v2729
    %v2731 = vand.u32 %v1972, 4294901760
    %v2732 = vsub.f32 %v1972, %v2731
    %2733 = vmatprep.subr.mxu0 %v2732
    %v2734 = vand.u32 %v1971, 4294901760
    %v2735 = vsub.f32 %v1971, %v2734
    %2736 = vmatpush1.msra.mxu0 %v2735
    %v2737 = vand.u32 %v1974, 4294901760
    %v2738 = vsub.f32 %v1974, %v2737
    %2739 = vmatprep.subr.mxu0 %v2738
    %v2740 = vand.u32 %v1973, 4294901760
    %v2741 = vsub.f32 %v1973, %v2740
    %2742 = vmatpush1.msra.mxu0 %v2741
    %v2743 = vand.u32 %v1976, 4294901760
    %v2744 = vsub.f32 %v1976, %v2743
    %2745 = vmatprep.subr.mxu0 %v2744
    %v2746 = vand.u32 %v1975, 4294901760
    %v2747 = vsub.f32 %v1975, %v2746
    %2748 = vmatpush1.msra.mxu0 %v2747
    %v2749 = vand.u32 %v1978, 4294901760
    %v2750 = vsub.f32 %v1978, %v2749
    %2751 = vmatprep.subr.mxu0 %v2750
    %v2752 = vand.u32 %v1977, 4294901760
    %v2753 = vsub.f32 %v1977, %v2752
    %2754 = vmatpush1.msra.mxu0 %v2753
    %v2755 = vand.u32 %v1980, 4294901760
    %v2756 = vsub.f32 %v1980, %v2755
    %2757 = vmatprep.subr.mxu0 %v2756
    %v2758 = vand.u32 %v1979, 4294901760
    %v2759 = vsub.f32 %v1979, %v2758
    %2760 = vmatpush1.msra.mxu0 %v2759
    %v2761 = vand.u32 %v1982, 4294901760
    %v2762 = vsub.f32 %v1982, %v2761
    %2763 = vmatprep.subr.mxu0 %v2762
    %v2764 = vand.u32 %v1981, 4294901760
    %v2765 = vsub.f32 %v1981, %v2764
    %2766 = vmatpush1.msra.mxu0 %v2765
    %v2767 = vand.u32 %v1984, 4294901760
    %v2768 = vsub.f32 %v1984, %v2767
    %2769 = vmatprep.subr.mxu0 %v2768
    %v2770 = vand.u32 %v1983, 4294901760
    %v2771 = vsub.f32 %v1983, %v2770
    %2772 = vmatpush1.msra.mxu0 %v2771
    %v2773 = vand.u32 %v1986, 4294901760
    %v2774 = vsub.f32 %v1986, %v2773
    %2775 = vmatprep.subr.mxu0 %v2774
    %v2776 = vand.u32 %v1985, 4294901760
    %v2777 = vsub.f32 %v1985, %v2776
    %2778 = vmatpush1.msra.mxu0 %v2777
    %v2779 = vand.u32 %v1988, 4294901760
    %v2780 = vsub.f32 %v1988, %v2779
    %2781 = vmatprep.subr.mxu0 %v2780
    %v2782 = vand.u32 %v1987, 4294901760
    %v2783 = vsub.f32 %v1987, %v2782
    %2784 = vmatpush1.msra.mxu0 %v2783
    %v2785 = vand.u32 %v1990, 4294901760
    %v2786 = vsub.f32 %v1990, %v2785
    %2787 = vmatprep.subr.mxu0 %v2786
    %v2788 = vand.u32 %v1989, 4294901760
    %v2789 = vsub.f32 %v1989, %v2788
    %2790 = vmatpush1.msra.mxu0 %v2789
    %v2791 = vand.u32 %v1992, 4294901760
    %v2792 = vsub.f32 %v1992, %v2791
    %2793 = vmatprep.subr.mxu0 %v2792
    %v2794 = vand.u32 %v1991, 4294901760
    %v2795 = vsub.f32 %v1991, %v2794
    %2796 = vmatpush1.msra.mxu0 %v2795
    %v2797 = vand.u32 %v1994, 4294901760
    %v2798 = vsub.f32 %v1994, %v2797
    %2799 = vmatprep.subr.mxu0 %v2798
    %v2800 = vand.u32 %v1993, 4294901760
    %v2801 = vsub.f32 %v1993, %v2800
    %2802 = vmatpush1.msra.mxu0 %v2801
    %v2803 = vand.u32 %v1996, 4294901760
    %v2804 = vsub.f32 %v1996, %v2803
    %2805 = vmatprep.subr.mxu0 %v2804
    %v2806 = vand.u32 %v1995, 4294901760
    %v2807 = vsub.f32 %v1995, %v2806
    %2808 = vmatpush1.msra.mxu0 %v2807
    %v2809 = vand.u32 %v1998, 4294901760
    %v2810 = vsub.f32 %v1998, %v2809
    %2811 = vmatprep.subr.mxu0 %v2810
    %v2812 = vand.u32 %v1997, 4294901760
    %v2813 = vsub.f32 %v1997, %v2812
    %2814 = vmatpush1.msra.mxu0 %v2813
    %v2815 = vand.u32 %v2079, 4294901760
    %v2816 = vsub.f32 %v2079, %v2815
    %2817 = vmatprep.mubr.f32.mxu0 %v2816
    %v2818 = vand.u32 %v2071, 4294901760
    %v2819 = vsub.f32 %v2071, %v2818
    %2820 = vmatmul.mubr.f32.gmra.mrb[0].mxu0 %v2819
    %v2821 = vpop.f32.mrb[0].mxu0
    %v2822 = vadd.f32 %v2619, %v2821
    %v2823 = vpop.f32.mrb[0].mxu0
    %v2824 = vadd.f32 %v2621, %v2823
    %2825 = vdwg.mxu0
    %v2826 = vand.u32 %v1936, 4294901760
    %2827 = vmatprep.subr.mxu0 %v2826
    %v2828 = vand.u32 %v1935, 4294901760
    %2829 = vmatpush1.msra.mxu0 %v2828
    %v2830 = vand.u32 %v1938, 4294901760
    %2831 = vmatprep.subr.mxu0 %v2830
    %v2832 = vand.u32 %v1937, 4294901760
    %2833 = vmatpush1.msra.mxu0 %v2832
    %v2834 = vand.u32 %v1940, 4294901760
    %2835 = vmatprep.subr.mxu0 %v2834
    %v2836 = vand.u32 %v1939, 4294901760
    %2837 = vmatpush1.msra.mxu0 %v2836
    %v2838 = vand.u32 %v1942, 4294901760
    %2839 = vmatprep.subr.mxu0 %v2838
    %v2840 = vand.u32 %v1941, 4294901760
    %2841 = vmatpush1.msra.mxu0 %v2840
    %v2842 = vand.u32 %v1944, 4294901760
    %2843 = vmatprep.subr.mxu0 %v2842
    %v2844 = vand.u32 %v1943, 4294901760
    %2845 = vmatpush1.msra.mxu0 %v2844
    %v2846 = vand.u32 %v1946, 4294901760
    %2847 = vmatprep.subr.mxu0 %v2846
    %v2848 = vand.u32 %v1945, 4294901760
    %2849 = vmatpush1.msra.mxu0 %v2848
    %v2850 = vand.u32 %v1948, 4294901760
    %2851 = vmatprep.subr.mxu0 %v2850
    %v2852 = vand.u32 %v1947, 4294901760
    %2853 = vmatpush1.msra.mxu0 %v2852
    %v2854 = vand.u32 %v1950, 4294901760
    %2855 = vmatprep.subr.mxu0 %v2854
    %v2856 = vand.u32 %v1949, 4294901760
    %2857 = vmatpush1.msra.mxu0 %v2856
    %v2858 = vand.u32 %v1952, 4294901760
    %2859 = vmatprep.subr.mxu0 %v2858
    %v2860 = vand.u32 %v1951, 4294901760
    %2861 = vmatpush1.msra.mxu0 %v2860
    %v2862 = vand.u32 %v1954, 4294901760
    %2863 = vmatprep.subr.mxu0 %v2862
    %v2864 = vand.u32 %v1953, 4294901760
    %2865 = vmatpush1.msra.mxu0 %v2864
    %v2866 = vand.u32 %v1956, 4294901760
    %2867 = vmatprep.subr.mxu0 %v2866
    %v2868 = vand.u32 %v1955, 4294901760
    %2869 = vmatpush1.msra.mxu0 %v2868
    %v2870 = vand.u32 %v1958, 4294901760
    %2871 = vmatprep.subr.mxu0 %v2870
    %v2872 = vand.u32 %v1957, 4294901760
    %2873 = vmatpush1.msra.mxu0 %v2872
    %v2874 = vand.u32 %v1960, 4294901760
    %2875 = vmatprep.subr.mxu0 %v2874
    %v2876 = vand.u32 %v1959, 4294901760
    %2877 = vmatpush1.msra.mxu0 %v2876
    %v2878 = vand.u32 %v1962, 4294901760
    %2879 = vmatprep.subr.mxu0 %v2878
    %v2880 = vand.u32 %v1961, 4294901760
    %2881 = vmatpush1.msra.mxu0 %v2880
    %v2882 = vand.u32 %v1964, 4294901760
    %2883 = vmatprep.subr.mxu0 %v2882
    %v2884 = vand.u32 %v1963, 4294901760
    %2885 = vmatpush1.msra.mxu0 %v2884
    %v2886 = vand.u32 %v1966, 4294901760
    %2887 = vmatprep.subr.mxu0 %v2886
    %v2888 = vand.u32 %v1965, 4294901760
    %2889 = vmatpush1.msra.mxu0 %v2888
    %v2890 = vand.u32 %v1968, 4294901760
    %2891 = vmatprep.subr.mxu0 %v2890
    %v2892 = vand.u32 %v1967, 4294901760
    %2893 = vmatpush1.msra.mxu0 %v2892
    %v2894 = vand.u32 %v1970, 4294901760
    %2895 = vmatprep.subr.mxu0 %v2894
    %v2896 = vand.u32 %v1969, 4294901760
    %2897 = vmatpush1.msra.mxu0 %v2896
    %v2898 = vand.u32 %v1972, 4294901760
    %2899 = vmatprep.subr.mxu0 %v2898
    %v2900 = vand.u32 %v1971, 4294901760
    %2901 = vmatpush1.msra.mxu0 %v2900
    %v2902 = vand.u32 %v1974, 4294901760
    %2903 = vmatprep.subr.mxu0 %v2902
    %v2904 = vand.u32 %v1973, 4294901760
    %2905 = vmatpush1.msra.mxu0 %v2904
    %v2906 = vand.u32 %v1976, 4294901760
    %2907 = vmatprep.subr.mxu0 %v2906
    %v2908 = vand.u32 %v1975, 4294901760
    %2909 = vmatpush1.msra.mxu0 %v2908
    %v2910 = vand.u32 %v1978, 4294901760
    %2911 = vmatprep.subr.mxu0 %v2910
    %v2912 = vand.u32 %v1977, 4294901760
    %2913 = vmatpush1.msra.mxu0 %v2912
    %v2914 = vand.u32 %v1980, 4294901760
    %2915 = vmatprep.subr.mxu0 %v2914
    %v2916 = vand.u32 %v1979, 4294901760
    %2917 = vmatpush1.msra.mxu0 %v2916
    %v2918 = vand.u32 %v1982, 4294901760
    %2919 = vmatprep.subr.mxu0 %v2918
    %v2920 = vand.u32 %v1981, 4294901760
    %2921 = vmatpush1.msra.mxu0 %v2920
    %v2922 = vand.u32 %v1984, 4294901760
    %2923 = vmatprep.subr.mxu0 %v2922
    %v2924 = vand.u32 %v1983, 4294901760
    %2925 = vmatpush1.msra.mxu0 %v2924
    %v2926 = vand.u32 %v1986, 4294901760
    %2927 = vmatprep.subr.mxu0 %v2926
    %v2928 = vand.u32 %v1985, 4294901760
    %2929 = vmatpush1.msra.mxu0 %v2928
    %v2930 = vand.u32 %v1988, 4294901760
    %2931 = vmatprep.subr.mxu0 %v2930
    %v2932 = vand.u32 %v1987, 4294901760
    %2933 = vmatpush1.msra.mxu0 %v2932
    %v2934 = vand.u32 %v1990, 4294901760
    %2935 = vmatprep.subr.mxu0 %v2934
    %v2936 = vand.u32 %v1989, 4294901760
    %2937 = vmatpush1.msra.mxu0 %v2936
    %v2938 = vand.u32 %v1992, 4294901760
    %2939 = vmatprep.subr.mxu0 %v2938
    %v2940 = vand.u32 %v1991, 4294901760
    %2941 = vmatpush1.msra.mxu0 %v2940
    %v2942 = vand.u32 %v1994, 4294901760
    %2943 = vmatprep.subr.mxu0 %v2942
    %v2944 = vand.u32 %v1993, 4294901760
    %2945 = vmatpush1.msra.mxu0 %v2944
    %v2946 = vand.u32 %v1996, 4294901760
    %2947 = vmatprep.subr.mxu0 %v2946
    %v2948 = vand.u32 %v1995, 4294901760
    %2949 = vmatpush1.msra.mxu0 %v2948
    %v2950 = vand.u32 %v1998, 4294901760
    %2951 = vmatprep.subr.mxu0 %v2950
    %v2952 = vand.u32 %v1997, 4294901760
    %2953 = vmatpush1.msra.mxu0 %v2952
    %v2954 = vand.u32 %v2079, 4294901760
    %v2955 = vsub.f32 %v2079, %v2954
    %v2956 = vand.u32 %v2955, 4294901760
    %2957 = vmatprep.mubr.f32.mxu0 %v2956
    %v2958 = vand.u32 %v2071, 4294901760
    %v2959 = vsub.f32 %v2071, %v2958
    %v2960 = vand.u32 %v2959, 4294901760
    %2961 = vmatmul.mubr.f32.gmra.mrb[0].mxu0 %v2960
    %v2962 = vpop.f32.mrb[0].mxu0
    %v2963 = vadd.f32 %v2822, %v2962
    %v2964 = vpop.f32.mrb[0].mxu0
    %v2965 = vadd.f32 %v2824, %v2964
    %2966 = vdwg.mxu0
    %v2967 = vand.u32 %v1936, 4294901760
    %v2968 = vsub.f32 %v1936, %v2967
    %v2969 = vand.u32 %v2968, 4294901760
    %2970 = vmatprep.subr.mxu0 %v2969
    %v2971 = vand.u32 %v1935, 4294901760
    %v2972 = vsub.f32 %v1935, %v2971
    %v2973 = vand.u32 %v2972, 4294901760
    %2974 = vmatpush1.msra.mxu0 %v2973
    %v2975 = vand.u32 %v1938, 4294901760
    %v2976 = vsub.f32 %v1938, %v2975
    %v2977 = vand.u32 %v2976, 4294901760
    %2978 = vmatprep.subr.mxu0 %v2977
    %v2979 = vand.u32 %v1937, 4294901760
    %v2980 = vsub.f32 %v1937, %v2979
    %v2981 = vand.u32 %v2980, 4294901760
    %2982 = vmatpush1.msra.mxu0 %v2981
    %v2983 = vand.u32 %v1940, 4294901760
    %v2984 = vsub.f32 %v1940, %v2983
    %v2985 = vand.u32 %v2984, 4294901760
    %2986 = vmatprep.subr.mxu0 %v2985
    %v2987 = vand.u32 %v1939, 4294901760
    %v2988 = vsub.f32 %v1939, %v2987
    %v2989 = vand.u32 %v2988, 4294901760
    %2990 = vmatpush1.msra.mxu0 %v2989
    %v2991 = vand.u32 %v1942, 4294901760
    %v2992 = vsub.f32 %v1942, %v2991
    %v2993 = vand.u32 %v2992, 4294901760
    %2994 = vmatprep.subr.mxu0 %v2993
    %v2995 = vand.u32 %v1941, 4294901760
    %v2996 = vsub.f32 %v1941, %v2995
    %v2997 = vand.u32 %v2996, 4294901760
    %2998 = vmatpush1.msra.mxu0 %v2997
    %v2999 = vand.u32 %v1944, 4294901760
    %v3000 = vsub.f32 %v1944, %v2999
    %v3001 = vand.u32 %v3000, 4294901760
    %3002 = vmatprep.subr.mxu0 %v3001
    %v3003 = vand.u32 %v1943, 4294901760
    %v3004 = vsub.f32 %v1943, %v3003
    %v3005 = vand.u32 %v3004, 4294901760
    %3006 = vmatpush1.msra.mxu0 %v3005
    %v3007 = vand.u32 %v1946, 4294901760
    %v3008 = vsub.f32 %v1946, %v3007
    %v3009 = vand.u32 %v3008, 4294901760
    %3010 = vmatprep.subr.mxu0 %v3009
    %v3011 = vand.u32 %v1945, 4294901760
    %v3012 = vsub.f32 %v1945, %v3011
    %v3013 = vand.u32 %v3012, 4294901760
    %3014 = vmatpush1.msra.mxu0 %v3013
    %v3015 = vand.u32 %v1948, 4294901760
    %v3016 = vsub.f32 %v1948, %v3015
    %v3017 = vand.u32 %v3016, 4294901760
    %3018 = vmatprep.subr.mxu0 %v3017
    %v3019 = vand.u32 %v1947, 4294901760
    %v3020 = vsub.f32 %v1947, %v3019
    %v3021 = vand.u32 %v3020, 4294901760
    %3022 = vmatpush1.msra.mxu0 %v3021
    %v3023 = vand.u32 %v1950, 4294901760
    %v3024 = vsub.f32 %v1950, %v3023
    %v3025 = vand.u32 %v3024, 4294901760
    %3026 = vmatprep.subr.mxu0 %v3025
    %v3027 = vand.u32 %v1949, 4294901760
    %v3028 = vsub.f32 %v1949, %v3027
    %v3029 = vand.u32 %v3028, 4294901760
    %3030 = vmatpush1.msra.mxu0 %v3029
    %v3031 = vand.u32 %v1952, 4294901760
    %v3032 = vsub.f32 %v1952, %v3031
    %v3033 = vand.u32 %v3032, 4294901760
    %3034 = vmatprep.subr.mxu0 %v3033
    %v3035 = vand.u32 %v1951, 4294901760
    %v3036 = vsub.f32 %v1951, %v3035
    %v3037 = vand.u32 %v3036, 4294901760
    %3038 = vmatpush1.msra.mxu0 %v3037
    %v3039 = vand.u32 %v1954, 4294901760
    %v3040 = vsub.f32 %v1954, %v3039
    %v3041 = vand.u32 %v3040, 4294901760
    %3042 = vmatprep.subr.mxu0 %v3041
    %v3043 = vand.u32 %v1953, 4294901760
    %v3044 = vsub.f32 %v1953, %v3043
    %v3045 = vand.u32 %v3044, 4294901760
    %3046 = vmatpush1.msra.mxu0 %v3045
    %v3047 = vand.u32 %v1956, 4294901760
    %v3048 = vsub.f32 %v1956, %v3047
    %v3049 = vand.u32 %v3048, 4294901760
    %3050 = vmatprep.subr.mxu0 %v3049
    %v3051 = vand.u32 %v1955, 4294901760
    %v3052 = vsub.f32 %v1955, %v3051
    %v3053 = vand.u32 %v3052, 4294901760
    %3054 = vmatpush1.msra.mxu0 %v3053
    %v3055 = vand.u32 %v1958, 4294901760
    %v3056 = vsub.f32 %v1958, %v3055
    %v3057 = vand.u32 %v3056, 4294901760
    %3058 = vmatprep.subr.mxu0 %v3057
    %v3059 = vand.u32 %v1957, 4294901760
    %v3060 = vsub.f32 %v1957, %v3059
    %v3061 = vand.u32 %v3060, 4294901760
    %3062 = vmatpush1.msra.mxu0 %v3061
    %v3063 = vand.u32 %v1960, 4294901760
    %v3064 = vsub.f32 %v1960, %v3063
    %v3065 = vand.u32 %v3064, 4294901760
    %3066 = vmatprep.subr.mxu0 %v3065
    %v3067 = vand.u32 %v1959, 4294901760
    %v3068 = vsub.f32 %v1959, %v3067
    %v3069 = vand.u32 %v3068, 4294901760
    %3070 = vmatpush1.msra.mxu0 %v3069
    %v3071 = vand.u32 %v1962, 4294901760
    %v3072 = vsub.f32 %v1962, %v3071
    %v3073 = vand.u32 %v3072, 4294901760
    %3074 = vmatprep.subr.mxu0 %v3073
    %v3075 = vand.u32 %v1961, 4294901760
    %v3076 = vsub.f32 %v1961, %v3075
    %v3077 = vand.u32 %v3076, 4294901760
    %3078 = vmatpush1.msra.mxu0 %v3077
    %v3079 = vand.u32 %v1964, 4294901760
    %v3080 = vsub.f32 %v1964, %v3079
    %v3081 = vand.u32 %v3080, 4294901760
    %3082 = vmatprep.subr.mxu0 %v3081
    %v3083 = vand.u32 %v1963, 4294901760
    %v3084 = vsub.f32 %v1963, %v3083
    %v3085 = vand.u32 %v3084, 4294901760
    %3086 = vmatpush1.msra.mxu0 %v3085
    %v3087 = vand.u32 %v1966, 4294901760
    %v3088 = vsub.f32 %v1966, %v3087
    %v3089 = vand.u32 %v3088, 4294901760
    %3090 = vmatprep.subr.mxu0 %v3089
    %v3091 = vand.u32 %v1965, 4294901760
    %v3092 = vsub.f32 %v1965, %v3091
    %v3093 = vand.u32 %v3092, 4294901760
    %3094 = vmatpush1.msra.mxu0 %v3093
    %v3095 = vand.u32 %v1968, 4294901760
    %v3096 = vsub.f32 %v1968, %v3095
    %v3097 = vand.u32 %v3096, 4294901760
    %3098 = vmatprep.subr.mxu0 %v3097
    %v3099 = vand.u32 %v1967, 4294901760
    %v3100 = vsub.f32 %v1967, %v3099
    %v3101 = vand.u32 %v3100, 4294901760
    %3102 = vmatpush1.msra.mxu0 %v3101
    %v3103 = vand.u32 %v1970, 4294901760
    %v3104 = vsub.f32 %v1970, %v3103
    %v3105 = vand.u32 %v3104, 4294901760
    %3106 = vmatprep.subr.mxu0 %v3105
    %v3107 = vand.u32 %v1969, 4294901760
    %v3108 = vsub.f32 %v1969, %v3107
    %v3109 = vand.u32 %v3108, 4294901760
    %3110 = vmatpush1.msra.mxu0 %v3109
    %v3111 = vand.u32 %v1972, 4294901760
    %v3112 = vsub.f32 %v1972, %v3111
    %v3113 = vand.u32 %v3112, 4294901760
    %3114 = vmatprep.subr.mxu0 %v3113
    %v3115 = vand.u32 %v1971, 4294901760
    %v3116 = vsub.f32 %v1971, %v3115
    %v3117 = vand.u32 %v3116, 4294901760
    %3118 = vmatpush1.msra.mxu0 %v3117
    %v3119 = vand.u32 %v1974, 4294901760
    %v3120 = vsub.f32 %v1974, %v3119
    %v3121 = vand.u32 %v3120, 4294901760
    %3122 = vmatprep.subr.mxu0 %v3121
    %v3123 = vand.u32 %v1973, 4294901760
    %v3124 = vsub.f32 %v1973, %v3123
    %v3125 = vand.u32 %v3124, 4294901760
    %3126 = vmatpush1.msra.mxu0 %v3125
    %v3127 = vand.u32 %v1976, 4294901760
    %v3128 = vsub.f32 %v1976, %v3127
    %v3129 = vand.u32 %v3128, 4294901760
    %3130 = vmatprep.subr.mxu0 %v3129
    %v3131 = vand.u32 %v1975, 4294901760
    %v3132 = vsub.f32 %v1975, %v3131
    %v3133 = vand.u32 %v3132, 4294901760
    %3134 = vmatpush1.msra.mxu0 %v3133
    %v3135 = vand.u32 %v1978, 4294901760
    %v3136 = vsub.f32 %v1978, %v3135
    %v3137 = vand.u32 %v3136, 4294901760
    %3138 = vmatprep.subr.mxu0 %v3137
    %v3139 = vand.u32 %v1977, 4294901760
    %v3140 = vsub.f32 %v1977, %v3139
    %v3141 = vand.u32 %v3140, 4294901760
    %3142 = vmatpush1.msra.mxu0 %v3141
    %v3143 = vand.u32 %v1980, 4294901760
    %v3144 = vsub.f32 %v1980, %v3143
    %v3145 = vand.u32 %v3144, 4294901760
    %3146 = vmatprep.subr.mxu0 %v3145
    %v3147 = vand.u32 %v1979, 4294901760
    %v3148 = vsub.f32 %v1979, %v3147
    %v3149 = vand.u32 %v3148, 4294901760
    %3150 = vmatpush1.msra.mxu0 %v3149
    %v3151 = vand.u32 %v1982, 4294901760
    %v3152 = vsub.f32 %v1982, %v3151
    %v3153 = vand.u32 %v3152, 4294901760
    %3154 = vmatprep.subr.mxu0 %v3153
    %v3155 = vand.u32 %v1981, 4294901760
    %v3156 = vsub.f32 %v1981, %v3155
    %v3157 = vand.u32 %v3156, 4294901760
    %3158 = vmatpush1.msra.mxu0 %v3157
    %v3159 = vand.u32 %v1984, 4294901760
    %v3160 = vsub.f32 %v1984, %v3159
    %v3161 = vand.u32 %v3160, 4294901760
    %3162 = vmatprep.subr.mxu0 %v3161
    %v3163 = vand.u32 %v1983, 4294901760
    %v3164 = vsub.f32 %v1983, %v3163
    %v3165 = vand.u32 %v3164, 4294901760
    %3166 = vmatpush1.msra.mxu0 %v3165
    %v3167 = vand.u32 %v1986, 4294901760
    %v3168 = vsub.f32 %v1986, %v3167
    %v3169 = vand.u32 %v3168, 4294901760
    %3170 = vmatprep.subr.mxu0 %v3169
    %v3171 = vand.u32 %v1985, 4294901760
    %v3172 = vsub.f32 %v1985, %v3171
    %v3173 = vand.u32 %v3172, 4294901760
    %3174 = vmatpush1.msra.mxu0 %v3173
    %v3175 = vand.u32 %v1988, 4294901760
    %v3176 = vsub.f32 %v1988, %v3175
    %v3177 = vand.u32 %v3176, 4294901760
    %3178 = vmatprep.subr.mxu0 %v3177
    %v3179 = vand.u32 %v1987, 4294901760
    %v3180 = vsub.f32 %v1987, %v3179
    %v3181 = vand.u32 %v3180, 4294901760
    %3182 = vmatpush1.msra.mxu0 %v3181
    %v3183 = vand.u32 %v1990, 4294901760
    %v3184 = vsub.f32 %v1990, %v3183
    %v3185 = vand.u32 %v3184, 4294901760
    %3186 = vmatprep.subr.mxu0 %v3185
    %v3187 = vand.u32 %v1989, 4294901760
    %v3188 = vsub.f32 %v1989, %v3187
    %v3189 = vand.u32 %v3188, 4294901760
    %3190 = vmatpush1.msra.mxu0 %v3189
    %v3191 = vand.u32 %v1992, 4294901760
    %v3192 = vsub.f32 %v1992, %v3191
    %v3193 = vand.u32 %v3192, 4294901760
    %3194 = vmatprep.subr.mxu0 %v3193
    %v3195 = vand.u32 %v1991, 4294901760
    %v3196 = vsub.f32 %v1991, %v3195
    %v3197 = vand.u32 %v3196, 4294901760
    %3198 = vmatpush1.msra.mxu0 %v3197
    %v3199 = vand.u32 %v1994, 4294901760
    %v3200 = vsub.f32 %v1994, %v3199
    %v3201 = vand.u32 %v3200, 4294901760
    %3202 = vmatprep.subr.mxu0 %v3201
    %v3203 = vand.u32 %v1993, 4294901760
    %v3204 = vsub.f32 %v1993, %v3203
    %v3205 = vand.u32 %v3204, 4294901760
    %3206 = vmatpush1.msra.mxu0 %v3205
    %v3207 = vand.u32 %v1996, 4294901760
    %v3208 = vsub.f32 %v1996, %v3207
    %v3209 = vand.u32 %v3208, 4294901760
    %3210 = vmatprep.subr.mxu0 %v3209
    %v3211 = vand.u32 %v1995, 4294901760
    %v3212 = vsub.f32 %v1995, %v3211
    %v3213 = vand.u32 %v3212, 4294901760
    %3214 = vmatpush1.msra.mxu0 %v3213
    %v3215 = vand.u32 %v1998, 4294901760
    %v3216 = vsub.f32 %v1998, %v3215
    %v3217 = vand.u32 %v3216, 4294901760
    %3218 = vmatprep.subr.mxu0 %v3217
    %v3219 = vand.u32 %v1997, 4294901760
    %v3220 = vsub.f32 %v1997, %v3219
    %v3221 = vand.u32 %v3220, 4294901760
    %3222 = vmatpush1.msra.mxu0 %v3221
    %v3223 = vand.u32 %v2079, 4294901760
    %3224 = vmatprep.mubr.f32.mxu0 %v3223
    %v3225 = vand.u32 %v2071, 4294901760
    %3226 = vmatmul.mubr.f32.gmra.mrb[0].mxu0 %v3225
    %v3227 = vpop.f32.mrb[0].mxu0
    %v3228 = vadd.f32 %v2963, %v3227
    %v3229 = vpop.f32.mrb[0].mxu0
    %v3230 = vadd.f32 %v2965, %v3229
    %3231 = vdwg.mxu0
    %v3232 = vand.u32 %v1936, 4294901760
    %3233 = vmatprep.subr.mxu0 %v3232
    %v3234 = vand.u32 %v1935, 4294901760
    %3235 = vmatpush1.msra.mxu0 %v3234
    %v3236 = vand.u32 %v1938, 4294901760
    %3237 = vmatprep.subr.mxu0 %v3236
    %v3238 = vand.u32 %v1937, 4294901760
    %3239 = vmatpush1.msra.mxu0 %v3238
    %v3240 = vand.u32 %v1940, 4294901760
    %3241 = vmatprep.subr.mxu0 %v3240
    %v3242 = vand.u32 %v1939, 4294901760
    %3243 = vmatpush1.msra.mxu0 %v3242
    %v3244 = vand.u32 %v1942, 4294901760
    %3245 = vmatprep.subr.mxu0 %v3244
    %v3246 = vand.u32 %v1941, 4294901760
    %3247 = vmatpush1.msra.mxu0 %v3246
    %v3248 = vand.u32 %v1944, 4294901760
    %3249 = vmatprep.subr.mxu0 %v3248
    %v3250 = vand.u32 %v1943, 4294901760
    %3251 = vmatpush1.msra.mxu0 %v3250
    %v3252 = vand.u32 %v1946, 4294901760
    %3253 = vmatprep.subr.mxu0 %v3252
    %v3254 = vand.u32 %v1945, 4294901760
    %3255 = vmatpush1.msra.mxu0 %v3254
    %v3256 = vand.u32 %v1948, 4294901760
    %3257 = vmatprep.subr.mxu0 %v3256
    %v3258 = vand.u32 %v1947, 4294901760
    %3259 = vmatpush1.msra.mxu0 %v3258
    %v3260 = vand.u32 %v1950, 4294901760
    %3261 = vmatprep.subr.mxu0 %v3260
    %v3262 = vand.u32 %v1949, 4294901760
    %3263 = vmatpush1.msra.mxu0 %v3262
    %v3264 = vand.u32 %v1952, 4294901760
    %3265 = vmatprep.subr.mxu0 %v3264
    %v3266 = vand.u32 %v1951, 4294901760
    %3267 = vmatpush1.msra.mxu0 %v3266
    %v3268 = vand.u32 %v1954, 4294901760
    %3269 = vmatprep.subr.mxu0 %v3268
    %v3270 = vand.u32 %v1953, 4294901760
    %3271 = vmatpush1.msra.mxu0 %v3270
    %v3272 = vand.u32 %v1956, 4294901760
    %3273 = vmatprep.subr.mxu0 %v3272
    %v3274 = vand.u32 %v1955, 4294901760
    %3275 = vmatpush1.msra.mxu0 %v3274
    %v3276 = vand.u32 %v1958, 4294901760
    %3277 = vmatprep.subr.mxu0 %v3276
    %v3278 = vand.u32 %v1957, 4294901760
    %3279 = vmatpush1.msra.mxu0 %v3278
    %v3280 = vand.u32 %v1960, 4294901760
    %3281 = vmatprep.subr.mxu0 %v3280
    %v3282 = vand.u32 %v1959, 4294901760
    %3283 = vmatpush1.msra.mxu0 %v3282
    %v3284 = vand.u32 %v1962, 4294901760
    %3285 = vmatprep.subr.mxu0 %v3284
    %v3286 = vand.u32 %v1961, 4294901760
    %3287 = vmatpush1.msra.mxu0 %v3286
    %v3288 = vand.u32 %v1964, 4294901760
    %3289 = vmatprep.subr.mxu0 %v3288
    %v3290 = vand.u32 %v1963, 4294901760
    %3291 = vmatpush1.msra.mxu0 %v3290
    %v3292 = vand.u32 %v1966, 4294901760
    %3293 = vmatprep.subr.mxu0 %v3292
    %v3294 = vand.u32 %v1965, 4294901760
    %3295 = vmatpush1.msra.mxu0 %v3294
    %v3296 = vand.u32 %v1968, 4294901760
    %3297 = vmatprep.subr.mxu0 %v3296
    %v3298 = vand.u32 %v1967, 4294901760
    %3299 = vmatpush1.msra.mxu0 %v3298
    %v3300 = vand.u32 %v1970, 4294901760
    %3301 = vmatprep.subr.mxu0 %v3300
    %v3302 = vand.u32 %v1969, 4294901760
    %3303 = vmatpush1.msra.mxu0 %v3302
    %v3304 = vand.u32 %v1972, 4294901760
    %3305 = vmatprep.subr.mxu0 %v3304
    %v3306 = vand.u32 %v1971, 4294901760
    %3307 = vmatpush1.msra.mxu0 %v3306
    %v3308 = vand.u32 %v1974, 4294901760
    %3309 = vmatprep.subr.mxu0 %v3308
    %v3310 = vand.u32 %v1973, 4294901760
    %3311 = vmatpush1.msra.mxu0 %v3310
    %v3312 = vand.u32 %v1976, 4294901760
    %3313 = vmatprep.subr.mxu0 %v3312
    %v3314 = vand.u32 %v1975, 4294901760
    %3315 = vmatpush1.msra.mxu0 %v3314
    %v3316 = vand.u32 %v1978, 4294901760
    %3317 = vmatprep.subr.mxu0 %v3316
    %v3318 = vand.u32 %v1977, 4294901760
    %3319 = vmatpush1.msra.mxu0 %v3318
    %v3320 = vand.u32 %v1980, 4294901760
    %3321 = vmatprep.subr.mxu0 %v3320
    %v3322 = vand.u32 %v1979, 4294901760
    %3323 = vmatpush1.msra.mxu0 %v3322
    %v3324 = vand.u32 %v1982, 4294901760
    %3325 = vmatprep.subr.mxu0 %v3324
    %v3326 = vand.u32 %v1981, 4294901760
    %3327 = vmatpush1.msra.mxu0 %v3326
    %v3328 = vand.u32 %v1984, 4294901760
    %3329 = vmatprep.subr.mxu0 %v3328
    %v3330 = vand.u32 %v1983, 4294901760
    %3331 = vmatpush1.msra.mxu0 %v3330
    %v3332 = vand.u32 %v1986, 4294901760
    %3333 = vmatprep.subr.mxu0 %v3332
    %v3334 = vand.u32 %v1985, 4294901760
    %3335 = vmatpush1.msra.mxu0 %v3334
    %v3336 = vand.u32 %v1988, 4294901760
    %3337 = vmatprep.subr.mxu0 %v3336
    %v3338 = vand.u32 %v1987, 4294901760
    %3339 = vmatpush1.msra.mxu0 %v3338
    %v3340 = vand.u32 %v1990, 4294901760
    %3341 = vmatprep.subr.mxu0 %v3340
    %v3342 = vand.u32 %v1989, 4294901760
    %3343 = vmatpush1.msra.mxu0 %v3342
    %v3344 = vand.u32 %v1992, 4294901760
    %3345 = vmatprep.subr.mxu0 %v3344
    %v3346 = vand.u32 %v1991, 4294901760
    %3347 = vmatpush1.msra.mxu0 %v3346
    %v3348 = vand.u32 %v1994, 4294901760
    %3349 = vmatprep.subr.mxu0 %v3348
    %v3350 = vand.u32 %v1993, 4294901760
    %3351 = vmatpush1.msra.mxu0 %v3350
    %v3352 = vand.u32 %v1996, 4294901760
    %3353 = vmatprep.subr.mxu0 %v3352
    %v3354 = vand.u32 %v1995, 4294901760
    %3355 = vmatpush1.msra.mxu0 %v3354
    %v3356 = vand.u32 %v1998, 4294901760
    %3357 = vmatprep.subr.mxu0 %v3356
    %v3358 = vand.u32 %v1997, 4294901760
    %3359 = vmatpush1.msra.mxu0 %v3358
    %v3360 = vand.u32 %v2079, 4294901760
    %3361 = vmatprep.mubr.f32.mxu0 %v3360
    %v3362 = vand.u32 %v2071, 4294901760
    %3363 = vmatmul.mubr.f32.gmra.mrb[0].mxu0 %v3362
    %v3364 = vpop.f32.mrb[0].mxu0
    %v3365 = vadd.f32 %v3228, %v3364
    %v3366 = vpop.f32.mrb[0].mxu0
    %v3367 = vadd.f32 %v3230, %v3366
    %3368 = vdwg.mxu0
    %v3369 = vand.u32 %v2000, 4294901760
    %3370 = vmatprep.subr.mxu0 %v3369
    %v3371 = vand.u32 %v1999, 4294901760
    %3372 = vmatpush1.msra.mxu0 %v3371
    %v3373 = vand.u32 %v2002, 4294901760
    %3374 = vmatprep.subr.mxu0 %v3373
    %v3375 = vand.u32 %v2001, 4294901760
    %3376 = vmatpush1.msra.mxu0 %v3375
    %v3377 = vand.u32 %v2004, 4294901760
    %3378 = vmatprep.subr.mxu0 %v3377
    %v3379 = vand.u32 %v2003, 4294901760
    %3380 = vmatpush1.msra.mxu0 %v3379
    %v3381 = vand.u32 %v2006, 4294901760
    %3382 = vmatprep.subr.mxu0 %v3381
    %v3383 = vand.u32 %v2005, 4294901760
    %3384 = vmatpush1.msra.mxu0 %v3383
    %v3385 = vand.u32 %v2008, 4294901760
    %3386 = vmatprep.subr.mxu0 %v3385
    %v3387 = vand.u32 %v2007, 4294901760
    %3388 = vmatpush1.msra.mxu0 %v3387
    %v3389 = vand.u32 %v2010, 4294901760
    %3390 = vmatprep.subr.mxu0 %v3389
    %v3391 = vand.u32 %v2009, 4294901760
    %3392 = vmatpush1.msra.mxu0 %v3391
    %v3393 = vand.u32 %v2012, 4294901760
    %3394 = vmatprep.subr.mxu0 %v3393
    %v3395 = vand.u32 %v2011, 4294901760
    %3396 = vmatpush1.msra.mxu0 %v3395
    %v3397 = vand.u32 %v2014, 4294901760
    %3398 = vmatprep.subr.mxu0 %v3397
    %v3399 = vand.u32 %v2013, 4294901760
    %3400 = vmatpush1.msra.mxu0 %v3399
    %v3401 = vand.u32 %v2016, 4294901760
    %3402 = vmatprep.subr.mxu0 %v3401
    %v3403 = vand.u32 %v2015, 4294901760
    %3404 = vmatpush1.msra.mxu0 %v3403
    %v3405 = vand.u32 %v2018, 4294901760
    %3406 = vmatprep.subr.mxu0 %v3405
    %v3407 = vand.u32 %v2017, 4294901760
    %3408 = vmatpush1.msra.mxu0 %v3407
    %v3409 = vand.u32 %v2020, 4294901760
    %3410 = vmatprep.subr.mxu0 %v3409
    %v3411 = vand.u32 %v2019, 4294901760
    %3412 = vmatpush1.msra.mxu0 %v3411
    %v3413 = vand.u32 %v2022, 4294901760
    %3414 = vmatprep.subr.mxu0 %v3413
    %v3415 = vand.u32 %v2021, 4294901760
    %3416 = vmatpush1.msra.mxu0 %v3415
    %v3417 = vand.u32 %v2024, 4294901760
    %3418 = vmatprep.subr.mxu0 %v3417
    %v3419 = vand.u32 %v2023, 4294901760
    %3420 = vmatpush1.msra.mxu0 %v3419
    %v3421 = vand.u32 %v2026, 4294901760
    %3422 = vmatprep.subr.mxu0 %v3421
    %v3423 = vand.u32 %v2025, 4294901760
    %3424 = vmatpush1.msra.mxu0 %v3423
    %v3425 = vand.u32 %v2028, 4294901760
    %3426 = vmatprep.subr.mxu0 %v3425
    %v3427 = vand.u32 %v2027, 4294901760
    %3428 = vmatpush1.msra.mxu0 %v3427
    %v3429 = vand.u32 %v2030, 4294901760
    %3430 = vmatprep.subr.mxu0 %v3429
    %v3431 = vand.u32 %v2029, 4294901760
    %3432 = vmatpush1.msra.mxu0 %v3431
    %v3433 = vand.u32 %v2032, 4294901760
    %3434 = vmatprep.subr.mxu0 %v3433
    %v3435 = vand.u32 %v2031, 4294901760
    %3436 = vmatpush1.msra.mxu0 %v3435
    %v3437 = vand.u32 %v2034, 4294901760
    %3438 = vmatprep.subr.mxu0 %v3437
    %v3439 = vand.u32 %v2033, 4294901760
    %3440 = vmatpush1.msra.mxu0 %v3439
    %v3441 = vand.u32 %v2036, 4294901760
    %3442 = vmatprep.subr.mxu0 %v3441
    %v3443 = vand.u32 %v2035, 4294901760
    %3444 = vmatpush1.msra.mxu0 %v3443
    %v3445 = vand.u32 %v2038, 4294901760
    %3446 = vmatprep.subr.mxu0 %v3445
    %v3447 = vand.u32 %v2037, 4294901760
    %3448 = vmatpush1.msra.mxu0 %v3447
    %v3449 = vand.u32 %v2040, 4294901760
    %3450 = vmatprep.subr.mxu0 %v3449
    %v3451 = vand.u32 %v2039, 4294901760
    %3452 = vmatpush1.msra.mxu0 %v3451
    %v3453 = vand.u32 %v2042, 4294901760
    %3454 = vmatprep.subr.mxu0 %v3453
    %v3455 = vand.u32 %v2041, 4294901760
    %3456 = vmatpush1.msra.mxu0 %v3455
    %v3457 = vand.u32 %v2044, 4294901760
    %3458 = vmatprep.subr.mxu0 %v3457
    %v3459 = vand.u32 %v2043, 4294901760
    %3460 = vmatpush1.msra.mxu0 %v3459
    %v3461 = vand.u32 %v2046, 4294901760
    %3462 = vmatprep.subr.mxu0 %v3461
    %v3463 = vand.u32 %v2045, 4294901760
    %3464 = vmatpush1.msra.mxu0 %v3463
    %v3465 = vand.u32 %v2048, 4294901760
    %3466 = vmatprep.subr.mxu0 %v3465
    %v3467 = vand.u32 %v2047, 4294901760
    %3468 = vmatpush1.msra.mxu0 %v3467
    %v3469 = vand.u32 %v2050, 4294901760
    %3470 = vmatprep.subr.mxu0 %v3469
    %v3471 = vand.u32 %v2049, 4294901760
    %3472 = vmatpush1.msra.mxu0 %v3471
    %v3473 = vand.u32 %v2052, 4294901760
    %3474 = vmatprep.subr.mxu0 %v3473
    %v3475 = vand.u32 %v2051, 4294901760
    %3476 = vmatpush1.msra.mxu0 %v3475
    %v3477 = vand.u32 %v2054, 4294901760
    %3478 = vmatprep.subr.mxu0 %v3477
    %v3479 = vand.u32 %v2053, 4294901760
    %3480 = vmatpush1.msra.mxu0 %v3479
    %v3481 = vand.u32 %v2056, 4294901760
    %3482 = vmatprep.subr.mxu0 %v3481
    %v3483 = vand.u32 %v2055, 4294901760
    %3484 = vmatpush1.msra.mxu0 %v3483
    %v3485 = vand.u32 %v2058, 4294901760
    %3486 = vmatprep.subr.mxu0 %v3485
    %v3487 = vand.u32 %v2057, 4294901760
    %3488 = vmatpush1.msra.mxu0 %v3487
    %v3489 = vand.u32 %v2060, 4294901760
    %3490 = vmatprep.subr.mxu0 %v3489
    %v3491 = vand.u32 %v2059, 4294901760
    %3492 = vmatpush1.msra.mxu0 %v3491
    %v3493 = vand.u32 %v2062, 4294901760
    %3494 = vmatprep.subr.mxu0 %v3493
    %v3495 = vand.u32 %v2061, 4294901760
    %3496 = vmatpush1.msra.mxu0 %v3495
    %v3497 = vand.u32 %v2080, 4294901760
    %v3498 = vsub.f32 %v2080, %v3497
    %v3499 = vand.u32 %v3498, 4294901760
    %v3500 = vsub.f32 %v3498, %v3499
    %v3501 = vand.u32 %v3500, 4294901760
    %3502 = vmatprep.mubr.f32.mxu0 %v3501
    %v3503 = vand.u32 %v2078, 4294901760
    %v3504 = vsub.f32 %v2078, %v3503
    %v3505 = vand.u32 %v3504, 4294901760
    %v3506 = vsub.f32 %v3504, %v3505
    %v3507 = vand.u32 %v3506, 4294901760
    %3508 = vmatmul.mubr.f32.gmra.mrb[0].mxu0 %v3507
    %v3509 = vpop.f32.mrb[0].mxu0
    %v3510 = vadd.f32 %v3365, %v3509
    %v3511 = vpop.f32.mrb[0].mxu0
    %v3512 = vadd.f32 %v3367, %v3511
    %3513 = vdwg.mxu0
    %v3514 = vand.u32 %v2000, 4294901760
    %v3515 = vsub.f32 %v2000, %v3514
    %v3516 = vand.u32 %v3515, 4294901760
    %v3517 = vsub.f32 %v3515, %v3516
    %v3518 = vand.u32 %v3517, 4294901760
    %3519 = vmatprep.subr.mxu0 %v3518
    %v3520 = vand.u32 %v1999, 4294901760
    %v3521 = vsub.f32 %v1999, %v3520
    %v3522 = vand.u32 %v3521, 4294901760
    %v3523 = vsub.f32 %v3521, %v3522
    %v3524 = vand.u32 %v3523, 4294901760
    %3525 = vmatpush1.msra.mxu0 %v3524
    %v3526 = vand.u32 %v2002, 4294901760
    %v3527 = vsub.f32 %v2002, %v3526
    %v3528 = vand.u32 %v3527, 4294901760
    %v3529 = vsub.f32 %v3527, %v3528
    %v3530 = vand.u32 %v3529, 4294901760
    %3531 = vmatprep.subr.mxu0 %v3530
    %v3532 = vand.u32 %v2001, 4294901760
    %v3533 = vsub.f32 %v2001, %v3532
    %v3534 = vand.u32 %v3533, 4294901760
    %v3535 = vsub.f32 %v3533, %v3534
    %v3536 = vand.u32 %v3535, 4294901760
    %3537 = vmatpush1.msra.mxu0 %v3536
    %v3538 = vand.u32 %v2004, 4294901760
    %v3539 = vsub.f32 %v2004, %v3538
    %v3540 = vand.u32 %v3539, 4294901760
    %v3541 = vsub.f32 %v3539, %v3540
    %v3542 = vand.u32 %v3541, 4294901760
    %3543 = vmatprep.subr.mxu0 %v3542
    %v3544 = vand.u32 %v2003, 4294901760
    %v3545 = vsub.f32 %v2003, %v3544
    %v3546 = vand.u32 %v3545, 4294901760
    %v3547 = vsub.f32 %v3545, %v3546
    %v3548 = vand.u32 %v3547, 4294901760
    %3549 = vmatpush1.msra.mxu0 %v3548
    %v3550 = vand.u32 %v2006, 4294901760
    %v3551 = vsub.f32 %v2006, %v3550
    %v3552 = vand.u32 %v3551, 4294901760
    %v3553 = vsub.f32 %v3551, %v3552
    %v3554 = vand.u32 %v3553, 4294901760
    %3555 = vmatprep.subr.mxu0 %v3554
    %v3556 = vand.u32 %v2005, 4294901760
    %v3557 = vsub.f32 %v2005, %v3556
    %v3558 = vand.u32 %v3557, 4294901760
    %v3559 = vsub.f32 %v3557, %v3558
    %v3560 = vand.u32 %v3559, 4294901760
    %3561 = vmatpush1.msra.mxu0 %v3560
    %v3562 = vand.u32 %v2008, 4294901760
    %v3563 = vsub.f32 %v2008, %v3562
    %v3564 = vand.u32 %v3563, 4294901760
    %v3565 = vsub.f32 %v3563, %v3564
    %v3566 = vand.u32 %v3565, 4294901760
    %3567 = vmatprep.subr.mxu0 %v3566
    %v3568 = vand.u32 %v2007, 4294901760
    %v3569 = vsub.f32 %v2007, %v3568
    %v3570 = vand.u32 %v3569, 4294901760
    %v3571 = vsub.f32 %v3569, %v3570
    %v3572 = vand.u32 %v3571, 4294901760
    %3573 = vmatpush1.msra.mxu0 %v3572
    %v3574 = vand.u32 %v2010, 4294901760
    %v3575 = vsub.f32 %v2010, %v3574
    %v3576 = vand.u32 %v3575, 4294901760
    %v3577 = vsub.f32 %v3575, %v3576
    %v3578 = vand.u32 %v3577, 4294901760
    %3579 = vmatprep.subr.mxu0 %v3578
    %v3580 = vand.u32 %v2009, 4294901760
    %v3581 = vsub.f32 %v2009, %v3580
    %v3582 = vand.u32 %v3581, 4294901760
    %v3583 = vsub.f32 %v3581, %v3582
    %v3584 = vand.u32 %v3583, 4294901760
    %3585 = vmatpush1.msra.mxu0 %v3584
    %v3586 = vand.u32 %v2012, 4294901760
    %v3587 = vsub.f32 %v2012, %v3586
    %v3588 = vand.u32 %v3587, 4294901760
    %v3589 = vsub.f32 %v3587, %v3588
    %v3590 = vand.u32 %v3589, 4294901760
    %3591 = vmatprep.subr.mxu0 %v3590
    %v3592 = vand.u32 %v2011, 4294901760
    %v3593 = vsub.f32 %v2011, %v3592
    %v3594 = vand.u32 %v3593, 4294901760
    %v3595 = vsub.f32 %v3593, %v3594
    %v3596 = vand.u32 %v3595, 4294901760
    %3597 = vmatpush1.msra.mxu0 %v3596
    %v3598 = vand.u32 %v2014, 4294901760
    %v3599 = vsub.f32 %v2014, %v3598
    %v3600 = vand.u32 %v3599, 4294901760
    %v3601 = vsub.f32 %v3599, %v3600
    %v3602 = vand.u32 %v3601, 4294901760
    %3603 = vmatprep.subr.mxu0 %v3602
    %v3604 = vand.u32 %v2013, 4294901760
    %v3605 = vsub.f32 %v2013, %v3604
    %v3606 = vand.u32 %v3605, 4294901760
    %v3607 = vsub.f32 %v3605, %v3606
    %v3608 = vand.u32 %v3607, 4294901760
    %3609 = vmatpush1.msra.mxu0 %v3608
    %v3610 = vand.u32 %v2016, 4294901760
    %v3611 = vsub.f32 %v2016, %v3610
    %v3612 = vand.u32 %v3611, 4294901760
    %v3613 = vsub.f32 %v3611, %v3612
    %v3614 = vand.u32 %v3613, 4294901760
    %3615 = vmatprep.subr.mxu0 %v3614
    %v3616 = vand.u32 %v2015, 4294901760
    %v3617 = vsub.f32 %v2015, %v3616
    %v3618 = vand.u32 %v3617, 4294901760
    %v3619 = vsub.f32 %v3617, %v3618
    %v3620 = vand.u32 %v3619, 4294901760
    %3621 = vmatpush1.msra.mxu0 %v3620
    %v3622 = vand.u32 %v2018, 4294901760
    %v3623 = vsub.f32 %v2018, %v3622
    %v3624 = vand.u32 %v3623, 4294901760
    %v3625 = vsub.f32 %v3623, %v3624
    %v3626 = vand.u32 %v3625, 4294901760
    %3627 = vmatprep.subr.mxu0 %v3626
    %v3628 = vand.u32 %v2017, 4294901760
    %v3629 = vsub.f32 %v2017, %v3628
    %v3630 = vand.u32 %v3629, 4294901760
    %v3631 = vsub.f32 %v3629, %v3630
    %v3632 = vand.u32 %v3631, 4294901760
    %3633 = vmatpush1.msra.mxu0 %v3632
    %v3634 = vand.u32 %v2020, 4294901760
    %v3635 = vsub.f32 %v2020, %v3634
    %v3636 = vand.u32 %v3635, 4294901760
    %v3637 = vsub.f32 %v3635, %v3636
    %v3638 = vand.u32 %v3637, 4294901760
    %3639 = vmatprep.subr.mxu0 %v3638
    %v3640 = vand.u32 %v2019, 4294901760
    %v3641 = vsub.f32 %v2019, %v3640
    %v3642 = vand.u32 %v3641, 4294901760
    %v3643 = vsub.f32 %v3641, %v3642
    %v3644 = vand.u32 %v3643, 4294901760
    %3645 = vmatpush1.msra.mxu0 %v3644
    %v3646 = vand.u32 %v2022, 4294901760
    %v3647 = vsub.f32 %v2022, %v3646
    %v3648 = vand.u32 %v3647, 4294901760
    %v3649 = vsub.f32 %v3647, %v3648
    %v3650 = vand.u32 %v3649, 4294901760
    %3651 = vmatprep.subr.mxu0 %v3650
    %v3652 = vand.u32 %v2021, 4294901760
    %v3653 = vsub.f32 %v2021, %v3652
    %v3654 = vand.u32 %v3653, 4294901760
    %v3655 = vsub.f32 %v3653, %v3654
    %v3656 = vand.u32 %v3655, 4294901760
    %3657 = vmatpush1.msra.mxu0 %v3656
    %v3658 = vand.u32 %v2024, 4294901760
    %v3659 = vsub.f32 %v2024, %v3658
    %v3660 = vand.u32 %v3659, 4294901760
    %v3661 = vsub.f32 %v3659, %v3660
    %v3662 = vand.u32 %v3661, 4294901760
    %3663 = vmatprep.subr.mxu0 %v3662
    %v3664 = vand.u32 %v2023, 4294901760
    %v3665 = vsub.f32 %v2023, %v3664
    %v3666 = vand.u32 %v3665, 4294901760
    %v3667 = vsub.f32 %v3665, %v3666
    %v3668 = vand.u32 %v3667, 4294901760
    %3669 = vmatpush1.msra.mxu0 %v3668
    %v3670 = vand.u32 %v2026, 4294901760
    %v3671 = vsub.f32 %v2026, %v3670
    %v3672 = vand.u32 %v3671, 4294901760
    %v3673 = vsub.f32 %v3671, %v3672
    %v3674 = vand.u32 %v3673, 4294901760
    %3675 = vmatprep.subr.mxu0 %v3674
    %v3676 = vand.u32 %v2025, 4294901760
    %v3677 = vsub.f32 %v2025, %v3676
    %v3678 = vand.u32 %v3677, 4294901760
    %v3679 = vsub.f32 %v3677, %v3678
    %v3680 = vand.u32 %v3679, 4294901760
    %3681 = vmatpush1.msra.mxu0 %v3680
    %v3682 = vand.u32 %v2028, 4294901760
    %v3683 = vsub.f32 %v2028, %v3682
    %v3684 = vand.u32 %v3683, 4294901760
    %v3685 = vsub.f32 %v3683, %v3684
    %v3686 = vand.u32 %v3685, 4294901760
    %3687 = vmatprep.subr.mxu0 %v3686
    %v3688 = vand.u32 %v2027, 4294901760
    %v3689 = vsub.f32 %v2027, %v3688
    %v3690 = vand.u32 %v3689, 4294901760
    %v3691 = vsub.f32 %v3689, %v3690
    %v3692 = vand.u32 %v3691, 4294901760
    %3693 = vmatpush1.msra.mxu0 %v3692
    %v3694 = vand.u32 %v2030, 4294901760
    %v3695 = vsub.f32 %v2030, %v3694
    %v3696 = vand.u32 %v3695, 4294901760
    %v3697 = vsub.f32 %v3695, %v3696
    %v3698 = vand.u32 %v3697, 4294901760
    %3699 = vmatprep.subr.mxu0 %v3698
    %v3700 = vand.u32 %v2029, 4294901760
    %v3701 = vsub.f32 %v2029, %v3700
    %v3702 = vand.u32 %v3701, 4294901760
    %v3703 = vsub.f32 %v3701, %v3702
    %v3704 = vand.u32 %v3703, 4294901760
    %3705 = vmatpush1.msra.mxu0 %v3704
    %v3706 = vand.u32 %v2032, 4294901760
    %v3707 = vsub.f32 %v2032, %v3706
    %v3708 = vand.u32 %v3707, 4294901760
    %v3709 = vsub.f32 %v3707, %v3708
    %v3710 = vand.u32 %v3709, 4294901760
    %3711 = vmatprep.subr.mxu0 %v3710
    %v3712 = vand.u32 %v2031, 4294901760
    %v3713 = vsub.f32 %v2031, %v3712
    %v3714 = vand.u32 %v3713, 4294901760
    %v3715 = vsub.f32 %v3713, %v3714
    %v3716 = vand.u32 %v3715, 4294901760
    %3717 = vmatpush1.msra.mxu0 %v3716
    %v3718 = vand.u32 %v2034, 4294901760
    %v3719 = vsub.f32 %v2034, %v3718
    %v3720 = vand.u32 %v3719, 4294901760
    %v3721 = vsub.f32 %v3719, %v3720
    %v3722 = vand.u32 %v3721, 4294901760
    %3723 = vmatprep.subr.mxu0 %v3722
    %v3724 = vand.u32 %v2033, 4294901760
    %v3725 = vsub.f32 %v2033, %v3724
    %v3726 = vand.u32 %v3725, 4294901760
    %v3727 = vsub.f32 %v3725, %v3726
    %v3728 = vand.u32 %v3727, 4294901760
    %3729 = vmatpush1.msra.mxu0 %v3728
    %v3730 = vand.u32 %v2036, 4294901760
    %v3731 = vsub.f32 %v2036, %v3730
    %v3732 = vand.u32 %v3731, 4294901760
    %v3733 = vsub.f32 %v3731, %v3732
    %v3734 = vand.u32 %v3733, 4294901760
    %3735 = vmatprep.subr.mxu0 %v3734
    %v3736 = vand.u32 %v2035, 4294901760
    %v3737 = vsub.f32 %v2035, %v3736
    %v3738 = vand.u32 %v3737, 4294901760
    %v3739 = vsub.f32 %v3737, %v3738
    %v3740 = vand.u32 %v3739, 4294901760
    %3741 = vmatpush1.msra.mxu0 %v3740
    %v3742 = vand.u32 %v2038, 4294901760
    %v3743 = vsub.f32 %v2038, %v3742
    %v3744 = vand.u32 %v3743, 4294901760
    %v3745 = vsub.f32 %v3743, %v3744
    %v3746 = vand.u32 %v3745, 4294901760
    %3747 = vmatprep.subr.mxu0 %v3746
    %v3748 = vand.u32 %v2037, 4294901760
    %v3749 = vsub.f32 %v2037, %v3748
    %v3750 = vand.u32 %v3749, 4294901760
    %v3751 = vsub.f32 %v3749, %v3750
    %v3752 = vand.u32 %v3751, 4294901760
    %3753 = vmatpush1.msra.mxu0 %v3752
    %v3754 = vand.u32 %v2040, 4294901760
    %v3755 = vsub.f32 %v2040, %v3754
    %v3756 = vand.u32 %v3755, 4294901760
    %v3757 = vsub.f32 %v3755, %v3756
    %v3758 = vand.u32 %v3757, 4294901760
    %3759 = vmatprep.subr.mxu0 %v3758
    %v3760 = vand.u32 %v2039, 4294901760
    %v3761 = vsub.f32 %v2039, %v3760
    %v3762 = vand.u32 %v3761, 4294901760
    %v3763 = vsub.f32 %v3761, %v3762
    %v3764 = vand.u32 %v3763, 4294901760
    %3765 = vmatpush1.msra.mxu0 %v3764
    %v3766 = vand.u32 %v2042, 4294901760
    %v3767 = vsub.f32 %v2042, %v3766
    %v3768 = vand.u32 %v3767, 4294901760
    %v3769 = vsub.f32 %v3767, %v3768
    %v3770 = vand.u32 %v3769, 4294901760
    %3771 = vmatprep.subr.mxu0 %v3770
    %v3772 = vand.u32 %v2041, 4294901760
    %v3773 = vsub.f32 %v2041, %v3772
    %v3774 = vand.u32 %v3773, 4294901760
    %v3775 = vsub.f32 %v3773, %v3774
    %v3776 = vand.u32 %v3775, 4294901760
    %3777 = vmatpush1.msra.mxu0 %v3776
    %v3778 = vand.u32 %v2044, 4294901760
    %v3779 = vsub.f32 %v2044, %v3778
    %v3780 = vand.u32 %v3779, 4294901760
    %v3781 = vsub.f32 %v3779, %v3780
    %v3782 = vand.u32 %v3781, 4294901760
    %3783 = vmatprep.subr.mxu0 %v3782
    %v3784 = vand.u32 %v2043, 4294901760
    %v3785 = vsub.f32 %v2043, %v3784
    %v3786 = vand.u32 %v3785, 4294901760
    %v3787 = vsub.f32 %v3785, %v3786
    %v3788 = vand.u32 %v3787, 4294901760
    %3789 = vmatpush1.msra.mxu0 %v3788
    %v3790 = vand.u32 %v2046, 4294901760
    %v3791 = vsub.f32 %v2046, %v3790
    %v3792 = vand.u32 %v3791, 4294901760
    %v3793 = vsub.f32 %v3791, %v3792
    %v3794 = vand.u32 %v3793, 4294901760
    %3795 = vmatprep.subr.mxu0 %v3794
    %v3796 = vand.u32 %v2045, 4294901760
    %v3797 = vsub.f32 %v2045, %v3796
    %v3798 = vand.u32 %v3797, 4294901760
    %v3799 = vsub.f32 %v3797, %v3798
    %v3800 = vand.u32 %v3799, 4294901760
    %3801 = vmatpush1.msra.mxu0 %v3800
    %v3802 = vand.u32 %v2048, 4294901760
    %v3803 = vsub.f32 %v2048, %v3802
    %v3804 = vand.u32 %v3803, 4294901760
    %v3805 = vsub.f32 %v3803, %v3804
    %v3806 = vand.u32 %v3805, 4294901760
    %3807 = vmatprep.subr.mxu0 %v3806
    %v3808 = vand.u32 %v2047, 4294901760
    %v3809 = vsub.f32 %v2047, %v3808
    %v3810 = vand.u32 %v3809, 4294901760
    %v3811 = vsub.f32 %v3809, %v3810
    %v3812 = vand.u32 %v3811, 4294901760
    %3813 = vmatpush1.msra.mxu0 %v3812
    %v3814 = vand.u32 %v2050, 4294901760
    %v3815 = vsub.f32 %v2050, %v3814
    %v3816 = vand.u32 %v3815, 4294901760
    %v3817 = vsub.f32 %v3815, %v3816
    %v3818 = vand.u32 %v3817, 4294901760
    %3819 = vmatprep.subr.mxu0 %v3818
    %v3820 = vand.u32 %v2049, 4294901760
    %v3821 = vsub.f32 %v2049, %v3820
    %v3822 = vand.u32 %v3821, 4294901760
    %v3823 = vsub.f32 %v3821, %v3822
    %v3824 = vand.u32 %v3823, 4294901760
    %3825 = vmatpush1.msra.mxu0 %v3824
    %v3826 = vand.u32 %v2052, 4294901760
    %v3827 = vsub.f32 %v2052, %v3826
    %v3828 = vand.u32 %v3827, 4294901760
    %v3829 = vsub.f32 %v3827, %v3828
    %v3830 = vand.u32 %v3829, 4294901760
    %3831 = vmatprep.subr.mxu0 %v3830
    %v3832 = vand.u32 %v2051, 4294901760
    %v3833 = vsub.f32 %v2051, %v3832
    %v3834 = vand.u32 %v3833, 4294901760
    %v3835 = vsub.f32 %v3833, %v3834
    %v3836 = vand.u32 %v3835, 4294901760
    %3837 = vmatpush1.msra.mxu0 %v3836
    %v3838 = vand.u32 %v2054, 4294901760
    %v3839 = vsub.f32 %v2054, %v3838
    %v3840 = vand.u32 %v3839, 4294901760
    %v3841 = vsub.f32 %v3839, %v3840
    %v3842 = vand.u32 %v3841, 4294901760
    %3843 = vmatprep.subr.mxu0 %v3842
    %v3844 = vand.u32 %v2053, 4294901760
    %v3845 = vsub.f32 %v2053, %v3844
    %v3846 = vand.u32 %v3845, 4294901760
    %v3847 = vsub.f32 %v3845, %v3846
    %v3848 = vand.u32 %v3847, 4294901760
    %3849 = vmatpush1.msra.mxu0 %v3848
    %v3850 = vand.u32 %v2056, 4294901760
    %v3851 = vsub.f32 %v2056, %v3850
    %v3852 = vand.u32 %v3851, 4294901760
    %v3853 = vsub.f32 %v3851, %v3852
    %v3854 = vand.u32 %v3853, 4294901760
    %3855 = vmatprep.subr.mxu0 %v3854
    %v3856 = vand.u32 %v2055, 4294901760
    %v3857 = vsub.f32 %v2055, %v3856
    %v3858 = vand.u32 %v3857, 4294901760
    %v3859 = vsub.f32 %v3857, %v3858
    %v3860 = vand.u32 %v3859, 4294901760
    %3861 = vmatpush1.msra.mxu0 %v3860
    %v3862 = vand.u32 %v2058, 4294901760
    %v3863 = vsub.f32 %v2058, %v3862
    %v3864 = vand.u32 %v3863, 4294901760
    %v3865 = vsub.f32 %v3863, %v3864
    %v3866 = vand.u32 %v3865, 4294901760
    %3867 = vmatprep.subr.mxu0 %v3866
    %v3868 = vand.u32 %v2057, 4294901760
    %v3869 = vsub.f32 %v2057, %v3868
    %v3870 = vand.u32 %v3869, 4294901760
    %v3871 = vsub.f32 %v3869, %v3870
    %v3872 = vand.u32 %v3871, 4294901760
    %3873 = vmatpush1.msra.mxu0 %v3872
    %v3874 = vand.u32 %v2060, 4294901760
    %v3875 = vsub.f32 %v2060, %v3874
    %v3876 = vand.u32 %v3875, 4294901760
    %v3877 = vsub.f32 %v3875, %v3876
    %v3878 = vand.u32 %v3877, 4294901760
    %3879 = vmatprep.subr.mxu0 %v3878
    %v3880 = vand.u32 %v2059, 4294901760
    %v3881 = vsub.f32 %v2059, %v3880
    %v3882 = vand.u32 %v3881, 4294901760
    %v3883 = vsub.f32 %v3881, %v3882
    %v3884 = vand.u32 %v3883, 4294901760
    %3885 = vmatpush1.msra.mxu0 %v3884
    %v3886 = vand.u32 %v2062, 4294901760
    %v3887 = vsub.f32 %v2062, %v3886
    %v3888 = vand.u32 %v3887, 4294901760
    %v3889 = vsub.f32 %v3887, %v3888
    %v3890 = vand.u32 %v3889, 4294901760
    %3891 = vmatprep.subr.mxu0 %v3890
    %v3892 = vand.u32 %v2061, 4294901760
    %v3893 = vsub.f32 %v2061, %v3892
    %v3894 = vand.u32 %v3893, 4294901760
    %v3895 = vsub.f32 %v3893, %v3894
    %v3896 = vand.u32 %v3895, 4294901760
    %3897 = vmatpush1.msra.mxu0 %v3896
    %v3898 = vand.u32 %v2080, 4294901760
    %3899 = vmatprep.mubr.f32.mxu0 %v3898
    %v3900 = vand.u32 %v2078, 4294901760
    %3901 = vmatmul.mubr.f32.gmra.mrb[0].mxu0 %v3900
    %v3902 = vpop.f32.mrb[0].mxu0
    %v3903 = vadd.f32 %v3510, %v3902
    %v3904 = vpop.f32.mrb[0].mxu0
    %v3905 = vadd.f32 %v3512, %v3904
    %3906 = vdwg.mxu0
    %v3907 = vand.u32 %v2000, 4294901760
    %v3908 = vsub.f32 %v2000, %v3907
    %3909 = vmatprep.subr.mxu0 %v3908
    %v3910 = vand.u32 %v1999, 4294901760
    %v3911 = vsub.f32 %v1999, %v3910
    %3912 = vmatpush1.msra.mxu0 %v3911
    %v3913 = vand.u32 %v2002, 4294901760
    %v3914 = vsub.f32 %v2002, %v3913
    %3915 = vmatprep.subr.mxu0 %v3914
    %v3916 = vand.u32 %v2001, 4294901760
    %v3917 = vsub.f32 %v2001, %v3916
    %3918 = vmatpush1.msra.mxu0 %v3917
    %v3919 = vand.u32 %v2004, 4294901760
    %v3920 = vsub.f32 %v2004, %v3919
    %3921 = vmatprep.subr.mxu0 %v3920
    %v3922 = vand.u32 %v2003, 4294901760
    %v3923 = vsub.f32 %v2003, %v3922
    %3924 = vmatpush1.msra.mxu0 %v3923
    %v3925 = vand.u32 %v2006, 4294901760
    %v3926 = vsub.f32 %v2006, %v3925
    %3927 = vmatprep.subr.mxu0 %v3926
    %v3928 = vand.u32 %v2005, 4294901760
    %v3929 = vsub.f32 %v2005, %v3928
    %3930 = vmatpush1.msra.mxu0 %v3929
    %v3931 = vand.u32 %v2008, 4294901760
    %v3932 = vsub.f32 %v2008, %v3931
    %3933 = vmatprep.subr.mxu0 %v3932
    %v3934 = vand.u32 %v2007, 4294901760
    %v3935 = vsub.f32 %v2007, %v3934
    %3936 = vmatpush1.msra.mxu0 %v3935
    %v3937 = vand.u32 %v2010, 4294901760
    %v3938 = vsub.f32 %v2010, %v3937
    %3939 = vmatprep.subr.mxu0 %v3938
    %v3940 = vand.u32 %v2009, 4294901760
    %v3941 = vsub.f32 %v2009, %v3940
    %3942 = vmatpush1.msra.mxu0 %v3941
    %v3943 = vand.u32 %v2012, 4294901760
    %v3944 = vsub.f32 %v2012, %v3943
    %3945 = vmatprep.subr.mxu0 %v3944
    %v3946 = vand.u32 %v2011, 4294901760
    %v3947 = vsub.f32 %v2011, %v3946
    %3948 = vmatpush1.msra.mxu0 %v3947
    %v3949 = vand.u32 %v2014, 4294901760
    %v3950 = vsub.f32 %v2014, %v3949
    %3951 = vmatprep.subr.mxu0 %v3950
    %v3952 = vand.u32 %v2013, 4294901760
    %v3953 = vsub.f32 %v2013, %v3952
    %3954 = vmatpush1.msra.mxu0 %v3953
    %v3955 = vand.u32 %v2016, 4294901760
    %v3956 = vsub.f32 %v2016, %v3955
    %3957 = vmatprep.subr.mxu0 %v3956
    %v3958 = vand.u32 %v2015, 4294901760
    %v3959 = vsub.f32 %v2015, %v3958
    %3960 = vmatpush1.msra.mxu0 %v3959
    %v3961 = vand.u32 %v2018, 4294901760
    %v3962 = vsub.f32 %v2018, %v3961
    %3963 = vmatprep.subr.mxu0 %v3962
    %v3964 = vand.u32 %v2017, 4294901760
    %v3965 = vsub.f32 %v2017, %v3964
    %3966 = vmatpush1.msra.mxu0 %v3965
    %v3967 = vand.u32 %v2020, 4294901760
    %v3968 = vsub.f32 %v2020, %v3967
    %3969 = vmatprep.subr.mxu0 %v3968
    %v3970 = vand.u32 %v2019, 4294901760
    %v3971 = vsub.f32 %v2019, %v3970
    %3972 = vmatpush1.msra.mxu0 %v3971
    %v3973 = vand.u32 %v2022, 4294901760
    %v3974 = vsub.f32 %v2022, %v3973
    %3975 = vmatprep.subr.mxu0 %v3974
    %v3976 = vand.u32 %v2021, 4294901760
    %v3977 = vsub.f32 %v2021, %v3976
    %3978 = vmatpush1.msra.mxu0 %v3977
    %v3979 = vand.u32 %v2024, 4294901760
    %v3980 = vsub.f32 %v2024, %v3979
    %3981 = vmatprep.subr.mxu0 %v3980
    %v3982 = vand.u32 %v2023, 4294901760
    %v3983 = vsub.f32 %v2023, %v3982
    %3984 = vmatpush1.msra.mxu0 %v3983
    %v3985 = vand.u32 %v2026, 4294901760
    %v3986 = vsub.f32 %v2026, %v3985
    %3987 = vmatprep.subr.mxu0 %v3986
    %v3988 = vand.u32 %v2025, 4294901760
    %v3989 = vsub.f32 %v2025, %v3988
    %3990 = vmatpush1.msra.mxu0 %v3989
    %v3991 = vand.u32 %v2028, 4294901760
    %v3992 = vsub.f32 %v2028, %v3991
    %3993 = vmatprep.subr.mxu0 %v3992
    %v3994 = vand.u32 %v2027, 4294901760
    %v3995 = vsub.f32 %v2027, %v3994
    %3996 = vmatpush1.msra.mxu0 %v3995
    %v3997 = vand.u32 %v2030, 4294901760
    %v3998 = vsub.f32 %v2030, %v3997
    %3999 = vmatprep.subr.mxu0 %v3998
    %v4000 = vand.u32 %v2029, 4294901760
    %v4001 = vsub.f32 %v2029, %v4000
    %4002 = vmatpush1.msra.mxu0 %v4001
    %v4003 = vand.u32 %v2032, 4294901760
    %v4004 = vsub.f32 %v2032, %v4003
    %4005 = vmatprep.subr.mxu0 %v4004
    %v4006 = vand.u32 %v2031, 4294901760
    %v4007 = vsub.f32 %v2031, %v4006
    %4008 = vmatpush1.msra.mxu0 %v4007
    %v4009 = vand.u32 %v2034, 4294901760
    %v4010 = vsub.f32 %v2034, %v4009
    %4011 = vmatprep.subr.mxu0 %v4010
    %v4012 = vand.u32 %v2033, 4294901760
    %v4013 = vsub.f32 %v2033, %v4012
    %4014 = vmatpush1.msra.mxu0 %v4013
    %v4015 = vand.u32 %v2036, 4294901760
    %v4016 = vsub.f32 %v2036, %v4015
    %4017 = vmatprep.subr.mxu0 %v4016
    %v4018 = vand.u32 %v2035, 4294901760
    %v4019 = vsub.f32 %v2035, %v4018
    %4020 = vmatpush1.msra.mxu0 %v4019
    %v4021 = vand.u32 %v2038, 4294901760
    %v4022 = vsub.f32 %v2038, %v4021
    %4023 = vmatprep.subr.mxu0 %v4022
    %v4024 = vand.u32 %v2037, 4294901760
    %v4025 = vsub.f32 %v2037, %v4024
    %4026 = vmatpush1.msra.mxu0 %v4025
    %v4027 = vand.u32 %v2040, 4294901760
    %v4028 = vsub.f32 %v2040, %v4027
    %4029 = vmatprep.subr.mxu0 %v4028
    %v4030 = vand.u32 %v2039, 4294901760
    %v4031 = vsub.f32 %v2039, %v4030
    %4032 = vmatpush1.msra.mxu0 %v4031
    %v4033 = vand.u32 %v2042, 4294901760
    %v4034 = vsub.f32 %v2042, %v4033
    %4035 = vmatprep.subr.mxu0 %v4034
    %v4036 = vand.u32 %v2041, 4294901760
    %v4037 = vsub.f32 %v2041, %v4036
    %4038 = vmatpush1.msra.mxu0 %v4037
    %v4039 = vand.u32 %v2044, 4294901760
    %v4040 = vsub.f32 %v2044, %v4039
    %4041 = vmatprep.subr.mxu0 %v4040
    %v4042 = vand.u32 %v2043, 4294901760
    %v4043 = vsub.f32 %v2043, %v4042
    %4044 = vmatpush1.msra.mxu0 %v4043
    %v4045 = vand.u32 %v2046, 4294901760
    %v4046 = vsub.f32 %v2046, %v4045
    %4047 = vmatprep.subr.mxu0 %v4046
    %v4048 = vand.u32 %v2045, 4294901760
    %v4049 = vsub.f32 %v2045, %v4048
    %4050 = vmatpush1.msra.mxu0 %v4049
    %v4051 = vand.u32 %v2048, 4294901760
    %v4052 = vsub.f32 %v2048, %v4051
    %4053 = vmatprep.subr.mxu0 %v4052
    %v4054 = vand.u32 %v2047, 4294901760
    %v4055 = vsub.f32 %v2047, %v4054
    %4056 = vmatpush1.msra.mxu0 %v4055
    %v4057 = vand.u32 %v2050, 4294901760
    %v4058 = vsub.f32 %v2050, %v4057
    %4059 = vmatprep.subr.mxu0 %v4058
    %v4060 = vand.u32 %v2049, 4294901760
    %v4061 = vsub.f32 %v2049, %v4060
    %4062 = vmatpush1.msra.mxu0 %v4061
    %v4063 = vand.u32 %v2052, 4294901760
    %v4064 = vsub.f32 %v2052, %v4063
    %4065 = vmatprep.subr.mxu0 %v4064
    %v4066 = vand.u32 %v2051, 4294901760
    %v4067 = vsub.f32 %v2051, %v4066
    %4068 = vmatpush1.msra.mxu0 %v4067
    %v4069 = vand.u32 %v2054, 4294901760
    %v4070 = vsub.f32 %v2054, %v4069
    %4071 = vmatprep.subr.mxu0 %v4070
    %v4072 = vand.u32 %v2053, 4294901760
    %v4073 = vsub.f32 %v2053, %v4072
    %4074 = vmatpush1.msra.mxu0 %v4073
    %v4075 = vand.u32 %v2056, 4294901760
    %v4076 = vsub.f32 %v2056, %v4075
    %4077 = vmatprep.subr.mxu0 %v4076
    %v4078 = vand.u32 %v2055, 4294901760
    %v4079 = vsub.f32 %v2055, %v4078
    %4080 = vmatpush1.msra.mxu0 %v4079
    %v4081 = vand.u32 %v2058, 4294901760
    %v4082 = vsub.f32 %v2058, %v4081
    %4083 = vmatprep.subr.mxu0 %v4082
    %v4084 = vand.u32 %v2057, 4294901760
    %v4085 = vsub.f32 %v2057, %v4084
    %4086 = vmatpush1.msra.mxu0 %v4085
    %v4087 = vand.u32 %v2060, 4294901760
    %v4088 = vsub.f32 %v2060, %v4087
    %4089 = vmatprep.subr.mxu0 %v4088
    %v4090 = vand.u32 %v2059, 4294901760
    %v4091 = vsub.f32 %v2059, %v4090
    %4092 = vmatpush1.msra.mxu0 %v4091
    %v4093 = vand.u32 %v2062, 4294901760
    %v4094 = vsub.f32 %v2062, %v4093
    %4095 = vmatprep.subr.mxu0 %v4094
    %v4096 = vand.u32 %v2061, 4294901760
    %v4097 = vsub.f32 %v2061, %v4096
    %4098 = vmatpush1.msra.mxu0 %v4097
    %v4099 = vand.u32 %v2080, 4294901760
    %v4100 = vsub.f32 %v2080, %v4099
    %4101 = vmatprep.mubr.f32.mxu0 %v4100
    %v4102 = vand.u32 %v2078, 4294901760
    %v4103 = vsub.f32 %v2078, %v4102
    %4104 = vmatmul.mubr.f32.gmra.mrb[0].mxu0 %v4103
    %v4105 = vpop.f32.mrb[0].mxu0
    %v4106 = vadd.f32 %v3903, %v4105
    %v4107 = vpop.f32.mrb[0].mxu0
    %v4108 = vadd.f32 %v3905, %v4107
    %4109 = vdwg.mxu0
    %v4110 = vand.u32 %v2000, 4294901760
    %4111 = vmatprep.subr.mxu0 %v4110
    %v4112 = vand.u32 %v1999, 4294901760
    %4113 = vmatpush1.msra.mxu0 %v4112
    %v4114 = vand.u32 %v2002, 4294901760
    %4115 = vmatprep.subr.mxu0 %v4114
    %v4116 = vand.u32 %v2001, 4294901760
    %4117 = vmatpush1.msra.mxu0 %v4116
    %v4118 = vand.u32 %v2004, 4294901760
    %4119 = vmatprep.subr.mxu0 %v4118
    %v4120 = vand.u32 %v2003, 4294901760
    %4121 = vmatpush1.msra.mxu0 %v4120
    %v4122 = vand.u32 %v2006, 4294901760
    %4123 = vmatprep.subr.mxu0 %v4122
    %v4124 = vand.u32 %v2005, 4294901760
    %4125 = vmatpush1.msra.mxu0 %v4124
    %v4126 = vand.u32 %v2008, 4294901760
    %4127 = vmatprep.subr.mxu0 %v4126
    %v4128 = vand.u32 %v2007, 4294901760
    %4129 = vmatpush1.msra.mxu0 %v4128
    %v4130 = vand.u32 %v2010, 4294901760
    %4131 = vmatprep.subr.mxu0 %v4130
    %v4132 = vand.u32 %v2009, 4294901760
    %4133 = vmatpush1.msra.mxu0 %v4132
    %v4134 = vand.u32 %v2012, 4294901760
    %4135 = vmatprep.subr.mxu0 %v4134
    %v4136 = vand.u32 %v2011, 4294901760
    %4137 = vmatpush1.msra.mxu0 %v4136
    %v4138 = vand.u32 %v2014, 4294901760
    %4139 = vmatprep.subr.mxu0 %v4138
    %v4140 = vand.u32 %v2013, 4294901760
    %4141 = vmatpush1.msra.mxu0 %v4140
    %v4142 = vand.u32 %v2016, 4294901760
    %4143 = vmatprep.subr.mxu0 %v4142
    %v4144 = vand.u32 %v2015, 4294901760
    %4145 = vmatpush1.msra.mxu0 %v4144
    %v4146 = vand.u32 %v2018, 4294901760
    %4147 = vmatprep.subr.mxu0 %v4146
    %v4148 = vand.u32 %v2017, 4294901760
    %4149 = vmatpush1.msra.mxu0 %v4148
    %v4150 = vand.u32 %v2020, 4294901760
    %4151 = vmatprep.subr.mxu0 %v4150
    %v4152 = vand.u32 %v2019, 4294901760
    %4153 = vmatpush1.msra.mxu0 %v4152
    %v4154 = vand.u32 %v2022, 4294901760
    %4155 = vmatprep.subr.mxu0 %v4154
    %v4156 = vand.u32 %v2021, 4294901760
    %4157 = vmatpush1.msra.mxu0 %v4156
    %v4158 = vand.u32 %v2024, 4294901760
    %4159 = vmatprep.subr.mxu0 %v4158
    %v4160 = vand.u32 %v2023, 4294901760
    %4161 = vmatpush1.msra.mxu0 %v4160
    %v4162 = vand.u32 %v2026, 4294901760
    %4163 = vmatprep.subr.mxu0 %v4162
    %v4164 = vand.u32 %v2025, 4294901760
    %4165 = vmatpush1.msra.mxu0 %v4164
    %v4166 = vand.u32 %v2028, 4294901760
    %4167 = vmatprep.subr.mxu0 %v4166
    %v4168 = vand.u32 %v2027, 4294901760
    %4169 = vmatpush1.msra.mxu0 %v4168
    %v4170 = vand.u32 %v2030, 4294901760
    %4171 = vmatprep.subr.mxu0 %v4170
    %v4172 = vand.u32 %v2029, 4294901760
    %4173 = vmatpush1.msra.mxu0 %v4172
    %v4174 = vand.u32 %v2032, 4294901760
    %4175 = vmatprep.subr.mxu0 %v4174
    %v4176 = vand.u32 %v2031, 4294901760
    %4177 = vmatpush1.msra.mxu0 %v4176
    %v4178 = vand.u32 %v2034, 4294901760
    %4179 = vmatprep.subr.mxu0 %v4178
    %v4180 = vand.u32 %v2033, 4294901760
    %4181 = vmatpush1.msra.mxu0 %v4180
    %v4182 = vand.u32 %v2036, 4294901760
    %4183 = vmatprep.subr.mxu0 %v4182
    %v4184 = vand.u32 %v2035, 4294901760
    %4185 = vmatpush1.msra.mxu0 %v4184
    %v4186 = vand.u32 %v2038, 4294901760
    %4187 = vmatprep.subr.mxu0 %v4186
    %v4188 = vand.u32 %v2037, 4294901760
    %4189 = vmatpush1.msra.mxu0 %v4188
    %v4190 = vand.u32 %v2040, 4294901760
    %4191 = vmatprep.subr.mxu0 %v4190
    %v4192 = vand.u32 %v2039, 4294901760
    %4193 = vmatpush1.msra.mxu0 %v4192
    %v4194 = vand.u32 %v2042, 4294901760
    %4195 = vmatprep.subr.mxu0 %v4194
    %v4196 = vand.u32 %v2041, 4294901760
    %4197 = vmatpush1.msra.mxu0 %v4196
    %v4198 = vand.u32 %v2044, 4294901760
    %4199 = vmatprep.subr.mxu0 %v4198
    %v4200 = vand.u32 %v2043, 4294901760
    %4201 = vmatpush1.msra.mxu0 %v4200
    %v4202 = vand.u32 %v2046, 4294901760
    %4203 = vmatprep.subr.mxu0 %v4202
    %v4204 = vand.u32 %v2045, 4294901760
    %4205 = vmatpush1.msra.mxu0 %v4204
    %v4206 = vand.u32 %v2048, 4294901760
    %4207 = vmatprep.subr.mxu0 %v4206
    %v4208 = vand.u32 %v2047, 4294901760
    %4209 = vmatpush1.msra.mxu0 %v4208
    %v4210 = vand.u32 %v2050, 4294901760
    %4211 = vmatprep.subr.mxu0 %v4210
    %v4212 = vand.u32 %v2049, 4294901760
    %4213 = vmatpush1.msra.mxu0 %v4212
    %v4214 = vand.u32 %v2052, 4294901760
    %4215 = vmatprep.subr.mxu0 %v4214
    %v4216 = vand.u32 %v2051, 4294901760
    %4217 = vmatpush1.msra.mxu0 %v4216
    %v4218 = vand.u32 %v2054, 4294901760
    %4219 = vmatprep.subr.mxu0 %v4218
    %v4220 = vand.u32 %v2053, 4294901760
    %4221 = vmatpush1.msra.mxu0 %v4220
    %v4222 = vand.u32 %v2056, 4294901760
    %4223 = vmatprep.subr.mxu0 %v4222
    %v4224 = vand.u32 %v2055, 4294901760
    %4225 = vmatpush1.msra.mxu0 %v4224
    %v4226 = vand.u32 %v2058, 4294901760
    %4227 = vmatprep.subr.mxu0 %v4226
    %v4228 = vand.u32 %v2057, 4294901760
    %4229 = vmatpush1.msra.mxu0 %v4228
    %v4230 = vand.u32 %v2060, 4294901760
    %4231 = vmatprep.subr.mxu0 %v4230
    %v4232 = vand.u32 %v2059, 4294901760
    %4233 = vmatpush1.msra.mxu0 %v4232
    %v4234 = vand.u32 %v2062, 4294901760
    %4235 = vmatprep.subr.mxu0 %v4234
    %v4236 = vand.u32 %v2061, 4294901760
    %4237 = vmatpush1.msra.mxu0 %v4236
    %v4238 = vand.u32 %v2080, 4294901760
    %v4239 = vsub.f32 %v2080, %v4238
    %v4240 = vand.u32 %v4239, 4294901760
    %4241 = vmatprep.mubr.f32.mxu0 %v4240
    %v4242 = vand.u32 %v2078, 4294901760
    %v4243 = vsub.f32 %v2078, %v4242
    %v4244 = vand.u32 %v4243, 4294901760
    %4245 = vmatmul.mubr.f32.gmra.mrb[0].mxu0 %v4244
    %v4246 = vpop.f32.mrb[0].mxu0
    %v4247 = vadd.f32 %v4106, %v4246
    %v4248 = vpop.f32.mrb[0].mxu0
    %v4249 = vadd.f32 %v4108, %v4248
    %4250 = vdwg.mxu0
    %v4251 = vand.u32 %v2000, 4294901760
    %v4252 = vsub.f32 %v2000, %v4251
    %v4253 = vand.u32 %v4252, 4294901760
    %4254 = vmatprep.subr.mxu0 %v4253
    %v4255 = vand.u32 %v1999, 4294901760
    %v4256 = vsub.f32 %v1999, %v4255
    %v4257 = vand.u32 %v4256, 4294901760
    %4258 = vmatpush1.msra.mxu0 %v4257
    %v4259 = vand.u32 %v2002, 4294901760
    %v4260 = vsub.f32 %v2002, %v4259
    %v4261 = vand.u32 %v4260, 4294901760
    %4262 = vmatprep.subr.mxu0 %v4261
    %v4263 = vand.u32 %v2001, 4294901760
    %v4264 = vsub.f32 %v2001, %v4263
    %v4265 = vand.u32 %v4264, 4294901760
    %4266 = vmatpush1.msra.mxu0 %v4265
    %v4267 = vand.u32 %v2004, 4294901760
    %v4268 = vsub.f32 %v2004, %v4267
    %v4269 = vand.u32 %v4268, 4294901760
    %4270 = vmatprep.subr.mxu0 %v4269
    %v4271 = vand.u32 %v2003, 4294901760
    %v4272 = vsub.f32 %v2003, %v4271
    %v4273 = vand.u32 %v4272, 4294901760
    %4274 = vmatpush1.msra.mxu0 %v4273
    %v4275 = vand.u32 %v2006, 4294901760
    %v4276 = vsub.f32 %v2006, %v4275
    %v4277 = vand.u32 %v4276, 4294901760
    %4278 = vmatprep.subr.mxu0 %v4277
    %v4279 = vand.u32 %v2005, 4294901760
    %v4280 = vsub.f32 %v2005, %v4279
    %v4281 = vand.u32 %v4280, 4294901760
    %4282 = vmatpush1.msra.mxu0 %v4281
    %v4283 = vand.u32 %v2008, 4294901760
    %v4284 = vsub.f32 %v2008, %v4283
    %v4285 = vand.u32 %v4284, 4294901760
    %4286 = vmatprep.subr.mxu0 %v4285
    %v4287 = vand.u32 %v2007, 4294901760
    %v4288 = vsub.f32 %v2007, %v4287
    %v4289 = vand.u32 %v4288, 4294901760
    %4290 = vmatpush1.msra.mxu0 %v4289
    %v4291 = vand.u32 %v2010, 4294901760
    %v4292 = vsub.f32 %v2010, %v4291
    %v4293 = vand.u32 %v4292, 4294901760
    %4294 = vmatprep.subr.mxu0 %v4293
    %v4295 = vand.u32 %v2009, 4294901760
    %v4296 = vsub.f32 %v2009, %v4295
    %v4297 = vand.u32 %v4296, 4294901760
    %4298 = vmatpush1.msra.mxu0 %v4297
    %v4299 = vand.u32 %v2012, 4294901760
    %v4300 = vsub.f32 %v2012, %v4299
    %v4301 = vand.u32 %v4300, 4294901760
    %4302 = vmatprep.subr.mxu0 %v4301
    %v4303 = vand.u32 %v2011, 4294901760
    %v4304 = vsub.f32 %v2011, %v4303
    %v4305 = vand.u32 %v4304, 4294901760
    %4306 = vmatpush1.msra.mxu0 %v4305
    %v4307 = vand.u32 %v2014, 4294901760
    %v4308 = vsub.f32 %v2014, %v4307
    %v4309 = vand.u32 %v4308, 4294901760
    %4310 = vmatprep.subr.mxu0 %v4309
    %v4311 = vand.u32 %v2013, 4294901760
    %v4312 = vsub.f32 %v2013, %v4311
    %v4313 = vand.u32 %v4312, 4294901760
    %4314 = vmatpush1.msra.mxu0 %v4313
    %v4315 = vand.u32 %v2016, 4294901760
    %v4316 = vsub.f32 %v2016, %v4315
    %v4317 = vand.u32 %v4316, 4294901760
    %4318 = vmatprep.subr.mxu0 %v4317
    %v4319 = vand.u32 %v2015, 4294901760
    %v4320 = vsub.f32 %v2015, %v4319
    %v4321 = vand.u32 %v4320, 4294901760
    %4322 = vmatpush1.msra.mxu0 %v4321
    %v4323 = vand.u32 %v2018, 4294901760
    %v4324 = vsub.f32 %v2018, %v4323
    %v4325 = vand.u32 %v4324, 4294901760
    %4326 = vmatprep.subr.mxu0 %v4325
    %v4327 = vand.u32 %v2017, 4294901760
    %v4328 = vsub.f32 %v2017, %v4327
    %v4329 = vand.u32 %v4328, 4294901760
    %4330 = vmatpush1.msra.mxu0 %v4329
    %v4331 = vand.u32 %v2020, 4294901760
    %v4332 = vsub.f32 %v2020, %v4331
    %v4333 = vand.u32 %v4332, 4294901760
    %4334 = vmatprep.subr.mxu0 %v4333
    %v4335 = vand.u32 %v2019, 4294901760
    %v4336 = vsub.f32 %v2019, %v4335
    %v4337 = vand.u32 %v4336, 4294901760
    %4338 = vmatpush1.msra.mxu0 %v4337
    %v4339 = vand.u32 %v2022, 4294901760
    %v4340 = vsub.f32 %v2022, %v4339
    %v4341 = vand.u32 %v4340, 4294901760
    %4342 = vmatprep.subr.mxu0 %v4341
    %v4343 = vand.u32 %v2021, 4294901760
    %v4344 = vsub.f32 %v2021, %v4343
    %v4345 = vand.u32 %v4344, 4294901760
    %4346 = vmatpush1.msra.mxu0 %v4345
    %v4347 = vand.u32 %v2024, 4294901760
    %v4348 = vsub.f32 %v2024, %v4347
    %v4349 = vand.u32 %v4348, 4294901760
    %4350 = vmatprep.subr.mxu0 %v4349
    %v4351 = vand.u32 %v2023, 4294901760
    %v4352 = vsub.f32 %v2023, %v4351
    %v4353 = vand.u32 %v4352, 4294901760
    %4354 = vmatpush1.msra.mxu0 %v4353
    %v4355 = vand.u32 %v2026, 4294901760
    %v4356 = vsub.f32 %v2026, %v4355
    %v4357 = vand.u32 %v4356, 4294901760
    %4358 = vmatprep.subr.mxu0 %v4357
    %v4359 = vand.u32 %v2025, 4294901760
    %v4360 = vsub.f32 %v2025, %v4359
    %v4361 = vand.u32 %v4360, 4294901760
    %4362 = vmatpush1.msra.mxu0 %v4361
    %v4363 = vand.u32 %v2028, 4294901760
    %v4364 = vsub.f32 %v2028, %v4363
    %v4365 = vand.u32 %v4364, 4294901760
    %4366 = vmatprep.subr.mxu0 %v4365
    %v4367 = vand.u32 %v2027, 4294901760
    %v4368 = vsub.f32 %v2027, %v4367
    %v4369 = vand.u32 %v4368, 4294901760
    %4370 = vmatpush1.msra.mxu0 %v4369
    %v4371 = vand.u32 %v2030, 4294901760
    %v4372 = vsub.f32 %v2030, %v4371
    %v4373 = vand.u32 %v4372, 4294901760
    %4374 = vmatprep.subr.mxu0 %v4373
    %v4375 = vand.u32 %v2029, 4294901760
    %v4376 = vsub.f32 %v2029, %v4375
    %v4377 = vand.u32 %v4376, 4294901760
    %4378 = vmatpush1.msra.mxu0 %v4377
    %v4379 = vand.u32 %v2032, 4294901760
    %v4380 = vsub.f32 %v2032, %v4379
    %v4381 = vand.u32 %v4380, 4294901760
    %4382 = vmatprep.subr.mxu0 %v4381
    %v4383 = vand.u32 %v2031, 4294901760
    %v4384 = vsub.f32 %v2031, %v4383
    %v4385 = vand.u32 %v4384, 4294901760
    %4386 = vmatpush1.msra.mxu0 %v4385
    %v4387 = vand.u32 %v2034, 4294901760
    %v4388 = vsub.f32 %v2034, %v4387
    %v4389 = vand.u32 %v4388, 4294901760
    %4390 = vmatprep.subr.mxu0 %v4389
    %v4391 = vand.u32 %v2033, 4294901760
    %v4392 = vsub.f32 %v2033, %v4391
    %v4393 = vand.u32 %v4392, 4294901760
    %4394 = vmatpush1.msra.mxu0 %v4393
    %v4395 = vand.u32 %v2036, 4294901760
    %v4396 = vsub.f32 %v2036, %v4395
    %v4397 = vand.u32 %v4396, 4294901760
    %4398 = vmatprep.subr.mxu0 %v4397
    %v4399 = vand.u32 %v2035, 4294901760
    %v4400 = vsub.f32 %v2035, %v4399
    %v4401 = vand.u32 %v4400, 4294901760
    %4402 = vmatpush1.msra.mxu0 %v4401
    %v4403 = vand.u32 %v2038, 4294901760
    %v4404 = vsub.f32 %v2038, %v4403
    %v4405 = vand.u32 %v4404, 4294901760
    %4406 = vmatprep.subr.mxu0 %v4405
    %v4407 = vand.u32 %v2037, 4294901760
    %v4408 = vsub.f32 %v2037, %v4407
    %v4409 = vand.u32 %v4408, 4294901760
    %4410 = vmatpush1.msra.mxu0 %v4409
    %v4411 = vand.u32 %v2040, 4294901760
    %v4412 = vsub.f32 %v2040, %v4411
    %v4413 = vand.u32 %v4412, 4294901760
    %4414 = vmatprep.subr.mxu0 %v4413
    %v4415 = vand.u32 %v2039, 4294901760
    %v4416 = vsub.f32 %v2039, %v4415
    %v4417 = vand.u32 %v4416, 4294901760
    %4418 = vmatpush1.msra.mxu0 %v4417
    %v4419 = vand.u32 %v2042, 4294901760
    %v4420 = vsub.f32 %v2042, %v4419
    %v4421 = vand.u32 %v4420, 4294901760
    %4422 = vmatprep.subr.mxu0 %v4421
    %v4423 = vand.u32 %v2041, 4294901760
    %v4424 = vsub.f32 %v2041, %v4423
    %v4425 = vand.u32 %v4424, 4294901760
    %4426 = vmatpush1.msra.mxu0 %v4425
    %v4427 = vand.u32 %v2044, 4294901760
    %v4428 = vsub.f32 %v2044, %v4427
    %v4429 = vand.u32 %v4428, 4294901760
    %4430 = vmatprep.subr.mxu0 %v4429
    %v4431 = vand.u32 %v2043, 4294901760
    %v4432 = vsub.f32 %v2043, %v4431
    %v4433 = vand.u32 %v4432, 4294901760
    %4434 = vmatpush1.msra.mxu0 %v4433
    %v4435 = vand.u32 %v2046, 4294901760
    %v4436 = vsub.f32 %v2046, %v4435
    %v4437 = vand.u32 %v4436, 4294901760
    %4438 = vmatprep.subr.mxu0 %v4437
    %v4439 = vand.u32 %v2045, 4294901760
    %v4440 = vsub.f32 %v2045, %v4439
    %v4441 = vand.u32 %v4440, 4294901760
    %4442 = vmatpush1.msra.mxu0 %v4441
    %v4443 = vand.u32 %v2048, 4294901760
    %v4444 = vsub.f32 %v2048, %v4443
    %v4445 = vand.u32 %v4444, 4294901760
    %4446 = vmatprep.subr.mxu0 %v4445
    %v4447 = vand.u32 %v2047, 4294901760
    %v4448 = vsub.f32 %v2047, %v4447
    %v4449 = vand.u32 %v4448, 4294901760
    %4450 = vmatpush1.msra.mxu0 %v4449
    %v4451 = vand.u32 %v2050, 4294901760
    %v4452 = vsub.f32 %v2050, %v4451
    %v4453 = vand.u32 %v4452, 4294901760
    %4454 = vmatprep.subr.mxu0 %v4453
    %v4455 = vand.u32 %v2049, 4294901760
    %v4456 = vsub.f32 %v2049, %v4455
    %v4457 = vand.u32 %v4456, 4294901760
    %4458 = vmatpush1.msra.mxu0 %v4457
    %v4459 = vand.u32 %v2052, 4294901760
    %v4460 = vsub.f32 %v2052, %v4459
    %v4461 = vand.u32 %v4460, 4294901760
    %4462 = vmatprep.subr.mxu0 %v4461
    %v4463 = vand.u32 %v2051, 4294901760
    %v4464 = vsub.f32 %v2051, %v4463
    %v4465 = vand.u32 %v4464, 4294901760
    %4466 = vmatpush1.msra.mxu0 %v4465
    %v4467 = vand.u32 %v2054, 4294901760
    %v4468 = vsub.f32 %v2054, %v4467
    %v4469 = vand.u32 %v4468, 4294901760
    %4470 = vmatprep.subr.mxu0 %v4469
    %v4471 = vand.u32 %v2053, 4294901760
    %v4472 = vsub.f32 %v2053, %v4471
    %v4473 = vand.u32 %v4472, 4294901760
    %4474 = vmatpush1.msra.mxu0 %v4473
    %v4475 = vand.u32 %v2056, 4294901760
    %v4476 = vsub.f32 %v2056, %v4475
    %v4477 = vand.u32 %v4476, 4294901760
    %4478 = vmatprep.subr.mxu0 %v4477
    %v4479 = vand.u32 %v2055, 4294901760
    %v4480 = vsub.f32 %v2055, %v4479
    %v4481 = vand.u32 %v4480, 4294901760
    %4482 = vmatpush1.msra.mxu0 %v4481
    %v4483 = vand.u32 %v2058, 4294901760
    %v4484 = vsub.f32 %v2058, %v4483
    %v4485 = vand.u32 %v4484, 4294901760
    %4486 = vmatprep.subr.mxu0 %v4485
    %v4487 = vand.u32 %v2057, 4294901760
    %v4488 = vsub.f32 %v2057, %v4487
    %v4489 = vand.u32 %v4488, 4294901760
    %4490 = vmatpush1.msra.mxu0 %v4489
    %v4491 = vand.u32 %v2060, 4294901760
    %v4492 = vsub.f32 %v2060, %v4491
    %v4493 = vand.u32 %v4492, 4294901760
    %4494 = vmatprep.subr.mxu0 %v4493
    %v4495 = vand.u32 %v2059, 4294901760
    %v4496 = vsub.f32 %v2059, %v4495
    %v4497 = vand.u32 %v4496, 4294901760
    %4498 = vmatpush1.msra.mxu0 %v4497
    %v4499 = vand.u32 %v2062, 4294901760
    %v4500 = vsub.f32 %v2062, %v4499
    %v4501 = vand.u32 %v4500, 4294901760
    %4502 = vmatprep.subr.mxu0 %v4501
    %v4503 = vand.u32 %v2061, 4294901760
    %v4504 = vsub.f32 %v2061, %v4503
    %v4505 = vand.u32 %v4504, 4294901760
    %4506 = vmatpush1.msra.mxu0 %v4505
    %v4507 = vand.u32 %v2080, 4294901760
    %4508 = vmatprep.mubr.f32.mxu0 %v4507
    %v4509 = vand.u32 %v2078, 4294901760
    %4510 = vmatmul.mubr.f32.gmra.mrb[0].mxu0 %v4509
    %v4511 = vpop.f32.mrb[0].mxu0
    %v4512 = vadd.f32 %v4247, %v4511
    %v4513 = vpop.f32.mrb[0].mxu0
    %v4514 = vadd.f32 %v4249, %v4513
    %4515 = vdwg.mxu0
    %v4516 = vand.u32 %v2000, 4294901760
    %4517 = vmatprep.subr.mxu0 %v4516
    %v4518 = vand.u32 %v1999, 4294901760
    %4519 = vmatpush1.msra.mxu0 %v4518
    %v4520 = vand.u32 %v2002, 4294901760
    %4521 = vmatprep.subr.mxu0 %v4520
    %v4522 = vand.u32 %v2001, 4294901760
    %4523 = vmatpush1.msra.mxu0 %v4522
    %v4524 = vand.u32 %v2004, 4294901760
    %4525 = vmatprep.subr.mxu0 %v4524
    %v4526 = vand.u32 %v2003, 4294901760
    %4527 = vmatpush1.msra.mxu0 %v4526
    %v4528 = vand.u32 %v2006, 4294901760
    %4529 = vmatprep.subr.mxu0 %v4528
    %v4530 = vand.u32 %v2005, 4294901760
    %4531 = vmatpush1.msra.mxu0 %v4530
    %v4532 = vand.u32 %v2008, 4294901760
    %4533 = vmatprep.subr.mxu0 %v4532
    %v4534 = vand.u32 %v2007, 4294901760
    %4535 = vmatpush1.msra.mxu0 %v4534
    %v4536 = vand.u32 %v2010, 4294901760
    %4537 = vmatprep.subr.mxu0 %v4536
    %v4538 = vand.u32 %v2009, 4294901760
    %4539 = vmatpush1.msra.mxu0 %v4538
    %v4540 = vand.u32 %v2012, 4294901760
    %4541 = vmatprep.subr.mxu0 %v4540
    %v4542 = vand.u32 %v2011, 4294901760
    %4543 = vmatpush1.msra.mxu0 %v4542
    %v4544 = vand.u32 %v2014, 4294901760
    %4545 = vmatprep.subr.mxu0 %v4544
    %v4546 = vand.u32 %v2013, 4294901760
    %4547 = vmatpush1.msra.mxu0 %v4546
    %v4548 = vand.u32 %v2016, 4294901760
    %4549 = vmatprep.subr.mxu0 %v4548
    %v4550 = vand.u32 %v2015, 4294901760
    %4551 = vmatpush1.msra.mxu0 %v4550
    %v4552 = vand.u32 %v2018, 4294901760
    %4553 = vmatprep.subr.mxu0 %v4552
    %v4554 = vand.u32 %v2017, 4294901760
    %4555 = vmatpush1.msra.mxu0 %v4554
    %v4556 = vand.u32 %v2020, 4294901760
    %4557 = vmatprep.subr.mxu0 %v4556
    %v4558 = vand.u32 %v2019, 4294901760
    %4559 = vmatpush1.msra.mxu0 %v4558
    %v4560 = vand.u32 %v2022, 4294901760
    %4561 = vmatprep.subr.mxu0 %v4560
    %v4562 = vand.u32 %v2021, 4294901760
    %4563 = vmatpush1.msra.mxu0 %v4562
    %v4564 = vand.u32 %v2024, 4294901760
    %4565 = vmatprep.subr.mxu0 %v4564
    %v4566 = vand.u32 %v2023, 4294901760
    %4567 = vmatpush1.msra.mxu0 %v4566
    %v4568 = vand.u32 %v2026, 4294901760
    %4569 = vmatprep.subr.mxu0 %v4568
    %v4570 = vand.u32 %v2025, 4294901760
    %4571 = vmatpush1.msra.mxu0 %v4570
    %v4572 = vand.u32 %v2028, 4294901760
    %4573 = vmatprep.subr.mxu0 %v4572
    %v4574 = vand.u32 %v2027, 4294901760
    %4575 = vmatpush1.msra.mxu0 %v4574
    %v4576 = vand.u32 %v2030, 4294901760
    %4577 = vmatprep.subr.mxu0 %v4576
    %v4578 = vand.u32 %v2029, 4294901760
    %4579 = vmatpush1.msra.mxu0 %v4578
    %v4580 = vand.u32 %v2032, 4294901760
    %4581 = vmatprep.subr.mxu0 %v4580
    %v4582 = vand.u32 %v2031, 4294901760
    %4583 = vmatpush1.msra.mxu0 %v4582
    %v4584 = vand.u32 %v2034, 4294901760
    %4585 = vmatprep.subr.mxu0 %v4584
    %v4586 = vand.u32 %v2033, 4294901760
    %4587 = vmatpush1.msra.mxu0 %v4586
    %v4588 = vand.u32 %v2036, 4294901760
    %4589 = vmatprep.subr.mxu0 %v4588
    %v4590 = vand.u32 %v2035, 4294901760
    %4591 = vmatpush1.msra.mxu0 %v4590
    %v4592 = vand.u32 %v2038, 4294901760
    %4593 = vmatprep.subr.mxu0 %v4592
    %v4594 = vand.u32 %v2037, 4294901760
    %4595 = vmatpush1.msra.mxu0 %v4594
    %v4596 = vand.u32 %v2040, 4294901760
    %4597 = vmatprep.subr.mxu0 %v4596
    %v4598 = vand.u32 %v2039, 4294901760
    %4599 = vmatpush1.msra.mxu0 %v4598
    %v4600 = vand.u32 %v2042, 4294901760
    %4601 = vmatprep.subr.mxu0 %v4600
    %v4602 = vand.u32 %v2041, 4294901760
    %4603 = vmatpush1.msra.mxu0 %v4602
    %v4604 = vand.u32 %v2044, 4294901760
    %4605 = vmatprep.subr.mxu0 %v4604
    %v4606 = vand.u32 %v2043, 4294901760
    %4607 = vmatpush1.msra.mxu0 %v4606
    %v4608 = vand.u32 %v2046, 4294901760
    %4609 = vmatprep.subr.mxu0 %v4608
    %v4610 = vand.u32 %v2045, 4294901760
    %4611 = vmatpush1.msra.mxu0 %v4610
    %v4612 = vand.u32 %v2048, 4294901760
    %4613 = vmatprep.subr.mxu0 %v4612
    %v4614 = vand.u32 %v2047, 4294901760
    %4615 = vmatpush1.msra.mxu0 %v4614
    %v4616 = vand.u32 %v2050, 4294901760
    %4617 = vmatprep.subr.mxu0 %v4616
    %v4618 = vand.u32 %v2049, 4294901760
    %4619 = vmatpush1.msra.mxu0 %v4618
    %v4620 = vand.u32 %v2052, 4294901760
    %4621 = vmatprep.subr.mxu0 %v4620
    %v4622 = vand.u32 %v2051, 4294901760
    %4623 = vmatpush1.msra.mxu0 %v4622
    %v4624 = vand.u32 %v2054, 4294901760
    %4625 = vmatprep.subr.mxu0 %v4624
    %v4626 = vand.u32 %v2053, 4294901760
    %4627 = vmatpush1.msra.mxu0 %v4626
    %v4628 = vand.u32 %v2056, 4294901760
    %4629 = vmatprep.subr.mxu0 %v4628
    %v4630 = vand.u32 %v2055, 4294901760
    %4631 = vmatpush1.msra.mxu0 %v4630
    %v4632 = vand.u32 %v2058, 4294901760
    %4633 = vmatprep.subr.mxu0 %v4632
    %v4634 = vand.u32 %v2057, 4294901760
    %4635 = vmatpush1.msra.mxu0 %v4634
    %v4636 = vand.u32 %v2060, 4294901760
    %4637 = vmatprep.subr.mxu0 %v4636
    %v4638 = vand.u32 %v2059, 4294901760
    %4639 = vmatpush1.msra.mxu0 %v4638
    %v4640 = vand.u32 %v2062, 4294901760
    %4641 = vmatprep.subr.mxu0 %v4640
    %v4642 = vand.u32 %v2061, 4294901760
    %4643 = vmatpush1.msra.mxu0 %v4642
    %v4644 = vand.u32 %v2080, 4294901760
    %4645 = vmatprep.mubr.f32.mxu0 %v4644
    %v4646 = vand.u32 %v2078, 4294901760
    %4647 = vmatmul.mubr.f32.gmra.mrb[0].mxu0 %v4646
    %v4648 = vpop.f32.mrb[0].mxu0
    %v4649 = vadd.f32 %v4512, %v4648
    %v4650 = vpop.f32.mrb[0].mxu0
    %v4651 = vadd.f32 %v4514, %v4650
    %4652 = vdwg.mxu0
    %v4653 = vxor.u32 %v4649, 2147483648
    %v4654 = vxor.u32 %v4651, 2147483648
    %v4655 = vmul.f32 %v4653, 1.442695
    %v4656 = vpow.pop %v4655
    %v4657 = vmul.f32 %v4654, 1.442695
    %v4658 = vpow.pop %v4657
    %v4659 = vadd.f32 %v4656, 1.0
    %v4660 = vadd.f32 %v4658, 1.0
    %v4661 = vrcp.pop %v4659
    %v4662 = vmul.f32 1.0, %v4661
    %v4663 = vrcp.pop %v4660
    %v4664 = vmul.f32 1.0, %v4663
    %v4665 = vld [vmem:[#allocation4] sm:$0xff]
    %v4666 = vld [vmem:[#allocation4 + $0x8] sm:$0xff]
    %v4667 = vld [vmem:[#allocation4 + $0x10] sm:$0xff]
    %v4668 = vld [vmem:[#allocation4 + $0x18] sm:$0xff]
    %v4669 = vld [vmem:[#allocation4 + $0x20] sm:$0xff]
    %v4670 = vld [vmem:[#allocation4 + $0x28] sm:$0xff]
    %v4671 = vld [vmem:[#allocation4 + $0x30] sm:$0xff]
    %v4672 = vld [vmem:[#allocation4 + $0x38] sm:$0xff]
    %v4673 = vld [vmem:[#allocation4 + $0x40] sm:$0xff]
    %v4674 = vld [vmem:[#allocation4 + $0x48] sm:$0xff]
    %v4675 = vld [vmem:[#allocation4 + $0x50] sm:$0xff]
    %v4676 = vld [vmem:[#allocation4 + $0x58] sm:$0xff]
    %v4677 = vld [vmem:[#allocation4 + $0x60] sm:$0xff]
    %v4678 = vld [vmem:[#allocation4 + $0x68] sm:$0xff]
    %v4679 = vld [vmem:[#allocation4 + $0x70] sm:$0xff]
    %v4680 = vld [vmem:[#allocation4 + $0x78] sm:$0xff]
    %v4681 = vmul.f32 %v4665, %v1630
    %v4682 = vmul.f32 %v4666, %v1630
    %v4683 = vmul.f32 %v4667, %v1635
    %v4684 = vmul.f32 %v4668, %v1635
    %v4685 = vmul.f32 %v4669, %v1640
    %v4686 = vmul.f32 %v4670, %v1640
    %v4687 = vmul.f32 %v4671, %v1645
    %v4688 = vmul.f32 %v4672, %v1645
    %v4689 = vmul.f32 %v4673, %v1650
    %v4690 = vmul.f32 %v4674, %v1650
    %v4691 = vmul.f32 %v4675, %v1655
    %v4692 = vmul.f32 %v4676, %v1655
    %v4693 = vmul.f32 %v4677, %v1660
    %v4694 = vmul.f32 %v4678, %v1660
    %v4695 = vmul.f32 %v4679, %v1665
    %v4696 = vmul.f32 %v4680, %v1665
    %v4697 = vlaneseq
    %v4698 = vshrl.u32 %v4697, 7
    %v4699 = vsub.s32 0, %v4698
    %v4700 = vrot.slane %v4662, %v4699
    %v4701 = vlaneseq
    %v4702 = vshrl.u32 %v4701, 7
    %v4703 = vsub.s32 0, %v4702
    %v4704 = vrot.slane %v4664, %v4703
    %v4705 = vmul.f32 %v4681, %v4700
    %v4706 = vmul.f32 %v4682, %v4704
    %v4707 = vmul.f32 %v4683, %v4700
    %v4708 = vmul.f32 %v4684, %v4704
    %v4709 = vmul.f32 %v4685, %v4700
    %v4710 = vmul.f32 %v4686, %v4704
    %v4711 = vmul.f32 %v4687, %v4700
    %v4712 = vmul.f32 %v4688, %v4704
    %v4713 = vmul.f32 %v4689, %v4700
    %v4714 = vmul.f32 %v4690, %v4704
    %v4715 = vmul.f32 %v4691, %v4700
    %v4716 = vmul.f32 %v4692, %v4704
    %v4717 = vmul.f32 %v4693, %v4700
    %v4718 = vmul.f32 %v4694, %v4704
    %v4719 = vmul.f32 %v4695, %v4700
    %v4720 = vmul.f32 %v4696, %v4704
    %4721 = vst [vmem:[#allocation9] sm:$0xff] %v4705
    %4722 = vst [vmem:[#allocation9 + $0x8] sm:$0xff] %v4706
    %4723 = vst [vmem:[#allocation9 + $0x10] sm:$0xff] %v4707
    %4724 = vst [vmem:[#allocation9 + $0x18] sm:$0xff] %v4708
    %4725 = vst [vmem:[#allocation9 + $0x20] sm:$0xff] %v4709
    %4726 = vst [vmem:[#allocation9 + $0x28] sm:$0xff] %v4710
    %4727 = vst [vmem:[#allocation9 + $0x30] sm:$0xff] %v4711
    %4728 = vst [vmem:[#allocation9 + $0x38] sm:$0xff] %v4712
    %4729 = vst [vmem:[#allocation9 + $0x40] sm:$0xff] %v4713
    %4730 = vst [vmem:[#allocation9 + $0x48] sm:$0xff] %v4714
    %4731 = vst [vmem:[#allocation9 + $0x50] sm:$0xff] %v4715
    %4732 = vst [vmem:[#allocation9 + $0x58] sm:$0xff] %v4716
    %4733 = vst [vmem:[#allocation9 + $0x60] sm:$0xff] %v4717
    %4734 = vst [vmem:[#allocation9 + $0x68] sm:$0xff] %v4718
    %4735 = vst [vmem:[#allocation9 + $0x70] sm:$0xff] %v4719
    %4736 = vst [vmem:[#allocation9 + $0x78] sm:$0xff] %v4720
    %v4737 = vld [vmem:[%s136] sm:$0xff]
    %v4738 = vld [vmem:[%s136 + $0x8] sm:$0xff]
    %v4739 = vld [vmem:[%s136 + $0x10] sm:$0xff]
    %v4740 = vld [vmem:[%s136 + $0x18] sm:$0xff]
    %v4741 = vld [vmem:[%s136 + $0x20] sm:$0xff]
    %v4742 = vld [vmem:[%s136 + $0x28] sm:$0xff]
    %v4743 = vld [vmem:[%s136 + $0x30] sm:$0xff]
    %v4744 = vld [vmem:[%s136 + $0x38] sm:$0xff]
    %v4745 = vld [vmem:[%s136 + $0x40] sm:$0xff]
    %v4746 = vld [vmem:[%s136 + $0x48] sm:$0xff]
    %v4747 = vld [vmem:[%s136 + $0x50] sm:$0xff]
    %v4748 = vld [vmem:[%s136 + $0x58] sm:$0xff]
    %v4749 = vld [vmem:[%s136 + $0x60] sm:$0xff]
    %v4750 = vld [vmem:[%s136 + $0x68] sm:$0xff]
    %v4751 = vld [vmem:[%s136 + $0x70] sm:$0xff]
    %v4752 = vld [vmem:[%s136 + $0x78] sm:$0xff]
    %v4753 = vmul.f32 %v4737, %v1796
    %v4754 = vmul.f32 %v4738, %v1796
    %v4755 = vmul.f32 %v4739, %v1800
    %v4756 = vmul.f32 %v4740, %v1800
    %v4757 = vmul.f32 %v4741, %v1804
    %v4758 = vmul.f32 %v4742, %v1804
    %v4759 = vmul.f32 %v4743, %v1808
    %v4760 = vmul.f32 %v4744, %v1808
    %v4761 = vmul.f32 %v4745, %v1812
    %v4762 = vmul.f32 %v4746, %v1812
    %v4763 = vmul.f32 %v4747, %v1816
    %v4764 = vmul.f32 %v4748, %v1816
    %v4765 = vmul.f32 %v4749, %v1820
    %v4766 = vmul.f32 %v4750, %v1820
    %v4767 = vmul.f32 %v4751, %v1824
    %v4768 = vmul.f32 %v4752, %v1824
    %v4769 = vlaneseq
    %v4770 = vshrl.u32 %v4769, 7
    %v4771 = vsub.s32 1, %v4770
    %v4772 = vrot.slane %v4662, %v4771
    %v4773 = vlaneseq
    %v4774 = vshrl.u32 %v4773, 7
    %v4775 = vsub.s32 1, %v4774
    %v4776 = vrot.slane %v4664, %v4775
    %v4777 = vmul.f32 %v4753, %v4772
    %v4778 = vmul.f32 %v4754, %v4776
    %v4779 = vmul.f32 %v4755, %v4772
    %v4780 = vmul.f32 %v4756, %v4776
    %v4781 = vmul.f32 %v4757, %v4772
    %v4782 = vmul.f32 %v4758, %v4776
    %v4783 = vmul.f32 %v4759, %v4772
    %v4784 = vmul.f32 %v4760, %v4776
    %v4785 = vmul.f32 %v4761, %v4772
    %v4786 = vmul.f32 %v4762, %v4776
    %v4787 = vmul.f32 %v4763, %v4772
    %v4788 = vmul.f32 %v4764, %v4776
    %v4789 = vmul.f32 %v4765, %v4772
    %v4790 = vmul.f32 %v4766, %v4776
    %v4791 = vmul.f32 %v4767, %v4772
    %v4792 = vmul.f32 %v4768, %v4776
    %s4793 = scalar_lea.vmem [#allocation9], 128
    %4794 = vst [vmem:[%s4793] sm:$0xff] %v4777
    %4795 = vst [vmem:[%s4793 + $0x8] sm:$0xff] %v4778
    %4796 = vst [vmem:[%s4793 + $0x10] sm:$0xff] %v4779
    %4797 = vst [vmem:[%s4793 + $0x18] sm:$0xff] %v4780
    %4798 = vst [vmem:[%s4793 + $0x20] sm:$0xff] %v4781
    %4799 = vst [vmem:[%s4793 + $0x28] sm:$0xff] %v4782
    %4800 = vst [vmem:[%s4793 + $0x30] sm:$0xff] %v4783
    %4801 = vst [vmem:[%s4793 + $0x38] sm:$0xff] %v4784
    %4802 = vst [vmem:[%s4793 + $0x40] sm:$0xff] %v4785
    %4803 = vst [vmem:[%s4793 + $0x48] sm:$0xff] %v4786
    %4804 = vst [vmem:[%s4793 + $0x50] sm:$0xff] %v4787
    %4805 = vst [vmem:[%s4793 + $0x58] sm:$0xff] %v4788
    %4806 = vst [vmem:[%s4793 + $0x60] sm:$0xff] %v4789
    %4807 = vst [vmem:[%s4793 + $0x68] sm:$0xff] %v4790
    %4808 = vst [vmem:[%s4793 + $0x70] sm:$0xff] %v4791
    %4809 = vst [vmem:[%s4793 + $0x78] sm:$0xff] %v4792
    // Predicated region
    $region26: #{tpu_custom_call.1} parent=1 // pred_check
      _
    $region27: #{tpu_custom_call.1} parent=1 // pred_check_branch
      %4811 = sbr.rel (0) target = $region29
    $region28: #{tpu_custom_call.1} parent=1 // pred_region
      %s4813 = ssub.s32 4096, 4096
      %4814 = vsyncadd [#allocation6], %s4813
      %s4815 = sshll.u32 [#allocation9], 4
      %s4816 = int_to_ptr.vmem [resolvable:$true] %s4815
      %4821 = dma.vmem_to_hbm [thread:$0]  %s4816, 4096, %s4, [#allocation6], 256, 256, 16
    $region29: #{tpu_custom_call.1} parent=1 // pred_fallthru
      _
    // Predicated region
    $region30: #{tpu_custom_call.1} parent=1 // pred_check
      _
    $region31: #{tpu_custom_call.1} parent=1 // pred_check_branch
      %4823 = sbr.rel (0) target = $region33
    $region32: #{tpu_custom_call.1} parent=1 // pred_region
      %4824 = dma.done [#allocation6], 4096
    $region33: #{tpu_custom_call.1} parent=1 // pred_fallthru
      _
    %4825 = vsyncpa [#allocation5], 1
    %4826 = vsyncpa [#allocation8], 1
    %4827 = vsyncpa [#allocation6], 1

</llo_original>
